<compile_context>
chip_gen: v7x
topology: tpu7x:2x2x1
jax: 0.10.0
libtpu: 0.0.40
codegen_flags: <defaults>
</compile_context>

<pallas_src>
import math
from functools import partial

import numpy as np
import jax
import jax.numpy as jnp
from jax import lax
from jax.experimental import pallas as pl
from jax.experimental.pallas import tpu as pltpu

_MXU_DTYPE = jnp.bfloat16      # matmul operand dtype (accumulation is always f32)


def _tree_sum(terms):
    """Log-depth sum of a list of same-shaped arrays."""
    terms = list(terms)
    while len(terms) > 1:
        nxt = [terms[i] + terms[i + 1] for i in range(0, len(terms) - 1, 2)]
        if len(terms) % 2:
            nxt.append(terms[-1])
        terms = nxt
    return terms[0]


def _conv_pos_mask(bins, batch_tile, ksize):
    """mask[t, i, 0] = 1 iff (i mod bins) + t - (k-1)//2 is a valid in-batch position."""
    pad = (ksize - 1) // 2
    pos = np.arange(bins)
    m = np.zeros((ksize, bins), np.float32)
    for t in range(ksize):
        src = pos + t - pad
        m[t] = ((src >= 0) & (src < bins)).astype(np.float32)
    m = np.tile(m, (1, batch_tile))                       # repeat per batch element
    return m.reshape(ksize, batch_tile * bins, 1)


def fused_forward_kernel(
        x_ref, pool_w_ref,
        m1_ref, dww_ref, dwb_ref, in1g_ref, in1b_ref,
        pww_ref, pwb_ref,
        m2_ref, cwf_ref, cwb_ref, in2g_ref, in2b_ref,
        hmask_ref, smask_ref,
        ln1g_ref, ln1b_ref, wq_ref, bq_ref, wk_ref, bk_ref,
        wv_ref, bv_ref, wo_ref, bo_ref, ln2g_ref, ln2b_ref,
        w1_ref, b1_ref, w2_ref, b2_ref,
        hw_ref, hb_ref,
        o_ref, *, heads, bins):
    f32 = jnp.float32
    M, L, C = x_ref.shape                    # M = Bt * bins tokens per grid step
    Bt = M // bins
    E = pww_ref.shape[1]
    depth = wq_ref.shape[0]

    def mm_w(a, w_bf16):                     # activation @ pre-cast bf16 weight, f32 acc
        return jnp.dot(a.astype(_MXU_DTYPE), w_bf16, preferred_element_type=f32)

    def mm_a(a, b):                          # activation @ activation
        return jnp.dot(a.astype(_MXU_DTYPE), b.astype(_MXU_DTYPE),
                       preferred_element_type=f32)

    def mm_t(a, b):                          # a @ b.T (contract last dim of both)
        return lax.dot_general(a.astype(_MXU_DTYPE), b.astype(_MXU_DTYPE),
                               (((1,), (1,)), ((), ())), preferred_element_type=f32)

    def inorm(v, g, b):                      # InstanceNorm1d: stats over bins, per batch
        c = v.shape[-1]
        v3 = v.reshape(Bt, bins, c)
        mu = jnp.mean(v3, axis=1, keepdims=True)
        var = jnp.mean((v3 - mu) ** 2, axis=1, keepdims=True)
        return ((v3 - mu) * lax.rsqrt(var + 1e-5)).reshape(M, c) * g + b

    def lnorm(v, g, b):                      # LayerNorm over the channel axis
        mu = jnp.mean(v, axis=-1, keepdims=True)
        var = jnp.mean((v - mu) ** 2, axis=-1, keepdims=True)
        return (v - mu) * lax.rsqrt(var + 1e-5) * g + b

    # ---------------- attention pool over the per-bin sequence (L) ----------------
    # TODO(synk): AttentionPool class is external; Enformer-style per-channel attention
    # pooling (x @ W logits, softmax over the sequence axis, weighted sum) is used.
    x3 = x_ref[...].astype(f32)                                          # (M, L, C)
    logits = mm_w(x3.reshape(M * L, C), pool_w_ref[...]).reshape(M, L, C)
    lmax = jnp.max(logits, axis=1, keepdims=True)
    p = jnp.exp(logits - lmax)
    den = jnp.sum(p, axis=1)                                             # (M, C)
    num = jnp.sum(p * x3, axis=1)                                        # (M, C)
    pooled = num * pl.reciprocal(den, approx=True)                       # (M, C)

    # ---------------- project: depthwise Conv1d(k=15, groups=C) over bins ----------------
    # XLU roll along the token axis + host-precomputed boundary masks (implicit zero pad).
    K1 = dww_ref.shape[0]
    pad1 = (K1 - 1) // 2
    terms = []
    for t in range(K1):
        sh = (pad1 - t) % M
        xt_roll = pooled if sh == 0 else pltpu.roll(pooled, sh, axis=0)
        terms.append(xt_roll * (dww_ref[t] * m1_ref[t]))                 # (M, C)
    y = _tree_sum(terms) + dwb_ref[...]
    y = inorm(y, in1g_ref[...], in1b_ref[...])                           # InstanceNorm1d(hidden)

    # Conv1d(hidden, embed, k=1) + ReLU     (Dropout = identity in eval)
    z = jnp.maximum(mm_w(y, pww_ref[...]) + pwb_ref[...], 0.0)           # (M, E)

    # Conv1d(embed, embed, k=9, pad=4): roll-based im2col folded into the contraction dim
    K2 = m2_ref.shape[0]
    pad2 = (K2 - 1) // 2
    cols = []
    for t in range(K2):
        sh = (pad2 - t) % M
        zt = z if sh == 0 else pltpu.roll(z, sh, axis=0)
        cols.append(zt * m2_ref[t])                                      # (M, E)
    im2col = jnp.concatenate(cols, axis=-1)                              # (M, K2*E)
    w = mm_w(im2col, cwf_ref[...]) + cwb_ref[...]                        # one MXU matmul
    w = jnp.maximum(inorm(w, in2g_ref[...], in2b_ref[...]), 0.0)         # (M, E)

    # ---------------- transformer: pre-LN, MHA (all heads at once) + ReLU FFN ----------------
    # TODO(synk): Enformer class is external; plain pre-LN transformer (depth=4, heads=8) is
    # used, Enformer-style relative positional bias omitted.
    hmask = hmask_ref[...]                    # (heads*M, E)  per-head channel selector
    smask = smask_ref[...]                    # (heads*M, M)  additive block-diag batch mask
    scale = 1.0 / math.sqrt(E // heads)

    xt = w
    for d in range(depth):                                               # static, unrolled
        h = lnorm(xt, ln1g_ref[d], ln1b_ref[d])
        hb = h.astype(_MXU_DTYPE)                                        # cast once for Q/K/V
        q = jnp.dot(hb, wq_ref[d], preferred_element_type=f32) + bq_ref[d]
        k = jnp.dot(hb, wk_ref[d], preferred_element_type=f32) + bk_ref[d]
        v = jnp.dot(hb, wv_ref[d], preferred_element_type=f32) + bv_ref[d]
        # all heads in one shot: row block hh of qbd only keeps channels of head hh
        qbd = jnp.concatenate([q] * heads, axis=0) * hmask               # (heads*M, E)
        s = mm_t(qbd, k) * scale + smask                                 # (heads*M, M)
        sm = jnp.max(s, axis=-1, keepdims=True)
        ps = jnp.exp(s - sm)
        at = ps * pl.reciprocal(jnp.sum(ps, axis=-1, keepdims=True), approx=True)
        ctx_all = mm_a(at, v) * hmask                                    # per-head contexts
        ctx = _tree_sum([ctx_all[hh * M:(hh + 1) * M] for hh in range(heads)])  # (M, E)
        xt = xt + mm_w(ctx, wo_ref[d]) + bo_ref[d]
        h2 = lnorm(xt, ln2g_ref[d], ln2b_ref[d])
        f = jnp.maximum(mm_w(h2, w1_ref[d]) + b1_ref[d], 0.0)            # ReLU FFN (dropout = id)
        xt = xt + mm_w(f, w2_ref[d]) + b2_ref[d]

    # ---------------- prediction head (lane-dense padded store; crop done outside) ----------
    hout = mm_w(xt, hw_ref[...]) + hb_ref[...]                           # (M, NPAD)
    o_ref[...] = hout.reshape(Bt, bins, -1).astype(o_ref.dtype)


# ----------------------------------------------------------------------------- wrapper
def finetune_forward(x, params, *, bins, crop, heads=8, batch_tile=None):
    # TODO(synk): self.pretrain_model is an external pretrained network (not defined in the
    # module); treated as identity — `x` is its (B*bins, L, hidden) per-bin output.
    BN, L, C = x.shape
    assert BN % bins == 0
    b = BN // bins
    pj, tf = params["project"], params["transformer"]
    K1, K2 = pj["dw_w"].shape[0], pj["cw_wT"].shape[0]
    E = pj["pw_wT"].shape[1]
    num_class = params["head_w"].shape[1]
    assert E % heads == 0
    hd = E // heads
    npad = ((num_class + 127) // 128) * 128           # lane-dense output store

    if batch_tile is None:
        # largest divisor of b with M = batch_tile*bins <= 256 (fills MXU rows on
        # v6e/v7x; on v7x with large b prefer a value keeping >=2 grid steps for 2 TCs)
        batch_tile = 1
        for t in range(1, b + 1):
            if b % t == 0 and t * bins <= 256:
                batch_tile = t
    Bt = batch_tile
    assert b % Bt == 0
    M = Bt * bins

    bf = _MXU_DTYPE

    # -------- host-precomputed constants (fetched once; constant index_map) --------
    m1 = jnp.asarray(_conv_pos_mask(bins, Bt, K1))                      # (K1, M, 1)
    m2 = jnp.asarray(_conv_pos_mask(bins, Bt, K2))                      # (K2, M, 1)
    hmask = np.zeros((heads * M, E), np.float32)
    for h in range(heads):
        hmask[h * M:(h + 1) * M, h * hd:(h + 1) * hd] = 1.0
    tok_b = np.arange(M) // bins
    smask = np.where(tok_b[:, None] == tok_b[None, :], 0.0, -1e9).astype(np.float32)
    smask = np.tile(smask, (heads, 1))                                   # (heads*M, M)

    head_w = jnp.zeros((E, npad), bf).at[:, :num_class].set(params["head_w"].astype(bf))
    head_b = jnp.zeros((1, npad), jnp.float32).at[:, :num_class].set(params["head_b"])

    inputs = [
        x,
        params["pool_w"].astype(bf),
        m1, pj["dw_w"], pj["dw_b"], pj["in1_g"], pj["in1_b"],
        pj["pw_wT"].astype(bf), pj["pw_b"],
        m2, pj["cw_wT"].reshape(K2 * E, E).astype(bf), pj["cw_b"], pj["in2_g"], pj["in2_b"],
        jnp.asarray(hmask), jnp.asarray(smask),
        tf["ln1_g"], tf["ln1_b"],
        tf["wq"].astype(bf), tf["bq"], tf["wk"].astype(bf), tf["bk"],
        tf["wv"].astype(bf), tf["bv"], tf["wo"].astype(bf), tf["bo"],
        tf["ln2_g"], tf["ln2_b"],
        tf["w1"].astype(bf), tf["b1"], tf["w2"].astype(bf), tf["b2"],
        head_w, head_b,
    ]

    def const_spec(a):                  # whole array, same block every grid step
        nd = a.ndim
        return pl.BlockSpec(a.shape, lambda i, _nd=nd: (0,) * _nd)

    in_specs = ([pl.BlockSpec((M, L, C), lambda i: (i, 0, 0))]
                + [const_spec(a) for a in inputs[1:]])

    out = pl.pallas_call(
        partial(fused_forward_kernel, heads=heads, bins=bins),
        out_shape=jax.ShapeDtypeStruct((b, bins, npad), x.dtype),
        grid=(b // Bt,),
        in_specs=in_specs,
        out_specs=pl.BlockSpec((Bt, bins, npad), lambda i: (i, 0, 0)),
        compiler_params=pltpu.CompilerParams(
            dimension_semantics=("parallel",),
            vmem_limit_bytes=48 * 1024 * 1024),
    )(*inputs)

    # crop + un-pad classes outside the kernel (cheap XLA slice; in-kernel store stays dense)
    return out[:, crop:bins - crop, :num_class]


# ----------------------------------------------------------------------------- params
def init_params(key, hidden_dim, embed_dim, num_class, depth=4, heads=8, k_dw=15, k_cv=9):
    keys = jax.random.split(key, 16)
    ki = iter(keys)

    def nrm(shape, scale=0.02):
        return scale * jax.random.normal(next(ki), shape, jnp.float32)

    ffn = 2 * embed_dim
    return {
        "pool_w": 2.0 * jnp.eye(hidden_dim, dtype=jnp.float32),          # dirac*2 init
        "project": {
            # depthwise Conv1d weight as (k, 1, C):  dw_w[t, 0, c] = torch W[c, 0, t]
            "dw_w": nrm((k_dw, 1, hidden_dim)),
            "dw_b": jnp.zeros((1, hidden_dim), jnp.float32),
            "in1_g": jnp.ones((1, hidden_dim), jnp.float32),
            "in1_b": jnp.zeros((1, hidden_dim), jnp.float32),
            # k=1 Conv1d weight transposed:          pw_wT[c, e] = torch W[e, c, 0]
            "pw_wT": nrm((hidden_dim, embed_dim)),
            "pw_b": jnp.zeros((1, embed_dim), jnp.float32),
            # k=9 Conv1d weight as (k, E_in, E_out): cw_wT[t, e, f] = torch W[f, e, t]
            "cw_wT": nrm((k_cv, embed_dim, embed_dim)),
            "cw_b": jnp.zeros((1, embed_dim), jnp.float32),
            "in2_g": jnp.ones((1, embed_dim), jnp.float32),
            "in2_b": jnp.zeros((1, embed_dim), jnp.float32),
        },
        "transformer": {                                                 # stacked over depth
            "ln1_g": jnp.ones((depth, 1, embed_dim), jnp.float32),
            "ln1_b": jnp.zeros((depth, 1, embed_dim), jnp.float32),
            "wq": nrm((depth, embed_dim, embed_dim)),
            "bq": jnp.zeros((depth, 1, embed_dim), jnp.float32),
            "wk": nrm((depth, embed_dim, embed_dim)),
            "bk": jnp.zeros((depth, 1, embed_dim), jnp.float32),
            "wv": nrm((depth, embed_dim, embed_dim)),
            "bv": jnp.zeros((depth, 1, embed_dim), jnp.float32),
            "wo": nrm((depth, embed_dim, embed_dim)),
            "bo": jnp.zeros((depth, 1, embed_dim), jnp.float32),
            "ln2_g": jnp.ones((depth, 1, embed_dim), jnp.float32),
            "ln2_b": jnp.zeros((depth, 1, embed_dim), jnp.float32),
            "w1": nrm((depth, embed_dim, ffn)),
            "b1": jnp.zeros((depth, 1, ffn), jnp.float32),
            "w2": nrm((depth, ffn, embed_dim)),
            "b2": jnp.zeros((depth, 1, embed_dim), jnp.float32),
        },
        "head_w": nrm((embed_dim, num_class)),
        "head_b": jnp.zeros((1, num_class), jnp.float32),
    }


if __name__ == "__main__":
    b, bins, L = 2, 16, 8
    hidden_dim, embed_dim = 32, 32
    num_class, crop, heads, depth = 8, 2, 8, 4

    key = jax.random.PRNGKey(0)
    kx, kp = jax.random.split(key)
    x = jax.random.normal(kx, (b * bins, L, hidden_dim), jnp.float32)
    params = init_params(kp, hidden_dim, embed_dim, num_class, depth=depth, heads=heads)

    out = finetune_forward(x, params, bins=bins, crop=crop, heads=heads)
    out = jax.block_until_ready(out)
    assert out.shape == (b, bins - 2 * crop, num_class), out.shape
    assert bool(jnp.all(jnp.isfinite(out)))
    print("KERNEL_OK")
</pallas_src>

<mosaic_0001>
module attributes {stable_mosaic.version = 11 : i64} {
  func.func @fused_forward_kernel(%arg0: i32, %arg1: memref<32x8x32xf32, #tpu.memory_space<vmem>>, %arg2: memref<32x32xbf16, #tpu.memory_space<vmem>>, %arg3: memref<15x32x1xf32, #tpu.memory_space<vmem>>, %arg4: memref<15x1x32xf32, #tpu.memory_space<vmem>>, %arg5: memref<1x32xf32, #tpu.memory_space<vmem>>, %arg6: memref<1x32xf32, #tpu.memory_space<vmem>>, %arg7: memref<1x32xf32, #tpu.memory_space<vmem>>, %arg8: memref<32x32xbf16, #tpu.memory_space<vmem>>, %arg9: memref<1x32xf32, #tpu.memory_space<vmem>>, %arg10: memref<9x32x1xf32, #tpu.memory_space<vmem>>, %arg11: memref<288x32xbf16, #tpu.memory_space<vmem>>, %arg12: memref<1x32xf32, #tpu.memory_space<vmem>>, %arg13: memref<1x32xf32, #tpu.memory_space<vmem>>, %arg14: memref<1x32xf32, #tpu.memory_space<vmem>>, %arg15: memref<256x32xf32, #tpu.memory_space<vmem>>, %arg16: memref<256x32xf32, #tpu.memory_space<vmem>>, %arg17: memref<4x1x32xf32, #tpu.memory_space<vmem>>, %arg18: memref<4x1x32xf32, #tpu.memory_space<vmem>>, %arg19: memref<4x32x32xbf16, #tpu.memory_space<vmem>>, %arg20: memref<4x1x32xf32, #tpu.memory_space<vmem>>, %arg21: memref<4x32x32xbf16, #tpu.memory_space<vmem>>, %arg22: memref<4x1x32xf32, #tpu.memory_space<vmem>>, %arg23: memref<4x32x32xbf16, #tpu.memory_space<vmem>>, %arg24: memref<4x1x32xf32, #tpu.memory_space<vmem>>, %arg25: memref<4x32x32xbf16, #tpu.memory_space<vmem>>, %arg26: memref<4x1x32xf32, #tpu.memory_space<vmem>>, %arg27: memref<4x1x32xf32, #tpu.memory_space<vmem>>, %arg28: memref<4x1x32xf32, #tpu.memory_space<vmem>>, %arg29: memref<4x32x64xbf16, #tpu.memory_space<vmem>>, %arg30: memref<4x1x64xf32, #tpu.memory_space<vmem>>, %arg31: memref<4x64x32xbf16, #tpu.memory_space<vmem>>, %arg32: memref<4x1x32xf32, #tpu.memory_space<vmem>>, %arg33: memref<32x128xbf16, #tpu.memory_space<vmem>>, %arg34: memref<1x128xf32, #tpu.memory_space<vmem>>, %arg35: memref<2x16x128xf32, #tpu.memory_space<vmem>>) attributes {dimension_semantics = [#tpu.dimension_semantics<parallel>], iteration_bounds = array<i64: 1>, scalar_prefetch = 0 : i64, scratch_operands = 0 : i64, tpu.core_type = #tpu.core_type<tc>, window_params = [{transform_indices = @transform_0, window_bounds = array<i64: 32, 8, 32>}, {pipeline_mode = #tpu.pipeline_mode<synchronous>, transform_indices = @transform_1, window_bounds = array<i64: 32, 32>}, {pipeline_mode = #tpu.pipeline_mode<synchronous>, transform_indices = @transform_2, window_bounds = array<i64: 15, 32, 1>}, {pipeline_mode = #tpu.pipeline_mode<synchronous>, transform_indices = @transform_3, window_bounds = array<i64: 15, 1, 32>}, {pipeline_mode = #tpu.pipeline_mode<synchronous>, transform_indices = @transform_4, window_bounds = array<i64: 1, 32>}, {pipeline_mode = #tpu.pipeline_mode<synchronous>, transform_indices = @transform_5, window_bounds = array<i64: 1, 32>}, {pipeline_mode = #tpu.pipeline_mode<synchronous>, transform_indices = @transform_6, window_bounds = array<i64: 1, 32>}, {pipeline_mode = #tpu.pipeline_mode<synchronous>, transform_indices = @transform_7, window_bounds = array<i64: 32, 32>}, {pipeline_mode = #tpu.pipeline_mode<synchronous>, transform_indices = @transform_8, window_bounds = array<i64: 1, 32>}, {pipeline_mode = #tpu.pipeline_mode<synchronous>, transform_indices = @transform_9, window_bounds = array<i64: 9, 32, 1>}, {pipeline_mode = #tpu.pipeline_mode<synchronous>, transform_indices = @transform_10, window_bounds = array<i64: 288, 32>}, {pipeline_mode = #tpu.pipeline_mode<synchronous>, transform_indices = @transform_11, window_bounds = array<i64: 1, 32>}, {pipeline_mode = #tpu.pipeline_mode<synchronous>, transform_indices = @transform_12, window_bounds = array<i64: 1, 32>}, {pipeline_mode = #tpu.pipeline_mode<synchronous>, transform_indices = @transform_13, window_bounds = array<i64: 1, 32>}, {pipeline_mode = #tpu.pipeline_mode<synchronous>, transform_indices = @transform_14, window_bounds = array<i64: 256, 32>}, {pipeline_mode = #tpu.pipeline_mode<synchronous>, transform_indices = @transform_15, window_bounds = array<i64: 256, 32>}, {pipeline_mode = #tpu.pipeline_mode<synchronous>, transform_indices = @transform_16, window_bounds = array<i64: 4, 1, 32>}, {pipeline_mode = #tpu.pipeline_mode<synchronous>, transform_indices = @transform_17, window_bounds = array<i64: 4, 1, 32>}, {pipeline_mode = #tpu.pipeline_mode<synchronous>, transform_indices = @transform_18, window_bounds = array<i64: 4, 32, 32>}, {pipeline_mode = #tpu.pipeline_mode<synchronous>, transform_indices = @transform_19, window_bounds = array<i64: 4, 1, 32>}, {pipeline_mode = #tpu.pipeline_mode<synchronous>, transform_indices = @transform_20, window_bounds = array<i64: 4, 32, 32>}, {pipeline_mode = #tpu.pipeline_mode<synchronous>, transform_indices = @transform_21, window_bounds = array<i64: 4, 1, 32>}, {pipeline_mode = #tpu.pipeline_mode<synchronous>, transform_indices = @transform_22, window_bounds = array<i64: 4, 32, 32>}, {pipeline_mode = #tpu.pipeline_mode<synchronous>, transform_indices = @transform_23, window_bounds = array<i64: 4, 1, 32>}, {pipeline_mode = #tpu.pipeline_mode<synchronous>, transform_indices = @transform_24, window_bounds = array<i64: 4, 32, 32>}, {pipeline_mode = #tpu.pipeline_mode<synchronous>, transform_indices = @transform_25, window_bounds = array<i64: 4, 1, 32>}, {pipeline_mode = #tpu.pipeline_mode<synchronous>, transform_indices = @transform_26, window_bounds = array<i64: 4, 1, 32>}, {pipeline_mode = #tpu.pipeline_mode<synchronous>, transform_indices = @transform_27, window_bounds = array<i64: 4, 1, 32>}, {pipeline_mode = #tpu.pipeline_mode<synchronous>, transform_indices = @transform_28, window_bounds = array<i64: 4, 32, 64>}, {pipeline_mode = #tpu.pipeline_mode<synchronous>, transform_indices = @transform_29, window_bounds = array<i64: 4, 1, 64>}, {pipeline_mode = #tpu.pipeline_mode<synchronous>, transform_indices = @transform_30, window_bounds = array<i64: 4, 64, 32>}, {pipeline_mode = #tpu.pipeline_mode<synchronous>, transform_indices = @transform_31, window_bounds = array<i64: 4, 1, 32>}, {pipeline_mode = #tpu.pipeline_mode<synchronous>, transform_indices = @transform_32, window_bounds = array<i64: 32, 128>}, {pipeline_mode = #tpu.pipeline_mode<synchronous>, transform_indices = @transform_33, window_bounds = array<i64: 1, 128>}, {transform_indices = @transform_34, window_bounds = array<i64: 2, 16, 128>}]} {
    %c0 = arith.constant 0 : index
    %c0_0 = arith.constant 0 : index
    %c0_1 = arith.constant 0 : index
    %0 = vector.load %arg1[%c0, %c0_0, %c0_1] : memref<32x8x32xf32, #tpu.memory_space<vmem>>, vector<32x8x32xf32>
    %1 = vector.shape_cast %0 : vector<32x8x32xf32> to vector<256x32xf32>
    %c0_2 = arith.constant 0 : index
    %c0_3 = arith.constant 0 : index
    %2 = vector.load %arg2[%c0_2, %c0_3] : memref<32x32xbf16, #tpu.memory_space<vmem>>, vector<32x32xbf16>
    %3 = arith.truncf %1 : vector<256x32xf32> to vector<256x32xbf16>
    %cst = arith.constant dense<0.000000e+00> : vector<256x32xf32>
    %4 = tpu.matmul %3, %2, %cst {dimension_numbers = #tpu.dot_dimension_numbers<[1], [0], [0], [1], [0, 0, 1, 1], [], []>} : vector<256x32xbf16>, vector<32x32xbf16>, vector<256x32xf32> -> vector<256x32xf32>
    %5 = vector.shape_cast %4 : vector<256x32xf32> to vector<32x8x32xf32>
    %cst_4 = arith.constant dense<0xFF800000> : vector<32x32xf32>
    %6 = vector.multi_reduction <maximumf>, %5, %cst_4 [1] : vector<32x8x32xf32> to vector<32x32xf32>
    %7 = vector.shape_cast %6 : vector<32x32xf32> to vector<32x1x32xf32>
    %8 = vector.broadcast %7 : vector<32x1x32xf32> to vector<32x8x32xf32>
    %9 = arith.subf %5, %8 : vector<32x8x32xf32>
    %10 = math.exp %9 : vector<32x8x32xf32>
    %cst_5 = arith.constant dense<0.000000e+00> : vector<32x32xf32>
    %11 = vector.multi_reduction <add>, %10, %cst_5 [1] : vector<32x8x32xf32> to vector<32x32xf32>
    %12 = arith.mulf %10, %0 : vector<32x8x32xf32>
    %cst_6 = arith.constant dense<0.000000e+00> : vector<32x32xf32>
    %13 = vector.multi_reduction <add>, %12, %cst_6 [1] : vector<32x8x32xf32> to vector<32x32xf32>
    %14 = tpu.reciprocal %11 {approx = true} : vector<32x32xf32> -> vector<32x32xf32>
    %15 = arith.mulf %13, %14 : vector<32x32xf32>
    %c7_i32 = arith.constant 7 : i32
    %16 = tpu.dynamic_rotate %15 by %c7_i32 dim 0 : vector<32x32xf32>, i32 -> vector<32x32xf32>
    %c0_7 = arith.constant 0 : index
    %c0_8 = arith.constant 0 : index
    %c0_9 = arith.constant 0 : index
    %17 = vector.load %arg4[%c0_7, %c0_8, %c0_9] : memref<15x1x32xf32, #tpu.memory_space<vmem>>, vector<1x1x32xf32>
    %18 = vector.shape_cast %17 : vector<1x1x32xf32> to vector<1x32xf32>
    %c0_10 = arith.constant 0 : index
    %c0_11 = arith.constant 0 : index
    %c0_12 = arith.constant 0 : index
    %19 = vector.load %arg3[%c0_10, %c0_11, %c0_12] : memref<15x32x1xf32, #tpu.memory_space<vmem>>, vector<1x32x1xf32>
    %20 = vector.shape_cast %19 : vector<1x32x1xf32> to vector<32x1xf32>
    %21 = vector.broadcast %18 : vector<1x32xf32> to vector<32x32xf32>
    %22 = vector.broadcast %20 : vector<32x1xf32> to vector<32x32xf32>
    %23 = arith.mulf %21, %22 : vector<32x32xf32>
    %24 = arith.mulf %16, %23 : vector<32x32xf32>
    %c6_i32 = arith.constant 6 : i32
    %25 = tpu.dynamic_rotate %15 by %c6_i32 dim 0 : vector<32x32xf32>, i32 -> vector<32x32xf32>
    %c1 = arith.constant 1 : index
    %c0_13 = arith.constant 0 : index
    %c0_14 = arith.constant 0 : index
    %26 = vector.load %arg4[%c1, %c0_13, %c0_14] : memref<15x1x32xf32, #tpu.memory_space<vmem>>, vector<1x1x32xf32>
    %27 = vector.shape_cast %26 : vector<1x1x32xf32> to vector<1x32xf32>
    %c1_15 = arith.constant 1 : index
    %c0_16 = arith.constant 0 : index
    %c0_17 = arith.constant 0 : index
    %28 = vector.load %arg3[%c1_15, %c0_16, %c0_17] : memref<15x32x1xf32, #tpu.memory_space<vmem>>, vector<1x32x1xf32>
    %29 = vector.shape_cast %28 : vector<1x32x1xf32> to vector<32x1xf32>
    %30 = vector.broadcast %27 : vector<1x32xf32> to vector<32x32xf32>
    %31 = vector.broadcast %29 : vector<32x1xf32> to vector<32x32xf32>
    %32 = arith.mulf %30, %31 : vector<32x32xf32>
    %33 = arith.mulf %25, %32 : vector<32x32xf32>
    %c5_i32 = arith.constant 5 : i32
    %34 = tpu.dynamic_rotate %15 by %c5_i32 dim 0 : vector<32x32xf32>, i32 -> vector<32x32xf32>
    %c2 = arith.constant 2 : index
    %c0_18 = arith.constant 0 : index
    %c0_19 = arith.constant 0 : index
    %35 = vector.load %arg4[%c2, %c0_18, %c0_19] : memref<15x1x32xf32, #tpu.memory_space<vmem>>, vector<1x1x32xf32>
    %36 = vector.shape_cast %35 : vector<1x1x32xf32> to vector<1x32xf32>
    %c2_20 = arith.constant 2 : index
    %c0_21 = arith.constant 0 : index
    %c0_22 = arith.constant 0 : index
    %37 = vector.load %arg3[%c2_20, %c0_21, %c0_22] : memref<15x32x1xf32, #tpu.memory_space<vmem>>, vector<1x32x1xf32>
    %38 = vector.shape_cast %37 : vector<1x32x1xf32> to vector<32x1xf32>
    %39 = vector.broadcast %36 : vector<1x32xf32> to vector<32x32xf32>
    %40 = vector.broadcast %38 : vector<32x1xf32> to vector<32x32xf32>
    %41 = arith.mulf %39, %40 : vector<32x32xf32>
    %42 = arith.mulf %34, %41 : vector<32x32xf32>
    %c4_i32 = arith.constant 4 : i32
    %43 = tpu.dynamic_rotate %15 by %c4_i32 dim 0 : vector<32x32xf32>, i32 -> vector<32x32xf32>
    %c3 = arith.constant 3 : index
    %c0_23 = arith.constant 0 : index
    %c0_24 = arith.constant 0 : index
    %44 = vector.load %arg4[%c3, %c0_23, %c0_24] : memref<15x1x32xf32, #tpu.memory_space<vmem>>, vector<1x1x32xf32>
    %45 = vector.shape_cast %44 : vector<1x1x32xf32> to vector<1x32xf32>
    %c3_25 = arith.constant 3 : index
    %c0_26 = arith.constant 0 : index
    %c0_27 = arith.constant 0 : index
    %46 = vector.load %arg3[%c3_25, %c0_26, %c0_27] : memref<15x32x1xf32, #tpu.memory_space<vmem>>, vector<1x32x1xf32>
    %47 = vector.shape_cast %46 : vector<1x32x1xf32> to vector<32x1xf32>
    %48 = vector.broadcast %45 : vector<1x32xf32> to vector<32x32xf32>
    %49 = vector.broadcast %47 : vector<32x1xf32> to vector<32x32xf32>
    %50 = arith.mulf %48, %49 : vector<32x32xf32>
    %51 = arith.mulf %43, %50 : vector<32x32xf32>
    %c3_i32 = arith.constant 3 : i32
    %52 = tpu.dynamic_rotate %15 by %c3_i32 dim 0 : vector<32x32xf32>, i32 -> vector<32x32xf32>
    %c4 = arith.constant 4 : index
    %c0_28 = arith.constant 0 : index
    %c0_29 = arith.constant 0 : index
    %53 = vector.load %arg4[%c4, %c0_28, %c0_29] : memref<15x1x32xf32, #tpu.memory_space<vmem>>, vector<1x1x32xf32>
    %54 = vector.shape_cast %53 : vector<1x1x32xf32> to vector<1x32xf32>
    %c4_30 = arith.constant 4 : index
    %c0_31 = arith.constant 0 : index
    %c0_32 = arith.constant 0 : index
    %55 = vector.load %arg3[%c4_30, %c0_31, %c0_32] : memref<15x32x1xf32, #tpu.memory_space<vmem>>, vector<1x32x1xf32>
    %56 = vector.shape_cast %55 : vector<1x32x1xf32> to vector<32x1xf32>
    %57 = vector.broadcast %54 : vector<1x32xf32> to vector<32x32xf32>
    %58 = vector.broadcast %56 : vector<32x1xf32> to vector<32x32xf32>
    %59 = arith.mulf %57, %58 : vector<32x32xf32>
    %60 = arith.mulf %52, %59 : vector<32x32xf32>
    %c2_i32 = arith.constant 2 : i32
    %61 = tpu.dynamic_rotate %15 by %c2_i32 dim 0 : vector<32x32xf32>, i32 -> vector<32x32xf32>
    %c5 = arith.constant 5 : index
    %c0_33 = arith.constant 0 : index
    %c0_34 = arith.constant 0 : index
    %62 = vector.load %arg4[%c5, %c0_33, %c0_34] : memref<15x1x32xf32, #tpu.memory_space<vmem>>, vector<1x1x32xf32>
    %63 = vector.shape_cast %62 : vector<1x1x32xf32> to vector<1x32xf32>
    %c5_35 = arith.constant 5 : index
    %c0_36 = arith.constant 0 : index
    %c0_37 = arith.constant 0 : index
    %64 = vector.load %arg3[%c5_35, %c0_36, %c0_37] : memref<15x32x1xf32, #tpu.memory_space<vmem>>, vector<1x32x1xf32>
    %65 = vector.shape_cast %64 : vector<1x32x1xf32> to vector<32x1xf32>
    %66 = vector.broadcast %63 : vector<1x32xf32> to vector<32x32xf32>
    %67 = vector.broadcast %65 : vector<32x1xf32> to vector<32x32xf32>
    %68 = arith.mulf %66, %67 : vector<32x32xf32>
    %69 = arith.mulf %61, %68 : vector<32x32xf32>
    %c1_i32 = arith.constant 1 : i32
    %70 = tpu.dynamic_rotate %15 by %c1_i32 dim 0 : vector<32x32xf32>, i32 -> vector<32x32xf32>
    %c6 = arith.constant 6 : index
    %c0_38 = arith.constant 0 : index
    %c0_39 = arith.constant 0 : index
    %71 = vector.load %arg4[%c6, %c0_38, %c0_39] : memref<15x1x32xf32, #tpu.memory_space<vmem>>, vector<1x1x32xf32>
    %72 = vector.shape_cast %71 : vector<1x1x32xf32> to vector<1x32xf32>
    %c6_40 = arith.constant 6 : index
    %c0_41 = arith.constant 0 : index
    %c0_42 = arith.constant 0 : index
    %73 = vector.load %arg3[%c6_40, %c0_41, %c0_42] : memref<15x32x1xf32, #tpu.memory_space<vmem>>, vector<1x32x1xf32>
    %74 = vector.shape_cast %73 : vector<1x32x1xf32> to vector<32x1xf32>
    %75 = vector.broadcast %72 : vector<1x32xf32> to vector<32x32xf32>
    %76 = vector.broadcast %74 : vector<32x1xf32> to vector<32x32xf32>
    %77 = arith.mulf %75, %76 : vector<32x32xf32>
    %78 = arith.mulf %70, %77 : vector<32x32xf32>
    %c7 = arith.constant 7 : index
    %c0_43 = arith.constant 0 : index
    %c0_44 = arith.constant 0 : index
    %79 = vector.load %arg4[%c7, %c0_43, %c0_44] : memref<15x1x32xf32, #tpu.memory_space<vmem>>, vector<1x1x32xf32>
    %80 = vector.shape_cast %79 : vector<1x1x32xf32> to vector<1x32xf32>
    %c7_45 = arith.constant 7 : index
    %c0_46 = arith.constant 0 : index
    %c0_47 = arith.constant 0 : index
    %81 = vector.load %arg3[%c7_45, %c0_46, %c0_47] : memref<15x32x1xf32, #tpu.memory_space<vmem>>, vector<1x32x1xf32>
    %82 = vector.shape_cast %81 : vector<1x32x1xf32> to vector<32x1xf32>
    %83 = vector.broadcast %80 : vector<1x32xf32> to vector<32x32xf32>
    %84 = vector.broadcast %82 : vector<32x1xf32> to vector<32x32xf32>
    %85 = arith.mulf %83, %84 : vector<32x32xf32>
    %86 = arith.mulf %15, %85 : vector<32x32xf32>
    %c31_i32 = arith.constant 31 : i32
    %87 = tpu.dynamic_rotate %15 by %c31_i32 dim 0 : vector<32x32xf32>, i32 -> vector<32x32xf32>
    %c8 = arith.constant 8 : index
    %c0_48 = arith.constant 0 : index
    %c0_49 = arith.constant 0 : index
    %88 = vector.load %arg4[%c8, %c0_48, %c0_49] : memref<15x1x32xf32, #tpu.memory_space<vmem>>, vector<1x1x32xf32>
    %89 = vector.shape_cast %88 : vector<1x1x32xf32> to vector<1x32xf32>
    %c8_50 = arith.constant 8 : index
    %c0_51 = arith.constant 0 : index
    %c0_52 = arith.constant 0 : index
    %90 = vector.load %arg3[%c8_50, %c0_51, %c0_52] : memref<15x32x1xf32, #tpu.memory_space<vmem>>, vector<1x32x1xf32>
    %91 = vector.shape_cast %90 : vector<1x32x1xf32> to vector<32x1xf32>
    %92 = vector.broadcast %89 : vector<1x32xf32> to vector<32x32xf32>
    %93 = vector.broadcast %91 : vector<32x1xf32> to vector<32x32xf32>
    %94 = arith.mulf %92, %93 : vector<32x32xf32>
    %95 = arith.mulf %87, %94 : vector<32x32xf32>
    %c30_i32 = arith.constant 30 : i32
    %96 = tpu.dynamic_rotate %15 by %c30_i32 dim 0 : vector<32x32xf32>, i32 -> vector<32x32xf32>
    %c9 = arith.constant 9 : index
    %c0_53 = arith.constant 0 : index
    %c0_54 = arith.constant 0 : index
    %97 = vector.load %arg4[%c9, %c0_53, %c0_54] : memref<15x1x32xf32, #tpu.memory_space<vmem>>, vector<1x1x32xf32>
    %98 = vector.shape_cast %97 : vector<1x1x32xf32> to vector<1x32xf32>
    %c9_55 = arith.constant 9 : index
    %c0_56 = arith.constant 0 : index
    %c0_57 = arith.constant 0 : index
    %99 = vector.load %arg3[%c9_55, %c0_56, %c0_57] : memref<15x32x1xf32, #tpu.memory_space<vmem>>, vector<1x32x1xf32>
    %100 = vector.shape_cast %99 : vector<1x32x1xf32> to vector<32x1xf32>
    %101 = vector.broadcast %98 : vector<1x32xf32> to vector<32x32xf32>
    %102 = vector.broadcast %100 : vector<32x1xf32> to vector<32x32xf32>
    %103 = arith.mulf %101, %102 : vector<32x32xf32>
    %104 = arith.mulf %96, %103 : vector<32x32xf32>
    %c29_i32 = arith.constant 29 : i32
    %105 = tpu.dynamic_rotate %15 by %c29_i32 dim 0 : vector<32x32xf32>, i32 -> vector<32x32xf32>
    %c10 = arith.constant 10 : index
    %c0_58 = arith.constant 0 : index
    %c0_59 = arith.constant 0 : index
    %106 = vector.load %arg4[%c10, %c0_58, %c0_59] : memref<15x1x32xf32, #tpu.memory_space<vmem>>, vector<1x1x32xf32>
    %107 = vector.shape_cast %106 : vector<1x1x32xf32> to vector<1x32xf32>
    %c10_60 = arith.constant 10 : index
    %c0_61 = arith.constant 0 : index
    %c0_62 = arith.constant 0 : index
    %108 = vector.load %arg3[%c10_60, %c0_61, %c0_62] : memref<15x32x1xf32, #tpu.memory_space<vmem>>, vector<1x32x1xf32>
    %109 = vector.shape_cast %108 : vector<1x32x1xf32> to vector<32x1xf32>
    %110 = vector.broadcast %107 : vector<1x32xf32> to vector<32x32xf32>
    %111 = vector.broadcast %109 : vector<32x1xf32> to vector<32x32xf32>
    %112 = arith.mulf %110, %111 : vector<32x32xf32>
    %113 = arith.mulf %105, %112 : vector<32x32xf32>
    %c28_i32 = arith.constant 28 : i32
    %114 = tpu.dynamic_rotate %15 by %c28_i32 dim 0 : vector<32x32xf32>, i32 -> vector<32x32xf32>
    %c11 = arith.constant 11 : index
    %c0_63 = arith.constant 0 : index
    %c0_64 = arith.constant 0 : index
    %115 = vector.load %arg4[%c11, %c0_63, %c0_64] : memref<15x1x32xf32, #tpu.memory_space<vmem>>, vector<1x1x32xf32>
    %116 = vector.shape_cast %115 : vector<1x1x32xf32> to vector<1x32xf32>
    %c11_65 = arith.constant 11 : index
    %c0_66 = arith.constant 0 : index
    %c0_67 = arith.constant 0 : index
    %117 = vector.load %arg3[%c11_65, %c0_66, %c0_67] : memref<15x32x1xf32, #tpu.memory_space<vmem>>, vector<1x32x1xf32>
    %118 = vector.shape_cast %117 : vector<1x32x1xf32> to vector<32x1xf32>
    %119 = vector.broadcast %116 : vector<1x32xf32> to vector<32x32xf32>
    %120 = vector.broadcast %118 : vector<32x1xf32> to vector<32x32xf32>
    %121 = arith.mulf %119, %120 : vector<32x32xf32>
    %122 = arith.mulf %114, %121 : vector<32x32xf32>
    %c27_i32 = arith.constant 27 : i32
    %123 = tpu.dynamic_rotate %15 by %c27_i32 dim 0 : vector<32x32xf32>, i32 -> vector<32x32xf32>
    %c12 = arith.constant 12 : index
    %c0_68 = arith.constant 0 : index
    %c0_69 = arith.constant 0 : index
    %124 = vector.load %arg4[%c12, %c0_68, %c0_69] : memref<15x1x32xf32, #tpu.memory_space<vmem>>, vector<1x1x32xf32>
    %125 = vector.shape_cast %124 : vector<1x1x32xf32> to vector<1x32xf32>
    %c12_70 = arith.constant 12 : index
    %c0_71 = arith.constant 0 : index
    %c0_72 = arith.constant 0 : index
    %126 = vector.load %arg3[%c12_70, %c0_71, %c0_72] : memref<15x32x1xf32, #tpu.memory_space<vmem>>, vector<1x32x1xf32>
    %127 = vector.shape_cast %126 : vector<1x32x1xf32> to vector<32x1xf32>
    %128 = vector.broadcast %125 : vector<1x32xf32> to vector<32x32xf32>
    %129 = vector.broadcast %127 : vector<32x1xf32> to vector<32x32xf32>
    %130 = arith.mulf %128, %129 : vector<32x32xf32>
    %131 = arith.mulf %123, %130 : vector<32x32xf32>
    %c26_i32 = arith.constant 26 : i32
    %132 = tpu.dynamic_rotate %15 by %c26_i32 dim 0 : vector<32x32xf32>, i32 -> vector<32x32xf32>
    %c13 = arith.constant 13 : index
    %c0_73 = arith.constant 0 : index
    %c0_74 = arith.constant 0 : index
    %133 = vector.load %arg4[%c13, %c0_73, %c0_74] : memref<15x1x32xf32, #tpu.memory_space<vmem>>, vector<1x1x32xf32>
    %134 = vector.shape_cast %133 : vector<1x1x32xf32> to vector<1x32xf32>
    %c13_75 = arith.constant 13 : index
    %c0_76 = arith.constant 0 : index
    %c0_77 = arith.constant 0 : index
    %135 = vector.load %arg3[%c13_75, %c0_76, %c0_77] : memref<15x32x1xf32, #tpu.memory_space<vmem>>, vector<1x32x1xf32>
    %136 = vector.shape_cast %135 : vector<1x32x1xf32> to vector<32x1xf32>
    %137 = vector.broadcast %134 : vector<1x32xf32> to vector<32x32xf32>
    %138 = vector.broadcast %136 : vector<32x1xf32> to vector<32x32xf32>
    %139 = arith.mulf %137, %138 : vector<32x32xf32>
    %140 = arith.mulf %132, %139 : vector<32x32xf32>
    %c25_i32 = arith.constant 25 : i32
    %141 = tpu.dynamic_rotate %15 by %c25_i32 dim 0 : vector<32x32xf32>, i32 -> vector<32x32xf32>
    %c14 = arith.constant 14 : index
    %c0_78 = arith.constant 0 : index
    %c0_79 = arith.constant 0 : index
    %142 = vector.load %arg4[%c14, %c0_78, %c0_79] : memref<15x1x32xf32, #tpu.memory_space<vmem>>, vector<1x1x32xf32>
    %143 = vector.shape_cast %142 : vector<1x1x32xf32> to vector<1x32xf32>
    %c14_80 = arith.constant 14 : index
    %c0_81 = arith.constant 0 : index
    %c0_82 = arith.constant 0 : index
    %144 = vector.load %arg3[%c14_80, %c0_81, %c0_82] : memref<15x32x1xf32, #tpu.memory_space<vmem>>, vector<1x32x1xf32>
    %145 = vector.shape_cast %144 : vector<1x32x1xf32> to vector<32x1xf32>
    %146 = vector.broadcast %143 : vector<1x32xf32> to vector<32x32xf32>
    %147 = vector.broadcast %145 : vector<32x1xf32> to vector<32x32xf32>
    %148 = arith.mulf %146, %147 : vector<32x32xf32>
    %149 = arith.mulf %141, %148 : vector<32x32xf32>
    %150 = arith.addf %24, %33 : vector<32x32xf32>
    %151 = arith.addf %42, %51 : vector<32x32xf32>
    %152 = arith.addf %60, %69 : vector<32x32xf32>
    %153 = arith.addf %78, %86 : vector<32x32xf32>
    %154 = arith.addf %95, %104 : vector<32x32xf32>
    %155 = arith.addf %113, %122 : vector<32x32xf32>
    %156 = arith.addf %131, %140 : vector<32x32xf32>
    %157 = arith.addf %150, %151 : vector<32x32xf32>
    %158 = arith.addf %152, %153 : vector<32x32xf32>
    %159 = arith.addf %154, %155 : vector<32x32xf32>
    %160 = arith.addf %156, %149 : vector<32x32xf32>
    %161 = arith.addf %157, %158 : vector<32x32xf32>
    %162 = arith.addf %159, %160 : vector<32x32xf32>
    %163 = arith.addf %161, %162 : vector<32x32xf32>
    %c0_83 = arith.constant 0 : index
    %c0_84 = arith.constant 0 : index
    %164 = vector.load %arg5[%c0_83, %c0_84] : memref<1x32xf32, #tpu.memory_space<vmem>>, vector<1x32xf32>
    %165 = vector.broadcast %164 : vector<1x32xf32> to vector<32x32xf32>
    %166 = arith.addf %163, %165 : vector<32x32xf32>
    %c0_85 = arith.constant 0 : index
    %c0_86 = arith.constant 0 : index
    %167 = vector.load %arg6[%c0_85, %c0_86] : memref<1x32xf32, #tpu.memory_space<vmem>>, vector<1x32xf32>
    %c0_87 = arith.constant 0 : index
    %c0_88 = arith.constant 0 : index
    %168 = vector.load %arg7[%c0_87, %c0_88] : memref<1x32xf32, #tpu.memory_space<vmem>>, vector<1x32xf32>
    %169 = vector.shape_cast %166 : vector<32x32xf32> to vector<2x16x32xf32>
    %cst_89 = arith.constant dense<0.000000e+00> : vector<2x32xf32>
    %170 = vector.multi_reduction <add>, %169, %cst_89 [1] : vector<2x16x32xf32> to vector<2x32xf32>
    %171 = vector.shape_cast %170 : vector<2x32xf32> to vector<2x1x32xf32>
    %cst_90 = arith.constant 1.600000e+01 : f32
    %172 = vector.broadcast %cst_90 : f32 to vector<2x1x32xf32>
    %173 = arith.divf %171, %172 : vector<2x1x32xf32>
    %174 = vector.broadcast %173 : vector<2x1x32xf32> to vector<2x16x32xf32>
    %175 = arith.subf %169, %174 : vector<2x16x32xf32>
    %176 = arith.mulf %175, %175 : vector<2x16x32xf32>
    %cst_91 = arith.constant dense<0.000000e+00> : vector<2x32xf32>
    %177 = vector.multi_reduction <add>, %176, %cst_91 [1] : vector<2x16x32xf32> to vector<2x32xf32>
    %178 = vector.shape_cast %177 : vector<2x32xf32> to vector<2x1x32xf32>
    %cst_92 = arith.constant 1.600000e+01 : f32
    %179 = vector.broadcast %cst_92 : f32 to vector<2x1x32xf32>
    %180 = arith.divf %178, %179 : vector<2x1x32xf32>
    %181 = vector.broadcast %173 : vector<2x1x32xf32> to vector<2x16x32xf32>
    %182 = arith.subf %169, %181 : vector<2x16x32xf32>
    %cst_93 = arith.constant 9.99999974E-6 : f32
    %183 = vector.broadcast %cst_93 : f32 to vector<2x1x32xf32>
    %184 = arith.addf %180, %183 : vector<2x1x32xf32>
    %185 = math.rsqrt %184 : vector<2x1x32xf32>
    %186 = vector.broadcast %185 : vector<2x1x32xf32> to vector<2x16x32xf32>
    %187 = arith.mulf %182, %186 : vector<2x16x32xf32>
    %188 = vector.shape_cast %187 : vector<2x16x32xf32> to vector<32x32xf32>
    %189 = vector.broadcast %167 : vector<1x32xf32> to vector<32x32xf32>
    %190 = arith.mulf %188, %189 : vector<32x32xf32>
    %191 = vector.broadcast %168 : vector<1x32xf32> to vector<32x32xf32>
    %192 = arith.addf %190, %191 : vector<32x32xf32>
    %c0_94 = arith.constant 0 : index
    %c0_95 = arith.constant 0 : index
    %193 = vector.load %arg8[%c0_94, %c0_95] : memref<32x32xbf16, #tpu.memory_space<vmem>>, vector<32x32xbf16>
    %194 = arith.truncf %192 : vector<32x32xf32> to vector<32x32xbf16>
    %cst_96 = arith.constant dense<0.000000e+00> : vector<32x32xf32>
    %195 = tpu.matmul %194, %193, %cst_96 {dimension_numbers = #tpu.dot_dimension_numbers<[1], [0], [0], [1], [0, 0, 1, 1], [], []>} : vector<32x32xbf16>, vector<32x32xbf16>, vector<32x32xf32> -> vector<32x32xf32>
    %c0_97 = arith.constant 0 : index
    %c0_98 = arith.constant 0 : index
    %196 = vector.load %arg9[%c0_97, %c0_98] : memref<1x32xf32, #tpu.memory_space<vmem>>, vector<1x32xf32>
    %197 = vector.broadcast %196 : vector<1x32xf32> to vector<32x32xf32>
    %198 = arith.addf %195, %197 : vector<32x32xf32>
    %cst_99 = arith.constant 0.000000e+00 : f32
    %199 = vector.broadcast %cst_99 : f32 to vector<32x32xf32>
    %200 = arith.maximumf %198, %199 : vector<32x32xf32>
    %c4_i32_100 = arith.constant 4 : i32
    %201 = tpu.dynamic_rotate %200 by %c4_i32_100 dim 0 : vector<32x32xf32>, i32 -> vector<32x32xf32>
    %c0_101 = arith.constant 0 : index
    %c0_102 = arith.constant 0 : index
    %c0_103 = arith.constant 0 : index
    %202 = vector.load %arg10[%c0_101, %c0_102, %c0_103] : memref<9x32x1xf32, #tpu.memory_space<vmem>>, vector<1x32x1xf32>
    %203 = vector.shape_cast %202 : vector<1x32x1xf32> to vector<32x1xf32>
    %204 = vector.broadcast %203 : vector<32x1xf32> to vector<32x32xf32>
    %205 = arith.mulf %201, %204 : vector<32x32xf32>
    %c3_i32_104 = arith.constant 3 : i32
    %206 = tpu.dynamic_rotate %200 by %c3_i32_104 dim 0 : vector<32x32xf32>, i32 -> vector<32x32xf32>
    %c1_105 = arith.constant 1 : index
    %c0_106 = arith.constant 0 : index
    %c0_107 = arith.constant 0 : index
    %207 = vector.load %arg10[%c1_105, %c0_106, %c0_107] : memref<9x32x1xf32, #tpu.memory_space<vmem>>, vector<1x32x1xf32>
    %208 = vector.shape_cast %207 : vector<1x32x1xf32> to vector<32x1xf32>
    %209 = vector.broadcast %208 : vector<32x1xf32> to vector<32x32xf32>
    %210 = arith.mulf %206, %209 : vector<32x32xf32>
    %c2_i32_108 = arith.constant 2 : i32
    %211 = tpu.dynamic_rotate %200 by %c2_i32_108 dim 0 : vector<32x32xf32>, i32 -> vector<32x32xf32>
    %c2_109 = arith.constant 2 : index
    %c0_110 = arith.constant 0 : index
    %c0_111 = arith.constant 0 : index
    %212 = vector.load %arg10[%c2_109, %c0_110, %c0_111] : memref<9x32x1xf32, #tpu.memory_space<vmem>>, vector<1x32x1xf32>
    %213 = vector.shape_cast %212 : vector<1x32x1xf32> to vector<32x1xf32>
    %214 = vector.broadcast %213 : vector<32x1xf32> to vector<32x32xf32>
    %215 = arith.mulf %211, %214 : vector<32x32xf32>
    %c1_i32_112 = arith.constant 1 : i32
    %216 = tpu.dynamic_rotate %200 by %c1_i32_112 dim 0 : vector<32x32xf32>, i32 -> vector<32x32xf32>
    %c3_113 = arith.constant 3 : index
    %c0_114 = arith.constant 0 : index
    %c0_115 = arith.constant 0 : index
    %217 = vector.load %arg10[%c3_113, %c0_114, %c0_115] : memref<9x32x1xf32, #tpu.memory_space<vmem>>, vector<1x32x1xf32>
    %218 = vector.shape_cast %217 : vector<1x32x1xf32> to vector<32x1xf32>
    %219 = vector.broadcast %218 : vector<32x1xf32> to vector<32x32xf32>
    %220 = arith.mulf %216, %219 : vector<32x32xf32>
    %c4_116 = arith.constant 4 : index
    %c0_117 = arith.constant 0 : index
    %c0_118 = arith.constant 0 : index
    %221 = vector.load %arg10[%c4_116, %c0_117, %c0_118] : memref<9x32x1xf32, #tpu.memory_space<vmem>>, vector<1x32x1xf32>
    %222 = vector.shape_cast %221 : vector<1x32x1xf32> to vector<32x1xf32>
    %223 = vector.broadcast %222 : vector<32x1xf32> to vector<32x32xf32>
    %224 = arith.mulf %200, %223 : vector<32x32xf32>
    %c31_i32_119 = arith.constant 31 : i32
    %225 = tpu.dynamic_rotate %200 by %c31_i32_119 dim 0 : vector<32x32xf32>, i32 -> vector<32x32xf32>
    %c5_120 = arith.constant 5 : index
    %c0_121 = arith.constant 0 : index
    %c0_122 = arith.constant 0 : index
    %226 = vector.load %arg10[%c5_120, %c0_121, %c0_122] : memref<9x32x1xf32, #tpu.memory_space<vmem>>, vector<1x32x1xf32>
    %227 = vector.shape_cast %226 : vector<1x32x1xf32> to vector<32x1xf32>
    %228 = vector.broadcast %227 : vector<32x1xf32> to vector<32x32xf32>
    %229 = arith.mulf %225, %228 : vector<32x32xf32>
    %c30_i32_123 = arith.constant 30 : i32
    %230 = tpu.dynamic_rotate %200 by %c30_i32_123 dim 0 : vector<32x32xf32>, i32 -> vector<32x32xf32>
    %c6_124 = arith.constant 6 : index
    %c0_125 = arith.constant 0 : index
    %c0_126 = arith.constant 0 : index
    %231 = vector.load %arg10[%c6_124, %c0_125, %c0_126] : memref<9x32x1xf32, #tpu.memory_space<vmem>>, vector<1x32x1xf32>
    %232 = vector.shape_cast %231 : vector<1x32x1xf32> to vector<32x1xf32>
    %233 = vector.broadcast %232 : vector<32x1xf32> to vector<32x32xf32>
    %234 = arith.mulf %230, %233 : vector<32x32xf32>
    %c29_i32_127 = arith.constant 29 : i32
    %235 = tpu.dynamic_rotate %200 by %c29_i32_127 dim 0 : vector<32x32xf32>, i32 -> vector<32x32xf32>
    %c7_128 = arith.constant 7 : index
    %c0_129 = arith.constant 0 : index
    %c0_130 = arith.constant 0 : index
    %236 = vector.load %arg10[%c7_128, %c0_129, %c0_130] : memref<9x32x1xf32, #tpu.memory_space<vmem>>, vector<1x32x1xf32>
    %237 = vector.shape_cast %236 : vector<1x32x1xf32> to vector<32x1xf32>
    %238 = vector.broadcast %237 : vector<32x1xf32> to vector<32x32xf32>
    %239 = arith.mulf %235, %238 : vector<32x32xf32>
    %c28_i32_131 = arith.constant 28 : i32
    %240 = tpu.dynamic_rotate %200 by %c28_i32_131 dim 0 : vector<32x32xf32>, i32 -> vector<32x32xf32>
    %c8_132 = arith.constant 8 : index
    %c0_133 = arith.constant 0 : index
    %c0_134 = arith.constant 0 : index
    %241 = vector.load %arg10[%c8_132, %c0_133, %c0_134] : memref<9x32x1xf32, #tpu.memory_space<vmem>>, vector<1x32x1xf32>
    %242 = vector.shape_cast %241 : vector<1x32x1xf32> to vector<32x1xf32>
    %243 = vector.broadcast %242 : vector<32x1xf32> to vector<32x32xf32>
    %244 = arith.mulf %240, %243 : vector<32x32xf32>
    %245 = tpu.concatenate %205, %210, %215, %220, %224, %229, %234, %239, %244 in 1 : vector<32x32xf32>, vector<32x32xf32>, vector<32x32xf32>, vector<32x32xf32>, vector<32x32xf32>, vector<32x32xf32>, vector<32x32xf32>, vector<32x32xf32>, vector<32x32xf32> -> vector<32x288xf32>
    %c0_135 = arith.constant 0 : index
    %c0_136 = arith.constant 0 : index
    %246 = vector.load %arg11[%c0_135, %c0_136] : memref<288x32xbf16, #tpu.memory_space<vmem>>, vector<288x32xbf16>
    %247 = arith.truncf %245 : vector<32x288xf32> to vector<32x288xbf16>
    %cst_137 = arith.constant dense<0.000000e+00> : vector<32x32xf32>
    %248 = tpu.matmul %247, %246, %cst_137 {dimension_numbers = #tpu.dot_dimension_numbers<[1], [0], [0], [1], [0, 0, 1, 1], [], []>} : vector<32x288xbf16>, vector<288x32xbf16>, vector<32x32xf32> -> vector<32x32xf32>
    %c0_138 = arith.constant 0 : index
    %c0_139 = arith.constant 0 : index
    %249 = vector.load %arg12[%c0_138, %c0_139] : memref<1x32xf32, #tpu.memory_space<vmem>>, vector<1x32xf32>
    %250 = vector.broadcast %249 : vector<1x32xf32> to vector<32x32xf32>
    %251 = arith.addf %248, %250 : vector<32x32xf32>
    %c0_140 = arith.constant 0 : index
    %c0_141 = arith.constant 0 : index
    %252 = vector.load %arg13[%c0_140, %c0_141] : memref<1x32xf32, #tpu.memory_space<vmem>>, vector<1x32xf32>
    %c0_142 = arith.constant 0 : index
    %c0_143 = arith.constant 0 : index
    %253 = vector.load %arg14[%c0_142, %c0_143] : memref<1x32xf32, #tpu.memory_space<vmem>>, vector<1x32xf32>
    %254 = vector.shape_cast %251 : vector<32x32xf32> to vector<2x16x32xf32>
    %cst_144 = arith.constant dense<0.000000e+00> : vector<2x32xf32>
    %255 = vector.multi_reduction <add>, %254, %cst_144 [1] : vector<2x16x32xf32> to vector<2x32xf32>
    %256 = vector.shape_cast %255 : vector<2x32xf32> to vector<2x1x32xf32>
    %cst_145 = arith.constant 1.600000e+01 : f32
    %257 = vector.broadcast %cst_145 : f32 to vector<2x1x32xf32>
    %258 = arith.divf %256, %257 : vector<2x1x32xf32>
    %259 = vector.broadcast %258 : vector<2x1x32xf32> to vector<2x16x32xf32>
    %260 = arith.subf %254, %259 : vector<2x16x32xf32>
    %261 = arith.mulf %260, %260 : vector<2x16x32xf32>
    %cst_146 = arith.constant dense<0.000000e+00> : vector<2x32xf32>
    %262 = vector.multi_reduction <add>, %261, %cst_146 [1] : vector<2x16x32xf32> to vector<2x32xf32>
    %263 = vector.shape_cast %262 : vector<2x32xf32> to vector<2x1x32xf32>
    %cst_147 = arith.constant 1.600000e+01 : f32
    %264 = vector.broadcast %cst_147 : f32 to vector<2x1x32xf32>
    %265 = arith.divf %263, %264 : vector<2x1x32xf32>
    %266 = vector.broadcast %258 : vector<2x1x32xf32> to vector<2x16x32xf32>
    %267 = arith.subf %254, %266 : vector<2x16x32xf32>
    %cst_148 = arith.constant 9.99999974E-6 : f32
    %268 = vector.broadcast %cst_148 : f32 to vector<2x1x32xf32>
    %269 = arith.addf %265, %268 : vector<2x1x32xf32>
    %270 = math.rsqrt %269 : vector<2x1x32xf32>
    %271 = vector.broadcast %270 : vector<2x1x32xf32> to vector<2x16x32xf32>
    %272 = arith.mulf %267, %271 : vector<2x16x32xf32>
    %273 = vector.shape_cast %272 : vector<2x16x32xf32> to vector<32x32xf32>
    %274 = vector.broadcast %252 : vector<1x32xf32> to vector<32x32xf32>
    %275 = arith.mulf %273, %274 : vector<32x32xf32>
    %276 = vector.broadcast %253 : vector<1x32xf32> to vector<32x32xf32>
    %277 = arith.addf %275, %276 : vector<32x32xf32>
    %cst_149 = arith.constant 0.000000e+00 : f32
    %278 = vector.broadcast %cst_149 : f32 to vector<32x32xf32>
    %279 = arith.maximumf %277, %278 : vector<32x32xf32>
    %c0_150 = arith.constant 0 : index
    %c0_151 = arith.constant 0 : index
    %280 = vector.load %arg15[%c0_150, %c0_151] : memref<256x32xf32, #tpu.memory_space<vmem>>, vector<256x32xf32>
    %c0_152 = arith.constant 0 : index
    %c0_153 = arith.constant 0 : index
    %281 = vector.load %arg16[%c0_152, %c0_153] : memref<256x32xf32, #tpu.memory_space<vmem>>, vector<256x32xf32>
    %c0_154 = arith.constant 0 : index
    %c0_155 = arith.constant 0 : index
    %c0_156 = arith.constant 0 : index
    %282 = vector.load %arg17[%c0_154, %c0_155, %c0_156] : memref<4x1x32xf32, #tpu.memory_space<vmem>>, vector<1x1x32xf32>
    %283 = vector.shape_cast %282 : vector<1x1x32xf32> to vector<1x32xf32>
    %c0_157 = arith.constant 0 : index
    %c0_158 = arith.constant 0 : index
    %c0_159 = arith.constant 0 : index
    %284 = vector.load %arg18[%c0_157, %c0_158, %c0_159] : memref<4x1x32xf32, #tpu.memory_space<vmem>>, vector<1x1x32xf32>
    %285 = vector.shape_cast %284 : vector<1x1x32xf32> to vector<1x32xf32>
    %cst_160 = arith.constant dense<0.000000e+00> : vector<32xf32>
    %286 = vector.multi_reduction <add>, %279, %cst_160 [1] : vector<32x32xf32> to vector<32xf32>
    %287 = vector.shape_cast %286 : vector<32xf32> to vector<32x1xf32>
    %cst_161 = arith.constant 3.200000e+01 : f32
    %288 = vector.broadcast %cst_161 : f32 to vector<32x1xf32>
    %289 = arith.divf %287, %288 : vector<32x1xf32>
    %290 = vector.broadcast %289 : vector<32x1xf32> to vector<32x32xf32>
    %291 = arith.subf %279, %290 : vector<32x32xf32>
    %292 = arith.mulf %291, %291 : vector<32x32xf32>
    %cst_162 = arith.constant dense<0.000000e+00> : vector<32xf32>
    %293 = vector.multi_reduction <add>, %292, %cst_162 [1] : vector<32x32xf32> to vector<32xf32>
    %294 = vector.shape_cast %293 : vector<32xf32> to vector<32x1xf32>
    %cst_163 = arith.constant 3.200000e+01 : f32
    %295 = vector.broadcast %cst_163 : f32 to vector<32x1xf32>
    %296 = arith.divf %294, %295 : vector<32x1xf32>
    %297 = vector.broadcast %289 : vector<32x1xf32> to vector<32x32xf32>
    %298 = arith.subf %279, %297 : vector<32x32xf32>
    %cst_164 = arith.constant 9.99999974E-6 : f32
    %299 = vector.broadcast %cst_164 : f32 to vector<32x1xf32>
    %300 = arith.addf %296, %299 : vector<32x1xf32>
    %301 = math.rsqrt %300 : vector<32x1xf32>
    %302 = vector.broadcast %301 : vector<32x1xf32> to vector<32x32xf32>
    %303 = arith.mulf %298, %302 : vector<32x32xf32>
    %304 = vector.broadcast %283 : vector<1x32xf32> to vector<32x32xf32>
    %305 = arith.mulf %303, %304 : vector<32x32xf32>
    %306 = vector.broadcast %285 : vector<1x32xf32> to vector<32x32xf32>
    %307 = arith.addf %305, %306 : vector<32x32xf32>
    %308 = arith.truncf %307 : vector<32x32xf32> to vector<32x32xbf16>
    %c0_165 = arith.constant 0 : index
    %c0_166 = arith.constant 0 : index
    %c0_167 = arith.constant 0 : index
    %309 = vector.load %arg19[%c0_165, %c0_166, %c0_167] : memref<4x32x32xbf16, #tpu.memory_space<vmem>>, vector<1x32x32xbf16>
    %310 = vector.shape_cast %309 : vector<1x32x32xbf16> to vector<32x32xbf16>
    %cst_168 = arith.constant dense<0.000000e+00> : vector<32x32xf32>
    %311 = tpu.matmul %308, %310, %cst_168 {dimension_numbers = #tpu.dot_dimension_numbers<[1], [0], [0], [1], [0, 0, 1, 1], [], []>} : vector<32x32xbf16>, vector<32x32xbf16>, vector<32x32xf32> -> vector<32x32xf32>
    %c0_169 = arith.constant 0 : index
    %c0_170 = arith.constant 0 : index
    %c0_171 = arith.constant 0 : index
    %312 = vector.load %arg20[%c0_169, %c0_170, %c0_171] : memref<4x1x32xf32, #tpu.memory_space<vmem>>, vector<1x1x32xf32>
    %313 = vector.shape_cast %312 : vector<1x1x32xf32> to vector<1x32xf32>
    %314 = vector.broadcast %313 : vector<1x32xf32> to vector<32x32xf32>
    %315 = arith.addf %311, %314 : vector<32x32xf32>
    %c0_172 = arith.constant 0 : index
    %c0_173 = arith.constant 0 : index
    %c0_174 = arith.constant 0 : index
    %316 = vector.load %arg21[%c0_172, %c0_173, %c0_174] : memref<4x32x32xbf16, #tpu.memory_space<vmem>>, vector<1x32x32xbf16>
    %317 = vector.shape_cast %316 : vector<1x32x32xbf16> to vector<32x32xbf16>
    %cst_175 = arith.constant dense<0.000000e+00> : vector<32x32xf32>
    %318 = tpu.matmul %308, %317, %cst_175 {dimension_numbers = #tpu.dot_dimension_numbers<[1], [0], [0], [1], [0, 0, 1, 1], [], []>} : vector<32x32xbf16>, vector<32x32xbf16>, vector<32x32xf32> -> vector<32x32xf32>
    %c0_176 = arith.constant 0 : index
    %c0_177 = arith.constant 0 : index
    %c0_178 = arith.constant 0 : index
    %319 = vector.load %arg22[%c0_176, %c0_177, %c0_178] : memref<4x1x32xf32, #tpu.memory_space<vmem>>, vector<1x1x32xf32>
    %320 = vector.shape_cast %319 : vector<1x1x32xf32> to vector<1x32xf32>
    %321 = vector.broadcast %320 : vector<1x32xf32> to vector<32x32xf32>
    %322 = arith.addf %318, %321 : vector<32x32xf32>
    %c0_179 = arith.constant 0 : index
    %c0_180 = arith.constant 0 : index
    %c0_181 = arith.constant 0 : index
    %323 = vector.load %arg23[%c0_179, %c0_180, %c0_181] : memref<4x32x32xbf16, #tpu.memory_space<vmem>>, vector<1x32x32xbf16>
    %324 = vector.shape_cast %323 : vector<1x32x32xbf16> to vector<32x32xbf16>
    %cst_182 = arith.constant dense<0.000000e+00> : vector<32x32xf32>
    %325 = tpu.matmul %308, %324, %cst_182 {dimension_numbers = #tpu.dot_dimension_numbers<[1], [0], [0], [1], [0, 0, 1, 1], [], []>} : vector<32x32xbf16>, vector<32x32xbf16>, vector<32x32xf32> -> vector<32x32xf32>
    %c0_183 = arith.constant 0 : index
    %c0_184 = arith.constant 0 : index
    %c0_185 = arith.constant 0 : index
    %326 = vector.load %arg24[%c0_183, %c0_184, %c0_185] : memref<4x1x32xf32, #tpu.memory_space<vmem>>, vector<1x1x32xf32>
    %327 = vector.shape_cast %326 : vector<1x1x32xf32> to vector<1x32xf32>
    %328 = vector.broadcast %327 : vector<1x32xf32> to vector<32x32xf32>
    %329 = arith.addf %325, %328 : vector<32x32xf32>
    %330 = tpu.concatenate %315, %315, %315, %315, %315, %315, %315, %315 in 0 : vector<32x32xf32>, vector<32x32xf32>, vector<32x32xf32>, vector<32x32xf32>, vector<32x32xf32>, vector<32x32xf32>, vector<32x32xf32>, vector<32x32xf32> -> vector<256x32xf32>
    %331 = arith.mulf %330, %280 : vector<256x32xf32>
    %332 = arith.truncf %331 : vector<256x32xf32> to vector<256x32xbf16>
    %333 = arith.truncf %322 : vector<32x32xf32> to vector<32x32xbf16>
    %cst_186 = arith.constant dense<0.000000e+00> : vector<256x32xf32>
    %334 = tpu.matmul %332, %333, %cst_186 {dimension_numbers = #tpu.dot_dimension_numbers<[1], [1], [0], [0], [0, 0, 1, 0], [], []>} : vector<256x32xbf16>, vector<32x32xbf16>, vector<256x32xf32> -> vector<256x32xf32>
    %cst_187 = arith.constant 5.000000e-01 : f32
    %335 = vector.broadcast %cst_187 : f32 to vector<256x32xf32>
    %336 = arith.mulf %334, %335 : vector<256x32xf32>
    %337 = arith.addf %336, %281 : vector<256x32xf32>
    %cst_188 = arith.constant dense<0xFF800000> : vector<256xf32>
    %338 = vector.multi_reduction <maximumf>, %337, %cst_188 [1] : vector<256x32xf32> to vector<256xf32>
    %339 = vector.shape_cast %338 : vector<256xf32> to vector<256x1xf32>
    %340 = vector.broadcast %339 : vector<256x1xf32> to vector<256x32xf32>
    %341 = arith.subf %337, %340 : vector<256x32xf32>
    %342 = math.exp %341 : vector<256x32xf32>
    %cst_189 = arith.constant dense<0.000000e+00> : vector<256xf32>
    %343 = vector.multi_reduction <add>, %342, %cst_189 [1] : vector<256x32xf32> to vector<256xf32>
    %344 = vector.shape_cast %343 : vector<256xf32> to vector<256x1xf32>
    %345 = tpu.reciprocal %344 {approx = true} : vector<256x1xf32> -> vector<256x1xf32>
    %346 = vector.broadcast %345 : vector<256x1xf32> to vector<256x32xf32>
    %347 = arith.mulf %342, %346 : vector<256x32xf32>
    %348 = arith.truncf %347 : vector<256x32xf32> to vector<256x32xbf16>
    %349 = arith.truncf %329 : vector<32x32xf32> to vector<32x32xbf16>
    %cst_190 = arith.constant dense<0.000000e+00> : vector<256x32xf32>
    %350 = tpu.matmul %348, %349, %cst_190 {dimension_numbers = #tpu.dot_dimension_numbers<[1], [0], [0], [1], [0, 0, 1, 1], [], []>} : vector<256x32xbf16>, vector<32x32xbf16>, vector<256x32xf32> -> vector<256x32xf32>
    %351 = arith.mulf %350, %280 : vector<256x32xf32>
    %352 = vector.extract_strided_slice %351 {offsets = [0, 0], sizes = [32, 32], strides = [1, 1]} : vector<256x32xf32> to vector<32x32xf32>
    %353 = vector.extract_strided_slice %351 {offsets = [32, 0], sizes = [32, 32], strides = [1, 1]} : vector<256x32xf32> to vector<32x32xf32>
    %354 = vector.extract_strided_slice %351 {offsets = [64, 0], sizes = [32, 32], strides = [1, 1]} : vector<256x32xf32> to vector<32x32xf32>
    %355 = vector.extract_strided_slice %351 {offsets = [96, 0], sizes = [32, 32], strides = [1, 1]} : vector<256x32xf32> to vector<32x32xf32>
    %356 = vector.extract_strided_slice %351 {offsets = [128, 0], sizes = [32, 32], strides = [1, 1]} : vector<256x32xf32> to vector<32x32xf32>
    %357 = vector.extract_strided_slice %351 {offsets = [160, 0], sizes = [32, 32], strides = [1, 1]} : vector<256x32xf32> to vector<32x32xf32>
    %358 = vector.extract_strided_slice %351 {offsets = [192, 0], sizes = [32, 32], strides = [1, 1]} : vector<256x32xf32> to vector<32x32xf32>
    %359 = vector.extract_strided_slice %351 {offsets = [224, 0], sizes = [32, 32], strides = [1, 1]} : vector<256x32xf32> to vector<32x32xf32>
    %360 = arith.addf %352, %353 : vector<32x32xf32>
    %361 = arith.addf %354, %355 : vector<32x32xf32>
    %362 = arith.addf %356, %357 : vector<32x32xf32>
    %363 = arith.addf %358, %359 : vector<32x32xf32>
    %364 = arith.addf %360, %361 : vector<32x32xf32>
    %365 = arith.addf %362, %363 : vector<32x32xf32>
    %366 = arith.addf %364, %365 : vector<32x32xf32>
    %c0_191 = arith.constant 0 : index
    %c0_192 = arith.constant 0 : index
    %c0_193 = arith.constant 0 : index
    %367 = vector.load %arg25[%c0_191, %c0_192, %c0_193] : memref<4x32x32xbf16, #tpu.memory_space<vmem>>, vector<1x32x32xbf16>
    %368 = vector.shape_cast %367 : vector<1x32x32xbf16> to vector<32x32xbf16>
    %369 = arith.truncf %366 : vector<32x32xf32> to vector<32x32xbf16>
    %cst_194 = arith.constant dense<0.000000e+00> : vector<32x32xf32>
    %370 = tpu.matmul %369, %368, %cst_194 {dimension_numbers = #tpu.dot_dimension_numbers<[1], [0], [0], [1], [0, 0, 1, 1], [], []>} : vector<32x32xbf16>, vector<32x32xbf16>, vector<32x32xf32> -> vector<32x32xf32>
    %371 = arith.addf %279, %370 : vector<32x32xf32>
    %c0_195 = arith.constant 0 : index
    %c0_196 = arith.constant 0 : index
    %c0_197 = arith.constant 0 : index
    %372 = vector.load %arg26[%c0_195, %c0_196, %c0_197] : memref<4x1x32xf32, #tpu.memory_space<vmem>>, vector<1x1x32xf32>
    %373 = vector.shape_cast %372 : vector<1x1x32xf32> to vector<1x32xf32>
    %374 = vector.broadcast %373 : vector<1x32xf32> to vector<32x32xf32>
    %375 = arith.addf %371, %374 : vector<32x32xf32>
    %c0_198 = arith.constant 0 : index
    %c0_199 = arith.constant 0 : index
    %c0_200 = arith.constant 0 : index
    %376 = vector.load %arg27[%c0_198, %c0_199, %c0_200] : memref<4x1x32xf32, #tpu.memory_space<vmem>>, vector<1x1x32xf32>
    %377 = vector.shape_cast %376 : vector<1x1x32xf32> to vector<1x32xf32>
    %c0_201 = arith.constant 0 : index
    %c0_202 = arith.constant 0 : index
    %c0_203 = arith.constant 0 : index
    %378 = vector.load %arg28[%c0_201, %c0_202, %c0_203] : memref<4x1x32xf32, #tpu.memory_space<vmem>>, vector<1x1x32xf32>
    %379 = vector.shape_cast %378 : vector<1x1x32xf32> to vector<1x32xf32>
    %cst_204 = arith.constant dense<0.000000e+00> : vector<32xf32>
    %380 = vector.multi_reduction <add>, %375, %cst_204 [1] : vector<32x32xf32> to vector<32xf32>
    %381 = vector.shape_cast %380 : vector<32xf32> to vector<32x1xf32>
    %cst_205 = arith.constant 3.200000e+01 : f32
    %382 = vector.broadcast %cst_205 : f32 to vector<32x1xf32>
    %383 = arith.divf %381, %382 : vector<32x1xf32>
    %384 = vector.broadcast %383 : vector<32x1xf32> to vector<32x32xf32>
    %385 = arith.subf %375, %384 : vector<32x32xf32>
    %386 = arith.mulf %385, %385 : vector<32x32xf32>
    %cst_206 = arith.constant dense<0.000000e+00> : vector<32xf32>
    %387 = vector.multi_reduction <add>, %386, %cst_206 [1] : vector<32x32xf32> to vector<32xf32>
    %388 = vector.shape_cast %387 : vector<32xf32> to vector<32x1xf32>
    %cst_207 = arith.constant 3.200000e+01 : f32
    %389 = vector.broadcast %cst_207 : f32 to vector<32x1xf32>
    %390 = arith.divf %388, %389 : vector<32x1xf32>
    %391 = vector.broadcast %383 : vector<32x1xf32> to vector<32x32xf32>
    %392 = arith.subf %375, %391 : vector<32x32xf32>
    %cst_208 = arith.constant 9.99999974E-6 : f32
    %393 = vector.broadcast %cst_208 : f32 to vector<32x1xf32>
    %394 = arith.addf %390, %393 : vector<32x1xf32>
    %395 = math.rsqrt %394 : vector<32x1xf32>
    %396 = vector.broadcast %395 : vector<32x1xf32> to vector<32x32xf32>
    %397 = arith.mulf %392, %396 : vector<32x32xf32>
    %398 = vector.broadcast %377 : vector<1x32xf32> to vector<32x32xf32>
    %399 = arith.mulf %397, %398 : vector<32x32xf32>
    %400 = vector.broadcast %379 : vector<1x32xf32> to vector<32x32xf32>
    %401 = arith.addf %399, %400 : vector<32x32xf32>
    %c0_209 = arith.constant 0 : index
    %c0_210 = arith.constant 0 : index
    %c0_211 = arith.constant 0 : index
    %402 = vector.load %arg29[%c0_209, %c0_210, %c0_211] : memref<4x32x64xbf16, #tpu.memory_space<vmem>>, vector<1x32x64xbf16>
    %403 = vector.shape_cast %402 : vector<1x32x64xbf16> to vector<32x64xbf16>
    %404 = arith.truncf %401 : vector<32x32xf32> to vector<32x32xbf16>
    %cst_212 = arith.constant dense<0.000000e+00> : vector<32x64xf32>
    %405 = tpu.matmul %404, %403, %cst_212 {dimension_numbers = #tpu.dot_dimension_numbers<[1], [0], [0], [1], [0, 0, 1, 1], [], []>} : vector<32x32xbf16>, vector<32x64xbf16>, vector<32x64xf32> -> vector<32x64xf32>
    %c0_213 = arith.constant 0 : index
    %c0_214 = arith.constant 0 : index
    %c0_215 = arith.constant 0 : index
    %406 = vector.load %arg30[%c0_213, %c0_214, %c0_215] : memref<4x1x64xf32, #tpu.memory_space<vmem>>, vector<1x1x64xf32>
    %407 = vector.shape_cast %406 : vector<1x1x64xf32> to vector<1x64xf32>
    %408 = vector.broadcast %407 : vector<1x64xf32> to vector<32x64xf32>
    %409 = arith.addf %405, %408 : vector<32x64xf32>
    %cst_216 = arith.constant 0.000000e+00 : f32
    %410 = vector.broadcast %cst_216 : f32 to vector<32x64xf32>
    %411 = arith.maximumf %409, %410 : vector<32x64xf32>
    %c0_217 = arith.constant 0 : index
    %c0_218 = arith.constant 0 : index
    %c0_219 = arith.constant 0 : index
    %412 = vector.load %arg31[%c0_217, %c0_218, %c0_219] : memref<4x64x32xbf16, #tpu.memory_space<vmem>>, vector<1x64x32xbf16>
    %413 = vector.shape_cast %412 : vector<1x64x32xbf16> to vector<64x32xbf16>
    %414 = arith.truncf %411 : vector<32x64xf32> to vector<32x64xbf16>
    %cst_220 = arith.constant dense<0.000000e+00> : vector<32x32xf32>
    %415 = tpu.matmul %414, %413, %cst_220 {dimension_numbers = #tpu.dot_dimension_numbers<[1], [0], [0], [1], [0, 0, 1, 1], [], []>} : vector<32x64xbf16>, vector<64x32xbf16>, vector<32x32xf32> -> vector<32x32xf32>
    %416 = arith.addf %375, %415 : vector<32x32xf32>
    %c0_221 = arith.constant 0 : index
    %c0_222 = arith.constant 0 : index
    %c0_223 = arith.constant 0 : index
    %417 = vector.load %arg32[%c0_221, %c0_222, %c0_223] : memref<4x1x32xf32, #tpu.memory_space<vmem>>, vector<1x1x32xf32>
    %418 = vector.shape_cast %417 : vector<1x1x32xf32> to vector<1x32xf32>
    %419 = vector.broadcast %418 : vector<1x32xf32> to vector<32x32xf32>
    %420 = arith.addf %416, %419 : vector<32x32xf32>
    %c1_224 = arith.constant 1 : index
    %c0_225 = arith.constant 0 : index
    %c0_226 = arith.constant 0 : index
    %421 = vector.load %arg17[%c1_224, %c0_225, %c0_226] : memref<4x1x32xf32, #tpu.memory_space<vmem>>, vector<1x1x32xf32>
    %422 = vector.shape_cast %421 : vector<1x1x32xf32> to vector<1x32xf32>
    %c1_227 = arith.constant 1 : index
    %c0_228 = arith.constant 0 : index
    %c0_229 = arith.constant 0 : index
    %423 = vector.load %arg18[%c1_227, %c0_228, %c0_229] : memref<4x1x32xf32, #tpu.memory_space<vmem>>, vector<1x1x32xf32>
    %424 = vector.shape_cast %423 : vector<1x1x32xf32> to vector<1x32xf32>
    %cst_230 = arith.constant dense<0.000000e+00> : vector<32xf32>
    %425 = vector.multi_reduction <add>, %420, %cst_230 [1] : vector<32x32xf32> to vector<32xf32>
    %426 = vector.shape_cast %425 : vector<32xf32> to vector<32x1xf32>
    %cst_231 = arith.constant 3.200000e+01 : f32
    %427 = vector.broadcast %cst_231 : f32 to vector<32x1xf32>
    %428 = arith.divf %426, %427 : vector<32x1xf32>
    %429 = vector.broadcast %428 : vector<32x1xf32> to vector<32x32xf32>
    %430 = arith.subf %420, %429 : vector<32x32xf32>
    %431 = arith.mulf %430, %430 : vector<32x32xf32>
    %cst_232 = arith.constant dense<0.000000e+00> : vector<32xf32>
    %432 = vector.multi_reduction <add>, %431, %cst_232 [1] : vector<32x32xf32> to vector<32xf32>
    %433 = vector.shape_cast %432 : vector<32xf32> to vector<32x1xf32>
    %cst_233 = arith.constant 3.200000e+01 : f32
    %434 = vector.broadcast %cst_233 : f32 to vector<32x1xf32>
    %435 = arith.divf %433, %434 : vector<32x1xf32>
    %436 = vector.broadcast %428 : vector<32x1xf32> to vector<32x32xf32>
    %437 = arith.subf %420, %436 : vector<32x32xf32>
    %cst_234 = arith.constant 9.99999974E-6 : f32
    %438 = vector.broadcast %cst_234 : f32 to vector<32x1xf32>
    %439 = arith.addf %435, %438 : vector<32x1xf32>
    %440 = math.rsqrt %439 : vector<32x1xf32>
    %441 = vector.broadcast %440 : vector<32x1xf32> to vector<32x32xf32>
    %442 = arith.mulf %437, %441 : vector<32x32xf32>
    %443 = vector.broadcast %422 : vector<1x32xf32> to vector<32x32xf32>
    %444 = arith.mulf %442, %443 : vector<32x32xf32>
    %445 = vector.broadcast %424 : vector<1x32xf32> to vector<32x32xf32>
    %446 = arith.addf %444, %445 : vector<32x32xf32>
    %447 = arith.truncf %446 : vector<32x32xf32> to vector<32x32xbf16>
    %c1_235 = arith.constant 1 : index
    %c0_236 = arith.constant 0 : index
    %c0_237 = arith.constant 0 : index
    %448 = vector.load %arg19[%c1_235, %c0_236, %c0_237] : memref<4x32x32xbf16, #tpu.memory_space<vmem>>, vector<1x32x32xbf16>
    %449 = vector.shape_cast %448 : vector<1x32x32xbf16> to vector<32x32xbf16>
    %cst_238 = arith.constant dense<0.000000e+00> : vector<32x32xf32>
    %450 = tpu.matmul %447, %449, %cst_238 {dimension_numbers = #tpu.dot_dimension_numbers<[1], [0], [0], [1], [0, 0, 1, 1], [], []>} : vector<32x32xbf16>, vector<32x32xbf16>, vector<32x32xf32> -> vector<32x32xf32>
    %c1_239 = arith.constant 1 : index
    %c0_240 = arith.constant 0 : index
    %c0_241 = arith.constant 0 : index
    %451 = vector.load %arg20[%c1_239, %c0_240, %c0_241] : memref<4x1x32xf32, #tpu.memory_space<vmem>>, vector<1x1x32xf32>
    %452 = vector.shape_cast %451 : vector<1x1x32xf32> to vector<1x32xf32>
    %453 = vector.broadcast %452 : vector<1x32xf32> to vector<32x32xf32>
    %454 = arith.addf %450, %453 : vector<32x32xf32>
    %c1_242 = arith.constant 1 : index
    %c0_243 = arith.constant 0 : index
    %c0_244 = arith.constant 0 : index
    %455 = vector.load %arg21[%c1_242, %c0_243, %c0_244] : memref<4x32x32xbf16, #tpu.memory_space<vmem>>, vector<1x32x32xbf16>
    %456 = vector.shape_cast %455 : vector<1x32x32xbf16> to vector<32x32xbf16>
    %cst_245 = arith.constant dense<0.000000e+00> : vector<32x32xf32>
    %457 = tpu.matmul %447, %456, %cst_245 {dimension_numbers = #tpu.dot_dimension_numbers<[1], [0], [0], [1], [0, 0, 1, 1], [], []>} : vector<32x32xbf16>, vector<32x32xbf16>, vector<32x32xf32> -> vector<32x32xf32>
    %c1_246 = arith.constant 1 : index
    %c0_247 = arith.constant 0 : index
    %c0_248 = arith.constant 0 : index
    %458 = vector.load %arg22[%c1_246, %c0_247, %c0_248] : memref<4x1x32xf32, #tpu.memory_space<vmem>>, vector<1x1x32xf32>
    %459 = vector.shape_cast %458 : vector<1x1x32xf32> to vector<1x32xf32>
    %460 = vector.broadcast %459 : vector<1x32xf32> to vector<32x32xf32>
    %461 = arith.addf %457, %460 : vector<32x32xf32>
    %c1_249 = arith.constant 1 : index
    %c0_250 = arith.constant 0 : index
    %c0_251 = arith.constant 0 : index
    %462 = vector.load %arg23[%c1_249, %c0_250, %c0_251] : memref<4x32x32xbf16, #tpu.memory_space<vmem>>, vector<1x32x32xbf16>
    %463 = vector.shape_cast %462 : vector<1x32x32xbf16> to vector<32x32xbf16>
    %cst_252 = arith.constant dense<0.000000e+00> : vector<32x32xf32>
    %464 = tpu.matmul %447, %463, %cst_252 {dimension_numbers = #tpu.dot_dimension_numbers<[1], [0], [0], [1], [0, 0, 1, 1], [], []>} : vector<32x32xbf16>, vector<32x32xbf16>, vector<32x32xf32> -> vector<32x32xf32>
    %c1_253 = arith.constant 1 : index
    %c0_254 = arith.constant 0 : index
    %c0_255 = arith.constant 0 : index
    %465 = vector.load %arg24[%c1_253, %c0_254, %c0_255] : memref<4x1x32xf32, #tpu.memory_space<vmem>>, vector<1x1x32xf32>
    %466 = vector.shape_cast %465 : vector<1x1x32xf32> to vector<1x32xf32>
    %467 = vector.broadcast %466 : vector<1x32xf32> to vector<32x32xf32>
    %468 = arith.addf %464, %467 : vector<32x32xf32>
    %469 = tpu.concatenate %454, %454, %454, %454, %454, %454, %454, %454 in 0 : vector<32x32xf32>, vector<32x32xf32>, vector<32x32xf32>, vector<32x32xf32>, vector<32x32xf32>, vector<32x32xf32>, vector<32x32xf32>, vector<32x32xf32> -> vector<256x32xf32>
    %470 = arith.mulf %469, %280 : vector<256x32xf32>
    %471 = arith.truncf %470 : vector<256x32xf32> to vector<256x32xbf16>
    %472 = arith.truncf %461 : vector<32x32xf32> to vector<32x32xbf16>
    %cst_256 = arith.constant dense<0.000000e+00> : vector<256x32xf32>
    %473 = tpu.matmul %471, %472, %cst_256 {dimension_numbers = #tpu.dot_dimension_numbers<[1], [1], [0], [0], [0, 0, 1, 0], [], []>} : vector<256x32xbf16>, vector<32x32xbf16>, vector<256x32xf32> -> vector<256x32xf32>
    %cst_257 = arith.constant 5.000000e-01 : f32
    %474 = vector.broadcast %cst_257 : f32 to vector<256x32xf32>
    %475 = arith.mulf %473, %474 : vector<256x32xf32>
    %476 = arith.addf %475, %281 : vector<256x32xf32>
    %cst_258 = arith.constant dense<0xFF800000> : vector<256xf32>
    %477 = vector.multi_reduction <maximumf>, %476, %cst_258 [1] : vector<256x32xf32> to vector<256xf32>
    %478 = vector.shape_cast %477 : vector<256xf32> to vector<256x1xf32>
    %479 = vector.broadcast %478 : vector<256x1xf32> to vector<256x32xf32>
    %480 = arith.subf %476, %479 : vector<256x32xf32>
    %481 = math.exp %480 : vector<256x32xf32>
    %cst_259 = arith.constant dense<0.000000e+00> : vector<256xf32>
    %482 = vector.multi_reduction <add>, %481, %cst_259 [1] : vector<256x32xf32> to vector<256xf32>
    %483 = vector.shape_cast %482 : vector<256xf32> to vector<256x1xf32>
    %484 = tpu.reciprocal %483 {approx = true} : vector<256x1xf32> -> vector<256x1xf32>
    %485 = vector.broadcast %484 : vector<256x1xf32> to vector<256x32xf32>
    %486 = arith.mulf %481, %485 : vector<256x32xf32>
    %487 = arith.truncf %486 : vector<256x32xf32> to vector<256x32xbf16>
    %488 = arith.truncf %468 : vector<32x32xf32> to vector<32x32xbf16>
    %cst_260 = arith.constant dense<0.000000e+00> : vector<256x32xf32>
    %489 = tpu.matmul %487, %488, %cst_260 {dimension_numbers = #tpu.dot_dimension_numbers<[1], [0], [0], [1], [0, 0, 1, 1], [], []>} : vector<256x32xbf16>, vector<32x32xbf16>, vector<256x32xf32> -> vector<256x32xf32>
    %490 = arith.mulf %489, %280 : vector<256x32xf32>
    %491 = vector.extract_strided_slice %490 {offsets = [0, 0], sizes = [32, 32], strides = [1, 1]} : vector<256x32xf32> to vector<32x32xf32>
    %492 = vector.extract_strided_slice %490 {offsets = [32, 0], sizes = [32, 32], strides = [1, 1]} : vector<256x32xf32> to vector<32x32xf32>
    %493 = vector.extract_strided_slice %490 {offsets = [64, 0], sizes = [32, 32], strides = [1, 1]} : vector<256x32xf32> to vector<32x32xf32>
    %494 = vector.extract_strided_slice %490 {offsets = [96, 0], sizes = [32, 32], strides = [1, 1]} : vector<256x32xf32> to vector<32x32xf32>
    %495 = vector.extract_strided_slice %490 {offsets = [128, 0], sizes = [32, 32], strides = [1, 1]} : vector<256x32xf32> to vector<32x32xf32>
    %496 = vector.extract_strided_slice %490 {offsets = [160, 0], sizes = [32, 32], strides = [1, 1]} : vector<256x32xf32> to vector<32x32xf32>
    %497 = vector.extract_strided_slice %490 {offsets = [192, 0], sizes = [32, 32], strides = [1, 1]} : vector<256x32xf32> to vector<32x32xf32>
    %498 = vector.extract_strided_slice %490 {offsets = [224, 0], sizes = [32, 32], strides = [1, 1]} : vector<256x32xf32> to vector<32x32xf32>
    %499 = arith.addf %491, %492 : vector<32x32xf32>
    %500 = arith.addf %493, %494 : vector<32x32xf32>
    %501 = arith.addf %495, %496 : vector<32x32xf32>
    %502 = arith.addf %497, %498 : vector<32x32xf32>
    %503 = arith.addf %499, %500 : vector<32x32xf32>
    %504 = arith.addf %501, %502 : vector<32x32xf32>
    %505 = arith.addf %503, %504 : vector<32x32xf32>
    %c1_261 = arith.constant 1 : index
    %c0_262 = arith.constant 0 : index
    %c0_263 = arith.constant 0 : index
    %506 = vector.load %arg25[%c1_261, %c0_262, %c0_263] : memref<4x32x32xbf16, #tpu.memory_space<vmem>>, vector<1x32x32xbf16>
    %507 = vector.shape_cast %506 : vector<1x32x32xbf16> to vector<32x32xbf16>
    %508 = arith.truncf %505 : vector<32x32xf32> to vector<32x32xbf16>
    %cst_264 = arith.constant dense<0.000000e+00> : vector<32x32xf32>
    %509 = tpu.matmul %508, %507, %cst_264 {dimension_numbers = #tpu.dot_dimension_numbers<[1], [0], [0], [1], [0, 0, 1, 1], [], []>} : vector<32x32xbf16>, vector<32x32xbf16>, vector<32x32xf32> -> vector<32x32xf32>
    %510 = arith.addf %420, %509 : vector<32x32xf32>
    %c1_265 = arith.constant 1 : index
    %c0_266 = arith.constant 0 : index
    %c0_267 = arith.constant 0 : index
    %511 = vector.load %arg26[%c1_265, %c0_266, %c0_267] : memref<4x1x32xf32, #tpu.memory_space<vmem>>, vector<1x1x32xf32>
    %512 = vector.shape_cast %511 : vector<1x1x32xf32> to vector<1x32xf32>
    %513 = vector.broadcast %512 : vector<1x32xf32> to vector<32x32xf32>
    %514 = arith.addf %510, %513 : vector<32x32xf32>
    %c1_268 = arith.constant 1 : index
    %c0_269 = arith.constant 0 : index
    %c0_270 = arith.constant 0 : index
    %515 = vector.load %arg27[%c1_268, %c0_269, %c0_270] : memref<4x1x32xf32, #tpu.memory_space<vmem>>, vector<1x1x32xf32>
    %516 = vector.shape_cast %515 : vector<1x1x32xf32> to vector<1x32xf32>
    %c1_271 = arith.constant 1 : index
    %c0_272 = arith.constant 0 : index
    %c0_273 = arith.constant 0 : index
    %517 = vector.load %arg28[%c1_271, %c0_272, %c0_273] : memref<4x1x32xf32, #tpu.memory_space<vmem>>, vector<1x1x32xf32>
    %518 = vector.shape_cast %517 : vector<1x1x32xf32> to vector<1x32xf32>
    %cst_274 = arith.constant dense<0.000000e+00> : vector<32xf32>
    %519 = vector.multi_reduction <add>, %514, %cst_274 [1] : vector<32x32xf32> to vector<32xf32>
    %520 = vector.shape_cast %519 : vector<32xf32> to vector<32x1xf32>
    %cst_275 = arith.constant 3.200000e+01 : f32
    %521 = vector.broadcast %cst_275 : f32 to vector<32x1xf32>
    %522 = arith.divf %520, %521 : vector<32x1xf32>
    %523 = vector.broadcast %522 : vector<32x1xf32> to vector<32x32xf32>
    %524 = arith.subf %514, %523 : vector<32x32xf32>
    %525 = arith.mulf %524, %524 : vector<32x32xf32>
    %cst_276 = arith.constant dense<0.000000e+00> : vector<32xf32>
    %526 = vector.multi_reduction <add>, %525, %cst_276 [1] : vector<32x32xf32> to vector<32xf32>
    %527 = vector.shape_cast %526 : vector<32xf32> to vector<32x1xf32>
    %cst_277 = arith.constant 3.200000e+01 : f32
    %528 = vector.broadcast %cst_277 : f32 to vector<32x1xf32>
    %529 = arith.divf %527, %528 : vector<32x1xf32>
    %530 = vector.broadcast %522 : vector<32x1xf32> to vector<32x32xf32>
    %531 = arith.subf %514, %530 : vector<32x32xf32>
    %cst_278 = arith.constant 9.99999974E-6 : f32
    %532 = vector.broadcast %cst_278 : f32 to vector<32x1xf32>
    %533 = arith.addf %529, %532 : vector<32x1xf32>
    %534 = math.rsqrt %533 : vector<32x1xf32>
    %535 = vector.broadcast %534 : vector<32x1xf32> to vector<32x32xf32>
    %536 = arith.mulf %531, %535 : vector<32x32xf32>
    %537 = vector.broadcast %516 : vector<1x32xf32> to vector<32x32xf32>
    %538 = arith.mulf %536, %537 : vector<32x32xf32>
    %539 = vector.broadcast %518 : vector<1x32xf32> to vector<32x32xf32>
    %540 = arith.addf %538, %539 : vector<32x32xf32>
    %c1_279 = arith.constant 1 : index
    %c0_280 = arith.constant 0 : index
    %c0_281 = arith.constant 0 : index
    %541 = vector.load %arg29[%c1_279, %c0_280, %c0_281] : memref<4x32x64xbf16, #tpu.memory_space<vmem>>, vector<1x32x64xbf16>
    %542 = vector.shape_cast %541 : vector<1x32x64xbf16> to vector<32x64xbf16>
    %543 = arith.truncf %540 : vector<32x32xf32> to vector<32x32xbf16>
    %cst_282 = arith.constant dense<0.000000e+00> : vector<32x64xf32>
    %544 = tpu.matmul %543, %542, %cst_282 {dimension_numbers = #tpu.dot_dimension_numbers<[1], [0], [0], [1], [0, 0, 1, 1], [], []>} : vector<32x32xbf16>, vector<32x64xbf16>, vector<32x64xf32> -> vector<32x64xf32>
    %c1_283 = arith.constant 1 : index
    %c0_284 = arith.constant 0 : index
    %c0_285 = arith.constant 0 : index
    %545 = vector.load %arg30[%c1_283, %c0_284, %c0_285] : memref<4x1x64xf32, #tpu.memory_space<vmem>>, vector<1x1x64xf32>
    %546 = vector.shape_cast %545 : vector<1x1x64xf32> to vector<1x64xf32>
    %547 = vector.broadcast %546 : vector<1x64xf32> to vector<32x64xf32>
    %548 = arith.addf %544, %547 : vector<32x64xf32>
    %cst_286 = arith.constant 0.000000e+00 : f32
    %549 = vector.broadcast %cst_286 : f32 to vector<32x64xf32>
    %550 = arith.maximumf %548, %549 : vector<32x64xf32>
    %c1_287 = arith.constant 1 : index
    %c0_288 = arith.constant 0 : index
    %c0_289 = arith.constant 0 : index
    %551 = vector.load %arg31[%c1_287, %c0_288, %c0_289] : memref<4x64x32xbf16, #tpu.memory_space<vmem>>, vector<1x64x32xbf16>
    %552 = vector.shape_cast %551 : vector<1x64x32xbf16> to vector<64x32xbf16>
    %553 = arith.truncf %550 : vector<32x64xf32> to vector<32x64xbf16>
    %cst_290 = arith.constant dense<0.000000e+00> : vector<32x32xf32>
    %554 = tpu.matmul %553, %552, %cst_290 {dimension_numbers = #tpu.dot_dimension_numbers<[1], [0], [0], [1], [0, 0, 1, 1], [], []>} : vector<32x64xbf16>, vector<64x32xbf16>, vector<32x32xf32> -> vector<32x32xf32>
    %555 = arith.addf %514, %554 : vector<32x32xf32>
    %c1_291 = arith.constant 1 : index
    %c0_292 = arith.constant 0 : index
    %c0_293 = arith.constant 0 : index
    %556 = vector.load %arg32[%c1_291, %c0_292, %c0_293] : memref<4x1x32xf32, #tpu.memory_space<vmem>>, vector<1x1x32xf32>
    %557 = vector.shape_cast %556 : vector<1x1x32xf32> to vector<1x32xf32>
    %558 = vector.broadcast %557 : vector<1x32xf32> to vector<32x32xf32>
    %559 = arith.addf %555, %558 : vector<32x32xf32>
    %c2_294 = arith.constant 2 : index
    %c0_295 = arith.constant 0 : index
    %c0_296 = arith.constant 0 : index
    %560 = vector.load %arg17[%c2_294, %c0_295, %c0_296] : memref<4x1x32xf32, #tpu.memory_space<vmem>>, vector<1x1x32xf32>
    %561 = vector.shape_cast %560 : vector<1x1x32xf32> to vector<1x32xf32>
    %c2_297 = arith.constant 2 : index
    %c0_298 = arith.constant 0 : index
    %c0_299 = arith.constant 0 : index
    %562 = vector.load %arg18[%c2_297, %c0_298, %c0_299] : memref<4x1x32xf32, #tpu.memory_space<vmem>>, vector<1x1x32xf32>
    %563 = vector.shape_cast %562 : vector<1x1x32xf32> to vector<1x32xf32>
    %cst_300 = arith.constant dense<0.000000e+00> : vector<32xf32>
    %564 = vector.multi_reduction <add>, %559, %cst_300 [1] : vector<32x32xf32> to vector<32xf32>
    %565 = vector.shape_cast %564 : vector<32xf32> to vector<32x1xf32>
    %cst_301 = arith.constant 3.200000e+01 : f32
    %566 = vector.broadcast %cst_301 : f32 to vector<32x1xf32>
    %567 = arith.divf %565, %566 : vector<32x1xf32>
    %568 = vector.broadcast %567 : vector<32x1xf32> to vector<32x32xf32>
    %569 = arith.subf %559, %568 : vector<32x32xf32>
    %570 = arith.mulf %569, %569 : vector<32x32xf32>
    %cst_302 = arith.constant dense<0.000000e+00> : vector<32xf32>
    %571 = vector.multi_reduction <add>, %570, %cst_302 [1] : vector<32x32xf32> to vector<32xf32>
    %572 = vector.shape_cast %571 : vector<32xf32> to vector<32x1xf32>
    %cst_303 = arith.constant 3.200000e+01 : f32
    %573 = vector.broadcast %cst_303 : f32 to vector<32x1xf32>
    %574 = arith.divf %572, %573 : vector<32x1xf32>
    %575 = vector.broadcast %567 : vector<32x1xf32> to vector<32x32xf32>
    %576 = arith.subf %559, %575 : vector<32x32xf32>
    %cst_304 = arith.constant 9.99999974E-6 : f32
    %577 = vector.broadcast %cst_304 : f32 to vector<32x1xf32>
    %578 = arith.addf %574, %577 : vector<32x1xf32>
    %579 = math.rsqrt %578 : vector<32x1xf32>
    %580 = vector.broadcast %579 : vector<32x1xf32> to vector<32x32xf32>
    %581 = arith.mulf %576, %580 : vector<32x32xf32>
    %582 = vector.broadcast %561 : vector<1x32xf32> to vector<32x32xf32>
    %583 = arith.mulf %581, %582 : vector<32x32xf32>
    %584 = vector.broadcast %563 : vector<1x32xf32> to vector<32x32xf32>
    %585 = arith.addf %583, %584 : vector<32x32xf32>
    %586 = arith.truncf %585 : vector<32x32xf32> to vector<32x32xbf16>
    %c2_305 = arith.constant 2 : index
    %c0_306 = arith.constant 0 : index
    %c0_307 = arith.constant 0 : index
    %587 = vector.load %arg19[%c2_305, %c0_306, %c0_307] : memref<4x32x32xbf16, #tpu.memory_space<vmem>>, vector<1x32x32xbf16>
    %588 = vector.shape_cast %587 : vector<1x32x32xbf16> to vector<32x32xbf16>
    %cst_308 = arith.constant dense<0.000000e+00> : vector<32x32xf32>
    %589 = tpu.matmul %586, %588, %cst_308 {dimension_numbers = #tpu.dot_dimension_numbers<[1], [0], [0], [1], [0, 0, 1, 1], [], []>} : vector<32x32xbf16>, vector<32x32xbf16>, vector<32x32xf32> -> vector<32x32xf32>
    %c2_309 = arith.constant 2 : index
    %c0_310 = arith.constant 0 : index
    %c0_311 = arith.constant 0 : index
    %590 = vector.load %arg20[%c2_309, %c0_310, %c0_311] : memref<4x1x32xf32, #tpu.memory_space<vmem>>, vector<1x1x32xf32>
    %591 = vector.shape_cast %590 : vector<1x1x32xf32> to vector<1x32xf32>
    %592 = vector.broadcast %591 : vector<1x32xf32> to vector<32x32xf32>
    %593 = arith.addf %589, %592 : vector<32x32xf32>
    %c2_312 = arith.constant 2 : index
    %c0_313 = arith.constant 0 : index
    %c0_314 = arith.constant 0 : index
    %594 = vector.load %arg21[%c2_312, %c0_313, %c0_314] : memref<4x32x32xbf16, #tpu.memory_space<vmem>>, vector<1x32x32xbf16>
    %595 = vector.shape_cast %594 : vector<1x32x32xbf16> to vector<32x32xbf16>
    %cst_315 = arith.constant dense<0.000000e+00> : vector<32x32xf32>
    %596 = tpu.matmul %586, %595, %cst_315 {dimension_numbers = #tpu.dot_dimension_numbers<[1], [0], [0], [1], [0, 0, 1, 1], [], []>} : vector<32x32xbf16>, vector<32x32xbf16>, vector<32x32xf32> -> vector<32x32xf32>
    %c2_316 = arith.constant 2 : index
    %c0_317 = arith.constant 0 : index
    %c0_318 = arith.constant 0 : index
    %597 = vector.load %arg22[%c2_316, %c0_317, %c0_318] : memref<4x1x32xf32, #tpu.memory_space<vmem>>, vector<1x1x32xf32>
    %598 = vector.shape_cast %597 : vector<1x1x32xf32> to vector<1x32xf32>
    %599 = vector.broadcast %598 : vector<1x32xf32> to vector<32x32xf32>
    %600 = arith.addf %596, %599 : vector<32x32xf32>
    %c2_319 = arith.constant 2 : index
    %c0_320 = arith.constant 0 : index
    %c0_321 = arith.constant 0 : index
    %601 = vector.load %arg23[%c2_319, %c0_320, %c0_321] : memref<4x32x32xbf16, #tpu.memory_space<vmem>>, vector<1x32x32xbf16>
    %602 = vector.shape_cast %601 : vector<1x32x32xbf16> to vector<32x32xbf16>
    %cst_322 = arith.constant dense<0.000000e+00> : vector<32x32xf32>
    %603 = tpu.matmul %586, %602, %cst_322 {dimension_numbers = #tpu.dot_dimension_numbers<[1], [0], [0], [1], [0, 0, 1, 1], [], []>} : vector<32x32xbf16>, vector<32x32xbf16>, vector<32x32xf32> -> vector<32x32xf32>
    %c2_323 = arith.constant 2 : index
    %c0_324 = arith.constant 0 : index
    %c0_325 = arith.constant 0 : index
    %604 = vector.load %arg24[%c2_323, %c0_324, %c0_325] : memref<4x1x32xf32, #tpu.memory_space<vmem>>, vector<1x1x32xf32>
    %605 = vector.shape_cast %604 : vector<1x1x32xf32> to vector<1x32xf32>
    %606 = vector.broadcast %605 : vector<1x32xf32> to vector<32x32xf32>
    %607 = arith.addf %603, %606 : vector<32x32xf32>
    %608 = tpu.concatenate %593, %593, %593, %593, %593, %593, %593, %593 in 0 : vector<32x32xf32>, vector<32x32xf32>, vector<32x32xf32>, vector<32x32xf32>, vector<32x32xf32>, vector<32x32xf32>, vector<32x32xf32>, vector<32x32xf32> -> vector<256x32xf32>
    %609 = arith.mulf %608, %280 : vector<256x32xf32>
    %610 = arith.truncf %609 : vector<256x32xf32> to vector<256x32xbf16>
    %611 = arith.truncf %600 : vector<32x32xf32> to vector<32x32xbf16>
    %cst_326 = arith.constant dense<0.000000e+00> : vector<256x32xf32>
    %612 = tpu.matmul %610, %611, %cst_326 {dimension_numbers = #tpu.dot_dimension_numbers<[1], [1], [0], [0], [0, 0, 1, 0], [], []>} : vector<256x32xbf16>, vector<32x32xbf16>, vector<256x32xf32> -> vector<256x32xf32>
    %cst_327 = arith.constant 5.000000e-01 : f32
    %613 = vector.broadcast %cst_327 : f32 to vector<256x32xf32>
    %614 = arith.mulf %612, %613 : vector<256x32xf32>
    %615 = arith.addf %614, %281 : vector<256x32xf32>
    %cst_328 = arith.constant dense<0xFF800000> : vector<256xf32>
    %616 = vector.multi_reduction <maximumf>, %615, %cst_328 [1] : vector<256x32xf32> to vector<256xf32>
    %617 = vector.shape_cast %616 : vector<256xf32> to vector<256x1xf32>
    %618 = vector.broadcast %617 : vector<256x1xf32> to vector<256x32xf32>
    %619 = arith.subf %615, %618 : vector<256x32xf32>
    %620 = math.exp %619 : vector<256x32xf32>
    %cst_329 = arith.constant dense<0.000000e+00> : vector<256xf32>
    %621 = vector.multi_reduction <add>, %620, %cst_329 [1] : vector<256x32xf32> to vector<256xf32>
    %622 = vector.shape_cast %621 : vector<256xf32> to vector<256x1xf32>
    %623 = tpu.reciprocal %622 {approx = true} : vector<256x1xf32> -> vector<256x1xf32>
    %624 = vector.broadcast %623 : vector<256x1xf32> to vector<256x32xf32>
    %625 = arith.mulf %620, %624 : vector<256x32xf32>
    %626 = arith.truncf %625 : vector<256x32xf32> to vector<256x32xbf16>
    %627 = arith.truncf %607 : vector<32x32xf32> to vector<32x32xbf16>
    %cst_330 = arith.constant dense<0.000000e+00> : vector<256x32xf32>
    %628 = tpu.matmul %626, %627, %cst_330 {dimension_numbers = #tpu.dot_dimension_numbers<[1], [0], [0], [1], [0, 0, 1, 1], [], []>} : vector<256x32xbf16>, vector<32x32xbf16>, vector<256x32xf32> -> vector<256x32xf32>
    %629 = arith.mulf %628, %280 : vector<256x32xf32>
    %630 = vector.extract_strided_slice %629 {offsets = [0, 0], sizes = [32, 32], strides = [1, 1]} : vector<256x32xf32> to vector<32x32xf32>
    %631 = vector.extract_strided_slice %629 {offsets = [32, 0], sizes = [32, 32], strides = [1, 1]} : vector<256x32xf32> to vector<32x32xf32>
    %632 = vector.extract_strided_slice %629 {offsets = [64, 0], sizes = [32, 32], strides = [1, 1]} : vector<256x32xf32> to vector<32x32xf32>
    %633 = vector.extract_strided_slice %629 {offsets = [96, 0], sizes = [32, 32], strides = [1, 1]} : vector<256x32xf32> to vector<32x32xf32>
    %634 = vector.extract_strided_slice %629 {offsets = [128, 0], sizes = [32, 32], strides = [1, 1]} : vector<256x32xf32> to vector<32x32xf32>
    %635 = vector.extract_strided_slice %629 {offsets = [160, 0], sizes = [32, 32], strides = [1, 1]} : vector<256x32xf32> to vector<32x32xf32>
    %636 = vector.extract_strided_slice %629 {offsets = [192, 0], sizes = [32, 32], strides = [1, 1]} : vector<256x32xf32> to vector<32x32xf32>
    %637 = vector.extract_strided_slice %629 {offsets = [224, 0], sizes = [32, 32], strides = [1, 1]} : vector<256x32xf32> to vector<32x32xf32>
    %638 = arith.addf %630, %631 : vector<32x32xf32>
    %639 = arith.addf %632, %633 : vector<32x32xf32>
    %640 = arith.addf %634, %635 : vector<32x32xf32>
    %641 = arith.addf %636, %637 : vector<32x32xf32>
    %642 = arith.addf %638, %639 : vector<32x32xf32>
    %643 = arith.addf %640, %641 : vector<32x32xf32>
    %644 = arith.addf %642, %643 : vector<32x32xf32>
    %c2_331 = arith.constant 2 : index
    %c0_332 = arith.constant 0 : index
    %c0_333 = arith.constant 0 : index
    %645 = vector.load %arg25[%c2_331, %c0_332, %c0_333] : memref<4x32x32xbf16, #tpu.memory_space<vmem>>, vector<1x32x32xbf16>
    %646 = vector.shape_cast %645 : vector<1x32x32xbf16> to vector<32x32xbf16>
    %647 = arith.truncf %644 : vector<32x32xf32> to vector<32x32xbf16>
    %cst_334 = arith.constant dense<0.000000e+00> : vector<32x32xf32>
    %648 = tpu.matmul %647, %646, %cst_334 {dimension_numbers = #tpu.dot_dimension_numbers<[1], [0], [0], [1], [0, 0, 1, 1], [], []>} : vector<32x32xbf16>, vector<32x32xbf16>, vector<32x32xf32> -> vector<32x32xf32>
    %649 = arith.addf %559, %648 : vector<32x32xf32>
    %c2_335 = arith.constant 2 : index
    %c0_336 = arith.constant 0 : index
    %c0_337 = arith.constant 0 : index
    %650 = vector.load %arg26[%c2_335, %c0_336, %c0_337] : memref<4x1x32xf32, #tpu.memory_space<vmem>>, vector<1x1x32xf32>
    %651 = vector.shape_cast %650 : vector<1x1x32xf32> to vector<1x32xf32>
    %652 = vector.broadcast %651 : vector<1x32xf32> to vector<32x32xf32>
    %653 = arith.addf %649, %652 : vector<32x32xf32>
    %c2_338 = arith.constant 2 : index
    %c0_339 = arith.constant 0 : index
    %c0_340 = arith.constant 0 : index
    %654 = vector.load %arg27[%c2_338, %c0_339, %c0_340] : memref<4x1x32xf32, #tpu.memory_space<vmem>>, vector<1x1x32xf32>
    %655 = vector.shape_cast %654 : vector<1x1x32xf32> to vector<1x32xf32>
    %c2_341 = arith.constant 2 : index
    %c0_342 = arith.constant 0 : index
    %c0_343 = arith.constant 0 : index
    %656 = vector.load %arg28[%c2_341, %c0_342, %c0_343] : memref<4x1x32xf32, #tpu.memory_space<vmem>>, vector<1x1x32xf32>
    %657 = vector.shape_cast %656 : vector<1x1x32xf32> to vector<1x32xf32>
    %cst_344 = arith.constant dense<0.000000e+00> : vector<32xf32>
    %658 = vector.multi_reduction <add>, %653, %cst_344 [1] : vector<32x32xf32> to vector<32xf32>
    %659 = vector.shape_cast %658 : vector<32xf32> to vector<32x1xf32>
    %cst_345 = arith.constant 3.200000e+01 : f32
    %660 = vector.broadcast %cst_345 : f32 to vector<32x1xf32>
    %661 = arith.divf %659, %660 : vector<32x1xf32>
    %662 = vector.broadcast %661 : vector<32x1xf32> to vector<32x32xf32>
    %663 = arith.subf %653, %662 : vector<32x32xf32>
    %664 = arith.mulf %663, %663 : vector<32x32xf32>
    %cst_346 = arith.constant dense<0.000000e+00> : vector<32xf32>
    %665 = vector.multi_reduction <add>, %664, %cst_346 [1] : vector<32x32xf32> to vector<32xf32>
    %666 = vector.shape_cast %665 : vector<32xf32> to vector<32x1xf32>
    %cst_347 = arith.constant 3.200000e+01 : f32
    %667 = vector.broadcast %cst_347 : f32 to vector<32x1xf32>
    %668 = arith.divf %666, %667 : vector<32x1xf32>
    %669 = vector.broadcast %661 : vector<32x1xf32> to vector<32x32xf32>
    %670 = arith.subf %653, %669 : vector<32x32xf32>
    %cst_348 = arith.constant 9.99999974E-6 : f32
    %671 = vector.broadcast %cst_348 : f32 to vector<32x1xf32>
    %672 = arith.addf %668, %671 : vector<32x1xf32>
    %673 = math.rsqrt %672 : vector<32x1xf32>
    %674 = vector.broadcast %673 : vector<32x1xf32> to vector<32x32xf32>
    %675 = arith.mulf %670, %674 : vector<32x32xf32>
    %676 = vector.broadcast %655 : vector<1x32xf32> to vector<32x32xf32>
    %677 = arith.mulf %675, %676 : vector<32x32xf32>
    %678 = vector.broadcast %657 : vector<1x32xf32> to vector<32x32xf32>
    %679 = arith.addf %677, %678 : vector<32x32xf32>
    %c2_349 = arith.constant 2 : index
    %c0_350 = arith.constant 0 : index
    %c0_351 = arith.constant 0 : index
    %680 = vector.load %arg29[%c2_349, %c0_350, %c0_351] : memref<4x32x64xbf16, #tpu.memory_space<vmem>>, vector<1x32x64xbf16>
    %681 = vector.shape_cast %680 : vector<1x32x64xbf16> to vector<32x64xbf16>
    %682 = arith.truncf %679 : vector<32x32xf32> to vector<32x32xbf16>
    %cst_352 = arith.constant dense<0.000000e+00> : vector<32x64xf32>
    %683 = tpu.matmul %682, %681, %cst_352 {dimension_numbers = #tpu.dot_dimension_numbers<[1], [0], [0], [1], [0, 0, 1, 1], [], []>} : vector<32x32xbf16>, vector<32x64xbf16>, vector<32x64xf32> -> vector<32x64xf32>
    %c2_353 = arith.constant 2 : index
    %c0_354 = arith.constant 0 : index
    %c0_355 = arith.constant 0 : index
    %684 = vector.load %arg30[%c2_353, %c0_354, %c0_355] : memref<4x1x64xf32, #tpu.memory_space<vmem>>, vector<1x1x64xf32>
    %685 = vector.shape_cast %684 : vector<1x1x64xf32> to vector<1x64xf32>
    %686 = vector.broadcast %685 : vector<1x64xf32> to vector<32x64xf32>
    %687 = arith.addf %683, %686 : vector<32x64xf32>
    %cst_356 = arith.constant 0.000000e+00 : f32
    %688 = vector.broadcast %cst_356 : f32 to vector<32x64xf32>
    %689 = arith.maximumf %687, %688 : vector<32x64xf32>
    %c2_357 = arith.constant 2 : index
    %c0_358 = arith.constant 0 : index
    %c0_359 = arith.constant 0 : index
    %690 = vector.load %arg31[%c2_357, %c0_358, %c0_359] : memref<4x64x32xbf16, #tpu.memory_space<vmem>>, vector<1x64x32xbf16>
    %691 = vector.shape_cast %690 : vector<1x64x32xbf16> to vector<64x32xbf16>
    %692 = arith.truncf %689 : vector<32x64xf32> to vector<32x64xbf16>
    %cst_360 = arith.constant dense<0.000000e+00> : vector<32x32xf32>
    %693 = tpu.matmul %692, %691, %cst_360 {dimension_numbers = #tpu.dot_dimension_numbers<[1], [0], [0], [1], [0, 0, 1, 1], [], []>} : vector<32x64xbf16>, vector<64x32xbf16>, vector<32x32xf32> -> vector<32x32xf32>
    %694 = arith.addf %653, %693 : vector<32x32xf32>
    %c2_361 = arith.constant 2 : index
    %c0_362 = arith.constant 0 : index
    %c0_363 = arith.constant 0 : index
    %695 = vector.load %arg32[%c2_361, %c0_362, %c0_363] : memref<4x1x32xf32, #tpu.memory_space<vmem>>, vector<1x1x32xf32>
    %696 = vector.shape_cast %695 : vector<1x1x32xf32> to vector<1x32xf32>
    %697 = vector.broadcast %696 : vector<1x32xf32> to vector<32x32xf32>
    %698 = arith.addf %694, %697 : vector<32x32xf32>
    %c3_364 = arith.constant 3 : index
    %c0_365 = arith.constant 0 : index
    %c0_366 = arith.constant 0 : index
    %699 = vector.load %arg17[%c3_364, %c0_365, %c0_366] : memref<4x1x32xf32, #tpu.memory_space<vmem>>, vector<1x1x32xf32>
    %700 = vector.shape_cast %699 : vector<1x1x32xf32> to vector<1x32xf32>
    %c3_367 = arith.constant 3 : index
    %c0_368 = arith.constant 0 : index
    %c0_369 = arith.constant 0 : index
    %701 = vector.load %arg18[%c3_367, %c0_368, %c0_369] : memref<4x1x32xf32, #tpu.memory_space<vmem>>, vector<1x1x32xf32>
    %702 = vector.shape_cast %701 : vector<1x1x32xf32> to vector<1x32xf32>
    %cst_370 = arith.constant dense<0.000000e+00> : vector<32xf32>
    %703 = vector.multi_reduction <add>, %698, %cst_370 [1] : vector<32x32xf32> to vector<32xf32>
    %704 = vector.shape_cast %703 : vector<32xf32> to vector<32x1xf32>
    %cst_371 = arith.constant 3.200000e+01 : f32
    %705 = vector.broadcast %cst_371 : f32 to vector<32x1xf32>
    %706 = arith.divf %704, %705 : vector<32x1xf32>
    %707 = vector.broadcast %706 : vector<32x1xf32> to vector<32x32xf32>
    %708 = arith.subf %698, %707 : vector<32x32xf32>
    %709 = arith.mulf %708, %708 : vector<32x32xf32>
    %cst_372 = arith.constant dense<0.000000e+00> : vector<32xf32>
    %710 = vector.multi_reduction <add>, %709, %cst_372 [1] : vector<32x32xf32> to vector<32xf32>
    %711 = vector.shape_cast %710 : vector<32xf32> to vector<32x1xf32>
    %cst_373 = arith.constant 3.200000e+01 : f32
    %712 = vector.broadcast %cst_373 : f32 to vector<32x1xf32>
    %713 = arith.divf %711, %712 : vector<32x1xf32>
    %714 = vector.broadcast %706 : vector<32x1xf32> to vector<32x32xf32>
    %715 = arith.subf %698, %714 : vector<32x32xf32>
    %cst_374 = arith.constant 9.99999974E-6 : f32
    %716 = vector.broadcast %cst_374 : f32 to vector<32x1xf32>
    %717 = arith.addf %713, %716 : vector<32x1xf32>
    %718 = math.rsqrt %717 : vector<32x1xf32>
    %719 = vector.broadcast %718 : vector<32x1xf32> to vector<32x32xf32>
    %720 = arith.mulf %715, %719 : vector<32x32xf32>
    %721 = vector.broadcast %700 : vector<1x32xf32> to vector<32x32xf32>
    %722 = arith.mulf %720, %721 : vector<32x32xf32>
    %723 = vector.broadcast %702 : vector<1x32xf32> to vector<32x32xf32>
    %724 = arith.addf %722, %723 : vector<32x32xf32>
    %725 = arith.truncf %724 : vector<32x32xf32> to vector<32x32xbf16>
    %c3_375 = arith.constant 3 : index
    %c0_376 = arith.constant 0 : index
    %c0_377 = arith.constant 0 : index
    %726 = vector.load %arg19[%c3_375, %c0_376, %c0_377] : memref<4x32x32xbf16, #tpu.memory_space<vmem>>, vector<1x32x32xbf16>
    %727 = vector.shape_cast %726 : vector<1x32x32xbf16> to vector<32x32xbf16>
    %cst_378 = arith.constant dense<0.000000e+00> : vector<32x32xf32>
    %728 = tpu.matmul %725, %727, %cst_378 {dimension_numbers = #tpu.dot_dimension_numbers<[1], [0], [0], [1], [0, 0, 1, 1], [], []>} : vector<32x32xbf16>, vector<32x32xbf16>, vector<32x32xf32> -> vector<32x32xf32>
    %c3_379 = arith.constant 3 : index
    %c0_380 = arith.constant 0 : index
    %c0_381 = arith.constant 0 : index
    %729 = vector.load %arg20[%c3_379, %c0_380, %c0_381] : memref<4x1x32xf32, #tpu.memory_space<vmem>>, vector<1x1x32xf32>
    %730 = vector.shape_cast %729 : vector<1x1x32xf32> to vector<1x32xf32>
    %731 = vector.broadcast %730 : vector<1x32xf32> to vector<32x32xf32>
    %732 = arith.addf %728, %731 : vector<32x32xf32>
    %c3_382 = arith.constant 3 : index
    %c0_383 = arith.constant 0 : index
    %c0_384 = arith.constant 0 : index
    %733 = vector.load %arg21[%c3_382, %c0_383, %c0_384] : memref<4x32x32xbf16, #tpu.memory_space<vmem>>, vector<1x32x32xbf16>
    %734 = vector.shape_cast %733 : vector<1x32x32xbf16> to vector<32x32xbf16>
    %cst_385 = arith.constant dense<0.000000e+00> : vector<32x32xf32>
    %735 = tpu.matmul %725, %734, %cst_385 {dimension_numbers = #tpu.dot_dimension_numbers<[1], [0], [0], [1], [0, 0, 1, 1], [], []>} : vector<32x32xbf16>, vector<32x32xbf16>, vector<32x32xf32> -> vector<32x32xf32>
    %c3_386 = arith.constant 3 : index
    %c0_387 = arith.constant 0 : index
    %c0_388 = arith.constant 0 : index
    %736 = vector.load %arg22[%c3_386, %c0_387, %c0_388] : memref<4x1x32xf32, #tpu.memory_space<vmem>>, vector<1x1x32xf32>
    %737 = vector.shape_cast %736 : vector<1x1x32xf32> to vector<1x32xf32>
    %738 = vector.broadcast %737 : vector<1x32xf32> to vector<32x32xf32>
    %739 = arith.addf %735, %738 : vector<32x32xf32>
    %c3_389 = arith.constant 3 : index
    %c0_390 = arith.constant 0 : index
    %c0_391 = arith.constant 0 : index
    %740 = vector.load %arg23[%c3_389, %c0_390, %c0_391] : memref<4x32x32xbf16, #tpu.memory_space<vmem>>, vector<1x32x32xbf16>
    %741 = vector.shape_cast %740 : vector<1x32x32xbf16> to vector<32x32xbf16>
    %cst_392 = arith.constant dense<0.000000e+00> : vector<32x32xf32>
    %742 = tpu.matmul %725, %741, %cst_392 {dimension_numbers = #tpu.dot_dimension_numbers<[1], [0], [0], [1], [0, 0, 1, 1], [], []>} : vector<32x32xbf16>, vector<32x32xbf16>, vector<32x32xf32> -> vector<32x32xf32>
    %c3_393 = arith.constant 3 : index
    %c0_394 = arith.constant 0 : index
    %c0_395 = arith.constant 0 : index
    %743 = vector.load %arg24[%c3_393, %c0_394, %c0_395] : memref<4x1x32xf32, #tpu.memory_space<vmem>>, vector<1x1x32xf32>
    %744 = vector.shape_cast %743 : vector<1x1x32xf32> to vector<1x32xf32>
    %745 = vector.broadcast %744 : vector<1x32xf32> to vector<32x32xf32>
    %746 = arith.addf %742, %745 : vector<32x32xf32>
    %747 = tpu.concatenate %732, %732, %732, %732, %732, %732, %732, %732 in 0 : vector<32x32xf32>, vector<32x32xf32>, vector<32x32xf32>, vector<32x32xf32>, vector<32x32xf32>, vector<32x32xf32>, vector<32x32xf32>, vector<32x32xf32> -> vector<256x32xf32>
    %748 = arith.mulf %747, %280 : vector<256x32xf32>
    %749 = arith.truncf %748 : vector<256x32xf32> to vector<256x32xbf16>
    %750 = arith.truncf %739 : vector<32x32xf32> to vector<32x32xbf16>
    %cst_396 = arith.constant dense<0.000000e+00> : vector<256x32xf32>
    %751 = tpu.matmul %749, %750, %cst_396 {dimension_numbers = #tpu.dot_dimension_numbers<[1], [1], [0], [0], [0, 0, 1, 0], [], []>} : vector<256x32xbf16>, vector<32x32xbf16>, vector<256x32xf32> -> vector<256x32xf32>
    %cst_397 = arith.constant 5.000000e-01 : f32
    %752 = vector.broadcast %cst_397 : f32 to vector<256x32xf32>
    %753 = arith.mulf %751, %752 : vector<256x32xf32>
    %754 = arith.addf %753, %281 : vector<256x32xf32>
    %cst_398 = arith.constant dense<0xFF800000> : vector<256xf32>
    %755 = vector.multi_reduction <maximumf>, %754, %cst_398 [1] : vector<256x32xf32> to vector<256xf32>
    %756 = vector.shape_cast %755 : vector<256xf32> to vector<256x1xf32>
    %757 = vector.broadcast %756 : vector<256x1xf32> to vector<256x32xf32>
    %758 = arith.subf %754, %757 : vector<256x32xf32>
    %759 = math.exp %758 : vector<256x32xf32>
    %cst_399 = arith.constant dense<0.000000e+00> : vector<256xf32>
    %760 = vector.multi_reduction <add>, %759, %cst_399 [1] : vector<256x32xf32> to vector<256xf32>
    %761 = vector.shape_cast %760 : vector<256xf32> to vector<256x1xf32>
    %762 = tpu.reciprocal %761 {approx = true} : vector<256x1xf32> -> vector<256x1xf32>
    %763 = vector.broadcast %762 : vector<256x1xf32> to vector<256x32xf32>
    %764 = arith.mulf %759, %763 : vector<256x32xf32>
    %765 = arith.truncf %764 : vector<256x32xf32> to vector<256x32xbf16>
    %766 = arith.truncf %746 : vector<32x32xf32> to vector<32x32xbf16>
    %cst_400 = arith.constant dense<0.000000e+00> : vector<256x32xf32>
    %767 = tpu.matmul %765, %766, %cst_400 {dimension_numbers = #tpu.dot_dimension_numbers<[1], [0], [0], [1], [0, 0, 1, 1], [], []>} : vector<256x32xbf16>, vector<32x32xbf16>, vector<256x32xf32> -> vector<256x32xf32>
    %768 = arith.mulf %767, %280 : vector<256x32xf32>
    %769 = vector.extract_strided_slice %768 {offsets = [0, 0], sizes = [32, 32], strides = [1, 1]} : vector<256x32xf32> to vector<32x32xf32>
    %770 = vector.extract_strided_slice %768 {offsets = [32, 0], sizes = [32, 32], strides = [1, 1]} : vector<256x32xf32> to vector<32x32xf32>
    %771 = vector.extract_strided_slice %768 {offsets = [64, 0], sizes = [32, 32], strides = [1, 1]} : vector<256x32xf32> to vector<32x32xf32>
    %772 = vector.extract_strided_slice %768 {offsets = [96, 0], sizes = [32, 32], strides = [1, 1]} : vector<256x32xf32> to vector<32x32xf32>
    %773 = vector.extract_strided_slice %768 {offsets = [128, 0], sizes = [32, 32], strides = [1, 1]} : vector<256x32xf32> to vector<32x32xf32>
    %774 = vector.extract_strided_slice %768 {offsets = [160, 0], sizes = [32, 32], strides = [1, 1]} : vector<256x32xf32> to vector<32x32xf32>
    %775 = vector.extract_strided_slice %768 {offsets = [192, 0], sizes = [32, 32], strides = [1, 1]} : vector<256x32xf32> to vector<32x32xf32>
    %776 = vector.extract_strided_slice %768 {offsets = [224, 0], sizes = [32, 32], strides = [1, 1]} : vector<256x32xf32> to vector<32x32xf32>
    %777 = arith.addf %769, %770 : vector<32x32xf32>
    %778 = arith.addf %771, %772 : vector<32x32xf32>
    %779 = arith.addf %773, %774 : vector<32x32xf32>
    %780 = arith.addf %775, %776 : vector<32x32xf32>
    %781 = arith.addf %777, %778 : vector<32x32xf32>
    %782 = arith.addf %779, %780 : vector<32x32xf32>
    %783 = arith.addf %781, %782 : vector<32x32xf32>
    %c3_401 = arith.constant 3 : index
    %c0_402 = arith.constant 0 : index
    %c0_403 = arith.constant 0 : index
    %784 = vector.load %arg25[%c3_401, %c0_402, %c0_403] : memref<4x32x32xbf16, #tpu.memory_space<vmem>>, vector<1x32x32xbf16>
    %785 = vector.shape_cast %784 : vector<1x32x32xbf16> to vector<32x32xbf16>
    %786 = arith.truncf %783 : vector<32x32xf32> to vector<32x32xbf16>
    %cst_404 = arith.constant dense<0.000000e+00> : vector<32x32xf32>
    %787 = tpu.matmul %786, %785, %cst_404 {dimension_numbers = #tpu.dot_dimension_numbers<[1], [0], [0], [1], [0, 0, 1, 1], [], []>} : vector<32x32xbf16>, vector<32x32xbf16>, vector<32x32xf32> -> vector<32x32xf32>
    %788 = arith.addf %698, %787 : vector<32x32xf32>
    %c3_405 = arith.constant 3 : index
    %c0_406 = arith.constant 0 : index
    %c0_407 = arith.constant 0 : index
    %789 = vector.load %arg26[%c3_405, %c0_406, %c0_407] : memref<4x1x32xf32, #tpu.memory_space<vmem>>, vector<1x1x32xf32>
    %790 = vector.shape_cast %789 : vector<1x1x32xf32> to vector<1x32xf32>
    %791 = vector.broadcast %790 : vector<1x32xf32> to vector<32x32xf32>
    %792 = arith.addf %788, %791 : vector<32x32xf32>
    %c3_408 = arith.constant 3 : index
    %c0_409 = arith.constant 0 : index
    %c0_410 = arith.constant 0 : index
    %793 = vector.load %arg27[%c3_408, %c0_409, %c0_410] : memref<4x1x32xf32, #tpu.memory_space<vmem>>, vector<1x1x32xf32>
    %794 = vector.shape_cast %793 : vector<1x1x32xf32> to vector<1x32xf32>
    %c3_411 = arith.constant 3 : index
    %c0_412 = arith.constant 0 : index
    %c0_413 = arith.constant 0 : index
    %795 = vector.load %arg28[%c3_411, %c0_412, %c0_413] : memref<4x1x32xf32, #tpu.memory_space<vmem>>, vector<1x1x32xf32>
    %796 = vector.shape_cast %795 : vector<1x1x32xf32> to vector<1x32xf32>
    %cst_414 = arith.constant dense<0.000000e+00> : vector<32xf32>
    %797 = vector.multi_reduction <add>, %792, %cst_414 [1] : vector<32x32xf32> to vector<32xf32>
    %798 = vector.shape_cast %797 : vector<32xf32> to vector<32x1xf32>
    %cst_415 = arith.constant 3.200000e+01 : f32
    %799 = vector.broadcast %cst_415 : f32 to vector<32x1xf32>
    %800 = arith.divf %798, %799 : vector<32x1xf32>
    %801 = vector.broadcast %800 : vector<32x1xf32> to vector<32x32xf32>
    %802 = arith.subf %792, %801 : vector<32x32xf32>
    %803 = arith.mulf %802, %802 : vector<32x32xf32>
    %cst_416 = arith.constant dense<0.000000e+00> : vector<32xf32>
    %804 = vector.multi_reduction <add>, %803, %cst_416 [1] : vector<32x32xf32> to vector<32xf32>
    %805 = vector.shape_cast %804 : vector<32xf32> to vector<32x1xf32>
    %cst_417 = arith.constant 3.200000e+01 : f32
    %806 = vector.broadcast %cst_417 : f32 to vector<32x1xf32>
    %807 = arith.divf %805, %806 : vector<32x1xf32>
    %808 = vector.broadcast %800 : vector<32x1xf32> to vector<32x32xf32>
    %809 = arith.subf %792, %808 : vector<32x32xf32>
    %cst_418 = arith.constant 9.99999974E-6 : f32
    %810 = vector.broadcast %cst_418 : f32 to vector<32x1xf32>
    %811 = arith.addf %807, %810 : vector<32x1xf32>
    %812 = math.rsqrt %811 : vector<32x1xf32>
    %813 = vector.broadcast %812 : vector<32x1xf32> to vector<32x32xf32>
    %814 = arith.mulf %809, %813 : vector<32x32xf32>
    %815 = vector.broadcast %794 : vector<1x32xf32> to vector<32x32xf32>
    %816 = arith.mulf %814, %815 : vector<32x32xf32>
    %817 = vector.broadcast %796 : vector<1x32xf32> to vector<32x32xf32>
    %818 = arith.addf %816, %817 : vector<32x32xf32>
    %c3_419 = arith.constant 3 : index
    %c0_420 = arith.constant 0 : index
    %c0_421 = arith.constant 0 : index
    %819 = vector.load %arg29[%c3_419, %c0_420, %c0_421] : memref<4x32x64xbf16, #tpu.memory_space<vmem>>, vector<1x32x64xbf16>
    %820 = vector.shape_cast %819 : vector<1x32x64xbf16> to vector<32x64xbf16>
    %821 = arith.truncf %818 : vector<32x32xf32> to vector<32x32xbf16>
    %cst_422 = arith.constant dense<0.000000e+00> : vector<32x64xf32>
    %822 = tpu.matmul %821, %820, %cst_422 {dimension_numbers = #tpu.dot_dimension_numbers<[1], [0], [0], [1], [0, 0, 1, 1], [], []>} : vector<32x32xbf16>, vector<32x64xbf16>, vector<32x64xf32> -> vector<32x64xf32>
    %c3_423 = arith.constant 3 : index
    %c0_424 = arith.constant 0 : index
    %c0_425 = arith.constant 0 : index
    %823 = vector.load %arg30[%c3_423, %c0_424, %c0_425] : memref<4x1x64xf32, #tpu.memory_space<vmem>>, vector<1x1x64xf32>
    %824 = vector.shape_cast %823 : vector<1x1x64xf32> to vector<1x64xf32>
    %825 = vector.broadcast %824 : vector<1x64xf32> to vector<32x64xf32>
    %826 = arith.addf %822, %825 : vector<32x64xf32>
    %cst_426 = arith.constant 0.000000e+00 : f32
    %827 = vector.broadcast %cst_426 : f32 to vector<32x64xf32>
    %828 = arith.maximumf %826, %827 : vector<32x64xf32>
    %c3_427 = arith.constant 3 : index
    %c0_428 = arith.constant 0 : index
    %c0_429 = arith.constant 0 : index
    %829 = vector.load %arg31[%c3_427, %c0_428, %c0_429] : memref<4x64x32xbf16, #tpu.memory_space<vmem>>, vector<1x64x32xbf16>
    %830 = vector.shape_cast %829 : vector<1x64x32xbf16> to vector<64x32xbf16>
    %831 = arith.truncf %828 : vector<32x64xf32> to vector<32x64xbf16>
    %cst_430 = arith.constant dense<0.000000e+00> : vector<32x32xf32>
    %832 = tpu.matmul %831, %830, %cst_430 {dimension_numbers = #tpu.dot_dimension_numbers<[1], [0], [0], [1], [0, 0, 1, 1], [], []>} : vector<32x64xbf16>, vector<64x32xbf16>, vector<32x32xf32> -> vector<32x32xf32>
    %833 = arith.addf %792, %832 : vector<32x32xf32>
    %c3_431 = arith.constant 3 : index
    %c0_432 = arith.constant 0 : index
    %c0_433 = arith.constant 0 : index
    %834 = vector.load %arg32[%c3_431, %c0_432, %c0_433] : memref<4x1x32xf32, #tpu.memory_space<vmem>>, vector<1x1x32xf32>
    %835 = vector.shape_cast %834 : vector<1x1x32xf32> to vector<1x32xf32>
    %836 = vector.broadcast %835 : vector<1x32xf32> to vector<32x32xf32>
    %837 = arith.addf %833, %836 : vector<32x32xf32>
    %c0_434 = arith.constant 0 : index
    %c0_435 = arith.constant 0 : index
    %838 = vector.load %arg33[%c0_434, %c0_435] : memref<32x128xbf16, #tpu.memory_space<vmem>>, vector<32x128xbf16>
    %839 = arith.truncf %837 : vector<32x32xf32> to vector<32x32xbf16>
    %cst_436 = arith.constant dense<0.000000e+00> : vector<32x128xf32>
    %840 = tpu.matmul %839, %838, %cst_436 {dimension_numbers = #tpu.dot_dimension_numbers<[1], [0], [0], [1], [0, 0, 1, 1], [], []>} : vector<32x32xbf16>, vector<32x128xbf16>, vector<32x128xf32> -> vector<32x128xf32>
    %c0_437 = arith.constant 0 : index
    %c0_438 = arith.constant 0 : index
    %841 = vector.load %arg34[%c0_437, %c0_438] : memref<1x128xf32, #tpu.memory_space<vmem>>, vector<1x128xf32>
    %842 = vector.broadcast %841 : vector<1x128xf32> to vector<32x128xf32>
    %843 = arith.addf %840, %842 : vector<32x128xf32>
    %844 = vector.shape_cast %843 : vector<32x128xf32> to vector<2x16x128xf32>
    %c0_439 = arith.constant 0 : index
    %c0_440 = arith.constant 0 : index
    %c0_441 = arith.constant 0 : index
    %845 = vector.load %arg35[%c0_439, %c0_440, %c0_441] : memref<2x16x128xf32, #tpu.memory_space<vmem>>, vector<2x16x128xf32>
    tpu.vector_store %arg35[%c0_439, %c0_440, %c0_441], %844 {strides = array<i32>} : memref<2x16x128xf32, #tpu.memory_space<vmem>>, vector<2x16x128xf32>,
    return
  }
  func.func @transform_0(%arg0: i32) -> (i32, i32, i32) {
    %c0_i32 = arith.constant 0 : i32
    %c0_i32_0 = arith.constant 0 : i32
    %c0_i32_1 = arith.constant 0 : i32
    return %arg0, %c0_i32, %c0_i32_0 : i32, i32, i32
  }
  func.func @transform_1(%arg0: i32) -> (i32, i32) {
    %c0_i32 = arith.constant 0 : i32
    %c0_i32_0 = arith.constant 0 : i32
    %c0_i32_1 = arith.constant 0 : i32
    return %c0_i32, %c0_i32_0 : i32, i32
  }
  func.func @transform_2(%arg0: i32) -> (i32, i32, i32) {
    %c0_i32 = arith.constant 0 : i32
    %c0_i32_0 = arith.constant 0 : i32
    %c0_i32_1 = arith.constant 0 : i32
    %c0_i32_2 = arith.constant 0 : i32
    return %c0_i32, %c0_i32_0, %c0_i32_1 : i32, i32, i32
  }
  func.func @transform_3(%arg0: i32) -> (i32, i32, i32) {
    %c0_i32 = arith.constant 0 : i32
    %c0_i32_0 = arith.constant 0 : i32
    %c0_i32_1 = arith.constant 0 : i32
    %c0_i32_2 = arith.constant 0 : i32
    return %c0_i32, %c0_i32_0, %c0_i32_1 : i32, i32, i32
  }
  func.func @transform_4(%arg0: i32) -> (i32, i32) {
    %c0_i32 = arith.constant 0 : i32
    %c0_i32_0 = arith.constant 0 : i32
    %c0_i32_1 = arith.constant 0 : i32
    return %c0_i32, %c0_i32_0 : i32, i32
  }
  func.func @transform_5(%arg0: i32) -> (i32, i32) {
    %c0_i32 = arith.constant 0 : i32
    %c0_i32_0 = arith.constant 0 : i32
    %c0_i32_1 = arith.constant 0 : i32
    return %c0_i32, %c0_i32_0 : i32, i32
  }
  func.func @transform_6(%arg0: i32) -> (i32, i32) {
    %c0_i32 = arith.constant 0 : i32
    %c0_i32_0 = arith.constant 0 : i32
    %c0_i32_1 = arith.constant 0 : i32
    return %c0_i32, %c0_i32_0 : i32, i32
  }
  func.func @transform_7(%arg0: i32) -> (i32, i32) {
    %c0_i32 = arith.constant 0 : i32
    %c0_i32_0 = arith.constant 0 : i32
    %c0_i32_1 = arith.constant 0 : i32
    return %c0_i32, %c0_i32_0 : i32, i32
  }
  func.func @transform_8(%arg0: i32) -> (i32, i32) {
    %c0_i32 = arith.constant 0 : i32
    %c0_i32_0 = arith.constant 0 : i32
    %c0_i32_1 = arith.constant 0 : i32
    return %c0_i32, %c0_i32_0 : i32, i32
  }
  func.func @transform_9(%arg0: i32) -> (i32, i32, i32) {
    %c0_i32 = arith.constant 0 : i32
    %c0_i32_0 = arith.constant 0 : i32
    %c0_i32_1 = arith.constant 0 : i32
    %c0_i32_2 = arith.constant 0 : i32
    return %c0_i32, %c0_i32_0, %c0_i32_1 : i32, i32, i32
  }
  func.func @transform_10(%arg0: i32) -> (i32, i32) {
    %c0_i32 = arith.constant 0 : i32
    %c0_i32_0 = arith.constant 0 : i32
    %c0_i32_1 = arith.constant 0 : i32
    return %c0_i32, %c0_i32_0 : i32, i32
  }
  func.func @transform_11(%arg0: i32) -> (i32, i32) {
    %c0_i32 = arith.constant 0 : i32
    %c0_i32_0 = arith.constant 0 : i32
    %c0_i32_1 = arith.constant 0 : i32
    return %c0_i32, %c0_i32_0 : i32, i32
  }
  func.func @transform_12(%arg0: i32) -> (i32, i32) {
    %c0_i32 = arith.constant 0 : i32
    %c0_i32_0 = arith.constant 0 : i32
    %c0_i32_1 = arith.constant 0 : i32
    return %c0_i32, %c0_i32_0 : i32, i32
  }
  func.func @transform_13(%arg0: i32) -> (i32, i32) {
    %c0_i32 = arith.constant 0 : i32
    %c0_i32_0 = arith.constant 0 : i32
    %c0_i32_1 = arith.constant 0 : i32
    return %c0_i32, %c0_i32_0 : i32, i32
  }
  func.func @transform_14(%arg0: i32) -> (i32, i32) {
    %c0_i32 = arith.constant 0 : i32
    %c0_i32_0 = arith.constant 0 : i32
    %c0_i32_1 = arith.constant 0 : i32
    return %c0_i32, %c0_i32_0 : i32, i32
  }
  func.func @transform_15(%arg0: i32) -> (i32, i32) {
    %c0_i32 = arith.constant 0 : i32
    %c0_i32_0 = arith.constant 0 : i32
    %c0_i32_1 = arith.constant 0 : i32
    return %c0_i32, %c0_i32_0 : i32, i32
  }
  func.func @transform_16(%arg0: i32) -> (i32, i32, i32) {
    %c0_i32 = arith.constant 0 : i32
    %c0_i32_0 = arith.constant 0 : i32
    %c0_i32_1 = arith.constant 0 : i32
    %c0_i32_2 = arith.constant 0 : i32
    return %c0_i32, %c0_i32_0, %c0_i32_1 : i32, i32, i32
  }
  func.func @transform_17(%arg0: i32) -> (i32, i32, i32) {
    %c0_i32 = arith.constant 0 : i32
    %c0_i32_0 = arith.constant 0 : i32
    %c0_i32_1 = arith.constant 0 : i32
    %c0_i32_2 = arith.constant 0 : i32
    return %c0_i32, %c0_i32_0, %c0_i32_1 : i32, i32, i32
  }
  func.func @transform_18(%arg0: i32) -> (i32, i32, i32) {
    %c0_i32 = arith.constant 0 : i32
    %c0_i32_0 = arith.constant 0 : i32
    %c0_i32_1 = arith.constant 0 : i32
    %c0_i32_2 = arith.constant 0 : i32
    return %c0_i32, %c0_i32_0, %c0_i32_1 : i32, i32, i32
  }
  func.func @transform_19(%arg0: i32) -> (i32, i32, i32) {
    %c0_i32 = arith.constant 0 : i32
    %c0_i32_0 = arith.constant 0 : i32
    %c0_i32_1 = arith.constant 0 : i32
    %c0_i32_2 = arith.constant 0 : i32
    return %c0_i32, %c0_i32_0, %c0_i32_1 : i32, i32, i32
  }
  func.func @transform_20(%arg0: i32) -> (i32, i32, i32) {
    %c0_i32 = arith.constant 0 : i32
    %c0_i32_0 = arith.constant 0 : i32
    %c0_i32_1 = arith.constant 0 : i32
    %c0_i32_2 = arith.constant 0 : i32
    return %c0_i32, %c0_i32_0, %c0_i32_1 : i32, i32, i32
  }
  func.func @transform_21(%arg0: i32) -> (i32, i32, i32) {
    %c0_i32 = arith.constant 0 : i32
    %c0_i32_0 = arith.constant 0 : i32
    %c0_i32_1 = arith.constant 0 : i32
    %c0_i32_2 = arith.constant 0 : i32
    return %c0_i32, %c0_i32_0, %c0_i32_1 : i32, i32, i32
  }
  func.func @transform_22(%arg0: i32) -> (i32, i32, i32) {
    %c0_i32 = arith.constant 0 : i32
    %c0_i32_0 = arith.constant 0 : i32
    %c0_i32_1 = arith.constant 0 : i32
    %c0_i32_2 = arith.constant 0 : i32
    return %c0_i32, %c0_i32_0, %c0_i32_1 : i32, i32, i32
  }
  func.func @transform_23(%arg0: i32) -> (i32, i32, i32) {
    %c0_i32 = arith.constant 0 : i32
    %c0_i32_0 = arith.constant 0 : i32
    %c0_i32_1 = arith.constant 0 : i32
    %c0_i32_2 = arith.constant 0 : i32
    return %c0_i32, %c0_i32_0, %c0_i32_1 : i32, i32, i32
  }
  func.func @transform_24(%arg0: i32) -> (i32, i32, i32) {
    %c0_i32 = arith.constant 0 : i32
    %c0_i32_0 = arith.constant 0 : i32
    %c0_i32_1 = arith.constant 0 : i32
    %c0_i32_2 = arith.constant 0 : i32
    return %c0_i32, %c0_i32_0, %c0_i32_1 : i32, i32, i32
  }
  func.func @transform_25(%arg0: i32) -> (i32, i32, i32) {
    %c0_i32 = arith.constant 0 : i32
    %c0_i32_0 = arith.constant 0 : i32
    %c0_i32_1 = arith.constant 0 : i32
    %c0_i32_2 = arith.constant 0 : i32
    return %c0_i32, %c0_i32_0, %c0_i32_1 : i32, i32, i32
  }
  func.func @transform_26(%arg0: i32) -> (i32, i32, i32) {
    %c0_i32 = arith.constant 0 : i32
    %c0_i32_0 = arith.constant 0 : i32
    %c0_i32_1 = arith.constant 0 : i32
    %c0_i32_2 = arith.constant 0 : i32
    return %c0_i32, %c0_i32_0, %c0_i32_1 : i32, i32, i32
  }
  func.func @transform_27(%arg0: i32) -> (i32, i32, i32) {
    %c0_i32 = arith.constant 0 : i32
    %c0_i32_0 = arith.constant 0 : i32
    %c0_i32_1 = arith.constant 0 : i32
    %c0_i32_2 = arith.constant 0 : i32
    return %c0_i32, %c0_i32_0, %c0_i32_1 : i32, i32, i32
  }
  func.func @transform_28(%arg0: i32) -> (i32, i32, i32) {
    %c0_i32 = arith.constant 0 : i32
    %c0_i32_0 = arith.constant 0 : i32
    %c0_i32_1 = arith.constant 0 : i32
    %c0_i32_2 = arith.constant 0 : i32
    return %c0_i32, %c0_i32_0, %c0_i32_1 : i32, i32, i32
  }
  func.func @transform_29(%arg0: i32) -> (i32, i32, i32) {
    %c0_i32 = arith.constant 0 : i32
    %c0_i32_0 = arith.constant 0 : i32
    %c0_i32_1 = arith.constant 0 : i32
    %c0_i32_2 = arith.constant 0 : i32
    return %c0_i32, %c0_i32_0, %c0_i32_1 : i32, i32, i32
  }
  func.func @transform_30(%arg0: i32) -> (i32, i32, i32) {
    %c0_i32 = arith.constant 0 : i32
    %c0_i32_0 = arith.constant 0 : i32
    %c0_i32_1 = arith.constant 0 : i32
    %c0_i32_2 = arith.constant 0 : i32
    return %c0_i32, %c0_i32_0, %c0_i32_1 : i32, i32, i32
  }
  func.func @transform_31(%arg0: i32) -> (i32, i32, i32) {
    %c0_i32 = arith.constant 0 : i32
    %c0_i32_0 = arith.constant 0 : i32
    %c0_i32_1 = arith.constant 0 : i32
    %c0_i32_2 = arith.constant 0 : i32
    return %c0_i32, %c0_i32_0, %c0_i32_1 : i32, i32, i32
  }
  func.func @transform_32(%arg0: i32) -> (i32, i32) {
    %c0_i32 = arith.constant 0 : i32
    %c0_i32_0 = arith.constant 0 : i32
    %c0_i32_1 = arith.constant 0 : i32
    return %c0_i32, %c0_i32_0 : i32, i32
  }
  func.func @transform_33(%arg0: i32) -> (i32, i32) {
    %c0_i32 = arith.constant 0 : i32
    %c0_i32_0 = arith.constant 0 : i32
    %c0_i32_1 = arith.constant 0 : i32
    return %c0_i32, %c0_i32_0 : i32, i32
  }
  func.func @transform_34(%arg0: i32) -> (i32, i32, i32) {
    %c0_i32 = arith.constant 0 : i32
    %c0_i32_0 = arith.constant 0 : i32
    %c0_i32_1 = arith.constant 0 : i32
    return %arg0, %c0_i32, %c0_i32_0 : i32, i32, i32
  }
}

</mosaic_0001>

<llo_original>
// kernel: tpu_custom_call.1
$region0: #{tpu_custom_call.1}
  #allocation0 [shape = 'u32[]', space=smem, size = 0x4, offset = 0x4, fixed_abs, tag = 'smem constant byte address 0x4 - core index']
  #allocation1 [shape = 'u32[144,128]{1,0:T(1,128)}', space=vmem, size = 0x12000, scoped, tag = 'internal scratch']
  %s0 = inlined_call_operand.smem [shape: u32[35], index: -1, kind: input, shape index: {}]
  %s1 = sld [smem:[%s0]]
  %s2 = scalar_lea.smem %s0, 1
  %s3 = sld [smem:[%s2]]
  %s4 = scalar_lea.smem %s0, 2
  %s5 = sld [smem:[%s4]]
  %s6 = scalar_lea.smem %s0, 3
  %s7 = sld [smem:[%s6]]
  %s8 = scalar_lea.smem %s0, 4
  %s9 = sld [smem:[%s8]]
  %s10 = scalar_lea.smem %s0, 5
  %s11 = sld [smem:[%s10]]
  %s12 = scalar_lea.smem %s0, 6
  %s13 = sld [smem:[%s12]]
  %s14 = scalar_lea.smem %s0, 7
  %s15 = sld [smem:[%s14]]
  %s16 = scalar_lea.smem %s0, 8
  %s17 = sld [smem:[%s16]]
  %s18 = scalar_lea.smem %s0, 9
  %s19 = sld [smem:[%s18]]
  %s20 = scalar_lea.smem %s0, 10
  %s21 = sld [smem:[%s20]]
  %s22 = scalar_lea.smem %s0, 11
  %s23 = sld [smem:[%s22]]
  %s24 = scalar_lea.smem %s0, 12
  %s25 = sld [smem:[%s24]]
  %s26 = scalar_lea.smem %s0, 13
  %s27 = sld [smem:[%s26]]
  %s28 = scalar_lea.smem %s0, 14
  %s29 = sld [smem:[%s28]]
  %s30 = scalar_lea.smem %s0, 15
  %s31 = sld [smem:[%s30]]
  %s32 = scalar_lea.smem %s0, 16
  %s33 = sld [smem:[%s32]]
  %s34 = scalar_lea.smem %s0, 17
  %s35 = sld [smem:[%s34]]
  %s36 = scalar_lea.smem %s0, 18
  %s37 = sld [smem:[%s36]]
  %s38 = scalar_lea.smem %s0, 19
  %s39 = sld [smem:[%s38]]
  %s40 = scalar_lea.smem %s0, 20
  %s41 = sld [smem:[%s40]]
  %s42 = scalar_lea.smem %s0, 21
  %s43 = sld [smem:[%s42]]
  %s44 = scalar_lea.smem %s0, 22
  %s45 = sld [smem:[%s44]]
  %s46 = scalar_lea.smem %s0, 23
  %s47 = sld [smem:[%s46]]
  %s48 = scalar_lea.smem %s0, 24
  %s49 = sld [smem:[%s48]]
  %s50 = scalar_lea.smem %s0, 25
  %s51 = sld [smem:[%s50]]
  %s52 = scalar_lea.smem %s0, 26
  %s53 = sld [smem:[%s52]]
  %s54 = scalar_lea.smem %s0, 27
  %s55 = sld [smem:[%s54]]
  %s56 = scalar_lea.smem %s0, 28
  %s57 = sld [smem:[%s56]]
  %s58 = scalar_lea.smem %s0, 29
  %s59 = sld [smem:[%s58]]
  %s60 = scalar_lea.smem %s0, 30
  %s61 = sld [smem:[%s60]]
  %s62 = scalar_lea.smem %s0, 31
  %s63 = sld [smem:[%s62]]
  %s64 = scalar_lea.smem %s0, 32
  %s65 = sld [smem:[%s64]]
  %s66 = scalar_lea.smem %s0, 33
  %s67 = sld [smem:[%s66]]
  %s68 = scalar_lea.smem %s0, 34
  %s69 = sld [smem:[%s68]]
  %s70 = sld [smem:[#allocation0]]
  $region146: #{tpu_custom_call.1} parent=0
    _
  %s72 = ssub.s32 1, %s70
  %s73 = scalar_select 0, %s72, %s70
  $region1: #{tpu_custom_call.1} parent=0
    #allocation2 [shape = 'u8[16384]{0}', space=vmem, size = 0x4000, scoped, tag = 'output window, operand 0, single buffered']
    #allocation3 [shape = 's32[1]{0}', space=sflag, size = 0x4, scoped, tag = 'scoped memory for tpu_custom_call.1']
    %74 = vsyncpa [#allocation3], 0
    // Predicated region
    $region2: #{tpu_custom_call.1} parent=1 // pred_check
      _
    $region3: #{tpu_custom_call.1} parent=1 // pred_check_branch
      %76 = sbr.rel (0) target = $region5
    $region4: #{tpu_custom_call.1} parent=1 // pred_region
      _
    $region5: #{tpu_custom_call.1} parent=1 // pred_fallthru
      _
    // Predicated region
    $region6: #{tpu_custom_call.1} parent=1 // pred_check
      _
    $region7: #{tpu_custom_call.1} parent=1 // pred_check_branch
      %78 = sbr.rel (0) target = $region9
    $region8: #{tpu_custom_call.1} parent=1 // pred_region
      _
    $region9: #{tpu_custom_call.1} parent=1 // pred_fallthru
      _
    // Predicated region
    $region10: #{tpu_custom_call.1} parent=1 // pred_check
      _
    $region11: #{tpu_custom_call.1} parent=1 // pred_check_branch
      %80 = sbr.rel (0) target = $region13
    $region12: #{tpu_custom_call.1} parent=1 // pred_region
      _
    $region13: #{tpu_custom_call.1} parent=1 // pred_fallthru
      _
    // Predicated region
    $region14: #{tpu_custom_call.1} parent=1 // pred_check
      _
    $region15: #{tpu_custom_call.1} parent=1 // pred_check_branch
      %82 = sbr.rel (0) target = $region17
    $region16: #{tpu_custom_call.1} parent=1 // pred_region
      _
    $region17: #{tpu_custom_call.1} parent=1 // pred_fallthru
      _
    // Predicated region
    $region18: #{tpu_custom_call.1} parent=1 // pred_check
      _
    $region19: #{tpu_custom_call.1} parent=1 // pred_check_branch
      %84 = sbr.rel (0) target = $region21
    $region20: #{tpu_custom_call.1} parent=1 // pred_region
      _
    $region21: #{tpu_custom_call.1} parent=1 // pred_fallthru
      _
    // Predicated region
    $region22: #{tpu_custom_call.1} parent=1 // pred_check
      _
    $region23: #{tpu_custom_call.1} parent=1 // pred_check_branch
      %86 = sbr.rel (0) target = $region25
    $region24: #{tpu_custom_call.1} parent=1 // pred_region
      _
    $region25: #{tpu_custom_call.1} parent=1 // pred_fallthru
      _
    // Predicated region
    $region26: #{tpu_custom_call.1} parent=1 // pred_check
      _
    $region27: #{tpu_custom_call.1} parent=1 // pred_check_branch
      %88 = sbr.rel (0) target = $region29
    $region28: #{tpu_custom_call.1} parent=1 // pred_region
      _
    $region29: #{tpu_custom_call.1} parent=1 // pred_fallthru
      _
    // Predicated region
    $region30: #{tpu_custom_call.1} parent=1 // pred_check
      _
    $region31: #{tpu_custom_call.1} parent=1 // pred_check_branch
      %90 = sbr.rel (0) target = $region33
    $region32: #{tpu_custom_call.1} parent=1 // pred_region
      _
    $region33: #{tpu_custom_call.1} parent=1 // pred_fallthru
      _
    // Predicated region
    $region34: #{tpu_custom_call.1} parent=1 // pred_check
      _
    $region35: #{tpu_custom_call.1} parent=1 // pred_check_branch
      %92 = sbr.rel (0) target = $region37
    $region36: #{tpu_custom_call.1} parent=1 // pred_region
      _
    $region37: #{tpu_custom_call.1} parent=1 // pred_fallthru
      _
    // Predicated region
    $region38: #{tpu_custom_call.1} parent=1 // pred_check
      _
    $region39: #{tpu_custom_call.1} parent=1 // pred_check_branch
      %94 = sbr.rel (0) target = $region41
    $region40: #{tpu_custom_call.1} parent=1 // pred_region
      _
    $region41: #{tpu_custom_call.1} parent=1 // pred_fallthru
      _
    // Predicated region
    $region42: #{tpu_custom_call.1} parent=1 // pred_check
      _
    $region43: #{tpu_custom_call.1} parent=1 // pred_check_branch
      %96 = sbr.rel (0) target = $region45
    $region44: #{tpu_custom_call.1} parent=1 // pred_region
      _
    $region45: #{tpu_custom_call.1} parent=1 // pred_fallthru
      _
    // Predicated region
    $region46: #{tpu_custom_call.1} parent=1 // pred_check
      _
    $region47: #{tpu_custom_call.1} parent=1 // pred_check_branch
      %98 = sbr.rel (0) target = $region49
    $region48: #{tpu_custom_call.1} parent=1 // pred_region
      _
    $region49: #{tpu_custom_call.1} parent=1 // pred_fallthru
      _
    // Predicated region
    $region50: #{tpu_custom_call.1} parent=1 // pred_check
      _
    $region51: #{tpu_custom_call.1} parent=1 // pred_check_branch
      %100 = sbr.rel (0) target = $region53
    $region52: #{tpu_custom_call.1} parent=1 // pred_region
      _
    $region53: #{tpu_custom_call.1} parent=1 // pred_fallthru
      _
    // Predicated region
    $region54: #{tpu_custom_call.1} parent=1 // pred_check
      _
    $region55: #{tpu_custom_call.1} parent=1 // pred_check_branch
      %102 = sbr.rel (0) target = $region57
    $region56: #{tpu_custom_call.1} parent=1 // pred_region
      _
    $region57: #{tpu_custom_call.1} parent=1 // pred_fallthru
      _
    // Predicated region
    $region58: #{tpu_custom_call.1} parent=1 // pred_check
      _
    $region59: #{tpu_custom_call.1} parent=1 // pred_check_branch
      %104 = sbr.rel (0) target = $region61
    $region60: #{tpu_custom_call.1} parent=1 // pred_region
      _
    $region61: #{tpu_custom_call.1} parent=1 // pred_fallthru
      _
    // Predicated region
    $region62: #{tpu_custom_call.1} parent=1 // pred_check
      _
    $region63: #{tpu_custom_call.1} parent=1 // pred_check_branch
      %106 = sbr.rel (0) target = $region65
    $region64: #{tpu_custom_call.1} parent=1 // pred_region
      _
    $region65: #{tpu_custom_call.1} parent=1 // pred_fallthru
      _
    // Predicated region
    $region66: #{tpu_custom_call.1} parent=1 // pred_check
      _
    $region67: #{tpu_custom_call.1} parent=1 // pred_check_branch
      %108 = sbr.rel (0) target = $region69
    $region68: #{tpu_custom_call.1} parent=1 // pred_region
      _
    $region69: #{tpu_custom_call.1} parent=1 // pred_fallthru
      _
    // Predicated region
    $region70: #{tpu_custom_call.1} parent=1 // pred_check
      _
    $region71: #{tpu_custom_call.1} parent=1 // pred_check_branch
      %110 = sbr.rel (0) target = $region73
    $region72: #{tpu_custom_call.1} parent=1 // pred_region
      _
    $region73: #{tpu_custom_call.1} parent=1 // pred_fallthru
      _
    // Predicated region
    $region74: #{tpu_custom_call.1} parent=1 // pred_check
      _
    $region75: #{tpu_custom_call.1} parent=1 // pred_check_branch
      %112 = sbr.rel (0) target = $region77
    $region76: #{tpu_custom_call.1} parent=1 // pred_region
      _
    $region77: #{tpu_custom_call.1} parent=1 // pred_fallthru
      _
    // Predicated region
    $region78: #{tpu_custom_call.1} parent=1 // pred_check
      _
    $region79: #{tpu_custom_call.1} parent=1 // pred_check_branch
      %114 = sbr.rel (0) target = $region81
    $region80: #{tpu_custom_call.1} parent=1 // pred_region
      _
    $region81: #{tpu_custom_call.1} parent=1 // pred_fallthru
      _
    // Predicated region
    $region82: #{tpu_custom_call.1} parent=1 // pred_check
      _
    $region83: #{tpu_custom_call.1} parent=1 // pred_check_branch
      %116 = sbr.rel (0) target = $region85
    $region84: #{tpu_custom_call.1} parent=1 // pred_region
      _
    $region85: #{tpu_custom_call.1} parent=1 // pred_fallthru
      _
    // Predicated region
    $region86: #{tpu_custom_call.1} parent=1 // pred_check
      _
    $region87: #{tpu_custom_call.1} parent=1 // pred_check_branch
      %118 = sbr.rel (0) target = $region89
    $region88: #{tpu_custom_call.1} parent=1 // pred_region
      _
    $region89: #{tpu_custom_call.1} parent=1 // pred_fallthru
      _
    // Predicated region
    $region90: #{tpu_custom_call.1} parent=1 // pred_check
      _
    $region91: #{tpu_custom_call.1} parent=1 // pred_check_branch
      %120 = sbr.rel (0) target = $region93
    $region92: #{tpu_custom_call.1} parent=1 // pred_region
      _
    $region93: #{tpu_custom_call.1} parent=1 // pred_fallthru
      _
    // Predicated region
    $region94: #{tpu_custom_call.1} parent=1 // pred_check
      _
    $region95: #{tpu_custom_call.1} parent=1 // pred_check_branch
      %122 = sbr.rel (0) target = $region97
    $region96: #{tpu_custom_call.1} parent=1 // pred_region
      _
    $region97: #{tpu_custom_call.1} parent=1 // pred_fallthru
      _
    // Predicated region
    $region98: #{tpu_custom_call.1} parent=1 // pred_check
      _
    $region99: #{tpu_custom_call.1} parent=1 // pred_check_branch
      %124 = sbr.rel (0) target = $region101
    $region100: #{tpu_custom_call.1} parent=1 // pred_region
      _
    $region101: #{tpu_custom_call.1} parent=1 // pred_fallthru
      _
    // Predicated region
    $region102: #{tpu_custom_call.1} parent=1 // pred_check
      _
    $region103: #{tpu_custom_call.1} parent=1 // pred_check_branch
      %126 = sbr.rel (0) target = $region105
    $region104: #{tpu_custom_call.1} parent=1 // pred_region
      _
    $region105: #{tpu_custom_call.1} parent=1 // pred_fallthru
      _
    // Predicated region
    $region106: #{tpu_custom_call.1} parent=1 // pred_check
      _
    $region107: #{tpu_custom_call.1} parent=1 // pred_check_branch
      %128 = sbr.rel (0) target = $region109
    $region108: #{tpu_custom_call.1} parent=1 // pred_region
      _
    $region109: #{tpu_custom_call.1} parent=1 // pred_fallthru
      _
    // Predicated region
    $region110: #{tpu_custom_call.1} parent=1 // pred_check
      _
    $region111: #{tpu_custom_call.1} parent=1 // pred_check_branch
      %130 = sbr.rel (0) target = $region113
    $region112: #{tpu_custom_call.1} parent=1 // pred_region
      _
    $region113: #{tpu_custom_call.1} parent=1 // pred_fallthru
      _
    // Predicated region
    $region114: #{tpu_custom_call.1} parent=1 // pred_check
      _
    $region115: #{tpu_custom_call.1} parent=1 // pred_check_branch
      %132 = sbr.rel (0) target = $region117
    $region116: #{tpu_custom_call.1} parent=1 // pred_region
      _
    $region117: #{tpu_custom_call.1} parent=1 // pred_fallthru
      _
    // Predicated region
    $region118: #{tpu_custom_call.1} parent=1 // pred_check
      _
    $region119: #{tpu_custom_call.1} parent=1 // pred_check_branch
      %134 = sbr.rel (0) target = $region121
    $region120: #{tpu_custom_call.1} parent=1 // pred_region
      _
    $region121: #{tpu_custom_call.1} parent=1 // pred_fallthru
      _
    // Predicated region
    $region122: #{tpu_custom_call.1} parent=1 // pred_check
      _
    $region123: #{tpu_custom_call.1} parent=1 // pred_check_branch
      %136 = sbr.rel (0) target = $region125
    $region124: #{tpu_custom_call.1} parent=1 // pred_region
      _
    $region125: #{tpu_custom_call.1} parent=1 // pred_fallthru
      _
    // Predicated region
    $region126: #{tpu_custom_call.1} parent=1 // pred_check
      _
    $region127: #{tpu_custom_call.1} parent=1 // pred_check_branch
      %138 = sbr.rel (0) target = $region129
    $region128: #{tpu_custom_call.1} parent=1 // pred_region
      _
    $region129: #{tpu_custom_call.1} parent=1 // pred_fallthru
      _
    // Predicated region
    $region130: #{tpu_custom_call.1} parent=1 // pred_check
      _
    $region131: #{tpu_custom_call.1} parent=1 // pred_check_branch
      %140 = sbr.rel (0) target = $region133
    $region132: #{tpu_custom_call.1} parent=1 // pred_region
      _
    $region133: #{tpu_custom_call.1} parent=1 // pred_fallthru
      _
    // Predicated region
    $region134: #{tpu_custom_call.1} parent=1 // pred_check
      _
    $region135: #{tpu_custom_call.1} parent=1 // pred_check_branch
      %142 = sbr.rel (0) target = $region137
    $region136: #{tpu_custom_call.1} parent=1 // pred_region
      _
    $region137: #{tpu_custom_call.1} parent=1 // pred_fallthru
      _
    %v144 = vld [vmem:[%s1] sm:$0xff]
    %v145 = vld [vmem:[%s1 + $0x8] sm:$0xff]
    %v146 = vld [vmem:[%s1 + $0x10] sm:$0xff]
    %v147 = vld [vmem:[%s1 + $0x18] sm:$0xff]
    %v148 = vld [vmem:[%s1 + $0x20] sm:$0xff]
    %v149 = vld [vmem:[%s1 + $0x28] sm:$0xff]
    %v150 = vld [vmem:[%s1 + $0x30] sm:$0xff]
    %v151 = vld [vmem:[%s1 + $0x38] sm:$0xff]
    %v152 = vld [vmem:[%s1 + $0x40] sm:$0xff]
    %v153 = vld [vmem:[%s1 + $0x48] sm:$0xff]
    %v154 = vld [vmem:[%s1 + $0x50] sm:$0xff]
    %v155 = vld [vmem:[%s1 + $0x58] sm:$0xff]
    %v156 = vld [vmem:[%s1 + $0x60] sm:$0xff]
    %v157 = vld [vmem:[%s1 + $0x68] sm:$0xff]
    %v158 = vld [vmem:[%s1 + $0x70] sm:$0xff]
    %v159 = vld [vmem:[%s1 + $0x78] sm:$0xff]
    %v160 = vld [vmem:[%s1 + $0x80] sm:$0xff]
    %v161 = vld [vmem:[%s1 + $0x88] sm:$0xff]
    %v162 = vld [vmem:[%s1 + $0x90] sm:$0xff]
    %v163 = vld [vmem:[%s1 + $0x98] sm:$0xff]
    %v164 = vld [vmem:[%s1 + $0xa0] sm:$0xff]
    %v165 = vld [vmem:[%s1 + $0xa8] sm:$0xff]
    %v166 = vld [vmem:[%s1 + $0xb0] sm:$0xff]
    %v167 = vld [vmem:[%s1 + $0xb8] sm:$0xff]
    %v168 = vld [vmem:[%s1 + $0xc0] sm:$0xff]
    %v169 = vld [vmem:[%s1 + $0xc8] sm:$0xff]
    %v170 = vld [vmem:[%s1 + $0xd0] sm:$0xff]
    %v171 = vld [vmem:[%s1 + $0xd8] sm:$0xff]
    %v172 = vld [vmem:[%s1 + $0xe0] sm:$0xff]
    %v173 = vld [vmem:[%s1 + $0xe8] sm:$0xff]
    %v174 = vld [vmem:[%s1 + $0xf0] sm:$0xff]
    %v175 = vld [vmem:[%s1 + $0xf8] sm:$0xff]
    %v176 = vld [vmem:[%s3] sm:$0xf]
    %v177 = vld [vmem:[%s3 + $0x4] sm:$0xf]
    %v178 = vld [vmem:[%s3 + $0x8] sm:$0xf]
    %v179 = vld [vmem:[%s3 + $0xc] sm:$0xf]
    %v180 = vpack.c.bf16 %v145, %v144
    %v181 = vpack.c.bf16 %v147, %v146
    %v182 = vpack.c.bf16 %v149, %v148
    %v183 = vpack.c.bf16 %v151, %v150
    %v184 = vpack.c.bf16 %v153, %v152
    %v185 = vpack.c.bf16 %v155, %v154
    %v186 = vpack.c.bf16 %v157, %v156
    %v187 = vpack.c.bf16 %v159, %v158
    %v188 = vpack.c.bf16 %v161, %v160
    %v189 = vpack.c.bf16 %v163, %v162
    %v190 = vpack.c.bf16 %v165, %v164
    %v191 = vpack.c.bf16 %v167, %v166
    %v192 = vpack.c.bf16 %v169, %v168
    %v193 = vpack.c.bf16 %v171, %v170
    %v194 = vpack.c.bf16 %v173, %v172
    %v195 = vpack.c.bf16 %v175, %v174
    %v200 = vunpack.c.l.b16 %v176
    %v201 = vunpack.c.l.b16 %v177
    %v202 = vunpack.c.l.b16 %v178
    %v203 = vunpack.c.l.b16 %v179
    %v204 = vpack.c.b16 %v201, %v200
    %v205 = vpack.c.b16 %v203, %v202
    %vm208 = vcmask 261120
    %v210 = vsel %vm208, %v180, 0
    %v213 = vsel %vm208, %v181, 0
    %v216 = vsel %vm208, %v182, 0
    %v219 = vsel %vm208, %v183, 0
    %v222 = vsel %vm208, %v184, 0
    %v225 = vsel %vm208, %v185, 0
    %v228 = vsel %vm208, %v186, 0
    %v231 = vsel %vm208, %v187, 0
    %v234 = vsel %vm208, %v188, 0
    %v237 = vsel %vm208, %v189, 0
    %v240 = vsel %vm208, %v190, 0
    %v243 = vsel %vm208, %v191, 0
    %v246 = vsel %vm208, %v192, 0
    %v249 = vsel %vm208, %v193, 0
    %v252 = vsel %vm208, %v194, 0
    %v255 = vsel %vm208, %v195, 0
    %257 = vmatprep.subr.bf16.mxu0 0
    %258 = vmatpush1.bf16.msra.mxu0 %v204
    %259 = vmatprep.subr.bf16.mxu0 0
    %260 = vmatpush1.bf16.msra.mxu0 %v205
    %261 = vmatprep.subr.bf16.mxu0 0
    %262 = vmatpush1.bf16.msra.mxu0 0
    %263 = vmatprep.subr.bf16.mxu0 0
    %264 = vmatpush1.bf16.msra.mxu0 0
    %265 = vmatprep.subr.bf16.mxu0 0
    %266 = vmatpush1.bf16.msra.mxu0 0
    %267 = vmatprep.subr.bf16.mxu0 0
    %268 = vmatpush1.bf16.msra.mxu0 0
    %269 = vmatprep.subr.bf16.mxu0 0
    %270 = vmatpush1.bf16.msra.mxu0 0
    %271 = vmatprep.subr.bf16.mxu0 0
    %272 = vmatpush1.bf16.msra.mxu0 0
    %273 = vmatprep.subr.bf16.mxu0 0
    %274 = vmatpush1.bf16.msra.mxu0 0
    %275 = vmatprep.subr.bf16.mxu0 0
    %276 = vmatpush1.bf16.msra.mxu0 0
    %277 = vmatprep.subr.bf16.mxu0 0
    %278 = vmatpush1.bf16.msra.mxu0 0
    %279 = vmatprep.subr.bf16.mxu0 0
    %280 = vmatpush1.bf16.msra.mxu0 0
    %281 = vmatprep.subr.bf16.mxu0 0
    %282 = vmatpush1.bf16.msra.mxu0 0
    %283 = vmatprep.subr.bf16.mxu0 0
    %284 = vmatpush1.bf16.msra.mxu0 0
    %285 = vmatprep.subr.bf16.mxu0 0
    %286 = vmatpush1.bf16.msra.mxu0 0
    %287 = vmatprep.subr.bf16.mxu0 0
    %288 = vmatpush1.bf16.msra.mxu0 0
    %289 = vmatprep.mubr.bf16.mxu0 0
    %290 = vmatmul.mubr.bf16.gmra.mrb[0].mxu0 %v210
    %v291 = vpop.f32.mrb[0].mxu0
    %v292 = vadd.f32 0.0, %v291
    %v293 = vpop.f32.mrb[0].mxu0
    %v294 = vpop.f32.mrb[0].mxu0
    %v295 = vadd.f32 0.0, %v294
    %v296 = vpop.f32.mrb[0].mxu0
    %297 = vmatprep.mubr.bf16.mxu0 0
    %298 = vmatmul.mubr.bf16.gmra.mrb[0].mxu0 %v213
    %v299 = vpop.f32.mrb[0].mxu0
    %v300 = vadd.f32 0.0, %v299
    %v301 = vpop.f32.mrb[0].mxu0
    %v302 = vpop.f32.mrb[0].mxu0
    %v303 = vadd.f32 0.0, %v302
    %v304 = vpop.f32.mrb[0].mxu0
    %305 = vmatprep.mubr.bf16.mxu0 0
    %306 = vmatmul.mubr.bf16.gmra.mrb[0].mxu0 %v216
    %v307 = vpop.f32.mrb[0].mxu0
    %v308 = vadd.f32 0.0, %v307
    %v309 = vpop.f32.mrb[0].mxu0
    %v310 = vpop.f32.mrb[0].mxu0
    %v311 = vadd.f32 0.0, %v310
    %v312 = vpop.f32.mrb[0].mxu0
    %313 = vmatprep.mubr.bf16.mxu0 0
    %314 = vmatmul.mubr.bf16.gmra.mrb[0].mxu0 %v219
    %v315 = vpop.f32.mrb[0].mxu0
    %v316 = vadd.f32 0.0, %v315
    %v317 = vpop.f32.mrb[0].mxu0
    %v318 = vpop.f32.mrb[0].mxu0
    %v319 = vadd.f32 0.0, %v318
    %v320 = vpop.f32.mrb[0].mxu0
    %321 = vmatprep.mubr.bf16.mxu0 0
    %322 = vmatmul.mubr.bf16.gmra.mrb[0].mxu0 %v222
    %v323 = vpop.f32.mrb[0].mxu0
    %v324 = vadd.f32 0.0, %v323
    %v325 = vpop.f32.mrb[0].mxu0
    %v326 = vpop.f32.mrb[0].mxu0
    %v327 = vadd.f32 0.0, %v326
    %v328 = vpop.f32.mrb[0].mxu0
    %329 = vmatprep.mubr.bf16.mxu0 0
    %330 = vmatmul.mubr.bf16.gmra.mrb[0].mxu0 %v225
    %v331 = vpop.f32.mrb[0].mxu0
    %v332 = vadd.f32 0.0, %v331
    %v333 = vpop.f32.mrb[0].mxu0
    %v334 = vpop.f32.mrb[0].mxu0
    %v335 = vadd.f32 0.0, %v334
    %v336 = vpop.f32.mrb[0].mxu0
    %337 = vmatprep.mubr.bf16.mxu0 0
    %338 = vmatmul.mubr.bf16.gmra.mrb[0].mxu0 %v228
    %v339 = vpop.f32.mrb[0].mxu0
    %v340 = vadd.f32 0.0, %v339
    %v341 = vpop.f32.mrb[0].mxu0
    %v342 = vpop.f32.mrb[0].mxu0
    %v343 = vadd.f32 0.0, %v342
    %v344 = vpop.f32.mrb[0].mxu0
    %345 = vmatprep.mubr.bf16.mxu0 0
    %346 = vmatmul.mubr.bf16.gmra.mrb[0].mxu0 %v231
    %v347 = vpop.f32.mrb[0].mxu0
    %v348 = vadd.f32 0.0, %v347
    %v349 = vpop.f32.mrb[0].mxu0
    %v350 = vpop.f32.mrb[0].mxu0
    %v351 = vadd.f32 0.0, %v350
    %v352 = vpop.f32.mrb[0].mxu0
    %353 = vmatprep.mubr.bf16.mxu0 0
    %354 = vmatmul.mubr.bf16.gmra.mrb[0].mxu0 %v234
    %v355 = vpop.f32.mrb[0].mxu0
    %v356 = vadd.f32 0.0, %v355
    %v357 = vpop.f32.mrb[0].mxu0
    %v358 = vpop.f32.mrb[0].mxu0
    %v359 = vadd.f32 0.0, %v358
    %v360 = vpop.f32.mrb[0].mxu0
    %361 = vmatprep.mubr.bf16.mxu0 0
    %362 = vmatmul.mubr.bf16.gmra.mrb[0].mxu0 %v237
    %v363 = vpop.f32.mrb[0].mxu0
    %v364 = vadd.f32 0.0, %v363
    %v365 = vpop.f32.mrb[0].mxu0
    %v366 = vpop.f32.mrb[0].mxu0
    %v367 = vadd.f32 0.0, %v366
    %v368 = vpop.f32.mrb[0].mxu0
    %369 = vmatprep.mubr.bf16.mxu0 0
    %370 = vmatmul.mubr.bf16.gmra.mrb[0].mxu0 %v240
    %v371 = vpop.f32.mrb[0].mxu0
    %v372 = vadd.f32 0.0, %v371
    %v373 = vpop.f32.mrb[0].mxu0
    %v374 = vpop.f32.mrb[0].mxu0
    %v375 = vadd.f32 0.0, %v374
    %v376 = vpop.f32.mrb[0].mxu0
    %377 = vmatprep.mubr.bf16.mxu0 0
    %378 = vmatmul.mubr.bf16.gmra.mrb[0].mxu0 %v243
    %v379 = vpop.f32.mrb[0].mxu0
    %v380 = vadd.f32 0.0, %v379
    %v381 = vpop.f32.mrb[0].mxu0
    %v382 = vpop.f32.mrb[0].mxu0
    %v383 = vadd.f32 0.0, %v382
    %v384 = vpop.f32.mrb[0].mxu0
    %385 = vmatprep.mubr.bf16.mxu0 0
    %386 = vmatmul.mubr.bf16.gmra.mrb[0].mxu0 %v246
    %v387 = vpop.f32.mrb[0].mxu0
    %v388 = vadd.f32 0.0, %v387
    %v389 = vpop.f32.mrb[0].mxu0
    %v390 = vpop.f32.mrb[0].mxu0
    %v391 = vadd.f32 0.0, %v390
    %v392 = vpop.f32.mrb[0].mxu0
    %393 = vmatprep.mubr.bf16.mxu0 0
    %394 = vmatmul.mubr.bf16.gmra.mrb[0].mxu0 %v249
    %v395 = vpop.f32.mrb[0].mxu0
    %v396 = vadd.f32 0.0, %v395
    %v397 = vpop.f32.mrb[0].mxu0
    %v398 = vpop.f32.mrb[0].mxu0
    %v399 = vadd.f32 0.0, %v398
    %v400 = vpop.f32.mrb[0].mxu0
    %401 = vmatprep.mubr.bf16.mxu0 0
    %402 = vmatmul.mubr.bf16.gmra.mrb[0].mxu0 %v252
    %v403 = vpop.f32.mrb[0].mxu0
    %v404 = vadd.f32 0.0, %v403
    %v405 = vpop.f32.mrb[0].mxu0
    %v406 = vpop.f32.mrb[0].mxu0
    %v407 = vadd.f32 0.0, %v406
    %v408 = vpop.f32.mrb[0].mxu0
    %409 = vmatprep.mubr.bf16.mxu0 0
    %410 = vmatmul.mubr.bf16.gmra.mrb[0].mxu0 %v255
    %v411 = vpop.f32.mrb[0].mxu0
    %v412 = vadd.f32 0.0, %v411
    %v413 = vpop.f32.mrb[0].mxu0
    %v414 = vpop.f32.mrb[0].mxu0
    %v415 = vadd.f32 0.0, %v414
    %v416 = vpop.f32.mrb[0].mxu0
    %417 = vdwg.mxu0
    %v418 = vsel %vm208, %v292, -inf
    %v419 = vrot.slane %v418, 4
    %v420 = vmax.f32 %v418, %v419
    %v421 = vrot.slane %v420, 2
    %v422 = vmax.f32 %v420, %v421
    %v423 = vrot.slane %v422, 1
    %v424 = vmax.f32 %v422, %v423
    %v425 = vsel %vm208, %v295, -inf
    %v426 = vrot.slane %v425, 4
    %v427 = vmax.f32 %v425, %v426
    %v428 = vrot.slane %v427, 2
    %v429 = vmax.f32 %v427, %v428
    %v430 = vrot.slane %v429, 1
    %v431 = vmax.f32 %v429, %v430
    %v432 = vsel %vm208, %v300, -inf
    %v433 = vrot.slane %v432, 4
    %v434 = vmax.f32 %v432, %v433
    %v435 = vrot.slane %v434, 2
    %v436 = vmax.f32 %v434, %v435
    %v437 = vrot.slane %v436, 1
    %v438 = vmax.f32 %v436, %v437
    %v439 = vsel %vm208, %v303, -inf
    %v440 = vrot.slane %v439, 4
    %v441 = vmax.f32 %v439, %v440
    %v442 = vrot.slane %v441, 2
    %v443 = vmax.f32 %v441, %v442
    %v444 = vrot.slane %v443, 1
    %v445 = vmax.f32 %v443, %v444
    %v446 = vsel %vm208, %v308, -inf
    %v447 = vrot.slane %v446, 4
    %v448 = vmax.f32 %v446, %v447
    %v449 = vrot.slane %v448, 2
    %v450 = vmax.f32 %v448, %v449
    %v451 = vrot.slane %v450, 1
    %v452 = vmax.f32 %v450, %v451
    %v453 = vsel %vm208, %v311, -inf
    %v454 = vrot.slane %v453, 4
    %v455 = vmax.f32 %v453, %v454
    %v456 = vrot.slane %v455, 2
    %v457 = vmax.f32 %v455, %v456
    %v458 = vrot.slane %v457, 1
    %v459 = vmax.f32 %v457, %v458
    %v460 = vsel %vm208, %v316, -inf
    %v461 = vrot.slane %v460, 4
    %v462 = vmax.f32 %v460, %v461
    %v463 = vrot.slane %v462, 2
    %v464 = vmax.f32 %v462, %v463
    %v465 = vrot.slane %v464, 1
    %v466 = vmax.f32 %v464, %v465
    %v467 = vsel %vm208, %v319, -inf
    %v468 = vrot.slane %v467, 4
    %v469 = vmax.f32 %v467, %v468
    %v470 = vrot.slane %v469, 2
    %v471 = vmax.f32 %v469, %v470
    %v472 = vrot.slane %v471, 1
    %v473 = vmax.f32 %v471, %v472
    %v474 = vsel %vm208, %v324, -inf
    %v475 = vrot.slane %v474, 4
    %v476 = vmax.f32 %v474, %v475
    %v477 = vrot.slane %v476, 2
    %v478 = vmax.f32 %v476, %v477
    %v479 = vrot.slane %v478, 1
    %v480 = vmax.f32 %v478, %v479
    %v481 = vsel %vm208, %v327, -inf
    %v482 = vrot.slane %v481, 4
    %v483 = vmax.f32 %v481, %v482
    %v484 = vrot.slane %v483, 2
    %v485 = vmax.f32 %v483, %v484
    %v486 = vrot.slane %v485, 1
    %v487 = vmax.f32 %v485, %v486
    %v488 = vsel %vm208, %v332, -inf
    %v489 = vrot.slane %v488, 4
    %v490 = vmax.f32 %v488, %v489
    %v491 = vrot.slane %v490, 2
    %v492 = vmax.f32 %v490, %v491
    %v493 = vrot.slane %v492, 1
    %v494 = vmax.f32 %v492, %v493
    %v495 = vsel %vm208, %v335, -inf
    %v496 = vrot.slane %v495, 4
    %v497 = vmax.f32 %v495, %v496
    %v498 = vrot.slane %v497, 2
    %v499 = vmax.f32 %v497, %v498
    %v500 = vrot.slane %v499, 1
    %v501 = vmax.f32 %v499, %v500
    %v502 = vsel %vm208, %v340, -inf
    %v503 = vrot.slane %v502, 4
    %v504 = vmax.f32 %v502, %v503
    %v505 = vrot.slane %v504, 2
    %v506 = vmax.f32 %v504, %v505
    %v507 = vrot.slane %v506, 1
    %v508 = vmax.f32 %v506, %v507
    %v509 = vsel %vm208, %v343, -inf
    %v510 = vrot.slane %v509, 4
    %v511 = vmax.f32 %v509, %v510
    %v512 = vrot.slane %v511, 2
    %v513 = vmax.f32 %v511, %v512
    %v514 = vrot.slane %v513, 1
    %v515 = vmax.f32 %v513, %v514
    %v516 = vsel %vm208, %v348, -inf
    %v517 = vrot.slane %v516, 4
    %v518 = vmax.f32 %v516, %v517
    %v519 = vrot.slane %v518, 2
    %v520 = vmax.f32 %v518, %v519
    %v521 = vrot.slane %v520, 1
    %v522 = vmax.f32 %v520, %v521
    %v523 = vsel %vm208, %v351, -inf
    %v524 = vrot.slane %v523, 4
    %v525 = vmax.f32 %v523, %v524
    %v526 = vrot.slane %v525, 2
    %v527 = vmax.f32 %v525, %v526
    %v528 = vrot.slane %v527, 1
    %v529 = vmax.f32 %v527, %v528
    %v530 = vsel %vm208, %v356, -inf
    %v531 = vrot.slane %v530, 4
    %v532 = vmax.f32 %v530, %v531
    %v533 = vrot.slane %v532, 2
    %v534 = vmax.f32 %v532, %v533
    %v535 = vrot.slane %v534, 1
    %v536 = vmax.f32 %v534, %v535
    %v537 = vsel %vm208, %v359, -inf
    %v538 = vrot.slane %v537, 4
    %v539 = vmax.f32 %v537, %v538
    %v540 = vrot.slane %v539, 2
    %v541 = vmax.f32 %v539, %v540
    %v542 = vrot.slane %v541, 1
    %v543 = vmax.f32 %v541, %v542
    %v544 = vsel %vm208, %v364, -inf
    %v545 = vrot.slane %v544, 4
    %v546 = vmax.f32 %v544, %v545
    %v547 = vrot.slane %v546, 2
    %v548 = vmax.f32 %v546, %v547
    %v549 = vrot.slane %v548, 1
    %v550 = vmax.f32 %v548, %v549
    %v551 = vsel %vm208, %v367, -inf
    %v552 = vrot.slane %v551, 4
    %v553 = vmax.f32 %v551, %v552
    %v554 = vrot.slane %v553, 2
    %v555 = vmax.f32 %v553, %v554
    %v556 = vrot.slane %v555, 1
    %v557 = vmax.f32 %v555, %v556
    %v558 = vsel %vm208, %v372, -inf
    %v559 = vrot.slane %v558, 4
    %v560 = vmax.f32 %v558, %v559
    %v561 = vrot.slane %v560, 2
    %v562 = vmax.f32 %v560, %v561
    %v563 = vrot.slane %v562, 1
    %v564 = vmax.f32 %v562, %v563
    %v565 = vsel %vm208, %v375, -inf
    %v566 = vrot.slane %v565, 4
    %v567 = vmax.f32 %v565, %v566
    %v568 = vrot.slane %v567, 2
    %v569 = vmax.f32 %v567, %v568
    %v570 = vrot.slane %v569, 1
    %v571 = vmax.f32 %v569, %v570
    %v572 = vsel %vm208, %v380, -inf
    %v573 = vrot.slane %v572, 4
    %v574 = vmax.f32 %v572, %v573
    %v575 = vrot.slane %v574, 2
    %v576 = vmax.f32 %v574, %v575
    %v577 = vrot.slane %v576, 1
    %v578 = vmax.f32 %v576, %v577
    %v579 = vsel %vm208, %v383, -inf
    %v580 = vrot.slane %v579, 4
    %v581 = vmax.f32 %v579, %v580
    %v582 = vrot.slane %v581, 2
    %v583 = vmax.f32 %v581, %v582
    %v584 = vrot.slane %v583, 1
    %v585 = vmax.f32 %v583, %v584
    %v586 = vsel %vm208, %v388, -inf
    %v587 = vrot.slane %v586, 4
    %v588 = vmax.f32 %v586, %v587
    %v589 = vrot.slane %v588, 2
    %v590 = vmax.f32 %v588, %v589
    %v591 = vrot.slane %v590, 1
    %v592 = vmax.f32 %v590, %v591
    %v593 = vsel %vm208, %v391, -inf
    %v594 = vrot.slane %v593, 4
    %v595 = vmax.f32 %v593, %v594
    %v596 = vrot.slane %v595, 2
    %v597 = vmax.f32 %v595, %v596
    %v598 = vrot.slane %v597, 1
    %v599 = vmax.f32 %v597, %v598
    %v600 = vsel %vm208, %v396, -inf
    %v601 = vrot.slane %v600, 4
    %v602 = vmax.f32 %v600, %v601
    %v603 = vrot.slane %v602, 2
    %v604 = vmax.f32 %v602, %v603
    %v605 = vrot.slane %v604, 1
    %v606 = vmax.f32 %v604, %v605
    %v607 = vsel %vm208, %v399, -inf
    %v608 = vrot.slane %v607, 4
    %v609 = vmax.f32 %v607, %v608
    %v610 = vrot.slane %v609, 2
    %v611 = vmax.f32 %v609, %v610
    %v612 = vrot.slane %v611, 1
    %v613 = vmax.f32 %v611, %v612
    %v614 = vsel %vm208, %v404, -inf
    %v615 = vrot.slane %v614, 4
    %v616 = vmax.f32 %v614, %v615
    %v617 = vrot.slane %v616, 2
    %v618 = vmax.f32 %v616, %v617
    %v619 = vrot.slane %v618, 1
    %v620 = vmax.f32 %v618, %v619
    %v621 = vsel %vm208, %v407, -inf
    %v622 = vrot.slane %v621, 4
    %v623 = vmax.f32 %v621, %v622
    %v624 = vrot.slane %v623, 2
    %v625 = vmax.f32 %v623, %v624
    %v626 = vrot.slane %v625, 1
    %v627 = vmax.f32 %v625, %v626
    %v628 = vsel %vm208, %v412, -inf
    %v629 = vrot.slane %v628, 4
    %v630 = vmax.f32 %v628, %v629
    %v631 = vrot.slane %v630, 2
    %v632 = vmax.f32 %v630, %v631
    %v633 = vrot.slane %v632, 1
    %v634 = vmax.f32 %v632, %v633
    %v635 = vsel %vm208, %v415, -inf
    %v636 = vrot.slane %v635, 4
    %v637 = vmax.f32 %v635, %v636
    %v638 = vrot.slane %v637, 2
    %v639 = vmax.f32 %v637, %v638
    %v640 = vrot.slane %v639, 1
    %v641 = vmax.f32 %v639, %v640
    %v642 = vsub.f32 %v292, %v424
    %v643 = vsub.f32 %v295, %v431
    %v644 = vsub.f32 %v300, %v438
    %v645 = vsub.f32 %v303, %v445
    %v646 = vsub.f32 %v308, %v452
    %v647 = vsub.f32 %v311, %v459
    %v648 = vsub.f32 %v316, %v466
    %v649 = vsub.f32 %v319, %v473
    %v650 = vsub.f32 %v324, %v480
    %v651 = vsub.f32 %v327, %v487
    %v652 = vsub.f32 %v332, %v494
    %v653 = vsub.f32 %v335, %v501
    %v654 = vsub.f32 %v340, %v508
    %v655 = vsub.f32 %v343, %v515
    %v656 = vsub.f32 %v348, %v522
    %v657 = vsub.f32 %v351, %v529
    %v658 = vsub.f32 %v356, %v536
    %v659 = vsub.f32 %v359, %v543
    %v660 = vsub.f32 %v364, %v550
    %v661 = vsub.f32 %v367, %v557
    %v662 = vsub.f32 %v372, %v564
    %v663 = vsub.f32 %v375, %v571
    %v664 = vsub.f32 %v380, %v578
    %v665 = vsub.f32 %v383, %v585
    %v666 = vsub.f32 %v388, %v592
    %v667 = vsub.f32 %v391, %v599
    %v668 = vsub.f32 %v396, %v606
    %v669 = vsub.f32 %v399, %v613
    %v670 = vsub.f32 %v404, %v620
    %v671 = vsub.f32 %v407, %v627
    %v672 = vsub.f32 %v412, %v634
    %v673 = vsub.f32 %v415, %v641
    %v674 = vmul.f32 %v642, 1.442695
    %v675 = vpow.pop %v674
    %v676 = vmul.f32 %v643, 1.442695
    %v677 = vpow.pop %v676
    %v678 = vmul.f32 %v644, 1.442695
    %v679 = vpow.pop %v678
    %v680 = vmul.f32 %v645, 1.442695
    %v681 = vpow.pop %v680
    %v682 = vmul.f32 %v646, 1.442695
    %v683 = vpow.pop %v682
    %v684 = vmul.f32 %v647, 1.442695
    %v685 = vpow.pop %v684
    %v686 = vmul.f32 %v648, 1.442695
    %v687 = vpow.pop %v686
    %v688 = vmul.f32 %v649, 1.442695
    %v689 = vpow.pop %v688
    %v690 = vmul.f32 %v650, 1.442695
    %v691 = vpow.pop %v690
    %v692 = vmul.f32 %v651, 1.442695
    %v693 = vpow.pop %v692
    %v694 = vmul.f32 %v652, 1.442695
    %v695 = vpow.pop %v694
    %v696 = vmul.f32 %v653, 1.442695
    %v697 = vpow.pop %v696
    %v698 = vmul.f32 %v654, 1.442695
    %v699 = vpow.pop %v698
    %v700 = vmul.f32 %v655, 1.442695
    %v701 = vpow.pop %v700
    %v702 = vmul.f32 %v656, 1.442695
    %v703 = vpow.pop %v702
    %v704 = vmul.f32 %v657, 1.442695
    %v705 = vpow.pop %v704
    %v706 = vmul.f32 %v658, 1.442695
    %v707 = vpow.pop %v706
    %v708 = vmul.f32 %v659, 1.442695
    %v709 = vpow.pop %v708
    %v710 = vmul.f32 %v660, 1.442695
    %v711 = vpow.pop %v710
    %v712 = vmul.f32 %v661, 1.442695
    %v713 = vpow.pop %v712
    %v714 = vmul.f32 %v662, 1.442695
    %v715 = vpow.pop %v714
    %v716 = vmul.f32 %v663, 1.442695
    %v717 = vpow.pop %v716
    %v718 = vmul.f32 %v664, 1.442695
    %v719 = vpow.pop %v718
    %v720 = vmul.f32 %v665, 1.442695
    %v721 = vpow.pop %v720
    %v722 = vmul.f32 %v666, 1.442695
    %v723 = vpow.pop %v722
    %v724 = vmul.f32 %v667, 1.442695
    %v725 = vpow.pop %v724
    %v726 = vmul.f32 %v668, 1.442695
    %v727 = vpow.pop %v726
    %v728 = vmul.f32 %v669, 1.442695
    %v729 = vpow.pop %v728
    %v730 = vmul.f32 %v670, 1.442695
    %v731 = vpow.pop %v730
    %v732 = vmul.f32 %v671, 1.442695
    %v733 = vpow.pop %v732
    %v734 = vmul.f32 %v672, 1.442695
    %v735 = vpow.pop %v734
    %v736 = vmul.f32 %v673, 1.442695
    %v737 = vpow.pop %v736
    %v738 = vsel %vm208, %v675, 0.0
    %v739 = vrot.slane %v738, 4
    %v740 = vadd.f32 %v738, %v739
    %v741 = vrot.slane %v740, 2
    %v742 = vadd.f32 %v740, %v741
    %v743 = vrot.slane %v742, 1
    %v744 = vadd.f32 %v742, %v743
    %v745 = vsel %vm208, %v677, 0.0
    %v746 = vrot.slane %v745, 4
    %v747 = vadd.f32 %v745, %v746
    %v748 = vrot.slane %v747, 2
    %v749 = vadd.f32 %v747, %v748
    %v750 = vrot.slane %v749, 1
    %v751 = vadd.f32 %v749, %v750
    %v752 = vsel %vm208, %v679, 0.0
    %v753 = vrot.slane %v752, 4
    %v754 = vadd.f32 %v752, %v753
    %v755 = vrot.slane %v754, 2
    %v756 = vadd.f32 %v754, %v755
    %v757 = vrot.slane %v756, 1
    %v758 = vadd.f32 %v756, %v757
    %v759 = vsel %vm208, %v681, 0.0
    %v760 = vrot.slane %v759, 4
    %v761 = vadd.f32 %v759, %v760
    %v762 = vrot.slane %v761, 2
    %v763 = vadd.f32 %v761, %v762
    %v764 = vrot.slane %v763, 1
    %v765 = vadd.f32 %v763, %v764
    %v766 = vsel %vm208, %v683, 0.0
    %v767 = vrot.slane %v766, 4
    %v768 = vadd.f32 %v766, %v767
    %v769 = vrot.slane %v768, 2
    %v770 = vadd.f32 %v768, %v769
    %v771 = vrot.slane %v770, 1
    %v772 = vadd.f32 %v770, %v771
    %v773 = vsel %vm208, %v685, 0.0
    %v774 = vrot.slane %v773, 4
    %v775 = vadd.f32 %v773, %v774
    %v776 = vrot.slane %v775, 2
    %v777 = vadd.f32 %v775, %v776
    %v778 = vrot.slane %v777, 1
    %v779 = vadd.f32 %v777, %v778
    %v780 = vsel %vm208, %v687, 0.0
    %v781 = vrot.slane %v780, 4
    %v782 = vadd.f32 %v780, %v781
    %v783 = vrot.slane %v782, 2
    %v784 = vadd.f32 %v782, %v783
    %v785 = vrot.slane %v784, 1
    %v786 = vadd.f32 %v784, %v785
    %v787 = vsel %vm208, %v689, 0.0
    %v788 = vrot.slane %v787, 4
    %v789 = vadd.f32 %v787, %v788
    %v790 = vrot.slane %v789, 2
    %v791 = vadd.f32 %v789, %v790
    %v792 = vrot.slane %v791, 1
    %v793 = vadd.f32 %v791, %v792
    %v794 = vsel %vm208, %v691, 0.0
    %v795 = vrot.slane %v794, 4
    %v796 = vadd.f32 %v794, %v795
    %v797 = vrot.slane %v796, 2
    %v798 = vadd.f32 %v796, %v797
    %v799 = vrot.slane %v798, 1
    %v800 = vadd.f32 %v798, %v799
    %v801 = vsel %vm208, %v693, 0.0
    %v802 = vrot.slane %v801, 4
    %v803 = vadd.f32 %v801, %v802
    %v804 = vrot.slane %v803, 2
    %v805 = vadd.f32 %v803, %v804
    %v806 = vrot.slane %v805, 1
    %v807 = vadd.f32 %v805, %v806
    %v808 = vsel %vm208, %v695, 0.0
    %v809 = vrot.slane %v808, 4
    %v810 = vadd.f32 %v808, %v809
    %v811 = vrot.slane %v810, 2
    %v812 = vadd.f32 %v810, %v811
    %v813 = vrot.slane %v812, 1
    %v814 = vadd.f32 %v812, %v813
    %v815 = vsel %vm208, %v697, 0.0
    %v816 = vrot.slane %v815, 4
    %v817 = vadd.f32 %v815, %v816
    %v818 = vrot.slane %v817, 2
    %v819 = vadd.f32 %v817, %v818
    %v820 = vrot.slane %v819, 1
    %v821 = vadd.f32 %v819, %v820
    %v822 = vsel %vm208, %v699, 0.0
    %v823 = vrot.slane %v822, 4
    %v824 = vadd.f32 %v822, %v823
    %v825 = vrot.slane %v824, 2
    %v826 = vadd.f32 %v824, %v825
    %v827 = vrot.slane %v826, 1
    %v828 = vadd.f32 %v826, %v827
    %v829 = vsel %vm208, %v701, 0.0
    %v830 = vrot.slane %v829, 4
    %v831 = vadd.f32 %v829, %v830
    %v832 = vrot.slane %v831, 2
    %v833 = vadd.f32 %v831, %v832
    %v834 = vrot.slane %v833, 1
    %v835 = vadd.f32 %v833, %v834
    %v836 = vsel %vm208, %v703, 0.0
    %v837 = vrot.slane %v836, 4
    %v838 = vadd.f32 %v836, %v837
    %v839 = vrot.slane %v838, 2
    %v840 = vadd.f32 %v838, %v839
    %v841 = vrot.slane %v840, 1
    %v842 = vadd.f32 %v840, %v841
    %v843 = vsel %vm208, %v705, 0.0
    %v844 = vrot.slane %v843, 4
    %v845 = vadd.f32 %v843, %v844
    %v846 = vrot.slane %v845, 2
    %v847 = vadd.f32 %v845, %v846
    %v848 = vrot.slane %v847, 1
    %v849 = vadd.f32 %v847, %v848
    %v850 = vsel %vm208, %v707, 0.0
    %v851 = vrot.slane %v850, 4
    %v852 = vadd.f32 %v850, %v851
    %v853 = vrot.slane %v852, 2
    %v854 = vadd.f32 %v852, %v853
    %v855 = vrot.slane %v854, 1
    %v856 = vadd.f32 %v854, %v855
    %v857 = vsel %vm208, %v709, 0.0
    %v858 = vrot.slane %v857, 4
    %v859 = vadd.f32 %v857, %v858
    %v860 = vrot.slane %v859, 2
    %v861 = vadd.f32 %v859, %v860
    %v862 = vrot.slane %v861, 1
    %v863 = vadd.f32 %v861, %v862
    %v864 = vsel %vm208, %v711, 0.0
    %v865 = vrot.slane %v864, 4
    %v866 = vadd.f32 %v864, %v865
    %v867 = vrot.slane %v866, 2
    %v868 = vadd.f32 %v866, %v867
    %v869 = vrot.slane %v868, 1
    %v870 = vadd.f32 %v868, %v869
    %v871 = vsel %vm208, %v713, 0.0
    %v872 = vrot.slane %v871, 4
    %v873 = vadd.f32 %v871, %v872
    %v874 = vrot.slane %v873, 2
    %v875 = vadd.f32 %v873, %v874
    %v876 = vrot.slane %v875, 1
    %v877 = vadd.f32 %v875, %v876
    %v878 = vsel %vm208, %v715, 0.0
    %v879 = vrot.slane %v878, 4
    %v880 = vadd.f32 %v878, %v879
    %v881 = vrot.slane %v880, 2
    %v882 = vadd.f32 %v880, %v881
    %v883 = vrot.slane %v882, 1
    %v884 = vadd.f32 %v882, %v883
    %v885 = vsel %vm208, %v717, 0.0
    %v886 = vrot.slane %v885, 4
    %v887 = vadd.f32 %v885, %v886
    %v888 = vrot.slane %v887, 2
    %v889 = vadd.f32 %v887, %v888
    %v890 = vrot.slane %v889, 1
    %v891 = vadd.f32 %v889, %v890
    %v892 = vsel %vm208, %v719, 0.0
    %v893 = vrot.slane %v892, 4
    %v894 = vadd.f32 %v892, %v893
    %v895 = vrot.slane %v894, 2
    %v896 = vadd.f32 %v894, %v895
    %v897 = vrot.slane %v896, 1
    %v898 = vadd.f32 %v896, %v897
    %v899 = vsel %vm208, %v721, 0.0
    %v900 = vrot.slane %v899, 4
    %v901 = vadd.f32 %v899, %v900
    %v902 = vrot.slane %v901, 2
    %v903 = vadd.f32 %v901, %v902
    %v904 = vrot.slane %v903, 1
    %v905 = vadd.f32 %v903, %v904
    %v906 = vsel %vm208, %v723, 0.0
    %v907 = vrot.slane %v906, 4
    %v908 = vadd.f32 %v906, %v907
    %v909 = vrot.slane %v908, 2
    %v910 = vadd.f32 %v908, %v909
    %v911 = vrot.slane %v910, 1
    %v912 = vadd.f32 %v910, %v911
    %v913 = vsel %vm208, %v725, 0.0
    %v914 = vrot.slane %v913, 4
    %v915 = vadd.f32 %v913, %v914
    %v916 = vrot.slane %v915, 2
    %v917 = vadd.f32 %v915, %v916
    %v918 = vrot.slane %v917, 1
    %v919 = vadd.f32 %v917, %v918
    %v920 = vsel %vm208, %v727, 0.0
    %v921 = vrot.slane %v920, 4
    %v922 = vadd.f32 %v920, %v921
    %v923 = vrot.slane %v922, 2
    %v924 = vadd.f32 %v922, %v923
    %v925 = vrot.slane %v924, 1
    %v926 = vadd.f32 %v924, %v925
    %v927 = vsel %vm208, %v729, 0.0
    %v928 = vrot.slane %v927, 4
    %v929 = vadd.f32 %v927, %v928
    %v930 = vrot.slane %v929, 2
    %v931 = vadd.f32 %v929, %v930
    %v932 = vrot.slane %v931, 1
    %v933 = vadd.f32 %v931, %v932
    %v934 = vsel %vm208, %v731, 0.0
    %v935 = vrot.slane %v934, 4
    %v936 = vadd.f32 %v934, %v935
    %v937 = vrot.slane %v936, 2
    %v938 = vadd.f32 %v936, %v937
    %v939 = vrot.slane %v938, 1
    %v940 = vadd.f32 %v938, %v939
    %v941 = vsel %vm208, %v733, 0.0
    %v942 = vrot.slane %v941, 4
    %v943 = vadd.f32 %v941, %v942
    %v944 = vrot.slane %v943, 2
    %v945 = vadd.f32 %v943, %v944
    %v946 = vrot.slane %v945, 1
    %v947 = vadd.f32 %v945, %v946
    %v948 = vsel %vm208, %v735, 0.0
    %v949 = vrot.slane %v948, 4
    %v950 = vadd.f32 %v948, %v949
    %v951 = vrot.slane %v950, 2
    %v952 = vadd.f32 %v950, %v951
    %v953 = vrot.slane %v952, 1
    %v954 = vadd.f32 %v952, %v953
    %v955 = vsel %vm208, %v737, 0.0
    %v956 = vrot.slane %v955, 4
    %v957 = vadd.f32 %v955, %v956
    %v958 = vrot.slane %v957, 2
    %v959 = vadd.f32 %v957, %v958
    %v960 = vrot.slane %v959, 1
    %v961 = vadd.f32 %v959, %v960
    %v962 = vmul.f32 %v675, %v144
    %v963 = vmul.f32 %v677, %v145
    %v964 = vmul.f32 %v679, %v146
    %v965 = vmul.f32 %v681, %v147
    %v966 = vmul.f32 %v683, %v148
    %v967 = vmul.f32 %v685, %v149
    %v968 = vmul.f32 %v687, %v150
    %v969 = vmul.f32 %v689, %v151
    %v970 = vmul.f32 %v691, %v152
    %v971 = vmul.f32 %v693, %v153
    %v972 = vmul.f32 %v695, %v154
    %v973 = vmul.f32 %v697, %v155
    %v974 = vmul.f32 %v699, %v156
    %v975 = vmul.f32 %v701, %v157
    %v976 = vmul.f32 %v703, %v158
    %v977 = vmul.f32 %v705, %v159
    %v978 = vmul.f32 %v707, %v160
    %v979 = vmul.f32 %v709, %v161
    %v980 = vmul.f32 %v711, %v162
    %v981 = vmul.f32 %v713, %v163
    %v982 = vmul.f32 %v715, %v164
    %v983 = vmul.f32 %v717, %v165
    %v984 = vmul.f32 %v719, %v166
    %v985 = vmul.f32 %v721, %v167
    %v986 = vmul.f32 %v723, %v168
    %v987 = vmul.f32 %v725, %v169
    %v988 = vmul.f32 %v727, %v170
    %v989 = vmul.f32 %v729, %v171
    %v990 = vmul.f32 %v731, %v172
    %v991 = vmul.f32 %v733, %v173
    %v992 = vmul.f32 %v735, %v174
    %v993 = vmul.f32 %v737, %v175
    %v994 = vsel %vm208, %v962, 0.0
    %v995 = vrot.slane %v994, 4
    %v996 = vadd.f32 %v994, %v995
    %v997 = vrot.slane %v996, 2
    %v998 = vadd.f32 %v996, %v997
    %v999 = vrot.slane %v998, 1
    %v1000 = vadd.f32 %v998, %v999
    %v1001 = vsel %vm208, %v963, 0.0
    %v1002 = vrot.slane %v1001, 4
    %v1003 = vadd.f32 %v1001, %v1002
    %v1004 = vrot.slane %v1003, 2
    %v1005 = vadd.f32 %v1003, %v1004
    %v1006 = vrot.slane %v1005, 1
    %v1007 = vadd.f32 %v1005, %v1006
    %v1008 = vsel %vm208, %v964, 0.0
    %v1009 = vrot.slane %v1008, 4
    %v1010 = vadd.f32 %v1008, %v1009
    %v1011 = vrot.slane %v1010, 2
    %v1012 = vadd.f32 %v1010, %v1011
    %v1013 = vrot.slane %v1012, 1
    %v1014 = vadd.f32 %v1012, %v1013
    %v1015 = vsel %vm208, %v965, 0.0
    %v1016 = vrot.slane %v1015, 4
    %v1017 = vadd.f32 %v1015, %v1016
    %v1018 = vrot.slane %v1017, 2
    %v1019 = vadd.f32 %v1017, %v1018
    %v1020 = vrot.slane %v1019, 1
    %v1021 = vadd.f32 %v1019, %v1020
    %v1022 = vsel %vm208, %v966, 0.0
    %v1023 = vrot.slane %v1022, 4
    %v1024 = vadd.f32 %v1022, %v1023
    %v1025 = vrot.slane %v1024, 2
    %v1026 = vadd.f32 %v1024, %v1025
    %v1027 = vrot.slane %v1026, 1
    %v1028 = vadd.f32 %v1026, %v1027
    %v1029 = vsel %vm208, %v967, 0.0
    %v1030 = vrot.slane %v1029, 4
    %v1031 = vadd.f32 %v1029, %v1030
    %v1032 = vrot.slane %v1031, 2
    %v1033 = vadd.f32 %v1031, %v1032
    %v1034 = vrot.slane %v1033, 1
    %v1035 = vadd.f32 %v1033, %v1034
    %v1036 = vsel %vm208, %v968, 0.0
    %v1037 = vrot.slane %v1036, 4
    %v1038 = vadd.f32 %v1036, %v1037
    %v1039 = vrot.slane %v1038, 2
    %v1040 = vadd.f32 %v1038, %v1039
    %v1041 = vrot.slane %v1040, 1
    %v1042 = vadd.f32 %v1040, %v1041
    %v1043 = vsel %vm208, %v969, 0.0
    %v1044 = vrot.slane %v1043, 4
    %v1045 = vadd.f32 %v1043, %v1044
    %v1046 = vrot.slane %v1045, 2
    %v1047 = vadd.f32 %v1045, %v1046
    %v1048 = vrot.slane %v1047, 1
    %v1049 = vadd.f32 %v1047, %v1048
    %v1050 = vsel %vm208, %v970, 0.0
    %v1051 = vrot.slane %v1050, 4
    %v1052 = vadd.f32 %v1050, %v1051
    %v1053 = vrot.slane %v1052, 2
    %v1054 = vadd.f32 %v1052, %v1053
    %v1055 = vrot.slane %v1054, 1
    %v1056 = vadd.f32 %v1054, %v1055
    %v1057 = vsel %vm208, %v971, 0.0
    %v1058 = vrot.slane %v1057, 4
    %v1059 = vadd.f32 %v1057, %v1058
    %v1060 = vrot.slane %v1059, 2
    %v1061 = vadd.f32 %v1059, %v1060
    %v1062 = vrot.slane %v1061, 1
    %v1063 = vadd.f32 %v1061, %v1062
    %v1064 = vsel %vm208, %v972, 0.0
    %v1065 = vrot.slane %v1064, 4
    %v1066 = vadd.f32 %v1064, %v1065
    %v1067 = vrot.slane %v1066, 2
    %v1068 = vadd.f32 %v1066, %v1067
    %v1069 = vrot.slane %v1068, 1
    %v1070 = vadd.f32 %v1068, %v1069
    %v1071 = vsel %vm208, %v973, 0.0
    %v1072 = vrot.slane %v1071, 4
    %v1073 = vadd.f32 %v1071, %v1072
    %v1074 = vrot.slane %v1073, 2
    %v1075 = vadd.f32 %v1073, %v1074
    %v1076 = vrot.slane %v1075, 1
    %v1077 = vadd.f32 %v1075, %v1076
    %v1078 = vsel %vm208, %v974, 0.0
    %v1079 = vrot.slane %v1078, 4
    %v1080 = vadd.f32 %v1078, %v1079
    %v1081 = vrot.slane %v1080, 2
    %v1082 = vadd.f32 %v1080, %v1081
    %v1083 = vrot.slane %v1082, 1
    %v1084 = vadd.f32 %v1082, %v1083
    %v1085 = vsel %vm208, %v975, 0.0
    %v1086 = vrot.slane %v1085, 4
    %v1087 = vadd.f32 %v1085, %v1086
    %v1088 = vrot.slane %v1087, 2
    %v1089 = vadd.f32 %v1087, %v1088
    %v1090 = vrot.slane %v1089, 1
    %v1091 = vadd.f32 %v1089, %v1090
    %v1092 = vsel %vm208, %v976, 0.0
    %v1093 = vrot.slane %v1092, 4
    %v1094 = vadd.f32 %v1092, %v1093
    %v1095 = vrot.slane %v1094, 2
    %v1096 = vadd.f32 %v1094, %v1095
    %v1097 = vrot.slane %v1096, 1
    %v1098 = vadd.f32 %v1096, %v1097
    %v1099 = vsel %vm208, %v977, 0.0
    %v1100 = vrot.slane %v1099, 4
    %v1101 = vadd.f32 %v1099, %v1100
    %v1102 = vrot.slane %v1101, 2
    %v1103 = vadd.f32 %v1101, %v1102
    %v1104 = vrot.slane %v1103, 1
    %v1105 = vadd.f32 %v1103, %v1104
    %v1106 = vsel %vm208, %v978, 0.0
    %v1107 = vrot.slane %v1106, 4
    %v1108 = vadd.f32 %v1106, %v1107
    %v1109 = vrot.slane %v1108, 2
    %v1110 = vadd.f32 %v1108, %v1109
    %v1111 = vrot.slane %v1110, 1
    %v1112 = vadd.f32 %v1110, %v1111
    %v1113 = vsel %vm208, %v979, 0.0
    %v1114 = vrot.slane %v1113, 4
    %v1115 = vadd.f32 %v1113, %v1114
    %v1116 = vrot.slane %v1115, 2
    %v1117 = vadd.f32 %v1115, %v1116
    %v1118 = vrot.slane %v1117, 1
    %v1119 = vadd.f32 %v1117, %v1118
    %v1120 = vsel %vm208, %v980, 0.0
    %v1121 = vrot.slane %v1120, 4
    %v1122 = vadd.f32 %v1120, %v1121
    %v1123 = vrot.slane %v1122, 2
    %v1124 = vadd.f32 %v1122, %v1123
    %v1125 = vrot.slane %v1124, 1
    %v1126 = vadd.f32 %v1124, %v1125
    %v1127 = vsel %vm208, %v981, 0.0
    %v1128 = vrot.slane %v1127, 4
    %v1129 = vadd.f32 %v1127, %v1128
    %v1130 = vrot.slane %v1129, 2
    %v1131 = vadd.f32 %v1129, %v1130
    %v1132 = vrot.slane %v1131, 1
    %v1133 = vadd.f32 %v1131, %v1132
    %v1134 = vsel %vm208, %v982, 0.0
    %v1135 = vrot.slane %v1134, 4
    %v1136 = vadd.f32 %v1134, %v1135
    %v1137 = vrot.slane %v1136, 2
    %v1138 = vadd.f32 %v1136, %v1137
    %v1139 = vrot.slane %v1138, 1
    %v1140 = vadd.f32 %v1138, %v1139
    %v1141 = vsel %vm208, %v983, 0.0
    %v1142 = vrot.slane %v1141, 4
    %v1143 = vadd.f32 %v1141, %v1142
    %v1144 = vrot.slane %v1143, 2
    %v1145 = vadd.f32 %v1143, %v1144
    %v1146 = vrot.slane %v1145, 1
    %v1147 = vadd.f32 %v1145, %v1146
    %v1148 = vsel %vm208, %v984, 0.0
    %v1149 = vrot.slane %v1148, 4
    %v1150 = vadd.f32 %v1148, %v1149
    %v1151 = vrot.slane %v1150, 2
    %v1152 = vadd.f32 %v1150, %v1151
    %v1153 = vrot.slane %v1152, 1
    %v1154 = vadd.f32 %v1152, %v1153
    %v1155 = vsel %vm208, %v985, 0.0
    %v1156 = vrot.slane %v1155, 4
    %v1157 = vadd.f32 %v1155, %v1156
    %v1158 = vrot.slane %v1157, 2
    %v1159 = vadd.f32 %v1157, %v1158
    %v1160 = vrot.slane %v1159, 1
    %v1161 = vadd.f32 %v1159, %v1160
    %v1162 = vsel %vm208, %v986, 0.0
    %v1163 = vrot.slane %v1162, 4
    %v1164 = vadd.f32 %v1162, %v1163
    %v1165 = vrot.slane %v1164, 2
    %v1166 = vadd.f32 %v1164, %v1165
    %v1167 = vrot.slane %v1166, 1
    %v1168 = vadd.f32 %v1166, %v1167
    %v1169 = vsel %vm208, %v987, 0.0
    %v1170 = vrot.slane %v1169, 4
    %v1171 = vadd.f32 %v1169, %v1170
    %v1172 = vrot.slane %v1171, 2
    %v1173 = vadd.f32 %v1171, %v1172
    %v1174 = vrot.slane %v1173, 1
    %v1175 = vadd.f32 %v1173, %v1174
    %v1176 = vsel %vm208, %v988, 0.0
    %v1177 = vrot.slane %v1176, 4
    %v1178 = vadd.f32 %v1176, %v1177
    %v1179 = vrot.slane %v1178, 2
    %v1180 = vadd.f32 %v1178, %v1179
    %v1181 = vrot.slane %v1180, 1
    %v1182 = vadd.f32 %v1180, %v1181
    %v1183 = vsel %vm208, %v989, 0.0
    %v1184 = vrot.slane %v1183, 4
    %v1185 = vadd.f32 %v1183, %v1184
    %v1186 = vrot.slane %v1185, 2
    %v1187 = vadd.f32 %v1185, %v1186
    %v1188 = vrot.slane %v1187, 1
    %v1189 = vadd.f32 %v1187, %v1188
    %v1190 = vsel %vm208, %v990, 0.0
    %v1191 = vrot.slane %v1190, 4
    %v1192 = vadd.f32 %v1190, %v1191
    %v1193 = vrot.slane %v1192, 2
    %v1194 = vadd.f32 %v1192, %v1193
    %v1195 = vrot.slane %v1194, 1
    %v1196 = vadd.f32 %v1194, %v1195
    %v1197 = vsel %vm208, %v991, 0.0
    %v1198 = vrot.slane %v1197, 4
    %v1199 = vadd.f32 %v1197, %v1198
    %v1200 = vrot.slane %v1199, 2
    %v1201 = vadd.f32 %v1199, %v1200
    %v1202 = vrot.slane %v1201, 1
    %v1203 = vadd.f32 %v1201, %v1202
    %v1204 = vsel %vm208, %v992, 0.0
    %v1205 = vrot.slane %v1204, 4
    %v1206 = vadd.f32 %v1204, %v1205
    %v1207 = vrot.slane %v1206, 2
    %v1208 = vadd.f32 %v1206, %v1207
    %v1209 = vrot.slane %v1208, 1
    %v1210 = vadd.f32 %v1208, %v1209
    %v1211 = vsel %vm208, %v993, 0.0
    %v1212 = vrot.slane %v1211, 4
    %v1213 = vadd.f32 %v1211, %v1212
    %v1214 = vrot.slane %v1213, 2
    %v1215 = vadd.f32 %v1213, %v1214
    %v1216 = vrot.slane %v1215, 1
    %v1217 = vadd.f32 %v1215, %v1216
    %v1218 = vrcp.pop %v744
    %v1219 = vrcp.pop %v751
    %v1220 = vrcp.pop %v758
    %v1221 = vrcp.pop %v765
    %v1222 = vrcp.pop %v772
    %v1223 = vrcp.pop %v779
    %v1224 = vrcp.pop %v786
    %v1225 = vrcp.pop %v793
    %v1226 = vrcp.pop %v800
    %v1227 = vrcp.pop %v807
    %v1228 = vrcp.pop %v814
    %v1229 = vrcp.pop %v821
    %v1230 = vrcp.pop %v828
    %v1231 = vrcp.pop %v835
    %v1232 = vrcp.pop %v842
    %v1233 = vrcp.pop %v849
    %v1234 = vrcp.pop %v856
    %v1235 = vrcp.pop %v863
    %v1236 = vrcp.pop %v870
    %v1237 = vrcp.pop %v877
    %v1238 = vrcp.pop %v884
    %v1239 = vrcp.pop %v891
    %v1240 = vrcp.pop %v898
    %v1241 = vrcp.pop %v905
    %v1242 = vrcp.pop %v912
    %v1243 = vrcp.pop %v919
    %v1244 = vrcp.pop %v926
    %v1245 = vrcp.pop %v933
    %v1246 = vrcp.pop %v940
    %v1247 = vrcp.pop %v947
    %v1248 = vrcp.pop %v954
    %v1249 = vrcp.pop %v961
    %v1250 = vmul.f32 %v1000, %v1218
    %v1251 = vmul.f32 %v1007, %v1219
    %v1252 = vmul.f32 %v1014, %v1220
    %v1253 = vmul.f32 %v1021, %v1221
    %v1254 = vmul.f32 %v1028, %v1222
    %v1255 = vmul.f32 %v1035, %v1223
    %v1256 = vmul.f32 %v1042, %v1224
    %v1257 = vmul.f32 %v1049, %v1225
    %v1258 = vmul.f32 %v1056, %v1226
    %v1259 = vmul.f32 %v1063, %v1227
    %v1260 = vmul.f32 %v1070, %v1228
    %v1261 = vmul.f32 %v1077, %v1229
    %v1262 = vmul.f32 %v1084, %v1230
    %v1263 = vmul.f32 %v1091, %v1231
    %v1264 = vmul.f32 %v1098, %v1232
    %v1265 = vmul.f32 %v1105, %v1233
    %v1266 = vmul.f32 %v1112, %v1234
    %v1267 = vmul.f32 %v1119, %v1235
    %v1268 = vmul.f32 %v1126, %v1236
    %v1269 = vmul.f32 %v1133, %v1237
    %v1270 = vmul.f32 %v1140, %v1238
    %v1271 = vmul.f32 %v1147, %v1239
    %v1272 = vmul.f32 %v1154, %v1240
    %v1273 = vmul.f32 %v1161, %v1241
    %v1274 = vmul.f32 %v1168, %v1242
    %v1275 = vmul.f32 %v1175, %v1243
    %v1276 = vmul.f32 %v1182, %v1244
    %v1277 = vmul.f32 %v1189, %v1245
    %v1278 = vmul.f32 %v1196, %v1246
    %v1279 = vmul.f32 %v1203, %v1247
    %v1280 = vmul.f32 %v1210, %v1248
    %v1281 = vmul.f32 %v1217, %v1249
    %vm1314 = vcmask 1041409
    %v1315 = vsel %vm1314, %v1251, %v1250
    %vm1316 = vcmask 1042434
    %v1317 = vsel %vm1316, %v1252, %v1315
    %vm1318 = vcmask 1043459
    %v1319 = vsel %vm1318, %v1253, %v1317
    %vm1320 = vcmask 1044484
    %v1321 = vsel %vm1320, %v1254, %v1319
    %vm1322 = vcmask 1045509
    %v1323 = vsel %vm1322, %v1255, %v1321
    %vm1324 = vcmask 1046534
    %v1325 = vsel %vm1324, %v1256, %v1323
    %vm1326 = vcmask 1047559
    %v1327 = vsel %vm1326, %v1257, %v1325
    %v1328 = vsel %vm1314, %v1259, %v1258
    %v1329 = vsel %vm1316, %v1260, %v1328
    %v1330 = vsel %vm1318, %v1261, %v1329
    %v1331 = vsel %vm1320, %v1262, %v1330
    %v1332 = vsel %vm1322, %v1263, %v1331
    %v1333 = vsel %vm1324, %v1264, %v1332
    %v1334 = vsel %vm1326, %v1265, %v1333
    %v1335 = vsel %vm1314, %v1267, %v1266
    %v1336 = vsel %vm1316, %v1268, %v1335
    %v1337 = vsel %vm1318, %v1269, %v1336
    %v1338 = vsel %vm1320, %v1270, %v1337
    %v1339 = vsel %vm1322, %v1271, %v1338
    %v1340 = vsel %vm1324, %v1272, %v1339
    %v1341 = vsel %vm1326, %v1273, %v1340
    %v1342 = vsel %vm1314, %v1275, %v1274
    %v1343 = vsel %vm1316, %v1276, %v1342
    %v1344 = vsel %vm1318, %v1277, %v1343
    %v1345 = vsel %vm1320, %v1278, %v1344
    %v1346 = vsel %vm1322, %v1279, %v1345
    %v1347 = vsel %vm1324, %v1280, %v1346
    %v1348 = vsel %vm1326, %v1281, %v1347
    %v1353 = vrot.slane %v1327, 1
    %v1354 = vrot.slane %v1334, 1
    %v1355 = vrot.slane %v1341, 1
    %v1356 = vrot.slane %v1348, 1
    %v1357 = vlaneseq
    %v1358 = vshrl.u32 %v1357, 7
    %vm1359 = vcmp.lt.s32.totalorder %v1358, 7
    %v1360 = vsel %vm1359, %v1355, %v1356
    %v1361 = vsel %vm1359, %v1354, %v1355
    %v1362 = vsel %vm1359, %v1353, %v1354
    %v1363 = vsel %vm1359, %v1356, %v1353
    %v1364 = vld [vmem:[%s7] sm:$0x1]
    %v1365 = vld [vmem:[%s5] sm:$0xff]
    %v1366 = vld [vmem:[%s5 + $0x8] sm:$0xff]
    %v1367 = vld [vmem:[%s5 + $0x10] sm:$0xff]
    %v1368 = vld [vmem:[%s5 + $0x18] sm:$0xff]
    %v1370 = vlaneseq
    %v1371 = vshrl.u32 %v1370, 7
    %v1372 = vsub.s32 0, %v1371
    %v1373 = vrot.slane %v1364, %v1372
    %1376 = vset.pattern.permute.xlu0 0
    %1377 = vperm.xlu0 %1376, %v1365
    %v1378 = vpop.permute.xlu0 %1377
    %1381 = vset.pattern.permute.xlu0 0
    %1382 = vperm.xlu0 %1381, %v1366
    %v1383 = vpop.permute.xlu0 %1382
    %1386 = vset.pattern.permute.xlu0 0
    %1387 = vperm.xlu0 %1386, %v1367
    %v1388 = vpop.permute.xlu0 %1387
    %1391 = vset.pattern.permute.xlu0 0
    %1392 = vperm.xlu0 %1391, %v1368
    %v1393 = vpop.permute.xlu0 %1392
    %v1395 = vmul.f32 %v1373, %v1378
    %v1396 = vmul.f32 %v1373, %v1383
    %v1397 = vmul.f32 %v1373, %v1388
    %v1398 = vmul.f32 %v1373, %v1393
    %v1399 = vmul.f32 %v1363, %v1395
    %v1400 = vmul.f32 %v1362, %v1396
    %v1401 = vmul.f32 %v1361, %v1397
    %v1402 = vmul.f32 %v1360, %v1398
    %v1403 = vrot.slane %v1327, 2
    %v1404 = vrot.slane %v1334, 2
    %v1405 = vrot.slane %v1341, 2
    %v1406 = vrot.slane %v1348, 2
    %vm1407 = vcmp.lt.s32.totalorder %v1358, 6
    %v1408 = vsel %vm1407, %v1405, %v1406
    %v1409 = vsel %vm1407, %v1404, %v1405
    %v1410 = vsel %vm1407, %v1403, %v1404
    %v1411 = vsel %vm1407, %v1406, %v1403
    %s1412 = scalar_lea.vmem %s7, 1
    %v1413 = vld [vmem:[%s1412] sm:$0x1]
    %s1414 = scalar_lea.vmem %s5, 32
    %v1415 = vld [vmem:[%s1414] sm:$0xff]
    %v1416 = vld [vmem:[%s1414 + $0x8] sm:$0xff]
    %v1417 = vld [vmem:[%s1414 + $0x10] sm:$0xff]
    %v1418 = vld [vmem:[%s1414 + $0x18] sm:$0xff]
    %v1420 = vlaneseq
    %v1421 = vshrl.u32 %v1420, 7
    %v1422 = vsub.s32 0, %v1421
    %v1423 = vrot.slane %v1413, %v1422
    %1426 = vset.pattern.permute.xlu0 0
    %1427 = vperm.xlu0 %1426, %v1415
    %v1428 = vpop.permute.xlu0 %1427
    %1431 = vset.pattern.permute.xlu0 0
    %1432 = vperm.xlu0 %1431, %v1416
    %v1433 = vpop.permute.xlu0 %1432
    %1436 = vset.pattern.permute.xlu0 0
    %1437 = vperm.xlu0 %1436, %v1417
    %v1438 = vpop.permute.xlu0 %1437
    %1441 = vset.pattern.permute.xlu0 0
    %1442 = vperm.xlu0 %1441, %v1418
    %v1443 = vpop.permute.xlu0 %1442
    %v1445 = vmul.f32 %v1423, %v1428
    %v1446 = vmul.f32 %v1423, %v1433
    %v1447 = vmul.f32 %v1423, %v1438
    %v1448 = vmul.f32 %v1423, %v1443
    %v1449 = vmul.f32 %v1411, %v1445
    %v1450 = vmul.f32 %v1410, %v1446
    %v1451 = vmul.f32 %v1409, %v1447
    %v1452 = vmul.f32 %v1408, %v1448
    %v1453 = vrot.slane %v1327, 3
    %v1454 = vrot.slane %v1334, 3
    %v1455 = vrot.slane %v1341, 3
    %v1456 = vrot.slane %v1348, 3
    %vm1457 = vcmp.lt.s32.totalorder %v1358, 5
    %v1458 = vsel %vm1457, %v1455, %v1456
    %v1459 = vsel %vm1457, %v1454, %v1455
    %v1460 = vsel %vm1457, %v1453, %v1454
    %v1461 = vsel %vm1457, %v1456, %v1453
    %s1462 = scalar_lea.vmem %s7, 2
    %v1463 = vld [vmem:[%s1462] sm:$0x1]
    %s1464 = scalar_lea.vmem %s5, 64
    %v1465 = vld [vmem:[%s1464] sm:$0xff]
    %v1466 = vld [vmem:[%s1464 + $0x8] sm:$0xff]
    %v1467 = vld [vmem:[%s1464 + $0x10] sm:$0xff]
    %v1468 = vld [vmem:[%s1464 + $0x18] sm:$0xff]
    %v1470 = vlaneseq
    %v1471 = vshrl.u32 %v1470, 7
    %v1472 = vsub.s32 0, %v1471
    %v1473 = vrot.slane %v1463, %v1472
    %1476 = vset.pattern.permute.xlu0 0
    %1477 = vperm.xlu0 %1476, %v1465
    %v1478 = vpop.permute.xlu0 %1477
    %1481 = vset.pattern.permute.xlu0 0
    %1482 = vperm.xlu0 %1481, %v1466
    %v1483 = vpop.permute.xlu0 %1482
    %1486 = vset.pattern.permute.xlu0 0
    %1487 = vperm.xlu0 %1486, %v1467
    %v1488 = vpop.permute.xlu0 %1487
    %1491 = vset.pattern.permute.xlu0 0
    %1492 = vperm.xlu0 %1491, %v1468
    %v1493 = vpop.permute.xlu0 %1492
    %v1495 = vmul.f32 %v1473, %v1478
    %v1496 = vmul.f32 %v1473, %v1483
    %v1497 = vmul.f32 %v1473, %v1488
    %v1498 = vmul.f32 %v1473, %v1493
    %v1499 = vmul.f32 %v1461, %v1495
    %v1500 = vmul.f32 %v1460, %v1496
    %v1501 = vmul.f32 %v1459, %v1497
    %v1502 = vmul.f32 %v1458, %v1498
    %v1503 = vrot.slane %v1327, 4
    %v1504 = vrot.slane %v1334, 4
    %v1505 = vrot.slane %v1341, 4
    %v1506 = vrot.slane %v1348, 4
    %vm1507 = vcmp.lt.s32.totalorder %v1358, 4
    %v1508 = vsel %vm1507, %v1505, %v1506
    %v1509 = vsel %vm1507, %v1504, %v1505
    %v1510 = vsel %vm1507, %v1503, %v1504
    %v1511 = vsel %vm1507, %v1506, %v1503
    %s1512 = scalar_lea.vmem %s7, 3
    %v1513 = vld [vmem:[%s1512] sm:$0x1]
    %s1514 = scalar_lea.vmem %s5, 96
    %v1515 = vld [vmem:[%s1514] sm:$0xff]
    %v1516 = vld [vmem:[%s1514 + $0x8] sm:$0xff]
    %v1517 = vld [vmem:[%s1514 + $0x10] sm:$0xff]
    %v1518 = vld [vmem:[%s1514 + $0x18] sm:$0xff]
    %v1520 = vlaneseq
    %v1521 = vshrl.u32 %v1520, 7
    %v1522 = vsub.s32 0, %v1521
    %v1523 = vrot.slane %v1513, %v1522
    %1526 = vset.pattern.permute.xlu0 0
    %1527 = vperm.xlu0 %1526, %v1515
    %v1528 = vpop.permute.xlu0 %1527
    %1531 = vset.pattern.permute.xlu0 0
    %1532 = vperm.xlu0 %1531, %v1516
    %v1533 = vpop.permute.xlu0 %1532
    %1536 = vset.pattern.permute.xlu0 0
    %1537 = vperm.xlu0 %1536, %v1517
    %v1538 = vpop.permute.xlu0 %1537
    %1541 = vset.pattern.permute.xlu0 0
    %1542 = vperm.xlu0 %1541, %v1518
    %v1543 = vpop.permute.xlu0 %1542
    %v1545 = vmul.f32 %v1523, %v1528
    %v1546 = vmul.f32 %v1523, %v1533
    %v1547 = vmul.f32 %v1523, %v1538
    %v1548 = vmul.f32 %v1523, %v1543
    %v1549 = vmul.f32 %v1511, %v1545
    %v1550 = vmul.f32 %v1510, %v1546
    %v1551 = vmul.f32 %v1509, %v1547
    %v1552 = vmul.f32 %v1508, %v1548
    %v1553 = vrot.slane %v1327, 5
    %v1554 = vrot.slane %v1334, 5
    %v1555 = vrot.slane %v1341, 5
    %v1556 = vrot.slane %v1348, 5
    %vm1557 = vcmp.lt.s32.totalorder %v1358, 3
    %v1558 = vsel %vm1557, %v1555, %v1556
    %v1559 = vsel %vm1557, %v1554, %v1555
    %v1560 = vsel %vm1557, %v1553, %v1554
    %v1561 = vsel %vm1557, %v1556, %v1553
    %s1562 = scalar_lea.vmem %s7, 4
    %v1563 = vld [vmem:[%s1562] sm:$0x1]
    %s1564 = scalar_lea.vmem %s5, 128
    %v1565 = vld [vmem:[%s1564] sm:$0xff]
    %v1566 = vld [vmem:[%s1564 + $0x8] sm:$0xff]
    %v1567 = vld [vmem:[%s1564 + $0x10] sm:$0xff]
    %v1568 = vld [vmem:[%s1564 + $0x18] sm:$0xff]
    %v1570 = vlaneseq
    %v1571 = vshrl.u32 %v1570, 7
    %v1572 = vsub.s32 0, %v1571
    %v1573 = vrot.slane %v1563, %v1572
    %1576 = vset.pattern.permute.xlu0 0
    %1577 = vperm.xlu0 %1576, %v1565
    %v1578 = vpop.permute.xlu0 %1577
    %1581 = vset.pattern.permute.xlu0 0
    %1582 = vperm.xlu0 %1581, %v1566
    %v1583 = vpop.permute.xlu0 %1582
    %1586 = vset.pattern.permute.xlu0 0
    %1587 = vperm.xlu0 %1586, %v1567
    %v1588 = vpop.permute.xlu0 %1587
    %1591 = vset.pattern.permute.xlu0 0
    %1592 = vperm.xlu0 %1591, %v1568
    %v1593 = vpop.permute.xlu0 %1592
    %v1595 = vmul.f32 %v1573, %v1578
    %v1596 = vmul.f32 %v1573, %v1583
    %v1597 = vmul.f32 %v1573, %v1588
    %v1598 = vmul.f32 %v1573, %v1593
    %v1599 = vmul.f32 %v1561, %v1595
    %v1600 = vmul.f32 %v1560, %v1596
    %v1601 = vmul.f32 %v1559, %v1597
    %v1602 = vmul.f32 %v1558, %v1598
    %v1603 = vrot.slane %v1327, 6
    %v1604 = vrot.slane %v1334, 6
    %v1605 = vrot.slane %v1341, 6
    %v1606 = vrot.slane %v1348, 6
    %vm1607 = vcmp.lt.s32.totalorder %v1358, 2
    %v1608 = vsel %vm1607, %v1605, %v1606
    %v1609 = vsel %vm1607, %v1604, %v1605
    %v1610 = vsel %vm1607, %v1603, %v1604
    %v1611 = vsel %vm1607, %v1606, %v1603
    %s1612 = scalar_lea.vmem %s7, 5
    %v1613 = vld [vmem:[%s1612] sm:$0x1]
    %s1614 = scalar_lea.vmem %s5, 160
    %v1615 = vld [vmem:[%s1614] sm:$0xff]
    %v1616 = vld [vmem:[%s1614 + $0x8] sm:$0xff]
    %v1617 = vld [vmem:[%s1614 + $0x10] sm:$0xff]
    %v1618 = vld [vmem:[%s1614 + $0x18] sm:$0xff]
    %v1620 = vlaneseq
    %v1621 = vshrl.u32 %v1620, 7
    %v1622 = vsub.s32 0, %v1621
    %v1623 = vrot.slane %v1613, %v1622
    %1626 = vset.pattern.permute.xlu0 0
    %1627 = vperm.xlu0 %1626, %v1615
    %v1628 = vpop.permute.xlu0 %1627
    %1631 = vset.pattern.permute.xlu0 0
    %1632 = vperm.xlu0 %1631, %v1616
    %v1633 = vpop.permute.xlu0 %1632
    %1636 = vset.pattern.permute.xlu0 0
    %1637 = vperm.xlu0 %1636, %v1617
    %v1638 = vpop.permute.xlu0 %1637
    %1641 = vset.pattern.permute.xlu0 0
    %1642 = vperm.xlu0 %1641, %v1618
    %v1643 = vpop.permute.xlu0 %1642
    %v1645 = vmul.f32 %v1623, %v1628
    %v1646 = vmul.f32 %v1623, %v1633
    %v1647 = vmul.f32 %v1623, %v1638
    %v1648 = vmul.f32 %v1623, %v1643
    %v1649 = vmul.f32 %v1611, %v1645
    %v1650 = vmul.f32 %v1610, %v1646
    %v1651 = vmul.f32 %v1609, %v1647
    %v1652 = vmul.f32 %v1608, %v1648
    %v1653 = vrot.slane %v1327, 7
    %v1654 = vrot.slane %v1334, 7
    %v1655 = vrot.slane %v1341, 7
    %v1656 = vrot.slane %v1348, 7
    %vm1657 = vcmp.lt.s32.totalorder %v1358, 1
    %v1658 = vsel %vm1657, %v1655, %v1656
    %v1659 = vsel %vm1657, %v1654, %v1655
    %v1660 = vsel %vm1657, %v1653, %v1654
    %v1661 = vsel %vm1657, %v1656, %v1653
    %s1662 = scalar_lea.vmem %s7, 6
    %v1663 = vld [vmem:[%s1662] sm:$0x1]
    %s1664 = scalar_lea.vmem %s5, 192
    %v1665 = vld [vmem:[%s1664] sm:$0xff]
    %v1666 = vld [vmem:[%s1664 + $0x8] sm:$0xff]
    %v1667 = vld [vmem:[%s1664 + $0x10] sm:$0xff]
    %v1668 = vld [vmem:[%s1664 + $0x18] sm:$0xff]
    %v1670 = vlaneseq
    %v1671 = vshrl.u32 %v1670, 7
    %v1672 = vsub.s32 0, %v1671
    %v1673 = vrot.slane %v1663, %v1672
    %1676 = vset.pattern.permute.xlu0 0
    %1677 = vperm.xlu0 %1676, %v1665
    %v1678 = vpop.permute.xlu0 %1677
    %1681 = vset.pattern.permute.xlu0 0
    %1682 = vperm.xlu0 %1681, %v1666
    %v1683 = vpop.permute.xlu0 %1682
    %1686 = vset.pattern.permute.xlu0 0
    %1687 = vperm.xlu0 %1686, %v1667
    %v1688 = vpop.permute.xlu0 %1687
    %1691 = vset.pattern.permute.xlu0 0
    %1692 = vperm.xlu0 %1691, %v1668
    %v1693 = vpop.permute.xlu0 %1692
    %v1695 = vmul.f32 %v1673, %v1678
    %v1696 = vmul.f32 %v1673, %v1683
    %v1697 = vmul.f32 %v1673, %v1688
    %v1698 = vmul.f32 %v1673, %v1693
    %v1699 = vmul.f32 %v1661, %v1695
    %v1700 = vmul.f32 %v1660, %v1696
    %v1701 = vmul.f32 %v1659, %v1697
    %v1702 = vmul.f32 %v1658, %v1698
    %s1703 = scalar_lea.vmem %s7, 7
    %v1704 = vld [vmem:[%s1703] sm:$0x1]
    %s1705 = scalar_lea.vmem %s5, 224
    %v1706 = vld [vmem:[%s1705] sm:$0xff]
    %v1707 = vld [vmem:[%s1705 + $0x8] sm:$0xff]
    %v1708 = vld [vmem:[%s1705 + $0x10] sm:$0xff]
    %v1709 = vld [vmem:[%s1705 + $0x18] sm:$0xff]
    %v1711 = vlaneseq
    %v1712 = vshrl.u32 %v1711, 7
    %v1713 = vsub.s32 0, %v1712
    %v1714 = vrot.slane %v1704, %v1713
    %1717 = vset.pattern.permute.xlu0 0
    %1718 = vperm.xlu0 %1717, %v1706
    %v1719 = vpop.permute.xlu0 %1718
    %1722 = vset.pattern.permute.xlu0 0
    %1723 = vperm.xlu0 %1722, %v1707
    %v1724 = vpop.permute.xlu0 %1723
    %1727 = vset.pattern.permute.xlu0 0
    %1728 = vperm.xlu0 %1727, %v1708
    %v1729 = vpop.permute.xlu0 %1728
    %1732 = vset.pattern.permute.xlu0 0
    %1733 = vperm.xlu0 %1732, %v1709
    %v1734 = vpop.permute.xlu0 %1733
    %v1736 = vmul.f32 %v1714, %v1719
    %v1737 = vmul.f32 %v1714, %v1724
    %v1738 = vmul.f32 %v1714, %v1729
    %v1739 = vmul.f32 %v1714, %v1734
    %v1744 = vrot.slane %v1736, 1
    %v1745 = vrot.slane %v1736, 2
    %v1746 = vrot.slane %v1736, 3
    %v1747 = vrot.slane %v1736, 4
    %v1748 = vrot.slane %v1736, 5
    %v1749 = vrot.slane %v1736, 6
    %v1750 = vrot.slane %v1736, 7
    %v1751 = vrot.slane %v1737, 1
    %v1752 = vrot.slane %v1737, 2
    %v1753 = vrot.slane %v1737, 3
    %v1754 = vrot.slane %v1737, 4
    %v1755 = vrot.slane %v1737, 5
    %v1756 = vrot.slane %v1737, 6
    %v1757 = vrot.slane %v1737, 7
    %v1758 = vrot.slane %v1738, 1
    %v1759 = vrot.slane %v1738, 2
    %v1760 = vrot.slane %v1738, 3
    %v1761 = vrot.slane %v1738, 4
    %v1762 = vrot.slane %v1738, 5
    %v1763 = vrot.slane %v1738, 6
    %v1764 = vrot.slane %v1738, 7
    %v1765 = vrot.slane %v1739, 1
    %v1766 = vrot.slane %v1739, 2
    %v1767 = vrot.slane %v1739, 3
    %v1768 = vrot.slane %v1739, 4
    %v1769 = vrot.slane %v1739, 5
    %v1770 = vrot.slane %v1739, 6
    %v1771 = vrot.slane %v1739, 7
    %v1804 = vmul.f32 %v1250, %v1736
    %v1805 = vmul.f32 %v1251, %v1744
    %v1806 = vmul.f32 %v1252, %v1745
    %v1807 = vmul.f32 %v1253, %v1746
    %v1808 = vmul.f32 %v1254, %v1747
    %v1809 = vmul.f32 %v1255, %v1748
    %v1810 = vmul.f32 %v1256, %v1749
    %v1811 = vmul.f32 %v1257, %v1750
    %v1812 = vmul.f32 %v1258, %v1737
    %v1813 = vmul.f32 %v1259, %v1751
    %v1814 = vmul.f32 %v1260, %v1752
    %v1815 = vmul.f32 %v1261, %v1753
    %v1816 = vmul.f32 %v1262, %v1754
    %v1817 = vmul.f32 %v1263, %v1755
    %v1818 = vmul.f32 %v1264, %v1756
    %v1819 = vmul.f32 %v1265, %v1757
    %v1820 = vmul.f32 %v1266, %v1738
    %v1821 = vmul.f32 %v1267, %v1758
    %v1822 = vmul.f32 %v1268, %v1759
    %v1823 = vmul.f32 %v1269, %v1760
    %v1824 = vmul.f32 %v1270, %v1761
    %v1825 = vmul.f32 %v1271, %v1762
    %v1826 = vmul.f32 %v1272, %v1763
    %v1827 = vmul.f32 %v1273, %v1764
    %v1828 = vmul.f32 %v1274, %v1739
    %v1829 = vmul.f32 %v1275, %v1765
    %v1830 = vmul.f32 %v1276, %v1766
    %v1831 = vmul.f32 %v1277, %v1767
    %v1832 = vmul.f32 %v1278, %v1768
    %v1833 = vmul.f32 %v1279, %v1769
    %v1834 = vmul.f32 %v1280, %v1770
    %v1835 = vmul.f32 %v1281, %v1771
    %s1836 = scalar_lea.vmem %s7, 8
    %v1837 = vld [vmem:[%s1836] sm:$0x1]
    %s1838 = scalar_lea.vmem %s5, 256
    %v1839 = vld [vmem:[%s1838] sm:$0xff]
    %v1840 = vld [vmem:[%s1838 + $0x8] sm:$0xff]
    %v1841 = vld [vmem:[%s1838 + $0x10] sm:$0xff]
    %v1842 = vld [vmem:[%s1838 + $0x18] sm:$0xff]
    %v1844 = vlaneseq
    %v1845 = vshrl.u32 %v1844, 7
    %v1846 = vsub.s32 0, %v1845
    %v1847 = vrot.slane %v1837, %v1846
    %1850 = vset.pattern.permute.xlu0 0
    %1851 = vperm.xlu0 %1850, %v1839
    %v1852 = vpop.permute.xlu0 %1851
    %1855 = vset.pattern.permute.xlu0 0
    %1856 = vperm.xlu0 %1855, %v1840
    %v1857 = vpop.permute.xlu0 %1856
    %1860 = vset.pattern.permute.xlu0 0
    %1861 = vperm.xlu0 %1860, %v1841
    %v1862 = vpop.permute.xlu0 %1861
    %1865 = vset.pattern.permute.xlu0 0
    %1866 = vperm.xlu0 %1865, %v1842
    %v1867 = vpop.permute.xlu0 %1866
    %v1869 = vmul.f32 %v1847, %v1852
    %v1870 = vmul.f32 %v1847, %v1857
    %v1871 = vmul.f32 %v1847, %v1862
    %v1872 = vmul.f32 %v1847, %v1867
    %v1873 = vmul.f32 %v1362, %v1869
    %v1874 = vmul.f32 %v1361, %v1870
    %v1875 = vmul.f32 %v1360, %v1871
    %v1876 = vmul.f32 %v1363, %v1872
    %s1877 = scalar_lea.vmem %s7, 9
    %v1878 = vld [vmem:[%s1877] sm:$0x1]
    %s1879 = scalar_lea.vmem %s5, 288
    %v1880 = vld [vmem:[%s1879] sm:$0xff]
    %v1881 = vld [vmem:[%s1879 + $0x8] sm:$0xff]
    %v1882 = vld [vmem:[%s1879 + $0x10] sm:$0xff]
    %v1883 = vld [vmem:[%s1879 + $0x18] sm:$0xff]
    %v1885 = vlaneseq
    %v1886 = vshrl.u32 %v1885, 7
    %v1887 = vsub.s32 0, %v1886
    %v1888 = vrot.slane %v1878, %v1887
    %1891 = vset.pattern.permute.xlu0 0
    %1892 = vperm.xlu0 %1891, %v1880
    %v1893 = vpop.permute.xlu0 %1892
    %1896 = vset.pattern.permute.xlu0 0
    %1897 = vperm.xlu0 %1896, %v1881
    %v1898 = vpop.permute.xlu0 %1897
    %1901 = vset.pattern.permute.xlu0 0
    %1902 = vperm.xlu0 %1901, %v1882
    %v1903 = vpop.permute.xlu0 %1902
    %1906 = vset.pattern.permute.xlu0 0
    %1907 = vperm.xlu0 %1906, %v1883
    %v1908 = vpop.permute.xlu0 %1907
    %v1910 = vmul.f32 %v1888, %v1893
    %v1911 = vmul.f32 %v1888, %v1898
    %v1912 = vmul.f32 %v1888, %v1903
    %v1913 = vmul.f32 %v1888, %v1908
    %v1914 = vmul.f32 %v1410, %v1910
    %v1915 = vmul.f32 %v1409, %v1911
    %v1916 = vmul.f32 %v1408, %v1912
    %v1917 = vmul.f32 %v1411, %v1913
    %s1918 = scalar_lea.vmem %s7, 10
    %v1919 = vld [vmem:[%s1918] sm:$0x1]
    %s1920 = scalar_lea.vmem %s5, 320
    %v1921 = vld [vmem:[%s1920] sm:$0xff]
    %v1922 = vld [vmem:[%s1920 + $0x8] sm:$0xff]
    %v1923 = vld [vmem:[%s1920 + $0x10] sm:$0xff]
    %v1924 = vld [vmem:[%s1920 + $0x18] sm:$0xff]
    %v1926 = vlaneseq
    %v1927 = vshrl.u32 %v1926, 7
    %v1928 = vsub.s32 0, %v1927
    %v1929 = vrot.slane %v1919, %v1928
    %1932 = vset.pattern.permute.xlu0 0
    %1933 = vperm.xlu0 %1932, %v1921
    %v1934 = vpop.permute.xlu0 %1933
    %1937 = vset.pattern.permute.xlu0 0
    %1938 = vperm.xlu0 %1937, %v1922
    %v1939 = vpop.permute.xlu0 %1938
    %1942 = vset.pattern.permute.xlu0 0
    %1943 = vperm.xlu0 %1942, %v1923
    %v1944 = vpop.permute.xlu0 %1943
    %1947 = vset.pattern.permute.xlu0 0
    %1948 = vperm.xlu0 %1947, %v1924
    %v1949 = vpop.permute.xlu0 %1948
    %v1951 = vmul.f32 %v1929, %v1934
    %v1952 = vmul.f32 %v1929, %v1939
    %v1953 = vmul.f32 %v1929, %v1944
    %v1954 = vmul.f32 %v1929, %v1949
    %v1955 = vmul.f32 %v1460, %v1951
    %v1956 = vmul.f32 %v1459, %v1952
    %v1957 = vmul.f32 %v1458, %v1953
    %v1958 = vmul.f32 %v1461, %v1954
    %s1959 = scalar_lea.vmem %s7, 11
    %v1960 = vld [vmem:[%s1959] sm:$0x1]
    %s1961 = scalar_lea.vmem %s5, 352
    %v1962 = vld [vmem:[%s1961] sm:$0xff]
    %v1963 = vld [vmem:[%s1961 + $0x8] sm:$0xff]
    %v1964 = vld [vmem:[%s1961 + $0x10] sm:$0xff]
    %v1965 = vld [vmem:[%s1961 + $0x18] sm:$0xff]
    %v1967 = vlaneseq
    %v1968 = vshrl.u32 %v1967, 7
    %v1969 = vsub.s32 0, %v1968
    %v1970 = vrot.slane %v1960, %v1969
    %1973 = vset.pattern.permute.xlu0 0
    %1974 = vperm.xlu0 %1973, %v1962
    %v1975 = vpop.permute.xlu0 %1974
    %1978 = vset.pattern.permute.xlu0 0
    %1979 = vperm.xlu0 %1978, %v1963
    %v1980 = vpop.permute.xlu0 %1979
    %1983 = vset.pattern.permute.xlu0 0
    %1984 = vperm.xlu0 %1983, %v1964
    %v1985 = vpop.permute.xlu0 %1984
    %1988 = vset.pattern.permute.xlu0 0
    %1989 = vperm.xlu0 %1988, %v1965
    %v1990 = vpop.permute.xlu0 %1989
    %v1992 = vmul.f32 %v1970, %v1975
    %v1993 = vmul.f32 %v1970, %v1980
    %v1994 = vmul.f32 %v1970, %v1985
    %v1995 = vmul.f32 %v1970, %v1990
    %v1996 = vmul.f32 %v1510, %v1992
    %v1997 = vmul.f32 %v1509, %v1993
    %v1998 = vmul.f32 %v1508, %v1994
    %v1999 = vmul.f32 %v1511, %v1995
    %s2000 = scalar_lea.vmem %s7, 12
    %v2001 = vld [vmem:[%s2000] sm:$0x1]
    %s2002 = scalar_lea.vmem %s5, 384
    %v2003 = vld [vmem:[%s2002] sm:$0xff]
    %v2004 = vld [vmem:[%s2002 + $0x8] sm:$0xff]
    %v2005 = vld [vmem:[%s2002 + $0x10] sm:$0xff]
    %v2006 = vld [vmem:[%s2002 + $0x18] sm:$0xff]
    %v2008 = vlaneseq
    %v2009 = vshrl.u32 %v2008, 7
    %v2010 = vsub.s32 0, %v2009
    %v2011 = vrot.slane %v2001, %v2010
    %2014 = vset.pattern.permute.xlu0 0
    %2015 = vperm.xlu0 %2014, %v2003
    %v2016 = vpop.permute.xlu0 %2015
    %2019 = vset.pattern.permute.xlu0 0
    %2020 = vperm.xlu0 %2019, %v2004
    %v2021 = vpop.permute.xlu0 %2020
    %2024 = vset.pattern.permute.xlu0 0
    %2025 = vperm.xlu0 %2024, %v2005
    %v2026 = vpop.permute.xlu0 %2025
    %2029 = vset.pattern.permute.xlu0 0
    %2030 = vperm.xlu0 %2029, %v2006
    %v2031 = vpop.permute.xlu0 %2030
    %v2033 = vmul.f32 %v2011, %v2016
    %v2034 = vmul.f32 %v2011, %v2021
    %v2035 = vmul.f32 %v2011, %v2026
    %v2036 = vmul.f32 %v2011, %v2031
    %v2037 = vmul.f32 %v1560, %v2033
    %v2038 = vmul.f32 %v1559, %v2034
    %v2039 = vmul.f32 %v1558, %v2035
    %v2040 = vmul.f32 %v1561, %v2036
    %s2041 = scalar_lea.vmem %s7, 13
    %v2042 = vld [vmem:[%s2041] sm:$0x1]
    %s2043 = scalar_lea.vmem %s5, 416
    %v2044 = vld [vmem:[%s2043] sm:$0xff]
    %v2045 = vld [vmem:[%s2043 + $0x8] sm:$0xff]
    %v2046 = vld [vmem:[%s2043 + $0x10] sm:$0xff]
    %v2047 = vld [vmem:[%s2043 + $0x18] sm:$0xff]
    %v2049 = vlaneseq
    %v2050 = vshrl.u32 %v2049, 7
    %v2051 = vsub.s32 0, %v2050
    %v2052 = vrot.slane %v2042, %v2051
    %2055 = vset.pattern.permute.xlu0 0
    %2056 = vperm.xlu0 %2055, %v2044
    %v2057 = vpop.permute.xlu0 %2056
    %2060 = vset.pattern.permute.xlu0 0
    %2061 = vperm.xlu0 %2060, %v2045
    %v2062 = vpop.permute.xlu0 %2061
    %2065 = vset.pattern.permute.xlu0 0
    %2066 = vperm.xlu0 %2065, %v2046
    %v2067 = vpop.permute.xlu0 %2066
    %2070 = vset.pattern.permute.xlu0 0
    %2071 = vperm.xlu0 %2070, %v2047
    %v2072 = vpop.permute.xlu0 %2071
    %v2074 = vmul.f32 %v2052, %v2057
    %v2075 = vmul.f32 %v2052, %v2062
    %v2076 = vmul.f32 %v2052, %v2067
    %v2077 = vmul.f32 %v2052, %v2072
    %v2078 = vmul.f32 %v1610, %v2074
    %v2079 = vmul.f32 %v1609, %v2075
    %v2080 = vmul.f32 %v1608, %v2076
    %v2081 = vmul.f32 %v1611, %v2077
    %s2082 = scalar_lea.vmem %s7, 14
    %v2083 = vld [vmem:[%s2082] sm:$0x1]
    %s2084 = scalar_lea.vmem %s5, 448
    %v2085 = vld [vmem:[%s2084] sm:$0xff]
    %v2086 = vld [vmem:[%s2084 + $0x8] sm:$0xff]
    %v2087 = vld [vmem:[%s2084 + $0x10] sm:$0xff]
    %v2088 = vld [vmem:[%s2084 + $0x18] sm:$0xff]
    %v2090 = vlaneseq
    %v2091 = vshrl.u32 %v2090, 7
    %v2092 = vsub.s32 0, %v2091
    %v2093 = vrot.slane %v2083, %v2092
    %2096 = vset.pattern.permute.xlu0 0
    %2097 = vperm.xlu0 %2096, %v2085
    %v2098 = vpop.permute.xlu0 %2097
    %2101 = vset.pattern.permute.xlu0 0
    %2102 = vperm.xlu0 %2101, %v2086
    %v2103 = vpop.permute.xlu0 %2102
    %2106 = vset.pattern.permute.xlu0 0
    %2107 = vperm.xlu0 %2106, %v2087
    %v2108 = vpop.permute.xlu0 %2107
    %2111 = vset.pattern.permute.xlu0 0
    %2112 = vperm.xlu0 %2111, %v2088
    %v2113 = vpop.permute.xlu0 %2112
    %v2115 = vmul.f32 %v2093, %v2098
    %v2116 = vmul.f32 %v2093, %v2103
    %v2117 = vmul.f32 %v2093, %v2108
    %v2118 = vmul.f32 %v2093, %v2113
    %v2119 = vmul.f32 %v1660, %v2115
    %v2120 = vmul.f32 %v1659, %v2116
    %v2121 = vmul.f32 %v1658, %v2117
    %v2122 = vmul.f32 %v1661, %v2118
    %v2123 = vadd.f32 %v1399, %v1449
    %v2124 = vadd.f32 %v1400, %v1450
    %v2125 = vadd.f32 %v1401, %v1451
    %v2126 = vadd.f32 %v1402, %v1452
    %v2127 = vadd.f32 %v1499, %v1549
    %v2128 = vadd.f32 %v1500, %v1550
    %v2129 = vadd.f32 %v1501, %v1551
    %v2130 = vadd.f32 %v1502, %v1552
    %v2131 = vadd.f32 %v1599, %v1649
    %v2132 = vadd.f32 %v1600, %v1650
    %v2133 = vadd.f32 %v1601, %v1651
    %v2134 = vadd.f32 %v1602, %v1652
    %v2167 = vrot.slane %v1805, 7
    %v2168 = vsel %vm1314, %v2167, %v1804
    %v2169 = vrot.slane %v1806, 6
    %v2170 = vsel %vm1316, %v2169, %v2168
    %v2171 = vrot.slane %v1807, 5
    %v2172 = vsel %vm1318, %v2171, %v2170
    %v2173 = vrot.slane %v1808, 4
    %v2174 = vsel %vm1320, %v2173, %v2172
    %v2175 = vrot.slane %v1809, 3
    %v2176 = vsel %vm1322, %v2175, %v2174
    %v2177 = vrot.slane %v1810, 2
    %v2178 = vsel %vm1324, %v2177, %v2176
    %v2179 = vrot.slane %v1811, 1
    %v2180 = vsel %vm1326, %v2179, %v2178
    %v2181 = vrot.slane %v1813, 7
    %v2182 = vsel %vm1314, %v2181, %v1812
    %v2183 = vrot.slane %v1814, 6
    %v2184 = vsel %vm1316, %v2183, %v2182
    %v2185 = vrot.slane %v1815, 5
    %v2186 = vsel %vm1318, %v2185, %v2184
    %v2187 = vrot.slane %v1816, 4
    %v2188 = vsel %vm1320, %v2187, %v2186
    %v2189 = vrot.slane %v1817, 3
    %v2190 = vsel %vm1322, %v2189, %v2188
    %v2191 = vrot.slane %v1818, 2
    %v2192 = vsel %vm1324, %v2191, %v2190
    %v2193 = vrot.slane %v1819, 1
    %v2194 = vsel %vm1326, %v2193, %v2192
    %v2195 = vrot.slane %v1821, 7
    %v2196 = vsel %vm1314, %v2195, %v1820
    %v2197 = vrot.slane %v1822, 6
    %v2198 = vsel %vm1316, %v2197, %v2196
    %v2199 = vrot.slane %v1823, 5
    %v2200 = vsel %vm1318, %v2199, %v2198
    %v2201 = vrot.slane %v1824, 4
    %v2202 = vsel %vm1320, %v2201, %v2200
    %v2203 = vrot.slane %v1825, 3
    %v2204 = vsel %vm1322, %v2203, %v2202
    %v2205 = vrot.slane %v1826, 2
    %v2206 = vsel %vm1324, %v2205, %v2204
    %v2207 = vrot.slane %v1827, 1
    %v2208 = vsel %vm1326, %v2207, %v2206
    %v2209 = vrot.slane %v1829, 7
    %v2210 = vsel %vm1314, %v2209, %v1828
    %v2211 = vrot.slane %v1830, 6
    %v2212 = vsel %vm1316, %v2211, %v2210
    %v2213 = vrot.slane %v1831, 5
    %v2214 = vsel %vm1318, %v2213, %v2212
    %v2215 = vrot.slane %v1832, 4
    %v2216 = vsel %vm1320, %v2215, %v2214
    %v2217 = vrot.slane %v1833, 3
    %v2218 = vsel %vm1322, %v2217, %v2216
    %v2219 = vrot.slane %v1834, 2
    %v2220 = vsel %vm1324, %v2219, %v2218
    %v2221 = vrot.slane %v1835, 1
    %v2222 = vsel %vm1326, %v2221, %v2220
    %v2227 = vadd.f32 %v1699, %v2180
    %v2228 = vadd.f32 %v1700, %v2194
    %v2229 = vadd.f32 %v1701, %v2208
    %v2230 = vadd.f32 %v1702, %v2222
    %v2231 = vadd.f32 %v1873, %v1914
    %v2232 = vadd.f32 %v1874, %v1915
    %v2233 = vadd.f32 %v1875, %v1916
    %v2234 = vadd.f32 %v1876, %v1917
    %v2235 = vadd.f32 %v1955, %v1996
    %v2236 = vadd.f32 %v1956, %v1997
    %v2237 = vadd.f32 %v1957, %v1998
    %v2238 = vadd.f32 %v1958, %v1999
    %v2239 = vadd.f32 %v2037, %v2078
    %v2240 = vadd.f32 %v2038, %v2079
    %v2241 = vadd.f32 %v2039, %v2080
    %v2242 = vadd.f32 %v2040, %v2081
    %v2243 = vadd.f32 %v2123, %v2127
    %v2244 = vadd.f32 %v2124, %v2128
    %v2245 = vadd.f32 %v2125, %v2129
    %v2246 = vadd.f32 %v2126, %v2130
    %v2247 = vadd.f32 %v2131, %v2227
    %v2248 = vadd.f32 %v2132, %v2228
    %v2249 = vadd.f32 %v2133, %v2229
    %v2250 = vadd.f32 %v2134, %v2230
    %v2251 = vadd.f32 %v2231, %v2235
    %v2252 = vadd.f32 %v2232, %v2236
    %v2253 = vadd.f32 %v2233, %v2237
    %v2254 = vadd.f32 %v2234, %v2238
    %v2255 = vadd.f32 %v2239, %v2119
    %v2256 = vadd.f32 %v2240, %v2120
    %v2257 = vadd.f32 %v2241, %v2121
    %v2258 = vadd.f32 %v2242, %v2122
    %v2259 = vadd.f32 %v2243, %v2247
    %v2260 = vadd.f32 %v2244, %v2248
    %v2261 = vadd.f32 %v2245, %v2249
    %v2262 = vadd.f32 %v2246, %v2250
    %v2263 = vadd.f32 %v2251, %v2255
    %v2264 = vadd.f32 %v2252, %v2256
    %v2265 = vadd.f32 %v2253, %v2257
    %v2266 = vadd.f32 %v2254, %v2258
    %v2267 = vadd.f32 %v2259, %v2263
    %v2268 = vadd.f32 %v2260, %v2264
    %v2269 = vadd.f32 %v2261, %v2265
    %v2270 = vadd.f32 %v2262, %v2266
    %v2271 = vld [vmem:[%s9] sm:$0x1]
    %v2273 = vlaneseq
    %v2274 = vshrl.u32 %v2273, 7
    %v2275 = vsub.s32 0, %v2274
    %v2276 = vrot.slane %v2271, %v2275
    %v2278 = vadd.f32 %v2267, %v2276
    %v2279 = vadd.f32 %v2268, %v2276
    %v2280 = vadd.f32 %v2269, %v2276
    %v2281 = vadd.f32 %v2270, %v2276
    %v2282 = vld [vmem:[%s11] sm:$0x1]
    %v2283 = vld [vmem:[%s13] sm:$0x1]
    %v2284 = vsel %vm208, %v2278, 0.0
    %v2285 = vsel %vm208, %v2279, 0.0
    %v2286 = vadd.f32 %v2284, %v2285
    %v2287 = vrot.slane %v2286, 4
    %v2288 = vadd.f32 %v2286, %v2287
    %v2289 = vrot.slane %v2288, 2
    %v2290 = vadd.f32 %v2288, %v2289
    %v2291 = vrot.slane %v2290, 1
    %v2292 = vadd.f32 %v2290, %v2291
    %v2293 = vsel %vm208, %v2280, 0.0
    %v2294 = vsel %vm208, %v2281, 0.0
    %v2295 = vadd.f32 %v2293, %v2294
    %v2296 = vrot.slane %v2295, 4
    %v2297 = vadd.f32 %v2295, %v2296
    %v2298 = vrot.slane %v2297, 2
    %v2299 = vadd.f32 %v2297, %v2298
    %v2300 = vrot.slane %v2299, 1
    %v2301 = vadd.f32 %v2299, %v2300
    %v2302 = vrcp.pop 16.0
    %v2303 = vmul.f32 %v2292, %v2302
    %v2304 = vmul.f32 %v2301, %v2302
    %v2305 = vsub.f32 %v2278, %v2303
    %v2306 = vsub.f32 %v2279, %v2303
    %v2307 = vsub.f32 %v2280, %v2304
    %v2308 = vsub.f32 %v2281, %v2304
    %v2309 = vmul.f32 %v2305, %v2305
    %v2310 = vmul.f32 %v2306, %v2306
    %v2311 = vmul.f32 %v2307, %v2307
    %v2312 = vmul.f32 %v2308, %v2308
    %v2313 = vsel %vm208, %v2309, 0.0
    %v2314 = vsel %vm208, %v2310, 0.0
    %v2315 = vadd.f32 %v2313, %v2314
    %v2316 = vrot.slane %v2315, 4
    %v2317 = vadd.f32 %v2315, %v2316
    %v2318 = vrot.slane %v2317, 2
    %v2319 = vadd.f32 %v2317, %v2318
    %v2320 = vrot.slane %v2319, 1
    %v2321 = vadd.f32 %v2319, %v2320
    %v2322 = vsel %vm208, %v2311, 0.0
    %v2323 = vsel %vm208, %v2312, 0.0
    %v2324 = vadd.f32 %v2322, %v2323
    %v2325 = vrot.slane %v2324, 4
    %v2326 = vadd.f32 %v2324, %v2325
    %v2327 = vrot.slane %v2326, 2
    %v2328 = vadd.f32 %v2326, %v2327
    %v2329 = vrot.slane %v2328, 1
    %v2330 = vadd.f32 %v2328, %v2329
    %v2331 = vmul.f32 %v2321, %v2302
    %v2332 = vmul.f32 %v2330, %v2302
    %v2333 = vadd.f32 %v2331, 1e-05
    %v2334 = vadd.f32 %v2332, 1e-05
    %v2335 = vrsqrt.pop %v2333
    %v2336 = vrsqrt.pop %v2334
    %v2337 = vmul.f32 %v2305, %v2335
    %v2338 = vmul.f32 %v2306, %v2335
    %v2339 = vmul.f32 %v2307, %v2336
    %v2340 = vmul.f32 %v2308, %v2336
    %v2342 = vlaneseq
    %v2343 = vshrl.u32 %v2342, 7
    %v2344 = vsub.s32 0, %v2343
    %v2345 = vrot.slane %v2282, %v2344
    %v2347 = vmul.f32 %v2337, %v2345
    %v2348 = vmul.f32 %v2338, %v2345
    %v2349 = vmul.f32 %v2339, %v2345
    %v2350 = vmul.f32 %v2340, %v2345
    %v2352 = vlaneseq
    %v2353 = vshrl.u32 %v2352, 7
    %v2354 = vsub.s32 0, %v2353
    %v2355 = vrot.slane %v2283, %v2354
    %v2357 = vadd.f32 %v2347, %v2355
    %v2358 = vadd.f32 %v2348, %v2355
    %v2359 = vadd.f32 %v2349, %v2355
    %v2360 = vadd.f32 %v2350, %v2355
    %v2361 = vld [vmem:[%s15] sm:$0xf]
    %v2362 = vld [vmem:[%s15 + $0x4] sm:$0xf]
    %v2363 = vld [vmem:[%s15 + $0x8] sm:$0xf]
    %v2364 = vld [vmem:[%s15 + $0xc] sm:$0xf]
    %v2365 = vpack.c.bf16 %v2358, %v2357
    %v2366 = vpack.c.bf16 %v2360, %v2359
    %v2367 = vld [vmem:[%s17] sm:$0x1]
    %v2369 = vlaneseq
    %v2370 = vshrl.u32 %v2369, 7
    %v2371 = vsub.s32 0, %v2370
    %v2372 = vrot.slane %v2367, %v2371
    %v2378 = vunpack.c.l.b16 %v2361
    %v2379 = vunpack.c.l.b16 %v2362
    %v2380 = vunpack.c.l.b16 %v2363
    %v2381 = vunpack.c.l.b16 %v2364
    %v2382 = vpack.c.b16 %v2379, %v2378
    %v2383 = vpack.c.b16 %v2381, %v2380
    %v2387 = vsel %vm208, %v2365, 0
    %v2390 = vsel %vm208, %v2366, 0
    %2392 = vmatprep.subr.bf16.mxu0 0
    %2393 = vmatpush1.bf16.msra.mxu0 %v2382
    %2394 = vmatprep.subr.bf16.mxu0 0
    %2395 = vmatpush1.bf16.msra.mxu0 %v2383
    %2396 = vmatprep.subr.bf16.mxu0 0
    %2397 = vmatpush1.bf16.msra.mxu0 0
    %2398 = vmatprep.subr.bf16.mxu0 0
    %2399 = vmatpush1.bf16.msra.mxu0 0
    %2400 = vmatprep.subr.bf16.mxu0 0
    %2401 = vmatpush1.bf16.msra.mxu0 0
    %2402 = vmatprep.subr.bf16.mxu0 0
    %2403 = vmatpush1.bf16.msra.mxu0 0
    %2404 = vmatprep.subr.bf16.mxu0 0
    %2405 = vmatpush1.bf16.msra.mxu0 0
    %2406 = vmatprep.subr.bf16.mxu0 0
    %2407 = vmatpush1.bf16.msra.mxu0 0
    %2408 = vmatprep.subr.bf16.mxu0 0
    %2409 = vmatpush1.bf16.msra.mxu0 0
    %2410 = vmatprep.subr.bf16.mxu0 0
    %2411 = vmatpush1.bf16.msra.mxu0 0
    %2412 = vmatprep.subr.bf16.mxu0 0
    %2413 = vmatpush1.bf16.msra.mxu0 0
    %2414 = vmatprep.subr.bf16.mxu0 0
    %2415 = vmatpush1.bf16.msra.mxu0 0
    %2416 = vmatprep.subr.bf16.mxu0 0
    %2417 = vmatpush1.bf16.msra.mxu0 0
    %2418 = vmatprep.subr.bf16.mxu0 0
    %2419 = vmatpush1.bf16.msra.mxu0 0
    %2420 = vmatprep.subr.bf16.mxu0 0
    %2421 = vmatpush1.bf16.msra.mxu0 0
    %2422 = vmatprep.subr.bf16.mxu0 0
    %2423 = vmatpush1.bf16.msra.mxu0 0
    %2424 = vmatprep.mubr.bf16.mxu0 0
    %2425 = vmatmul.mubr.bf16.gmra.mrb[0].mxu0 %v2387
    %v2426 = vpop.f32.mrb[0].mxu0
    %v2427 = vadd.f32 %v2372, %v2426
    %v2428 = vpop.f32.mrb[0].mxu0
    %v2429 = vpop.f32.mrb[0].mxu0
    %v2430 = vadd.f32 %v2372, %v2429
    %v2431 = vpop.f32.mrb[0].mxu0
    %2432 = vmatprep.mubr.bf16.mxu0 0
    %2433 = vmatmul.mubr.bf16.gmra.mrb[0].mxu0 %v2390
    %v2434 = vpop.f32.mrb[0].mxu0
    %v2435 = vadd.f32 %v2372, %v2434
    %v2436 = vpop.f32.mrb[0].mxu0
    %v2437 = vpop.f32.mrb[0].mxu0
    %v2438 = vadd.f32 %v2372, %v2437
    %v2439 = vpop.f32.mrb[0].mxu0
    %2440 = vdwg.mxu0
    %v2441 = vmax.f32 %v2427, 0.0
    %v2442 = vmax.f32 %v2430, 0.0
    %v2443 = vmax.f32 %v2435, 0.0
    %v2444 = vmax.f32 %v2438, 0.0
    %v2445 = vrot.slane %v2441, 4
    %v2446 = vrot.slane %v2442, 4
    %v2447 = vrot.slane %v2443, 4
    %v2448 = vrot.slane %v2444, 4
    %v2449 = vsel %vm1507, %v2447, %v2448
    %v2450 = vsel %vm1507, %v2446, %v2447
    %v2451 = vsel %vm1507, %v2445, %v2446
    %v2452 = vsel %vm1507, %v2448, %v2445
    %v2453 = vld [vmem:[%s19] sm:$0xff]
    %v2454 = vld [vmem:[%s19 + $0x8] sm:$0xff]
    %v2455 = vld [vmem:[%s19 + $0x10] sm:$0xff]
    %v2456 = vld [vmem:[%s19 + $0x18] sm:$0xff]
    %2458 = vset.pattern.permute.xlu0 0
    %2459 = vperm.xlu0 %2458, %v2453
    %v2460 = vpop.permute.xlu0 %2459
    %2463 = vset.pattern.permute.xlu0 0
    %2464 = vperm.xlu0 %2463, %v2454
    %v2465 = vpop.permute.xlu0 %2464
    %2468 = vset.pattern.permute.xlu0 0
    %2469 = vperm.xlu0 %2468, %v2455
    %v2470 = vpop.permute.xlu0 %2469
    %2473 = vset.pattern.permute.xlu0 0
    %2474 = vperm.xlu0 %2473, %v2456
    %v2475 = vpop.permute.xlu0 %2474
    %v2477 = vmul.f32 %v2452, %v2460
    %v2478 = vmul.f32 %v2451, %v2465
    %v2479 = vmul.f32 %v2450, %v2470
    %v2480 = vmul.f32 %v2449, %v2475
    %v2481 = vrot.slane %v2441, 5
    %v2482 = vrot.slane %v2442, 5
    %v2483 = vrot.slane %v2443, 5
    %v2484 = vrot.slane %v2444, 5
    %v2485 = vsel %vm1557, %v2483, %v2484
    %v2486 = vsel %vm1557, %v2482, %v2483
    %v2487 = vsel %vm1557, %v2481, %v2482
    %v2488 = vsel %vm1557, %v2484, %v2481
    %s2489 = scalar_lea.vmem %s19, 32
    %v2490 = vld [vmem:[%s2489] sm:$0xff]
    %v2491 = vld [vmem:[%s2489 + $0x8] sm:$0xff]
    %v2492 = vld [vmem:[%s2489 + $0x10] sm:$0xff]
    %v2493 = vld [vmem:[%s2489 + $0x18] sm:$0xff]
    %2495 = vset.pattern.permute.xlu0 0
    %2496 = vperm.xlu0 %2495, %v2490
    %v2497 = vpop.permute.xlu0 %2496
    %2500 = vset.pattern.permute.xlu0 0
    %2501 = vperm.xlu0 %2500, %v2491
    %v2502 = vpop.permute.xlu0 %2501
    %2505 = vset.pattern.permute.xlu0 0
    %2506 = vperm.xlu0 %2505, %v2492
    %v2507 = vpop.permute.xlu0 %2506
    %2510 = vset.pattern.permute.xlu0 0
    %2511 = vperm.xlu0 %2510, %v2493
    %v2512 = vpop.permute.xlu0 %2511
    %v2514 = vmul.f32 %v2488, %v2497
    %v2515 = vmul.f32 %v2487, %v2502
    %v2516 = vmul.f32 %v2486, %v2507
    %v2517 = vmul.f32 %v2485, %v2512
    %v2518 = vrot.slane %v2441, 6
    %v2519 = vrot.slane %v2442, 6
    %v2520 = vrot.slane %v2443, 6
    %v2521 = vrot.slane %v2444, 6
    %v2522 = vsel %vm1607, %v2520, %v2521
    %v2523 = vsel %vm1607, %v2519, %v2520
    %v2524 = vsel %vm1607, %v2518, %v2519
    %v2525 = vsel %vm1607, %v2521, %v2518
    %s2526 = scalar_lea.vmem %s19, 64
    %v2527 = vld [vmem:[%s2526] sm:$0xff]
    %v2528 = vld [vmem:[%s2526 + $0x8] sm:$0xff]
    %v2529 = vld [vmem:[%s2526 + $0x10] sm:$0xff]
    %v2530 = vld [vmem:[%s2526 + $0x18] sm:$0xff]
    %2532 = vset.pattern.permute.xlu0 0
    %2533 = vperm.xlu0 %2532, %v2527
    %v2534 = vpop.permute.xlu0 %2533
    %2537 = vset.pattern.permute.xlu0 0
    %2538 = vperm.xlu0 %2537, %v2528
    %v2539 = vpop.permute.xlu0 %2538
    %2542 = vset.pattern.permute.xlu0 0
    %2543 = vperm.xlu0 %2542, %v2529
    %v2544 = vpop.permute.xlu0 %2543
    %2547 = vset.pattern.permute.xlu0 0
    %2548 = vperm.xlu0 %2547, %v2530
    %v2549 = vpop.permute.xlu0 %2548
    %v2551 = vmul.f32 %v2525, %v2534
    %v2552 = vmul.f32 %v2524, %v2539
    %v2553 = vmul.f32 %v2523, %v2544
    %v2554 = vmul.f32 %v2522, %v2549
    %v2555 = vrot.slane %v2441, 7
    %v2556 = vrot.slane %v2442, 7
    %v2557 = vrot.slane %v2443, 7
    %v2558 = vrot.slane %v2444, 7
    %v2559 = vsel %vm1657, %v2557, %v2558
    %v2560 = vsel %vm1657, %v2556, %v2557
    %v2561 = vsel %vm1657, %v2555, %v2556
    %v2562 = vsel %vm1657, %v2558, %v2555
    %s2563 = scalar_lea.vmem %s19, 96
    %v2564 = vld [vmem:[%s2563] sm:$0xff]
    %v2565 = vld [vmem:[%s2563 + $0x8] sm:$0xff]
    %v2566 = vld [vmem:[%s2563 + $0x10] sm:$0xff]
    %v2567 = vld [vmem:[%s2563 + $0x18] sm:$0xff]
    %2569 = vset.pattern.permute.xlu0 0
    %2570 = vperm.xlu0 %2569, %v2564
    %v2571 = vpop.permute.xlu0 %2570
    %2574 = vset.pattern.permute.xlu0 0
    %2575 = vperm.xlu0 %2574, %v2565
    %v2576 = vpop.permute.xlu0 %2575
    %2579 = vset.pattern.permute.xlu0 0
    %2580 = vperm.xlu0 %2579, %v2566
    %v2581 = vpop.permute.xlu0 %2580
    %2584 = vset.pattern.permute.xlu0 0
    %2585 = vperm.xlu0 %2584, %v2567
    %v2586 = vpop.permute.xlu0 %2585
    %v2588 = vmul.f32 %v2562, %v2571
    %v2589 = vmul.f32 %v2561, %v2576
    %v2590 = vmul.f32 %v2560, %v2581
    %v2591 = vmul.f32 %v2559, %v2586
    %s2592 = scalar_lea.vmem %s19, 128
    %v2593 = vld [vmem:[%s2592] sm:$0xff]
    %v2594 = vld [vmem:[%s2592 + $0x8] sm:$0xff]
    %v2595 = vld [vmem:[%s2592 + $0x10] sm:$0xff]
    %v2596 = vld [vmem:[%s2592 + $0x18] sm:$0xff]
    %2598 = vset.pattern.permute.xlu0 0
    %2599 = vperm.xlu0 %2598, %v2593
    %v2600 = vpop.permute.xlu0 %2599
    %2603 = vset.pattern.permute.xlu0 0
    %2604 = vperm.xlu0 %2603, %v2594
    %v2605 = vpop.permute.xlu0 %2604
    %2608 = vset.pattern.permute.xlu0 0
    %2609 = vperm.xlu0 %2608, %v2595
    %v2610 = vpop.permute.xlu0 %2609
    %2613 = vset.pattern.permute.xlu0 0
    %2614 = vperm.xlu0 %2613, %v2596
    %v2615 = vpop.permute.xlu0 %2614
    %v2617 = vmul.f32 %v2441, %v2600
    %v2618 = vmul.f32 %v2442, %v2605
    %v2619 = vmul.f32 %v2443, %v2610
    %v2620 = vmul.f32 %v2444, %v2615
    %v2621 = vrot.slane %v2441, 1
    %v2622 = vrot.slane %v2442, 1
    %v2623 = vrot.slane %v2443, 1
    %v2624 = vrot.slane %v2444, 1
    %v2625 = vsel %vm1359, %v2623, %v2624
    %v2626 = vsel %vm1359, %v2622, %v2623
    %v2627 = vsel %vm1359, %v2621, %v2622
    %v2628 = vsel %vm1359, %v2624, %v2621
    %s2629 = scalar_lea.vmem %s19, 160
    %v2630 = vld [vmem:[%s2629] sm:$0xff]
    %v2631 = vld [vmem:[%s2629 + $0x8] sm:$0xff]
    %v2632 = vld [vmem:[%s2629 + $0x10] sm:$0xff]
    %v2633 = vld [vmem:[%s2629 + $0x18] sm:$0xff]
    %2635 = vset.pattern.permute.xlu0 0
    %2636 = vperm.xlu0 %2635, %v2630
    %v2637 = vpop.permute.xlu0 %2636
    %2640 = vset.pattern.permute.xlu0 0
    %2641 = vperm.xlu0 %2640, %v2631
    %v2642 = vpop.permute.xlu0 %2641
    %2645 = vset.pattern.permute.xlu0 0
    %2646 = vperm.xlu0 %2645, %v2632
    %v2647 = vpop.permute.xlu0 %2646
    %2650 = vset.pattern.permute.xlu0 0
    %2651 = vperm.xlu0 %2650, %v2633
    %v2652 = vpop.permute.xlu0 %2651
    %v2654 = vmul.f32 %v2627, %v2637
    %v2655 = vmul.f32 %v2626, %v2642
    %v2656 = vmul.f32 %v2625, %v2647
    %v2657 = vmul.f32 %v2628, %v2652
    %v2658 = vrot.slane %v2441, 2
    %v2659 = vrot.slane %v2442, 2
    %v2660 = vrot.slane %v2443, 2
    %v2661 = vrot.slane %v2444, 2
    %v2662 = vsel %vm1407, %v2660, %v2661
    %v2663 = vsel %vm1407, %v2659, %v2660
    %v2664 = vsel %vm1407, %v2658, %v2659
    %v2665 = vsel %vm1407, %v2661, %v2658
    %s2666 = scalar_lea.vmem %s19, 192
    %v2667 = vld [vmem:[%s2666] sm:$0xff]
    %v2668 = vld [vmem:[%s2666 + $0x8] sm:$0xff]
    %v2669 = vld [vmem:[%s2666 + $0x10] sm:$0xff]
    %v2670 = vld [vmem:[%s2666 + $0x18] sm:$0xff]
    %2672 = vset.pattern.permute.xlu0 0
    %2673 = vperm.xlu0 %2672, %v2667
    %v2674 = vpop.permute.xlu0 %2673
    %2677 = vset.pattern.permute.xlu0 0
    %2678 = vperm.xlu0 %2677, %v2668
    %v2679 = vpop.permute.xlu0 %2678
    %2682 = vset.pattern.permute.xlu0 0
    %2683 = vperm.xlu0 %2682, %v2669
    %v2684 = vpop.permute.xlu0 %2683
    %2687 = vset.pattern.permute.xlu0 0
    %2688 = vperm.xlu0 %2687, %v2670
    %v2689 = vpop.permute.xlu0 %2688
    %v2691 = vmul.f32 %v2664, %v2674
    %v2692 = vmul.f32 %v2663, %v2679
    %v2693 = vmul.f32 %v2662, %v2684
    %v2694 = vmul.f32 %v2665, %v2689
    %v2695 = vrot.slane %v2441, 3
    %v2696 = vrot.slane %v2442, 3
    %v2697 = vrot.slane %v2443, 3
    %v2698 = vrot.slane %v2444, 3
    %v2699 = vsel %vm1457, %v2697, %v2698
    %v2700 = vsel %vm1457, %v2696, %v2697
    %v2701 = vsel %vm1457, %v2695, %v2696
    %v2702 = vsel %vm1457, %v2698, %v2695
    %s2703 = scalar_lea.vmem %s19, 224
    %v2704 = vld [vmem:[%s2703] sm:$0xff]
    %v2705 = vld [vmem:[%s2703 + $0x8] sm:$0xff]
    %v2706 = vld [vmem:[%s2703 + $0x10] sm:$0xff]
    %v2707 = vld [vmem:[%s2703 + $0x18] sm:$0xff]
    %2709 = vset.pattern.permute.xlu0 0
    %2710 = vperm.xlu0 %2709, %v2704
    %v2711 = vpop.permute.xlu0 %2710
    %2714 = vset.pattern.permute.xlu0 0
    %2715 = vperm.xlu0 %2714, %v2705
    %v2716 = vpop.permute.xlu0 %2715
    %2719 = vset.pattern.permute.xlu0 0
    %2720 = vperm.xlu0 %2719, %v2706
    %v2721 = vpop.permute.xlu0 %2720
    %2724 = vset.pattern.permute.xlu0 0
    %2725 = vperm.xlu0 %2724, %v2707
    %v2726 = vpop.permute.xlu0 %2725
    %v2728 = vmul.f32 %v2701, %v2711
    %v2729 = vmul.f32 %v2700, %v2716
    %v2730 = vmul.f32 %v2699, %v2721
    %v2731 = vmul.f32 %v2702, %v2726
    %s2732 = scalar_lea.vmem %s19, 256
    %v2733 = vld [vmem:[%s2732] sm:$0xff]
    %v2734 = vld [vmem:[%s2732 + $0x8] sm:$0xff]
    %v2735 = vld [vmem:[%s2732 + $0x10] sm:$0xff]
    %v2736 = vld [vmem:[%s2732 + $0x18] sm:$0xff]
    %2738 = vset.pattern.permute.xlu0 0
    %2739 = vperm.xlu0 %2738, %v2733
    %v2740 = vpop.permute.xlu0 %2739
    %2743 = vset.pattern.permute.xlu0 0
    %2744 = vperm.xlu0 %2743, %v2734
    %v2745 = vpop.permute.xlu0 %2744
    %2748 = vset.pattern.permute.xlu0 0
    %2749 = vperm.xlu0 %2748, %v2735
    %v2750 = vpop.permute.xlu0 %2749
    %2753 = vset.pattern.permute.xlu0 0
    %2754 = vperm.xlu0 %2753, %v2736
    %v2755 = vpop.permute.xlu0 %2754
    %v2757 = vmul.f32 %v2451, %v2740
    %v2758 = vmul.f32 %v2450, %v2745
    %v2759 = vmul.f32 %v2449, %v2750
    %v2760 = vmul.f32 %v2452, %v2755
    %2765 = vrot.lane.b32.xlu0 %v2514, 32
    %v2766 = vpop.permute.xlu0 %2765
    %2767 = vrot.lane.b32.xlu0 %v2515, 32
    %v2768 = vpop.permute.xlu0 %2767
    %2769 = vrot.lane.b32.xlu0 %v2516, 32
    %v2770 = vpop.permute.xlu0 %2769
    %2771 = vrot.lane.b32.xlu0 %v2517, 32
    %v2772 = vpop.permute.xlu0 %2771
    %2781 = vrot.lane.b32.xlu0 %v2551, 64
    %v2782 = vpop.permute.xlu0 %2781
    %2783 = vrot.lane.b32.xlu0 %v2552, 64
    %v2784 = vpop.permute.xlu0 %2783
    %2785 = vrot.lane.b32.xlu0 %v2553, 64
    %v2786 = vpop.permute.xlu0 %2785
    %2787 = vrot.lane.b32.xlu0 %v2554, 64
    %v2788 = vpop.permute.xlu0 %2787
    %2797 = vrot.lane.b32.xlu0 %v2588, 96
    %v2798 = vpop.permute.xlu0 %2797
    %2799 = vrot.lane.b32.xlu0 %v2589, 96
    %v2800 = vpop.permute.xlu0 %2799
    %2801 = vrot.lane.b32.xlu0 %v2590, 96
    %v2802 = vpop.permute.xlu0 %2801
    %2803 = vrot.lane.b32.xlu0 %v2591, 96
    %v2804 = vpop.permute.xlu0 %2803
    %2813 = vrot.lane.b32.xlu0 %v2654, 32
    %v2814 = vpop.permute.xlu0 %2813
    %2815 = vrot.lane.b32.xlu0 %v2655, 32
    %v2816 = vpop.permute.xlu0 %2815
    %2817 = vrot.lane.b32.xlu0 %v2656, 32
    %v2818 = vpop.permute.xlu0 %2817
    %2819 = vrot.lane.b32.xlu0 %v2657, 32
    %v2820 = vpop.permute.xlu0 %2819
    %2829 = vrot.lane.b32.xlu0 %v2691, 64
    %v2830 = vpop.permute.xlu0 %2829
    %2831 = vrot.lane.b32.xlu0 %v2692, 64
    %v2832 = vpop.permute.xlu0 %2831
    %2833 = vrot.lane.b32.xlu0 %v2693, 64
    %v2834 = vpop.permute.xlu0 %2833
    %2835 = vrot.lane.b32.xlu0 %v2694, 64
    %v2836 = vpop.permute.xlu0 %2835
    %2845 = vrot.lane.b32.xlu0 %v2728, 96
    %v2846 = vpop.permute.xlu0 %2845
    %2847 = vrot.lane.b32.xlu0 %v2729, 96
    %v2848 = vpop.permute.xlu0 %2847
    %2849 = vrot.lane.b32.xlu0 %v2730, 96
    %v2850 = vpop.permute.xlu0 %2849
    %2851 = vrot.lane.b32.xlu0 %v2731, 96
    %v2852 = vpop.permute.xlu0 %2851
    %v2857 = vsel %vm208, %v2477, %v2766
    %v2858 = vsel %vm208, %v2478, %v2768
    %v2859 = vsel %vm208, %v2479, %v2770
    %v2860 = vsel %vm208, %v2480, %v2772
    %vm2861 = vcmask 523264
    %v2862 = vsel %vm2861, %v2857, %v2782
    %v2863 = vsel %vm2861, %v2858, %v2784
    %v2864 = vsel %vm2861, %v2859, %v2786
    %v2865 = vsel %vm2861, %v2860, %v2788
    %vm2866 = vcmask 785408
    %v2867 = vsel %vm2866, %v2862, %v2798
    %v2868 = vsel %vm2866, %v2863, %v2800
    %v2869 = vsel %vm2866, %v2864, %v2802
    %v2870 = vsel %vm2866, %v2865, %v2804
    %v2871 = vsel %vm208, %v2617, %v2814
    %v2872 = vsel %vm208, %v2618, %v2816
    %v2873 = vsel %vm208, %v2619, %v2818
    %v2874 = vsel %vm208, %v2620, %v2820
    %v2875 = vsel %vm2861, %v2871, %v2830
    %v2876 = vsel %vm2861, %v2872, %v2832
    %v2877 = vsel %vm2861, %v2873, %v2834
    %v2878 = vsel %vm2861, %v2874, %v2836
    %v2879 = vsel %vm2866, %v2875, %v2846
    %v2880 = vsel %vm2866, %v2876, %v2848
    %v2881 = vsel %vm2866, %v2877, %v2850
    %v2882 = vsel %vm2866, %v2878, %v2852
    %v2883 = vld [vmem:[%s21] sm:$0xf]
    %v2884 = vld [vmem:[%s21 + $0x4] sm:$0xf]
    %v2885 = vld [vmem:[%s21 + $0x8] sm:$0xf]
    %v2886 = vld [vmem:[%s21 + $0xc] sm:$0xf]
    %v2887 = vld [vmem:[%s21 + $0x10] sm:$0xf]
    %v2888 = vld [vmem:[%s21 + $0x14] sm:$0xf]
    %v2889 = vld [vmem:[%s21 + $0x18] sm:$0xf]
    %v2890 = vld [vmem:[%s21 + $0x1c] sm:$0xf]
    %v2891 = vld [vmem:[%s21 + $0x20] sm:$0xf]
    %v2892 = vld [vmem:[%s21 + $0x24] sm:$0xf]
    %v2893 = vld [vmem:[%s21 + $0x28] sm:$0xf]
    %v2894 = vld [vmem:[%s21 + $0x2c] sm:$0xf]
    %v2895 = vld [vmem:[%s21 + $0x30] sm:$0xf]
    %v2896 = vld [vmem:[%s21 + $0x34] sm:$0xf]
    %v2897 = vld [vmem:[%s21 + $0x38] sm:$0xf]
    %v2898 = vld [vmem:[%s21 + $0x3c] sm:$0xf]
    %v2899 = vld [vmem:[%s21 + $0x40] sm:$0xf]
    %v2900 = vld [vmem:[%s21 + $0x44] sm:$0xf]
    %v2901 = vld [vmem:[%s21 + $0x48] sm:$0xf]
    %v2902 = vld [vmem:[%s21 + $0x4c] sm:$0xf]
    %v2903 = vld [vmem:[%s21 + $0x50] sm:$0xf]
    %v2904 = vld [vmem:[%s21 + $0x54] sm:$0xf]
    %v2905 = vld [vmem:[%s21 + $0x58] sm:$0xf]
    %v2906 = vld [vmem:[%s21 + $0x5c] sm:$0xf]
    %v2907 = vld [vmem:[%s21 + $0x60] sm:$0xf]
    %v2908 = vld [vmem:[%s21 + $0x64] sm:$0xf]
    %v2909 = vld [vmem:[%s21 + $0x68] sm:$0xf]
    %v2910 = vld [vmem:[%s21 + $0x6c] sm:$0xf]
    %v2911 = vld [vmem:[%s21 + $0x70] sm:$0xf]
    %v2912 = vld [vmem:[%s21 + $0x74] sm:$0xf]
    %v2913 = vld [vmem:[%s21 + $0x78] sm:$0xf]
    %v2914 = vld [vmem:[%s21 + $0x7c] sm:$0xf]
    %v2915 = vld [vmem:[%s21 + $0x80] sm:$0xf]
    %v2916 = vld [vmem:[%s21 + $0x84] sm:$0xf]
    %v2917 = vld [vmem:[%s21 + $0x88] sm:$0xf]
    %v2918 = vld [vmem:[%s21 + $0x8c] sm:$0xf]
    %v2919 = vpack.c.bf16 %v2868, %v2867
    %v2920 = vpack.c.bf16 %v2880, %v2879
    %v2921 = vpack.c.bf16 %v2758, %v2757
    %v2922 = vpack.c.bf16 %v2870, %v2869
    %v2923 = vpack.c.bf16 %v2882, %v2881
    %v2924 = vpack.c.bf16 %v2760, %v2759
    %v2925 = vld [vmem:[%s23] sm:$0x1]
    %v2927 = vlaneseq
    %v2928 = vshrl.u32 %v2927, 7
    %v2929 = vsub.s32 0, %v2928
    %v2930 = vrot.slane %v2925, %v2929
    %v2968 = vunpack.c.l.b16 %v2883
    %v2969 = vunpack.c.l.b16 %v2884
    %v2970 = vunpack.c.l.b16 %v2885
    %v2971 = vunpack.c.l.b16 %v2886
    %v2972 = vunpack.c.l.b16 %v2887
    %v2973 = vunpack.c.l.b16 %v2888
    %v2974 = vunpack.c.l.b16 %v2889
    %v2975 = vunpack.c.l.b16 %v2890
    %v2976 = vunpack.c.l.b16 %v2891
    %v2977 = vunpack.c.l.b16 %v2892
    %v2978 = vunpack.c.l.b16 %v2893
    %v2979 = vunpack.c.l.b16 %v2894
    %v2980 = vunpack.c.l.b16 %v2895
    %v2981 = vunpack.c.l.b16 %v2896
    %v2982 = vunpack.c.l.b16 %v2897
    %v2983 = vunpack.c.l.b16 %v2898
    %v2984 = vunpack.c.l.b16 %v2899
    %v2985 = vunpack.c.l.b16 %v2900
    %v2986 = vunpack.c.l.b16 %v2901
    %v2987 = vunpack.c.l.b16 %v2902
    %v2988 = vunpack.c.l.b16 %v2903
    %v2989 = vunpack.c.l.b16 %v2904
    %v2990 = vunpack.c.l.b16 %v2905
    %v2991 = vunpack.c.l.b16 %v2906
    %v2992 = vunpack.c.l.b16 %v2907
    %v2993 = vunpack.c.l.b16 %v2908
    %v2994 = vunpack.c.l.b16 %v2909
    %v2995 = vunpack.c.l.b16 %v2910
    %v2996 = vunpack.c.l.b16 %v2911
    %v2997 = vunpack.c.l.b16 %v2912
    %v2998 = vunpack.c.l.b16 %v2913
    %v2999 = vunpack.c.l.b16 %v2914
    %v3000 = vunpack.c.l.b16 %v2915
    %v3001 = vunpack.c.l.b16 %v2916
    %v3002 = vunpack.c.l.b16 %v2917
    %v3003 = vunpack.c.l.b16 %v2918
    %v3004 = vpack.c.b16 %v2969, %v2968
    %v3005 = vpack.c.b16 %v2971, %v2970
    %v3006 = vpack.c.b16 %v2973, %v2972
    %v3007 = vpack.c.b16 %v2975, %v2974
    %v3008 = vpack.c.b16 %v2977, %v2976
    %v3009 = vpack.c.b16 %v2979, %v2978
    %v3010 = vpack.c.b16 %v2981, %v2980
    %v3011 = vpack.c.b16 %v2983, %v2982
    %v3012 = vpack.c.b16 %v2985, %v2984
    %v3013 = vpack.c.b16 %v2987, %v2986
    %v3014 = vpack.c.b16 %v2989, %v2988
    %v3015 = vpack.c.b16 %v2991, %v2990
    %v3016 = vpack.c.b16 %v2993, %v2992
    %v3017 = vpack.c.b16 %v2995, %v2994
    %v3018 = vpack.c.b16 %v2997, %v2996
    %v3019 = vpack.c.b16 %v2999, %v2998
    %v3020 = vpack.c.b16 %v3001, %v3000
    %v3021 = vpack.c.b16 %v3003, %v3002
    %v3041 = vsel %vm208, %v2921, 0
    %v3044 = vsel %vm208, %v2924, 0
    %3046 = vmatprep.subr.bf16.mxu0 0
    %3047 = vmatpush1.bf16.msra.mxu0 %v3004
    %3048 = vmatprep.subr.bf16.mxu0 0
    %3049 = vmatpush1.bf16.msra.mxu0 %v3005
    %3050 = vmatprep.subr.bf16.mxu0 0
    %3051 = vmatpush1.bf16.msra.mxu0 %v3006
    %3052 = vmatprep.subr.bf16.mxu0 0
    %3053 = vmatpush1.bf16.msra.mxu0 %v3007
    %3054 = vmatprep.subr.bf16.mxu0 0
    %3055 = vmatpush1.bf16.msra.mxu0 %v3008
    %3056 = vmatprep.subr.bf16.mxu0 0
    %3057 = vmatpush1.bf16.msra.mxu0 %v3009
    %3058 = vmatprep.subr.bf16.mxu0 0
    %3059 = vmatpush1.bf16.msra.mxu0 %v3010
    %3060 = vmatprep.subr.bf16.mxu0 0
    %3061 = vmatpush1.bf16.msra.mxu0 %v3011
    %3062 = vmatprep.subr.bf16.mxu0 0
    %3063 = vmatpush1.bf16.msra.mxu0 %v3012
    %3064 = vmatprep.subr.bf16.mxu0 0
    %3065 = vmatpush1.bf16.msra.mxu0 %v3013
    %3066 = vmatprep.subr.bf16.mxu0 0
    %3067 = vmatpush1.bf16.msra.mxu0 %v3014
    %3068 = vmatprep.subr.bf16.mxu0 0
    %3069 = vmatpush1.bf16.msra.mxu0 %v3015
    %3070 = vmatprep.subr.bf16.mxu0 0
    %3071 = vmatpush1.bf16.msra.mxu0 %v3016
    %3072 = vmatprep.subr.bf16.mxu0 0
    %3073 = vmatpush1.bf16.msra.mxu0 %v3017
    %3074 = vmatprep.subr.bf16.mxu0 0
    %3075 = vmatpush1.bf16.msra.mxu0 %v3018
    %3076 = vmatprep.subr.bf16.mxu0 0
    %3077 = vmatpush1.bf16.msra.mxu0 %v3019
    %3078 = vmatprep.mubr.bf16.mxu0 %v2920
    %3079 = vmatmul.mubr.bf16.gmra.mrb[0].mxu0 %v2919
    %v3080 = vpop.f32.mrb[0].mxu0
    %v3081 = vadd.f32 %v2930, %v3080
    %v3082 = vpop.f32.mrb[0].mxu0
    %v3083 = vpop.f32.mrb[0].mxu0
    %v3084 = vadd.f32 %v2930, %v3083
    %v3085 = vpop.f32.mrb[0].mxu0
    %3086 = vmatprep.mubr.bf16.mxu0 %v2923
    %3087 = vmatmul.mubr.bf16.gmra.mrb[0].mxu0 %v2922
    %v3088 = vpop.f32.mrb[0].mxu0
    %v3089 = vadd.f32 %v2930, %v3088
    %v3090 = vpop.f32.mrb[0].mxu0
    %v3091 = vpop.f32.mrb[0].mxu0
    %v3092 = vadd.f32 %v2930, %v3091
    %v3093 = vpop.f32.mrb[0].mxu0
    %3094 = vdwg.mxu0
    %3095 = vmatprep.subr.bf16.mxu0 0
    %3096 = vmatpush1.bf16.msra.mxu0 %v3020
    %3097 = vmatprep.subr.bf16.mxu0 0
    %3098 = vmatpush1.bf16.msra.mxu0 %v3021
    %3099 = vmatprep.subr.bf16.mxu0 0
    %3100 = vmatpush1.bf16.msra.mxu0 0
    %3101 = vmatprep.subr.bf16.mxu0 0
    %3102 = vmatpush1.bf16.msra.mxu0 0
    %3103 = vmatprep.subr.bf16.mxu0 0
    %3104 = vmatpush1.bf16.msra.mxu0 0
    %3105 = vmatprep.subr.bf16.mxu0 0
    %3106 = vmatpush1.bf16.msra.mxu0 0
    %3107 = vmatprep.subr.bf16.mxu0 0
    %3108 = vmatpush1.bf16.msra.mxu0 0
    %3109 = vmatprep.subr.bf16.mxu0 0
    %3110 = vmatpush1.bf16.msra.mxu0 0
    %3111 = vmatprep.subr.bf16.mxu0 0
    %3112 = vmatpush1.bf16.msra.mxu0 0
    %3113 = vmatprep.subr.bf16.mxu0 0
    %3114 = vmatpush1.bf16.msra.mxu0 0
    %3115 = vmatprep.subr.bf16.mxu0 0
    %3116 = vmatpush1.bf16.msra.mxu0 0
    %3117 = vmatprep.subr.bf16.mxu0 0
    %3118 = vmatpush1.bf16.msra.mxu0 0
    %3119 = vmatprep.subr.bf16.mxu0 0
    %3120 = vmatpush1.bf16.msra.mxu0 0
    %3121 = vmatprep.subr.bf16.mxu0 0
    %3122 = vmatpush1.bf16.msra.mxu0 0
    %3123 = vmatprep.subr.bf16.mxu0 0
    %3124 = vmatpush1.bf16.msra.mxu0 0
    %3125 = vmatprep.subr.bf16.mxu0 0
    %3126 = vmatpush1.bf16.msra.mxu0 0
    %3127 = vmatprep.mubr.bf16.mxu0 0
    %3128 = vmatmul.mubr.bf16.gmra.mrb[0].mxu0 %v3041
    %v3129 = vpop.f32.mrb[0].mxu0
    %v3130 = vadd.f32 %v3081, %v3129
    %v3131 = vpop.f32.mrb[0].mxu0
    %v3132 = vpop.f32.mrb[0].mxu0
    %v3133 = vadd.f32 %v3084, %v3132
    %v3134 = vpop.f32.mrb[0].mxu0
    %3135 = vmatprep.mubr.bf16.mxu0 0
    %3136 = vmatmul.mubr.bf16.gmra.mrb[0].mxu0 %v3044
    %v3137 = vpop.f32.mrb[0].mxu0
    %v3138 = vadd.f32 %v3089, %v3137
    %v3139 = vpop.f32.mrb[0].mxu0
    %v3140 = vpop.f32.mrb[0].mxu0
    %v3141 = vadd.f32 %v3092, %v3140
    %v3142 = vpop.f32.mrb[0].mxu0
    %3143 = vdwg.mxu0
    %v3144 = vld [vmem:[%s25] sm:$0x1]
    %v3145 = vld [vmem:[%s27] sm:$0x1]
    %v3146 = vsel %vm208, %v3130, 0.0
    %v3147 = vsel %vm208, %v3133, 0.0
    %v3148 = vadd.f32 %v3146, %v3147
    %v3149 = vrot.slane %v3148, 4
    %v3150 = vadd.f32 %v3148, %v3149
    %v3151 = vrot.slane %v3150, 2
    %v3152 = vadd.f32 %v3150, %v3151
    %v3153 = vrot.slane %v3152, 1
    %v3154 = vadd.f32 %v3152, %v3153
    %v3155 = vsel %vm208, %v3138, 0.0
    %v3156 = vsel %vm208, %v3141, 0.0
    %v3157 = vadd.f32 %v3155, %v3156
    %v3158 = vrot.slane %v3157, 4
    %v3159 = vadd.f32 %v3157, %v3158
    %v3160 = vrot.slane %v3159, 2
    %v3161 = vadd.f32 %v3159, %v3160
    %v3162 = vrot.slane %v3161, 1
    %v3163 = vadd.f32 %v3161, %v3162
    %v3164 = vmul.f32 %v3154, %v2302
    %v3165 = vmul.f32 %v3163, %v2302
    %v3166 = vsub.f32 %v3130, %v3164
    %v3167 = vsub.f32 %v3133, %v3164
    %v3168 = vsub.f32 %v3138, %v3165
    %v3169 = vsub.f32 %v3141, %v3165
    %v3170 = vmul.f32 %v3166, %v3166
    %v3171 = vmul.f32 %v3167, %v3167
    %v3172 = vmul.f32 %v3168, %v3168
    %v3173 = vmul.f32 %v3169, %v3169
    %v3174 = vsel %vm208, %v3170, 0.0
    %v3175 = vsel %vm208, %v3171, 0.0
    %v3176 = vadd.f32 %v3174, %v3175
    %v3177 = vrot.slane %v3176, 4
    %v3178 = vadd.f32 %v3176, %v3177
    %v3179 = vrot.slane %v3178, 2
    %v3180 = vadd.f32 %v3178, %v3179
    %v3181 = vrot.slane %v3180, 1
    %v3182 = vadd.f32 %v3180, %v3181
    %v3183 = vsel %vm208, %v3172, 0.0
    %v3184 = vsel %vm208, %v3173, 0.0
    %v3185 = vadd.f32 %v3183, %v3184
    %v3186 = vrot.slane %v3185, 4
    %v3187 = vadd.f32 %v3185, %v3186
    %v3188 = vrot.slane %v3187, 2
    %v3189 = vadd.f32 %v3187, %v3188
    %v3190 = vrot.slane %v3189, 1
    %v3191 = vadd.f32 %v3189, %v3190
    %v3192 = vmul.f32 %v3182, %v2302
    %v3193 = vmul.f32 %v3191, %v2302
    %v3194 = vadd.f32 %v3192, 1e-05
    %v3195 = vadd.f32 %v3193, 1e-05
    %v3196 = vrsqrt.pop %v3194
    %v3197 = vrsqrt.pop %v3195
    %v3198 = vmul.f32 %v3166, %v3196
    %v3199 = vmul.f32 %v3167, %v3196
    %v3200 = vmul.f32 %v3168, %v3197
    %v3201 = vmul.f32 %v3169, %v3197
    %v3203 = vlaneseq
    %v3204 = vshrl.u32 %v3203, 7
    %v3205 = vsub.s32 0, %v3204
    %v3206 = vrot.slane %v3144, %v3205
    %v3208 = vmul.f32 %v3198, %v3206
    %v3209 = vmul.f32 %v3199, %v3206
    %v3210 = vmul.f32 %v3200, %v3206
    %v3211 = vmul.f32 %v3201, %v3206
    %v3213 = vlaneseq
    %v3214 = vshrl.u32 %v3213, 7
    %v3215 = vsub.s32 0, %v3214
    %v3216 = vrot.slane %v3145, %v3215
    %v3218 = vadd.f32 %v3208, %v3216
    %v3219 = vadd.f32 %v3209, %v3216
    %v3220 = vadd.f32 %v3210, %v3216
    %v3221 = vadd.f32 %v3211, %v3216
    %v3222 = vmax.f32 %v3218, 0.0
    %v3223 = vmax.f32 %v3219, 0.0
    %v3224 = vmax.f32 %v3220, 0.0
    %v3225 = vmax.f32 %v3221, 0.0
    %v3226 = vld [vmem:[%s29] sm:$0xff]
    %v3227 = vld [vmem:[%s29 + $0x8] sm:$0xff]
    %v3228 = vld [vmem:[%s29 + $0x10] sm:$0xff]
    %v3229 = vld [vmem:[%s29 + $0x18] sm:$0xff]
    %v3230 = vld [vmem:[%s29 + $0x20] sm:$0xff]
    %v3231 = vld [vmem:[%s29 + $0x28] sm:$0xff]
    %v3232 = vld [vmem:[%s29 + $0x30] sm:$0xff]
    %v3233 = vld [vmem:[%s29 + $0x38] sm:$0xff]
    %v3234 = vld [vmem:[%s29 + $0x40] sm:$0xff]
    %v3235 = vld [vmem:[%s29 + $0x48] sm:$0xff]
    %v3236 = vld [vmem:[%s29 + $0x50] sm:$0xff]
    %v3237 = vld [vmem:[%s29 + $0x58] sm:$0xff]
    %v3238 = vld [vmem:[%s29 + $0x60] sm:$0xff]
    %v3239 = vld [vmem:[%s29 + $0x68] sm:$0xff]
    %v3240 = vld [vmem:[%s29 + $0x70] sm:$0xff]
    %v3241 = vld [vmem:[%s29 + $0x78] sm:$0xff]
    %v3242 = vld [vmem:[%s29 + $0x80] sm:$0xff]
    %v3243 = vld [vmem:[%s29 + $0x88] sm:$0xff]
    %v3244 = vld [vmem:[%s29 + $0x90] sm:$0xff]
    %v3245 = vld [vmem:[%s29 + $0x98] sm:$0xff]
    %v3246 = vld [vmem:[%s29 + $0xa0] sm:$0xff]
    %v3247 = vld [vmem:[%s29 + $0xa8] sm:$0xff]
    %v3248 = vld [vmem:[%s29 + $0xb0] sm:$0xff]
    %v3249 = vld [vmem:[%s29 + $0xb8] sm:$0xff]
    %v3250 = vld [vmem:[%s29 + $0xc0] sm:$0xff]
    %v3251 = vld [vmem:[%s29 + $0xc8] sm:$0xff]
    %v3252 = vld [vmem:[%s29 + $0xd0] sm:$0xff]
    %v3253 = vld [vmem:[%s29 + $0xd8] sm:$0xff]
    %v3254 = vld [vmem:[%s29 + $0xe0] sm:$0xff]
    %v3255 = vld [vmem:[%s29 + $0xe8] sm:$0xff]
    %v3256 = vld [vmem:[%s29 + $0xf0] sm:$0xff]
    %v3257 = vld [vmem:[%s29 + $0xf8] sm:$0xff]
    %v3258 = vld [vmem:[%s31] sm:$0xff]
    %v3259 = vld [vmem:[%s31 + $0x8] sm:$0xff]
    %v3260 = vld [vmem:[%s31 + $0x10] sm:$0xff]
    %v3261 = vld [vmem:[%s31 + $0x18] sm:$0xff]
    %v3262 = vld [vmem:[%s31 + $0x20] sm:$0xff]
    %v3263 = vld [vmem:[%s31 + $0x28] sm:$0xff]
    %v3264 = vld [vmem:[%s31 + $0x30] sm:$0xff]
    %v3265 = vld [vmem:[%s31 + $0x38] sm:$0xff]
    %v3266 = vld [vmem:[%s31 + $0x40] sm:$0xff]
    %v3267 = vld [vmem:[%s31 + $0x48] sm:$0xff]
    %v3268 = vld [vmem:[%s31 + $0x50] sm:$0xff]
    %v3269 = vld [vmem:[%s31 + $0x58] sm:$0xff]
    %v3270 = vld [vmem:[%s31 + $0x60] sm:$0xff]
    %v3271 = vld [vmem:[%s31 + $0x68] sm:$0xff]
    %v3272 = vld [vmem:[%s31 + $0x70] sm:$0xff]
    %v3273 = vld [vmem:[%s31 + $0x78] sm:$0xff]
    %v3274 = vld [vmem:[%s31 + $0x80] sm:$0xff]
    %v3275 = vld [vmem:[%s31 + $0x88] sm:$0xff]
    %v3276 = vld [vmem:[%s31 + $0x90] sm:$0xff]
    %v3277 = vld [vmem:[%s31 + $0x98] sm:$0xff]
    %v3278 = vld [vmem:[%s31 + $0xa0] sm:$0xff]
    %v3279 = vld [vmem:[%s31 + $0xa8] sm:$0xff]
    %v3280 = vld [vmem:[%s31 + $0xb0] sm:$0xff]
    %v3281 = vld [vmem:[%s31 + $0xb8] sm:$0xff]
    %v3282 = vld [vmem:[%s31 + $0xc0] sm:$0xff]
    %v3283 = vld [vmem:[%s31 + $0xc8] sm:$0xff]
    %v3284 = vld [vmem:[%s31 + $0xd0] sm:$0xff]
    %v3285 = vld [vmem:[%s31 + $0xd8] sm:$0xff]
    %v3286 = vld [vmem:[%s31 + $0xe0] sm:$0xff]
    %v3287 = vld [vmem:[%s31 + $0xe8] sm:$0xff]
    %v3288 = vld [vmem:[%s31 + $0xf0] sm:$0xff]
    %v3289 = vld [vmem:[%s31 + $0xf8] sm:$0xff]
    %v3290 = vld [vmem:[%s33] sm:$0x1]
    %v3291 = vld [vmem:[%s35] sm:$0x1]
    %v3292 = vsel %vm208, %v3222, 0.0
    %3293 = vadd.xlane.f32.xlu0 %v3292
    %v3294 = vpop.xlane.xlu0 %3293
    %v3295 = vsel %vm208, %v3223, 0.0
    %3296 = vadd.xlane.f32.xlu0 %v3295
    %v3297 = vpop.xlane.xlu0 %3296
    %v3298 = vsel %vm208, %v3224, 0.0
    %3299 = vadd.xlane.f32.xlu0 %v3298
    %v3300 = vpop.xlane.xlu0 %3299
    %v3301 = vsel %vm208, %v3225, 0.0
    %3302 = vadd.xlane.f32.xlu0 %v3301
    %v3303 = vpop.xlane.xlu0 %3302
    %v3304 = vrcp.pop 32.0
    %v3305 = vmul.f32 %v3294, %v3304
    %v3306 = vmul.f32 %v3297, %v3304
    %v3307 = vmul.f32 %v3300, %v3304
    %v3308 = vmul.f32 %v3303, %v3304
    %v3309 = vsub.f32 %v3222, %v3305
    %v3310 = vsub.f32 %v3223, %v3306
    %v3311 = vsub.f32 %v3224, %v3307
    %v3312 = vsub.f32 %v3225, %v3308
    %v3313 = vmul.f32 %v3309, %v3309
    %v3314 = vmul.f32 %v3310, %v3310
    %v3315 = vmul.f32 %v3311, %v3311
    %v3316 = vmul.f32 %v3312, %v3312
    %v3317 = vsel %vm208, %v3313, 0.0
    %3318 = vadd.xlane.f32.xlu0 %v3317
    %v3319 = vpop.xlane.xlu0 %3318
    %v3320 = vsel %vm208, %v3314, 0.0
    %3321 = vadd.xlane.f32.xlu0 %v3320
    %v3322 = vpop.xlane.xlu0 %3321
    %v3323 = vsel %vm208, %v3315, 0.0
    %3324 = vadd.xlane.f32.xlu0 %v3323
    %v3325 = vpop.xlane.xlu0 %3324
    %v3326 = vsel %vm208, %v3316, 0.0
    %3327 = vadd.xlane.f32.xlu0 %v3326
    %v3328 = vpop.xlane.xlu0 %3327
    %v3329 = vmul.f32 %v3319, %v3304
    %v3330 = vmul.f32 %v3322, %v3304
    %v3331 = vmul.f32 %v3325, %v3304
    %v3332 = vmul.f32 %v3328, %v3304
    %v3333 = vadd.f32 %v3329, 1e-05
    %v3334 = vadd.f32 %v3330, 1e-05
    %v3335 = vadd.f32 %v3331, 1e-05
    %v3336 = vadd.f32 %v3332, 1e-05
    %v3337 = vrsqrt.pop %v3333
    %v3338 = vrsqrt.pop %v3334
    %v3339 = vrsqrt.pop %v3335
    %v3340 = vrsqrt.pop %v3336
    %v3341 = vmul.f32 %v3309, %v3337
    %v3342 = vmul.f32 %v3310, %v3338
    %v3343 = vmul.f32 %v3311, %v3339
    %v3344 = vmul.f32 %v3312, %v3340
    %v3346 = vlaneseq
    %v3347 = vshrl.u32 %v3346, 7
    %v3348 = vsub.s32 0, %v3347
    %v3349 = vrot.slane %v3290, %v3348
    %v3351 = vmul.f32 %v3341, %v3349
    %v3352 = vmul.f32 %v3342, %v3349
    %v3353 = vmul.f32 %v3343, %v3349
    %v3354 = vmul.f32 %v3344, %v3349
    %v3356 = vlaneseq
    %v3357 = vshrl.u32 %v3356, 7
    %v3358 = vsub.s32 0, %v3357
    %v3359 = vrot.slane %v3291, %v3358
    %v3361 = vadd.f32 %v3351, %v3359
    %v3362 = vadd.f32 %v3352, %v3359
    %v3363 = vadd.f32 %v3353, %v3359
    %v3364 = vadd.f32 %v3354, %v3359
    %v3365 = vpack.c.bf16 %v3362, %v3361
    %v3366 = vpack.c.bf16 %v3364, %v3363
    %v3367 = vld [vmem:[%s37] sm:$0xf]
    %v3368 = vld [vmem:[%s37 + $0x4] sm:$0xf]
    %v3369 = vld [vmem:[%s37 + $0x8] sm:$0xf]
    %v3370 = vld [vmem:[%s37 + $0xc] sm:$0xf]
    %v3371 = vld [vmem:[%s39] sm:$0x1]
    %v3373 = vlaneseq
    %v3374 = vshrl.u32 %v3373, 7
    %v3375 = vsub.s32 0, %v3374
    %v3376 = vrot.slane %v3371, %v3375
    %v3382 = vunpack.c.l.b16 %v3367
    %v3383 = vunpack.c.l.b16 %v3368
    %v3384 = vunpack.c.l.b16 %v3369
    %v3385 = vunpack.c.l.b16 %v3370
    %v3386 = vpack.c.b16 %v3383, %v3382
    %v3387 = vpack.c.b16 %v3385, %v3384
    %v3391 = vsel %vm208, %v3365, 0
    %v3394 = vsel %vm208, %v3366, 0
    %3396 = vmatprep.subr.bf16.mxu0 0
    %3397 = vmatpush1.bf16.msra.mxu0 %v3386
    %3398 = vmatprep.subr.bf16.mxu0 0
    %3399 = vmatpush1.bf16.msra.mxu0 %v3387
    %3400 = vmatprep.subr.bf16.mxu0 0
    %3401 = vmatpush1.bf16.msra.mxu0 0
    %3402 = vmatprep.subr.bf16.mxu0 0
    %3403 = vmatpush1.bf16.msra.mxu0 0
    %3404 = vmatprep.subr.bf16.mxu0 0
    %3405 = vmatpush1.bf16.msra.mxu0 0
    %3406 = vmatprep.subr.bf16.mxu0 0
    %3407 = vmatpush1.bf16.msra.mxu0 0
    %3408 = vmatprep.subr.bf16.mxu0 0
    %3409 = vmatpush1.bf16.msra.mxu0 0
    %3410 = vmatprep.subr.bf16.mxu0 0
    %3411 = vmatpush1.bf16.msra.mxu0 0
    %3412 = vmatprep.subr.bf16.mxu0 0
    %3413 = vmatpush1.bf16.msra.mxu0 0
    %3414 = vmatprep.subr.bf16.mxu0 0
    %3415 = vmatpush1.bf16.msra.mxu0 0
    %3416 = vmatprep.subr.bf16.mxu0 0
    %3417 = vmatpush1.bf16.msra.mxu0 0
    %3418 = vmatprep.subr.bf16.mxu0 0
    %3419 = vmatpush1.bf16.msra.mxu0 0
    %3420 = vmatprep.subr.bf16.mxu0 0
    %3421 = vmatpush1.bf16.msra.mxu0 0
    %3422 = vmatprep.subr.bf16.mxu0 0
    %3423 = vmatpush1.bf16.msra.mxu0 0
    %3424 = vmatprep.subr.bf16.mxu0 0
    %3425 = vmatpush1.bf16.msra.mxu0 0
    %3426 = vmatprep.subr.bf16.mxu0 0
    %3427 = vmatpush1.bf16.msra.mxu0 0
    %3428 = vmatprep.mubr.bf16.mxu0 0
    %3429 = vmatmul.mubr.bf16.gmra.mrb[0].mxu0 %v3391
    %v3430 = vpop.f32.mrb[0].mxu0
    %v3431 = vadd.f32 %v3376, %v3430
    %v3432 = vpop.f32.mrb[0].mxu0
    %v3433 = vpop.f32.mrb[0].mxu0
    %v3434 = vadd.f32 %v3376, %v3433
    %v3435 = vpop.f32.mrb[0].mxu0
    %3436 = vmatprep.mubr.bf16.mxu0 0
    %3437 = vmatmul.mubr.bf16.gmra.mrb[0].mxu0 %v3394
    %v3438 = vpop.f32.mrb[0].mxu0
    %v3439 = vadd.f32 %v3376, %v3438
    %v3440 = vpop.f32.mrb[0].mxu0
    %v3441 = vpop.f32.mrb[0].mxu0
    %v3442 = vadd.f32 %v3376, %v3441
    %v3443 = vpop.f32.mrb[0].mxu0
    %3444 = vdwg.mxu0
    %v3445 = vld [vmem:[%s41] sm:$0xf]
    %v3446 = vld [vmem:[%s41 + $0x4] sm:$0xf]
    %v3447 = vld [vmem:[%s41 + $0x8] sm:$0xf]
    %v3448 = vld [vmem:[%s41 + $0xc] sm:$0xf]
    %v3449 = vld [vmem:[%s43] sm:$0x1]
    %v3451 = vlaneseq
    %v3452 = vshrl.u32 %v3451, 7
    %v3453 = vsub.s32 0, %v3452
    %v3454 = vrot.slane %v3449, %v3453
    %v3460 = vunpack.c.l.b16 %v3445
    %v3461 = vunpack.c.l.b16 %v3446
    %v3462 = vunpack.c.l.b16 %v3447
    %v3463 = vunpack.c.l.b16 %v3448
    %v3464 = vpack.c.b16 %v3461, %v3460
    %v3465 = vpack.c.b16 %v3463, %v3462
    %3468 = vmatprep.subr.bf16.mxu0 0
    %3469 = vmatpush1.bf16.msra.mxu0 %v3464
    %3470 = vmatprep.subr.bf16.mxu0 0
    %3471 = vmatpush1.bf16.msra.mxu0 %v3465
    %3472 = vmatprep.subr.bf16.mxu0 0
    %3473 = vmatpush1.bf16.msra.mxu0 0
    %3474 = vmatprep.subr.bf16.mxu0 0
    %3475 = vmatpush1.bf16.msra.mxu0 0
    %3476 = vmatprep.subr.bf16.mxu0 0
    %3477 = vmatpush1.bf16.msra.mxu0 0
    %3478 = vmatprep.subr.bf16.mxu0 0
    %3479 = vmatpush1.bf16.msra.mxu0 0
    %3480 = vmatprep.subr.bf16.mxu0 0
    %3481 = vmatpush1.bf16.msra.mxu0 0
    %3482 = vmatprep.subr.bf16.mxu0 0
    %3483 = vmatpush1.bf16.msra.mxu0 0
    %3484 = vmatprep.subr.bf16.mxu0 0
    %3485 = vmatpush1.bf16.msra.mxu0 0
    %3486 = vmatprep.subr.bf16.mxu0 0
    %3487 = vmatpush1.bf16.msra.mxu0 0
    %3488 = vmatprep.subr.bf16.mxu0 0
    %3489 = vmatpush1.bf16.msra.mxu0 0
    %3490 = vmatprep.subr.bf16.mxu0 0
    %3491 = vmatpush1.bf16.msra.mxu0 0
    %3492 = vmatprep.subr.bf16.mxu0 0
    %3493 = vmatpush1.bf16.msra.mxu0 0
    %3494 = vmatprep.subr.bf16.mxu0 0
    %3495 = vmatpush1.bf16.msra.mxu0 0
    %3496 = vmatprep.subr.bf16.mxu0 0
    %3497 = vmatpush1.bf16.msra.mxu0 0
    %3498 = vmatprep.subr.bf16.mxu0 0
    %3499 = vmatpush1.bf16.msra.mxu0 0
    %3500 = vmatprep.mubr.bf16.mxu0 0
    %3501 = vmatmul.mubr.bf16.gmra.mrb[0].mxu0 %v3391
    %v3502 = vpop.f32.mrb[0].mxu0
    %v3503 = vadd.f32 %v3454, %v3502
    %v3504 = vpop.f32.mrb[0].mxu0
    %v3505 = vpop.f32.mrb[0].mxu0
    %v3506 = vadd.f32 %v3454, %v3505
    %v3507 = vpop.f32.mrb[0].mxu0
    %3508 = vmatprep.mubr.bf16.mxu0 0
    %3509 = vmatmul.mubr.bf16.gmra.mrb[0].mxu0 %v3394
    %v3510 = vpop.f32.mrb[0].mxu0
    %v3511 = vadd.f32 %v3454, %v3510
    %v3512 = vpop.f32.mrb[0].mxu0
    %v3513 = vpop.f32.mrb[0].mxu0
    %v3514 = vadd.f32 %v3454, %v3513
    %v3515 = vpop.f32.mrb[0].mxu0
    %3516 = vdwg.mxu0
    %v3517 = vld [vmem:[%s45] sm:$0xf]
    %v3518 = vld [vmem:[%s45 + $0x4] sm:$0xf]
    %v3519 = vld [vmem:[%s45 + $0x8] sm:$0xf]
    %v3520 = vld [vmem:[%s45 + $0xc] sm:$0xf]
    %v3521 = vld [vmem:[%s47] sm:$0x1]
    %v3523 = vlaneseq
    %v3524 = vshrl.u32 %v3523, 7
    %v3525 = vsub.s32 0, %v3524
    %v3526 = vrot.slane %v3521, %v3525
    %v3532 = vunpack.c.l.b16 %v3517
    %v3533 = vunpack.c.l.b16 %v3518
    %v3534 = vunpack.c.l.b16 %v3519
    %v3535 = vunpack.c.l.b16 %v3520
    %v3536 = vpack.c.b16 %v3533, %v3532
    %v3537 = vpack.c.b16 %v3535, %v3534
    %3540 = vmatprep.subr.bf16.mxu0 0
    %3541 = vmatpush1.bf16.msra.mxu0 %v3536
    %3542 = vmatprep.subr.bf16.mxu0 0
    %3543 = vmatpush1.bf16.msra.mxu0 %v3537
    %3544 = vmatprep.subr.bf16.mxu0 0
    %3545 = vmatpush1.bf16.msra.mxu0 0
    %3546 = vmatprep.subr.bf16.mxu0 0
    %3547 = vmatpush1.bf16.msra.mxu0 0
    %3548 = vmatprep.subr.bf16.mxu0 0
    %3549 = vmatpush1.bf16.msra.mxu0 0
    %3550 = vmatprep.subr.bf16.mxu0 0
    %3551 = vmatpush1.bf16.msra.mxu0 0
    %3552 = vmatprep.subr.bf16.mxu0 0
    %3553 = vmatpush1.bf16.msra.mxu0 0
    %3554 = vmatprep.subr.bf16.mxu0 0
    %3555 = vmatpush1.bf16.msra.mxu0 0
    %3556 = vmatprep.subr.bf16.mxu0 0
    %3557 = vmatpush1.bf16.msra.mxu0 0
    %3558 = vmatprep.subr.bf16.mxu0 0
    %3559 = vmatpush1.bf16.msra.mxu0 0
    %3560 = vmatprep.subr.bf16.mxu0 0
    %3561 = vmatpush1.bf16.msra.mxu0 0
    %3562 = vmatprep.subr.bf16.mxu0 0
    %3563 = vmatpush1.bf16.msra.mxu0 0
    %3564 = vmatprep.subr.bf16.mxu0 0
    %3565 = vmatpush1.bf16.msra.mxu0 0
    %3566 = vmatprep.subr.bf16.mxu0 0
    %3567 = vmatpush1.bf16.msra.mxu0 0
    %3568 = vmatprep.subr.bf16.mxu0 0
    %3569 = vmatpush1.bf16.msra.mxu0 0
    %3570 = vmatprep.subr.bf16.mxu0 0
    %3571 = vmatpush1.bf16.msra.mxu0 0
    %3572 = vmatprep.mubr.bf16.mxu0 0
    %3573 = vmatmul.mubr.bf16.gmra.mrb[0].mxu0 %v3391
    %v3574 = vpop.f32.mrb[0].mxu0
    %v3575 = vadd.f32 %v3526, %v3574
    %v3576 = vpop.f32.mrb[0].mxu0
    %v3577 = vpop.f32.mrb[0].mxu0
    %v3578 = vadd.f32 %v3526, %v3577
    %v3579 = vpop.f32.mrb[0].mxu0
    %3580 = vmatprep.mubr.bf16.mxu0 0
    %3581 = vmatmul.mubr.bf16.gmra.mrb[0].mxu0 %v3394
    %v3582 = vpop.f32.mrb[0].mxu0
    %v3583 = vadd.f32 %v3526, %v3582
    %v3584 = vpop.f32.mrb[0].mxu0
    %v3585 = vpop.f32.mrb[0].mxu0
    %v3586 = vadd.f32 %v3526, %v3585
    %v3587 = vpop.f32.mrb[0].mxu0
    %3588 = vdwg.mxu0
    %v3589 = vmul.f32 %v3431, %v3226
    %v3590 = vmul.f32 %v3434, %v3227
    %v3591 = vmul.f32 %v3439, %v3228
    %v3592 = vmul.f32 %v3442, %v3229
    %v3593 = vmul.f32 %v3431, %v3230
    %v3594 = vmul.f32 %v3434, %v3231
    %v3595 = vmul.f32 %v3439, %v3232
    %v3596 = vmul.f32 %v3442, %v3233
    %v3597 = vmul.f32 %v3431, %v3234
    %v3598 = vmul.f32 %v3434, %v3235
    %v3599 = vmul.f32 %v3439, %v3236
    %v3600 = vmul.f32 %v3442, %v3237
    %v3601 = vmul.f32 %v3431, %v3238
    %v3602 = vmul.f32 %v3434, %v3239
    %v3603 = vmul.f32 %v3439, %v3240
    %v3604 = vmul.f32 %v3442, %v3241
    %v3605 = vmul.f32 %v3431, %v3242
    %v3606 = vmul.f32 %v3434, %v3243
    %v3607 = vmul.f32 %v3439, %v3244
    %v3608 = vmul.f32 %v3442, %v3245
    %v3609 = vmul.f32 %v3431, %v3246
    %v3610 = vmul.f32 %v3434, %v3247
    %v3611 = vmul.f32 %v3439, %v3248
    %v3612 = vmul.f32 %v3442, %v3249
    %v3613 = vmul.f32 %v3431, %v3250
    %v3614 = vmul.f32 %v3434, %v3251
    %v3615 = vmul.f32 %v3439, %v3252
    %v3616 = vmul.f32 %v3442, %v3253
    %v3617 = vmul.f32 %v3431, %v3254
    %v3618 = vmul.f32 %v3434, %v3255
    %v3619 = vmul.f32 %v3439, %v3256
    %v3620 = vmul.f32 %v3442, %v3257
    %v3621 = vpack.c.bf16 %v3590, %v3589
    %v3622 = vpack.c.bf16 %v3592, %v3591
    %v3623 = vpack.c.bf16 %v3594, %v3593
    %v3624 = vpack.c.bf16 %v3596, %v3595
    %v3625 = vpack.c.bf16 %v3598, %v3597
    %v3626 = vpack.c.bf16 %v3600, %v3599
    %v3627 = vpack.c.bf16 %v3602, %v3601
    %v3628 = vpack.c.bf16 %v3604, %v3603
    %v3629 = vpack.c.bf16 %v3606, %v3605
    %v3630 = vpack.c.bf16 %v3608, %v3607
    %v3631 = vpack.c.bf16 %v3610, %v3609
    %v3632 = vpack.c.bf16 %v3612, %v3611
    %v3633 = vpack.c.bf16 %v3614, %v3613
    %v3634 = vpack.c.bf16 %v3616, %v3615
    %v3635 = vpack.c.bf16 %v3618, %v3617
    %v3636 = vpack.c.bf16 %v3620, %v3619
    %v3637 = vpack.c.bf16 %v3506, %v3503
    %v3638 = vpack.c.bf16 %v3514, %v3511
    %v3640 = vsel %vm208, %v3621, 0
    %v3643 = vsel %vm208, %v3622, 0
    %v3646 = vsel %vm208, %v3623, 0
    %v3649 = vsel %vm208, %v3624, 0
    %v3652 = vsel %vm208, %v3625, 0
    %v3655 = vsel %vm208, %v3626, 0
    %v3658 = vsel %vm208, %v3627, 0
    %v3661 = vsel %vm208, %v3628, 0
    %v3664 = vsel %vm208, %v3629, 0
    %v3667 = vsel %vm208, %v3630, 0
    %v3670 = vsel %vm208, %v3631, 0
    %v3673 = vsel %vm208, %v3632, 0
    %v3676 = vsel %vm208, %v3633, 0
    %v3679 = vsel %vm208, %v3634, 0
    %v3682 = vsel %vm208, %v3635, 0
    %v3685 = vsel %vm208, %v3636, 0
    %v3688 = vsel %vm208, %v3637, 0
    %v3691 = vsel %vm208, %v3638, 0
    %3693 = vmatprep.subr.bf16.mxu0 0
    %3694 = vmatpush1.bf16.xpose.msra.mxu0 %v3688
    %3695 = vmatprep.subr.bf16.mxu0 0
    %3696 = vmatpush1.bf16.xpose.msra.mxu0 %v3691
    %3697 = vmatprep.subr.bf16.mxu0 0
    %3698 = vmatpush1.bf16.xpose.msra.mxu0 0
    %3699 = vmatprep.subr.bf16.mxu0 0
    %3700 = vmatpush1.bf16.xpose.msra.mxu0 0
    %3701 = vmatprep.subr.bf16.mxu0 0
    %3702 = vmatpush1.bf16.xpose.msra.mxu0 0
    %3703 = vmatprep.subr.bf16.mxu0 0
    %3704 = vmatpush1.bf16.xpose.msra.mxu0 0
    %3705 = vmatprep.subr.bf16.mxu0 0
    %3706 = vmatpush1.bf16.xpose.msra.mxu0 0
    %3707 = vmatprep.subr.bf16.mxu0 0
    %3708 = vmatpush1.bf16.xpose.msra.mxu0 0
    %3709 = vmatprep.subr.bf16.mxu0 0
    %3710 = vmatpush1.bf16.xpose.msra.mxu0 0
    %3711 = vmatprep.subr.bf16.mxu0 0
    %3712 = vmatpush1.bf16.xpose.msra.mxu0 0
    %3713 = vmatprep.subr.bf16.mxu0 0
    %3714 = vmatpush1.bf16.xpose.msra.mxu0 0
    %3715 = vmatprep.subr.bf16.mxu0 0
    %3716 = vmatpush1.bf16.xpose.msra.mxu0 0
    %3717 = vmatprep.subr.bf16.mxu0 0
    %3718 = vmatpush1.bf16.xpose.msra.mxu0 0
    %3719 = vmatprep.subr.bf16.mxu0 0
    %3720 = vmatpush1.bf16.xpose.msra.mxu0 0
    %3721 = vmatprep.subr.bf16.mxu0 0
    %3722 = vmatpush1.bf16.xpose.msra.mxu0 0
    %3723 = vmatprep.subr.bf16.mxu0 0
    %3724 = vmatpush1.bf16.xpose.msra.mxu0 0
    %3725 = vmatprep.mubr.bf16.mxu0 0
    %3726 = vmatmul.mubr.bf16.gmra.mrb[0].mxu0 %v3640
    %v3727 = vpop.f32.mrb[0].mxu0
    %v3728 = vadd.f32 0.0, %v3727
    %v3729 = vpop.f32.mrb[0].mxu0
    %v3730 = vpop.f32.mrb[0].mxu0
    %v3731 = vadd.f32 0.0, %v3730
    %v3732 = vpop.f32.mrb[0].mxu0
    %3733 = vmatprep.mubr.bf16.mxu0 0
    %3734 = vmatmul.mubr.bf16.gmra.mrb[0].mxu0 %v3643
    %v3735 = vpop.f32.mrb[0].mxu0
    %v3736 = vadd.f32 0.0, %v3735
    %v3737 = vpop.f32.mrb[0].mxu0
    %v3738 = vpop.f32.mrb[0].mxu0
    %v3739 = vadd.f32 0.0, %v3738
    %v3740 = vpop.f32.mrb[0].mxu0
    %3741 = vmatprep.mubr.bf16.mxu0 0
    %3742 = vmatmul.mubr.bf16.gmra.mrb[0].mxu0 %v3646
    %v3743 = vpop.f32.mrb[0].mxu0
    %v3744 = vadd.f32 0.0, %v3743
    %v3745 = vpop.f32.mrb[0].mxu0
    %v3746 = vpop.f32.mrb[0].mxu0
    %v3747 = vadd.f32 0.0, %v3746
    %v3748 = vpop.f32.mrb[0].mxu0
    %3749 = vmatprep.mubr.bf16.mxu0 0
    %3750 = vmatmul.mubr.bf16.gmra.mrb[0].mxu0 %v3649
    %v3751 = vpop.f32.mrb[0].mxu0
    %v3752 = vadd.f32 0.0, %v3751
    %v3753 = vpop.f32.mrb[0].mxu0
    %v3754 = vpop.f32.mrb[0].mxu0
    %v3755 = vadd.f32 0.0, %v3754
    %v3756 = vpop.f32.mrb[0].mxu0
    %3757 = vmatprep.mubr.bf16.mxu0 0
    %3758 = vmatmul.mubr.bf16.gmra.mrb[0].mxu0 %v3652
    %v3759 = vpop.f32.mrb[0].mxu0
    %v3760 = vadd.f32 0.0, %v3759
    %v3761 = vpop.f32.mrb[0].mxu0
    %v3762 = vpop.f32.mrb[0].mxu0
    %v3763 = vadd.f32 0.0, %v3762
    %v3764 = vpop.f32.mrb[0].mxu0
    %3765 = vmatprep.mubr.bf16.mxu0 0
    %3766 = vmatmul.mubr.bf16.gmra.mrb[0].mxu0 %v3655
    %v3767 = vpop.f32.mrb[0].mxu0
    %v3768 = vadd.f32 0.0, %v3767
    %v3769 = vpop.f32.mrb[0].mxu0
    %v3770 = vpop.f32.mrb[0].mxu0
    %v3771 = vadd.f32 0.0, %v3770
    %v3772 = vpop.f32.mrb[0].mxu0
    %3773 = vmatprep.mubr.bf16.mxu0 0
    %3774 = vmatmul.mubr.bf16.gmra.mrb[0].mxu0 %v3658
    %v3775 = vpop.f32.mrb[0].mxu0
    %v3776 = vadd.f32 0.0, %v3775
    %v3777 = vpop.f32.mrb[0].mxu0
    %v3778 = vpop.f32.mrb[0].mxu0
    %v3779 = vadd.f32 0.0, %v3778
    %v3780 = vpop.f32.mrb[0].mxu0
    %3781 = vmatprep.mubr.bf16.mxu0 0
    %3782 = vmatmul.mubr.bf16.gmra.mrb[0].mxu0 %v3661
    %v3783 = vpop.f32.mrb[0].mxu0
    %v3784 = vadd.f32 0.0, %v3783
    %v3785 = vpop.f32.mrb[0].mxu0
    %v3786 = vpop.f32.mrb[0].mxu0
    %v3787 = vadd.f32 0.0, %v3786
    %v3788 = vpop.f32.mrb[0].mxu0
    %3789 = vmatprep.mubr.bf16.mxu0 0
    %3790 = vmatmul.mubr.bf16.gmra.mrb[0].mxu0 %v3664
    %v3791 = vpop.f32.mrb[0].mxu0
    %v3792 = vadd.f32 0.0, %v3791
    %v3793 = vpop.f32.mrb[0].mxu0
    %v3794 = vpop.f32.mrb[0].mxu0
    %v3795 = vadd.f32 0.0, %v3794
    %v3796 = vpop.f32.mrb[0].mxu0
    %3797 = vmatprep.mubr.bf16.mxu0 0
    %3798 = vmatmul.mubr.bf16.gmra.mrb[0].mxu0 %v3667
    %v3799 = vpop.f32.mrb[0].mxu0
    %v3800 = vadd.f32 0.0, %v3799
    %v3801 = vpop.f32.mrb[0].mxu0
    %v3802 = vpop.f32.mrb[0].mxu0
    %v3803 = vadd.f32 0.0, %v3802
    %v3804 = vpop.f32.mrb[0].mxu0
    %3805 = vmatprep.mubr.bf16.mxu0 0
    %3806 = vmatmul.mubr.bf16.gmra.mrb[0].mxu0 %v3670
    %v3807 = vpop.f32.mrb[0].mxu0
    %v3808 = vadd.f32 0.0, %v3807
    %v3809 = vpop.f32.mrb[0].mxu0
    %v3810 = vpop.f32.mrb[0].mxu0
    %v3811 = vadd.f32 0.0, %v3810
    %v3812 = vpop.f32.mrb[0].mxu0
    %3813 = vmatprep.mubr.bf16.mxu0 0
    %3814 = vmatmul.mubr.bf16.gmra.mrb[0].mxu0 %v3673
    %v3815 = vpop.f32.mrb[0].mxu0
    %v3816 = vadd.f32 0.0, %v3815
    %v3817 = vpop.f32.mrb[0].mxu0
    %v3818 = vpop.f32.mrb[0].mxu0
    %v3819 = vadd.f32 0.0, %v3818
    %v3820 = vpop.f32.mrb[0].mxu0
    %3821 = vmatprep.mubr.bf16.mxu0 0
    %3822 = vmatmul.mubr.bf16.gmra.mrb[0].mxu0 %v3676
    %v3823 = vpop.f32.mrb[0].mxu0
    %v3824 = vadd.f32 0.0, %v3823
    %v3825 = vpop.f32.mrb[0].mxu0
    %v3826 = vpop.f32.mrb[0].mxu0
    %v3827 = vadd.f32 0.0, %v3826
    %v3828 = vpop.f32.mrb[0].mxu0
    %3829 = vmatprep.mubr.bf16.mxu0 0
    %3830 = vmatmul.mubr.bf16.gmra.mrb[0].mxu0 %v3679
    %v3831 = vpop.f32.mrb[0].mxu0
    %v3832 = vadd.f32 0.0, %v3831
    %v3833 = vpop.f32.mrb[0].mxu0
    %v3834 = vpop.f32.mrb[0].mxu0
    %v3835 = vadd.f32 0.0, %v3834
    %v3836 = vpop.f32.mrb[0].mxu0
    %3837 = vmatprep.mubr.bf16.mxu0 0
    %3838 = vmatmul.mubr.bf16.gmra.mrb[0].mxu0 %v3682
    %v3839 = vpop.f32.mrb[0].mxu0
    %v3840 = vadd.f32 0.0, %v3839
    %v3841 = vpop.f32.mrb[0].mxu0
    %v3842 = vpop.f32.mrb[0].mxu0
    %v3843 = vadd.f32 0.0, %v3842
    %v3844 = vpop.f32.mrb[0].mxu0
    %3845 = vmatprep.mubr.bf16.mxu0 0
    %3846 = vmatmul.mubr.bf16.gmra.mrb[0].mxu0 %v3685
    %v3847 = vpop.f32.mrb[0].mxu0
    %v3848 = vadd.f32 0.0, %v3847
    %v3849 = vpop.f32.mrb[0].mxu0
    %v3850 = vpop.f32.mrb[0].mxu0
    %v3851 = vadd.f32 0.0, %v3850
    %v3852 = vpop.f32.mrb[0].mxu0
    %3853 = vdwg.mxu0
    %v3854 = vmul.f32 %v3728, 0.5
    %v3855 = vmul.f32 %v3731, 0.5
    %v3856 = vmul.f32 %v3736, 0.5
    %v3857 = vmul.f32 %v3739, 0.5
    %v3858 = vmul.f32 %v3744, 0.5
    %v3859 = vmul.f32 %v3747, 0.5
    %v3860 = vmul.f32 %v3752, 0.5
    %v3861 = vmul.f32 %v3755, 0.5
    %v3862 = vmul.f32 %v3760, 0.5
    %v3863 = vmul.f32 %v3763, 0.5
    %v3864 = vmul.f32 %v3768, 0.5
    %v3865 = vmul.f32 %v3771, 0.5
    %v3866 = vmul.f32 %v3776, 0.5
    %v3867 = vmul.f32 %v3779, 0.5
    %v3868 = vmul.f32 %v3784, 0.5
    %v3869 = vmul.f32 %v3787, 0.5
    %v3870 = vmul.f32 %v3792, 0.5
    %v3871 = vmul.f32 %v3795, 0.5
    %v3872 = vmul.f32 %v3800, 0.5
    %v3873 = vmul.f32 %v3803, 0.5
    %v3874 = vmul.f32 %v3808, 0.5
    %v3875 = vmul.f32 %v3811, 0.5
    %v3876 = vmul.f32 %v3816, 0.5
    %v3877 = vmul.f32 %v3819, 0.5
    %v3878 = vmul.f32 %v3824, 0.5
    %v3879 = vmul.f32 %v3827, 0.5
    %v3880 = vmul.f32 %v3832, 0.5
    %v3881 = vmul.f32 %v3835, 0.5
    %v3882 = vmul.f32 %v3840, 0.5
    %v3883 = vmul.f32 %v3843, 0.5
    %v3884 = vmul.f32 %v3848, 0.5
    %v3885 = vmul.f32 %v3851, 0.5
    %v3886 = vadd.f32 %v3854, %v3258
    %v3887 = vadd.f32 %v3855, %v3259
    %v3888 = vadd.f32 %v3856, %v3260
    %v3889 = vadd.f32 %v3857, %v3261
    %v3890 = vadd.f32 %v3858, %v3262
    %v3891 = vadd.f32 %v3859, %v3263
    %v3892 = vadd.f32 %v3860, %v3264
    %v3893 = vadd.f32 %v3861, %v3265
    %v3894 = vadd.f32 %v3862, %v3266
    %v3895 = vadd.f32 %v3863, %v3267
    %v3896 = vadd.f32 %v3864, %v3268
    %v3897 = vadd.f32 %v3865, %v3269
    %v3898 = vadd.f32 %v3866, %v3270
    %v3899 = vadd.f32 %v3867, %v3271
    %v3900 = vadd.f32 %v3868, %v3272
    %v3901 = vadd.f32 %v3869, %v3273
    %v3902 = vadd.f32 %v3870, %v3274
    %v3903 = vadd.f32 %v3871, %v3275
    %v3904 = vadd.f32 %v3872, %v3276
    %v3905 = vadd.f32 %v3873, %v3277
    %v3906 = vadd.f32 %v3874, %v3278
    %v3907 = vadd.f32 %v3875, %v3279
    %v3908 = vadd.f32 %v3876, %v3280
    %v3909 = vadd.f32 %v3877, %v3281
    %v3910 = vadd.f32 %v3878, %v3282
    %v3911 = vadd.f32 %v3879, %v3283
    %v3912 = vadd.f32 %v3880, %v3284
    %v3913 = vadd.f32 %v3881, %v3285
    %v3914 = vadd.f32 %v3882, %v3286
    %v3915 = vadd.f32 %v3883, %v3287
    %v3916 = vadd.f32 %v3884, %v3288
    %v3917 = vadd.f32 %v3885, %v3289
    %v3918 = vsel %vm208, %v3886, -inf
    %3919 = vmax.xlane.f32.xlu0 %v3918
    %v3920 = vpop.xlane.xlu0 %3919
    %v3921 = vsel %vm208, %v3887, -inf
    %3922 = vmax.xlane.f32.xlu0 %v3921
    %v3923 = vpop.xlane.xlu0 %3922
    %v3924 = vsel %vm208, %v3888, -inf
    %3925 = vmax.xlane.f32.xlu0 %v3924
    %v3926 = vpop.xlane.xlu0 %3925
    %v3927 = vsel %vm208, %v3889, -inf
    %3928 = vmax.xlane.f32.xlu0 %v3927
    %v3929 = vpop.xlane.xlu0 %3928
    %v3930 = vsel %vm208, %v3890, -inf
    %3931 = vmax.xlane.f32.xlu0 %v3930
    %v3932 = vpop.xlane.xlu0 %3931
    %v3933 = vsel %vm208, %v3891, -inf
    %3934 = vmax.xlane.f32.xlu0 %v3933
    %v3935 = vpop.xlane.xlu0 %3934
    %v3936 = vsel %vm208, %v3892, -inf
    %3937 = vmax.xlane.f32.xlu0 %v3936
    %v3938 = vpop.xlane.xlu0 %3937
    %v3939 = vsel %vm208, %v3893, -inf
    %3940 = vmax.xlane.f32.xlu0 %v3939
    %v3941 = vpop.xlane.xlu0 %3940
    %v3942 = vsel %vm208, %v3894, -inf
    %3943 = vmax.xlane.f32.xlu0 %v3942
    %v3944 = vpop.xlane.xlu0 %3943
    %v3945 = vsel %vm208, %v3895, -inf
    %3946 = vmax.xlane.f32.xlu0 %v3945
    %v3947 = vpop.xlane.xlu0 %3946
    %v3948 = vsel %vm208, %v3896, -inf
    %3949 = vmax.xlane.f32.xlu0 %v3948
    %v3950 = vpop.xlane.xlu0 %3949
    %v3951 = vsel %vm208, %v3897, -inf
    %3952 = vmax.xlane.f32.xlu0 %v3951
    %v3953 = vpop.xlane.xlu0 %3952
    %v3954 = vsel %vm208, %v3898, -inf
    %3955 = vmax.xlane.f32.xlu0 %v3954
    %v3956 = vpop.xlane.xlu0 %3955
    %v3957 = vsel %vm208, %v3899, -inf
    %3958 = vmax.xlane.f32.xlu0 %v3957
    %v3959 = vpop.xlane.xlu0 %3958
    %v3960 = vsel %vm208, %v3900, -inf
    %3961 = vmax.xlane.f32.xlu0 %v3960
    %v3962 = vpop.xlane.xlu0 %3961
    %v3963 = vsel %vm208, %v3901, -inf
    %3964 = vmax.xlane.f32.xlu0 %v3963
    %v3965 = vpop.xlane.xlu0 %3964
    %v3966 = vsel %vm208, %v3902, -inf
    %3967 = vmax.xlane.f32.xlu0 %v3966
    %v3968 = vpop.xlane.xlu0 %3967
    %v3969 = vsel %vm208, %v3903, -inf
    %3970 = vmax.xlane.f32.xlu0 %v3969
    %v3971 = vpop.xlane.xlu0 %3970
    %v3972 = vsel %vm208, %v3904, -inf
    %3973 = vmax.xlane.f32.xlu0 %v3972
    %v3974 = vpop.xlane.xlu0 %3973
    %v3975 = vsel %vm208, %v3905, -inf
    %3976 = vmax.xlane.f32.xlu0 %v3975
    %v3977 = vpop.xlane.xlu0 %3976
    %v3978 = vsel %vm208, %v3906, -inf
    %3979 = vmax.xlane.f32.xlu0 %v3978
    %v3980 = vpop.xlane.xlu0 %3979
    %v3981 = vsel %vm208, %v3907, -inf
    %3982 = vmax.xlane.f32.xlu0 %v3981
    %v3983 = vpop.xlane.xlu0 %3982
    %v3984 = vsel %vm208, %v3908, -inf
    %3985 = vmax.xlane.f32.xlu0 %v3984
    %v3986 = vpop.xlane.xlu0 %3985
    %v3987 = vsel %vm208, %v3909, -inf
    %3988 = vmax.xlane.f32.xlu0 %v3987
    %v3989 = vpop.xlane.xlu0 %3988
    %v3990 = vsel %vm208, %v3910, -inf
    %3991 = vmax.xlane.f32.xlu0 %v3990
    %v3992 = vpop.xlane.xlu0 %3991
    %v3993 = vsel %vm208, %v3911, -inf
    %3994 = vmax.xlane.f32.xlu0 %v3993
    %v3995 = vpop.xlane.xlu0 %3994
    %v3996 = vsel %vm208, %v3912, -inf
    %3997 = vmax.xlane.f32.xlu0 %v3996
    %v3998 = vpop.xlane.xlu0 %3997
    %v3999 = vsel %vm208, %v3913, -inf
    %4000 = vmax.xlane.f32.xlu0 %v3999
    %v4001 = vpop.xlane.xlu0 %4000
    %v4002 = vsel %vm208, %v3914, -inf
    %4003 = vmax.xlane.f32.xlu0 %v4002
    %v4004 = vpop.xlane.xlu0 %4003
    %v4005 = vsel %vm208, %v3915, -inf
    %4006 = vmax.xlane.f32.xlu0 %v4005
    %v4007 = vpop.xlane.xlu0 %4006
    %v4008 = vsel %vm208, %v3916, -inf
    %4009 = vmax.xlane.f32.xlu0 %v4008
    %v4010 = vpop.xlane.xlu0 %4009
    %v4011 = vsel %vm208, %v3917, -inf
    %4012 = vmax.xlane.f32.xlu0 %v4011
    %v4013 = vpop.xlane.xlu0 %4012
    %v4014 = vsub.f32 %v3886, %v3920
    %v4015 = vsub.f32 %v3887, %v3923
    %v4016 = vsub.f32 %v3888, %v3926
    %v4017 = vsub.f32 %v3889, %v3929
    %v4018 = vsub.f32 %v3890, %v3932
    %v4019 = vsub.f32 %v3891, %v3935
    %v4020 = vsub.f32 %v3892, %v3938
    %v4021 = vsub.f32 %v3893, %v3941
    %v4022 = vsub.f32 %v3894, %v3944
    %v4023 = vsub.f32 %v3895, %v3947
    %v4024 = vsub.f32 %v3896, %v3950
    %v4025 = vsub.f32 %v3897, %v3953
    %v4026 = vsub.f32 %v3898, %v3956
    %v4027 = vsub.f32 %v3899, %v3959
    %v4028 = vsub.f32 %v3900, %v3962
    %v4029 = vsub.f32 %v3901, %v3965
    %v4030 = vsub.f32 %v3902, %v3968
    %v4031 = vsub.f32 %v3903, %v3971
    %v4032 = vsub.f32 %v3904, %v3974
    %v4033 = vsub.f32 %v3905, %v3977
    %v4034 = vsub.f32 %v3906, %v3980
    %v4035 = vsub.f32 %v3907, %v3983
    %v4036 = vsub.f32 %v3908, %v3986
    %v4037 = vsub.f32 %v3909, %v3989
    %v4038 = vsub.f32 %v3910, %v3992
    %v4039 = vsub.f32 %v3911, %v3995
    %v4040 = vsub.f32 %v3912, %v3998
    %v4041 = vsub.f32 %v3913, %v4001
    %v4042 = vsub.f32 %v3914, %v4004
    %v4043 = vsub.f32 %v3915, %v4007
    %v4044 = vsub.f32 %v3916, %v4010
    %v4045 = vsub.f32 %v3917, %v4013
    %v4046 = vmul.f32 %v4014, 1.442695
    %v4047 = vpow.pop %v4046
    %v4048 = vmul.f32 %v4015, 1.442695
    %v4049 = vpow.pop %v4048
    %v4050 = vmul.f32 %v4016, 1.442695
    %v4051 = vpow.pop %v4050
    %v4052 = vmul.f32 %v4017, 1.442695
    %v4053 = vpow.pop %v4052
    %v4054 = vmul.f32 %v4018, 1.442695
    %v4055 = vpow.pop %v4054
    %v4056 = vmul.f32 %v4019, 1.442695
    %v4057 = vpow.pop %v4056
    %v4058 = vmul.f32 %v4020, 1.442695
    %v4059 = vpow.pop %v4058
    %v4060 = vmul.f32 %v4021, 1.442695
    %v4061 = vpow.pop %v4060
    %v4062 = vmul.f32 %v4022, 1.442695
    %v4063 = vpow.pop %v4062
    %v4064 = vmul.f32 %v4023, 1.442695
    %v4065 = vpow.pop %v4064
    %v4066 = vmul.f32 %v4024, 1.442695
    %v4067 = vpow.pop %v4066
    %v4068 = vmul.f32 %v4025, 1.442695
    %v4069 = vpow.pop %v4068
    %v4070 = vmul.f32 %v4026, 1.442695
    %v4071 = vpow.pop %v4070
    %v4072 = vmul.f32 %v4027, 1.442695
    %v4073 = vpow.pop %v4072
    %v4074 = vmul.f32 %v4028, 1.442695
    %v4075 = vpow.pop %v4074
    %v4076 = vmul.f32 %v4029, 1.442695
    %v4077 = vpow.pop %v4076
    %v4078 = vmul.f32 %v4030, 1.442695
    %v4079 = vpow.pop %v4078
    %v4080 = vmul.f32 %v4031, 1.442695
    %v4081 = vpow.pop %v4080
    %v4082 = vmul.f32 %v4032, 1.442695
    %v4083 = vpow.pop %v4082
    %v4084 = vmul.f32 %v4033, 1.442695
    %v4085 = vpow.pop %v4084
    %v4086 = vmul.f32 %v4034, 1.442695
    %v4087 = vpow.pop %v4086
    %v4088 = vmul.f32 %v4035, 1.442695
    %v4089 = vpow.pop %v4088
    %v4090 = vmul.f32 %v4036, 1.442695
    %v4091 = vpow.pop %v4090
    %v4092 = vmul.f32 %v4037, 1.442695
    %v4093 = vpow.pop %v4092
    %v4094 = vmul.f32 %v4038, 1.442695
    %v4095 = vpow.pop %v4094
    %v4096 = vmul.f32 %v4039, 1.442695
    %v4097 = vpow.pop %v4096
    %v4098 = vmul.f32 %v4040, 1.442695
    %v4099 = vpow.pop %v4098
    %v4100 = vmul.f32 %v4041, 1.442695
    %v4101 = vpow.pop %v4100
    %v4102 = vmul.f32 %v4042, 1.442695
    %v4103 = vpow.pop %v4102
    %v4104 = vmul.f32 %v4043, 1.442695
    %v4105 = vpow.pop %v4104
    %v4106 = vmul.f32 %v4044, 1.442695
    %v4107 = vpow.pop %v4106
    %v4108 = vmul.f32 %v4045, 1.442695
    %v4109 = vpow.pop %v4108
    %v4110 = vsel %vm208, %v4047, 0.0
    %4111 = vadd.xlane.f32.xlu0 %v4110
    %v4112 = vpop.xlane.xlu0 %4111
    %v4113 = vsel %vm208, %v4049, 0.0
    %4114 = vadd.xlane.f32.xlu0 %v4113
    %v4115 = vpop.xlane.xlu0 %4114
    %v4116 = vsel %vm208, %v4051, 0.0
    %4117 = vadd.xlane.f32.xlu0 %v4116
    %v4118 = vpop.xlane.xlu0 %4117
    %v4119 = vsel %vm208, %v4053, 0.0
    %4120 = vadd.xlane.f32.xlu0 %v4119
    %v4121 = vpop.xlane.xlu0 %4120
    %v4122 = vsel %vm208, %v4055, 0.0
    %4123 = vadd.xlane.f32.xlu0 %v4122
    %v4124 = vpop.xlane.xlu0 %4123
    %v4125 = vsel %vm208, %v4057, 0.0
    %4126 = vadd.xlane.f32.xlu0 %v4125
    %v4127 = vpop.xlane.xlu0 %4126
    %v4128 = vsel %vm208, %v4059, 0.0
    %4129 = vadd.xlane.f32.xlu0 %v4128
    %v4130 = vpop.xlane.xlu0 %4129
    %v4131 = vsel %vm208, %v4061, 0.0
    %4132 = vadd.xlane.f32.xlu0 %v4131
    %v4133 = vpop.xlane.xlu0 %4132
    %v4134 = vsel %vm208, %v4063, 0.0
    %4135 = vadd.xlane.f32.xlu0 %v4134
    %v4136 = vpop.xlane.xlu0 %4135
    %v4137 = vsel %vm208, %v4065, 0.0
    %4138 = vadd.xlane.f32.xlu0 %v4137
    %v4139 = vpop.xlane.xlu0 %4138
    %v4140 = vsel %vm208, %v4067, 0.0
    %4141 = vadd.xlane.f32.xlu0 %v4140
    %v4142 = vpop.xlane.xlu0 %4141
    %v4143 = vsel %vm208, %v4069, 0.0
    %4144 = vadd.xlane.f32.xlu0 %v4143
    %v4145 = vpop.xlane.xlu0 %4144
    %v4146 = vsel %vm208, %v4071, 0.0
    %4147 = vadd.xlane.f32.xlu0 %v4146
    %v4148 = vpop.xlane.xlu0 %4147
    %v4149 = vsel %vm208, %v4073, 0.0
    %4150 = vadd.xlane.f32.xlu0 %v4149
    %v4151 = vpop.xlane.xlu0 %4150
    %v4152 = vsel %vm208, %v4075, 0.0
    %4153 = vadd.xlane.f32.xlu0 %v4152
    %v4154 = vpop.xlane.xlu0 %4153
    %v4155 = vsel %vm208, %v4077, 0.0
    %4156 = vadd.xlane.f32.xlu0 %v4155
    %v4157 = vpop.xlane.xlu0 %4156
    %v4158 = vsel %vm208, %v4079, 0.0
    %4159 = vadd.xlane.f32.xlu0 %v4158
    %v4160 = vpop.xlane.xlu0 %4159
    %v4161 = vsel %vm208, %v4081, 0.0
    %4162 = vadd.xlane.f32.xlu0 %v4161
    %v4163 = vpop.xlane.xlu0 %4162
    %v4164 = vsel %vm208, %v4083, 0.0
    %4165 = vadd.xlane.f32.xlu0 %v4164
    %v4166 = vpop.xlane.xlu0 %4165
    %v4167 = vsel %vm208, %v4085, 0.0
    %4168 = vadd.xlane.f32.xlu0 %v4167
    %v4169 = vpop.xlane.xlu0 %4168
    %v4170 = vsel %vm208, %v4087, 0.0
    %4171 = vadd.xlane.f32.xlu0 %v4170
    %v4172 = vpop.xlane.xlu0 %4171
    %v4173 = vsel %vm208, %v4089, 0.0
    %4174 = vadd.xlane.f32.xlu0 %v4173
    %v4175 = vpop.xlane.xlu0 %4174
    %v4176 = vsel %vm208, %v4091, 0.0
    %4177 = vadd.xlane.f32.xlu0 %v4176
    %v4178 = vpop.xlane.xlu0 %4177
    %v4179 = vsel %vm208, %v4093, 0.0
    %4180 = vadd.xlane.f32.xlu0 %v4179
    %v4181 = vpop.xlane.xlu0 %4180
    %v4182 = vsel %vm208, %v4095, 0.0
    %4183 = vadd.xlane.f32.xlu0 %v4182
    %v4184 = vpop.xlane.xlu0 %4183
    %v4185 = vsel %vm208, %v4097, 0.0
    %4186 = vadd.xlane.f32.xlu0 %v4185
    %v4187 = vpop.xlane.xlu0 %4186
    %v4188 = vsel %vm208, %v4099, 0.0
    %4189 = vadd.xlane.f32.xlu0 %v4188
    %v4190 = vpop.xlane.xlu0 %4189
    %v4191 = vsel %vm208, %v4101, 0.0
    %4192 = vadd.xlane.f32.xlu0 %v4191
    %v4193 = vpop.xlane.xlu0 %4192
    %v4194 = vsel %vm208, %v4103, 0.0
    %4195 = vadd.xlane.f32.xlu0 %v4194
    %v4196 = vpop.xlane.xlu0 %4195
    %v4197 = vsel %vm208, %v4105, 0.0
    %4198 = vadd.xlane.f32.xlu0 %v4197
    %v4199 = vpop.xlane.xlu0 %4198
    %v4200 = vsel %vm208, %v4107, 0.0
    %4201 = vadd.xlane.f32.xlu0 %v4200
    %v4202 = vpop.xlane.xlu0 %4201
    %v4203 = vsel %vm208, %v4109, 0.0
    %4204 = vadd.xlane.f32.xlu0 %v4203
    %v4205 = vpop.xlane.xlu0 %4204
    %v4206 = vrcp.pop %v4112
    %v4207 = vrcp.pop %v4115
    %v4208 = vrcp.pop %v4118
    %v4209 = vrcp.pop %v4121
    %v4210 = vrcp.pop %v4124
    %v4211 = vrcp.pop %v4127
    %v4212 = vrcp.pop %v4130
    %v4213 = vrcp.pop %v4133
    %v4214 = vrcp.pop %v4136
    %v4215 = vrcp.pop %v4139
    %v4216 = vrcp.pop %v4142
    %v4217 = vrcp.pop %v4145
    %v4218 = vrcp.pop %v4148
    %v4219 = vrcp.pop %v4151
    %v4220 = vrcp.pop %v4154
    %v4221 = vrcp.pop %v4157
    %v4222 = vrcp.pop %v4160
    %v4223 = vrcp.pop %v4163
    %v4224 = vrcp.pop %v4166
    %v4225 = vrcp.pop %v4169
    %v4226 = vrcp.pop %v4172
    %v4227 = vrcp.pop %v4175
    %v4228 = vrcp.pop %v4178
    %v4229 = vrcp.pop %v4181
    %v4230 = vrcp.pop %v4184
    %v4231 = vrcp.pop %v4187
    %v4232 = vrcp.pop %v4190
    %v4233 = vrcp.pop %v4193
    %v4234 = vrcp.pop %v4196
    %v4235 = vrcp.pop %v4199
    %v4236 = vrcp.pop %v4202
    %v4237 = vrcp.pop %v4205
    %v4238 = vmul.f32 %v4047, %v4206
    %v4239 = vmul.f32 %v4049, %v4207
    %v4240 = vmul.f32 %v4051, %v4208
    %v4241 = vmul.f32 %v4053, %v4209
    %v4242 = vmul.f32 %v4055, %v4210
    %v4243 = vmul.f32 %v4057, %v4211
    %v4244 = vmul.f32 %v4059, %v4212
    %v4245 = vmul.f32 %v4061, %v4213
    %v4246 = vmul.f32 %v4063, %v4214
    %v4247 = vmul.f32 %v4065, %v4215
    %v4248 = vmul.f32 %v4067, %v4216
    %v4249 = vmul.f32 %v4069, %v4217
    %v4250 = vmul.f32 %v4071, %v4218
    %v4251 = vmul.f32 %v4073, %v4219
    %v4252 = vmul.f32 %v4075, %v4220
    %v4253 = vmul.f32 %v4077, %v4221
    %v4254 = vmul.f32 %v4079, %v4222
    %v4255 = vmul.f32 %v4081, %v4223
    %v4256 = vmul.f32 %v4083, %v4224
    %v4257 = vmul.f32 %v4085, %v4225
    %v4258 = vmul.f32 %v4087, %v4226
    %v4259 = vmul.f32 %v4089, %v4227
    %v4260 = vmul.f32 %v4091, %v4228
    %v4261 = vmul.f32 %v4093, %v4229
    %v4262 = vmul.f32 %v4095, %v4230
    %v4263 = vmul.f32 %v4097, %v4231
    %v4264 = vmul.f32 %v4099, %v4232
    %v4265 = vmul.f32 %v4101, %v4233
    %v4266 = vmul.f32 %v4103, %v4234
    %v4267 = vmul.f32 %v4105, %v4235
    %v4268 = vmul.f32 %v4107, %v4236
    %v4269 = vmul.f32 %v4109, %v4237
    %v4270 = vpack.c.bf16 %v4239, %v4238
    %v4271 = vpack.c.bf16 %v4241, %v4240
    %v4272 = vpack.c.bf16 %v4243, %v4242
    %v4273 = vpack.c.bf16 %v4245, %v4244
    %v4274 = vpack.c.bf16 %v4247, %v4246
    %v4275 = vpack.c.bf16 %v4249, %v4248
    %v4276 = vpack.c.bf16 %v4251, %v4250
    %v4277 = vpack.c.bf16 %v4253, %v4252
    %v4278 = vpack.c.bf16 %v4255, %v4254
    %v4279 = vpack.c.bf16 %v4257, %v4256
    %v4280 = vpack.c.bf16 %v4259, %v4258
    %v4281 = vpack.c.bf16 %v4261, %v4260
    %v4282 = vpack.c.bf16 %v4263, %v4262
    %v4283 = vpack.c.bf16 %v4265, %v4264
    %v4284 = vpack.c.bf16 %v4267, %v4266
    %v4285 = vpack.c.bf16 %v4269, %v4268
    %v4286 = vpack.c.bf16 %v3578, %v3575
    %v4287 = vpack.c.bf16 %v3586, %v3583
    %v4289 = vsel %vm208, %v4270, 0
    %v4292 = vsel %vm208, %v4271, 0
    %v4295 = vsel %vm208, %v4272, 0
    %v4298 = vsel %vm208, %v4273, 0
    %v4301 = vsel %vm208, %v4274, 0
    %v4304 = vsel %vm208, %v4275, 0
    %v4307 = vsel %vm208, %v4276, 0
    %v4310 = vsel %vm208, %v4277, 0
    %v4313 = vsel %vm208, %v4278, 0
    %v4316 = vsel %vm208, %v4279, 0
    %v4319 = vsel %vm208, %v4280, 0
    %v4322 = vsel %vm208, %v4281, 0
    %v4325 = vsel %vm208, %v4282, 0
    %v4328 = vsel %vm208, %v4283, 0
    %v4331 = vsel %vm208, %v4284, 0
    %v4334 = vsel %vm208, %v4285, 0
    %4336 = vmatprep.subr.bf16.mxu0 0
    %4337 = vmatpush1.bf16.msra.mxu0 %v4286
    %4338 = vmatprep.subr.bf16.mxu0 0
    %4339 = vmatpush1.bf16.msra.mxu0 %v4287
    %4340 = vmatprep.subr.bf16.mxu0 0
    %4341 = vmatpush1.bf16.msra.mxu0 0
    %4342 = vmatprep.subr.bf16.mxu0 0
    %4343 = vmatpush1.bf16.msra.mxu0 0
    %4344 = vmatprep.subr.bf16.mxu0 0
    %4345 = vmatpush1.bf16.msra.mxu0 0
    %4346 = vmatprep.subr.bf16.mxu0 0
    %4347 = vmatpush1.bf16.msra.mxu0 0
    %4348 = vmatprep.subr.bf16.mxu0 0
    %4349 = vmatpush1.bf16.msra.mxu0 0
    %4350 = vmatprep.subr.bf16.mxu0 0
    %4351 = vmatpush1.bf16.msra.mxu0 0
    %4352 = vmatprep.subr.bf16.mxu0 0
    %4353 = vmatpush1.bf16.msra.mxu0 0
    %4354 = vmatprep.subr.bf16.mxu0 0
    %4355 = vmatpush1.bf16.msra.mxu0 0
    %4356 = vmatprep.subr.bf16.mxu0 0
    %4357 = vmatpush1.bf16.msra.mxu0 0
    %4358 = vmatprep.subr.bf16.mxu0 0
    %4359 = vmatpush1.bf16.msra.mxu0 0
    %4360 = vmatprep.subr.bf16.mxu0 0
    %4361 = vmatpush1.bf16.msra.mxu0 0
    %4362 = vmatprep.subr.bf16.mxu0 0
    %4363 = vmatpush1.bf16.msra.mxu0 0
    %4364 = vmatprep.subr.bf16.mxu0 0
    %4365 = vmatpush1.bf16.msra.mxu0 0
    %4366 = vmatprep.subr.bf16.mxu0 0
    %4367 = vmatpush1.bf16.msra.mxu0 0
    %4368 = vmatprep.mubr.bf16.mxu0 0
    %4369 = vmatmul.mubr.bf16.gmra.mrb[0].mxu0 %v4289
    %v4370 = vpop.f32.mrb[0].mxu0
    %v4371 = vadd.f32 0.0, %v4370
    %v4372 = vpop.f32.mrb[0].mxu0
    %v4373 = vpop.f32.mrb[0].mxu0
    %v4374 = vadd.f32 0.0, %v4373
    %v4375 = vpop.f32.mrb[0].mxu0
    %4376 = vmatprep.mubr.bf16.mxu0 0
    %4377 = vmatmul.mubr.bf16.gmra.mrb[0].mxu0 %v4292
    %v4378 = vpop.f32.mrb[0].mxu0
    %v4379 = vadd.f32 0.0, %v4378
    %v4380 = vpop.f32.mrb[0].mxu0
    %v4381 = vpop.f32.mrb[0].mxu0
    %v4382 = vadd.f32 0.0, %v4381
    %v4383 = vpop.f32.mrb[0].mxu0
    %4384 = vmatprep.mubr.bf16.mxu0 0
    %4385 = vmatmul.mubr.bf16.gmra.mrb[0].mxu0 %v4295
    %v4386 = vpop.f32.mrb[0].mxu0
    %v4387 = vadd.f32 0.0, %v4386
    %v4388 = vpop.f32.mrb[0].mxu0
    %v4389 = vpop.f32.mrb[0].mxu0
    %v4390 = vadd.f32 0.0, %v4389
    %v4391 = vpop.f32.mrb[0].mxu0
    %4392 = vmatprep.mubr.bf16.mxu0 0
    %4393 = vmatmul.mubr.bf16.gmra.mrb[0].mxu0 %v4298
    %v4394 = vpop.f32.mrb[0].mxu0
    %v4395 = vadd.f32 0.0, %v4394
    %v4396 = vpop.f32.mrb[0].mxu0
    %v4397 = vpop.f32.mrb[0].mxu0
    %v4398 = vadd.f32 0.0, %v4397
    %v4399 = vpop.f32.mrb[0].mxu0
    %4400 = vmatprep.mubr.bf16.mxu0 0
    %4401 = vmatmul.mubr.bf16.gmra.mrb[0].mxu0 %v4301
    %v4402 = vpop.f32.mrb[0].mxu0
    %v4403 = vadd.f32 0.0, %v4402
    %v4404 = vpop.f32.mrb[0].mxu0
    %v4405 = vpop.f32.mrb[0].mxu0
    %v4406 = vadd.f32 0.0, %v4405
    %v4407 = vpop.f32.mrb[0].mxu0
    %4408 = vmatprep.mubr.bf16.mxu0 0
    %4409 = vmatmul.mubr.bf16.gmra.mrb[0].mxu0 %v4304
    %v4410 = vpop.f32.mrb[0].mxu0
    %v4411 = vadd.f32 0.0, %v4410
    %v4412 = vpop.f32.mrb[0].mxu0
    %v4413 = vpop.f32.mrb[0].mxu0
    %v4414 = vadd.f32 0.0, %v4413
    %v4415 = vpop.f32.mrb[0].mxu0
    %4416 = vmatprep.mubr.bf16.mxu0 0
    %4417 = vmatmul.mubr.bf16.gmra.mrb[0].mxu0 %v4307
    %v4418 = vpop.f32.mrb[0].mxu0
    %v4419 = vadd.f32 0.0, %v4418
    %v4420 = vpop.f32.mrb[0].mxu0
    %v4421 = vpop.f32.mrb[0].mxu0
    %v4422 = vadd.f32 0.0, %v4421
    %v4423 = vpop.f32.mrb[0].mxu0
    %4424 = vmatprep.mubr.bf16.mxu0 0
    %4425 = vmatmul.mubr.bf16.gmra.mrb[0].mxu0 %v4310
    %v4426 = vpop.f32.mrb[0].mxu0
    %v4427 = vadd.f32 0.0, %v4426
    %v4428 = vpop.f32.mrb[0].mxu0
    %v4429 = vpop.f32.mrb[0].mxu0
    %v4430 = vadd.f32 0.0, %v4429
    %v4431 = vpop.f32.mrb[0].mxu0
    %4432 = vmatprep.mubr.bf16.mxu0 0
    %4433 = vmatmul.mubr.bf16.gmra.mrb[0].mxu0 %v4313
    %v4434 = vpop.f32.mrb[0].mxu0
    %v4435 = vadd.f32 0.0, %v4434
    %v4436 = vpop.f32.mrb[0].mxu0
    %v4437 = vpop.f32.mrb[0].mxu0
    %v4438 = vadd.f32 0.0, %v4437
    %v4439 = vpop.f32.mrb[0].mxu0
    %4440 = vmatprep.mubr.bf16.mxu0 0
    %4441 = vmatmul.mubr.bf16.gmra.mrb[0].mxu0 %v4316
    %v4442 = vpop.f32.mrb[0].mxu0
    %v4443 = vadd.f32 0.0, %v4442
    %v4444 = vpop.f32.mrb[0].mxu0
    %v4445 = vpop.f32.mrb[0].mxu0
    %v4446 = vadd.f32 0.0, %v4445
    %v4447 = vpop.f32.mrb[0].mxu0
    %4448 = vmatprep.mubr.bf16.mxu0 0
    %4449 = vmatmul.mubr.bf16.gmra.mrb[0].mxu0 %v4319
    %v4450 = vpop.f32.mrb[0].mxu0
    %v4451 = vadd.f32 0.0, %v4450
    %v4452 = vpop.f32.mrb[0].mxu0
    %v4453 = vpop.f32.mrb[0].mxu0
    %v4454 = vadd.f32 0.0, %v4453
    %v4455 = vpop.f32.mrb[0].mxu0
    %4456 = vmatprep.mubr.bf16.mxu0 0
    %4457 = vmatmul.mubr.bf16.gmra.mrb[0].mxu0 %v4322
    %v4458 = vpop.f32.mrb[0].mxu0
    %v4459 = vadd.f32 0.0, %v4458
    %v4460 = vpop.f32.mrb[0].mxu0
    %v4461 = vpop.f32.mrb[0].mxu0
    %v4462 = vadd.f32 0.0, %v4461
    %v4463 = vpop.f32.mrb[0].mxu0
    %4464 = vmatprep.mubr.bf16.mxu0 0
    %4465 = vmatmul.mubr.bf16.gmra.mrb[0].mxu0 %v4325
    %v4466 = vpop.f32.mrb[0].mxu0
    %v4467 = vadd.f32 0.0, %v4466
    %v4468 = vpop.f32.mrb[0].mxu0
    %v4469 = vpop.f32.mrb[0].mxu0
    %v4470 = vadd.f32 0.0, %v4469
    %v4471 = vpop.f32.mrb[0].mxu0
    %4472 = vmatprep.mubr.bf16.mxu0 0
    %4473 = vmatmul.mubr.bf16.gmra.mrb[0].mxu0 %v4328
    %v4474 = vpop.f32.mrb[0].mxu0
    %v4475 = vadd.f32 0.0, %v4474
    %v4476 = vpop.f32.mrb[0].mxu0
    %v4477 = vpop.f32.mrb[0].mxu0
    %v4478 = vadd.f32 0.0, %v4477
    %v4479 = vpop.f32.mrb[0].mxu0
    %4480 = vmatprep.mubr.bf16.mxu0 0
    %4481 = vmatmul.mubr.bf16.gmra.mrb[0].mxu0 %v4331
    %v4482 = vpop.f32.mrb[0].mxu0
    %v4483 = vadd.f32 0.0, %v4482
    %v4484 = vpop.f32.mrb[0].mxu0
    %v4485 = vpop.f32.mrb[0].mxu0
    %v4486 = vadd.f32 0.0, %v4485
    %v4487 = vpop.f32.mrb[0].mxu0
    %4488 = vmatprep.mubr.bf16.mxu0 0
    %4489 = vmatmul.mubr.bf16.gmra.mrb[0].mxu0 %v4334
    %v4490 = vpop.f32.mrb[0].mxu0
    %v4491 = vadd.f32 0.0, %v4490
    %v4492 = vpop.f32.mrb[0].mxu0
    %v4493 = vpop.f32.mrb[0].mxu0
    %v4494 = vadd.f32 0.0, %v4493
    %v4495 = vpop.f32.mrb[0].mxu0
    %4496 = vdwg.mxu0
    %v4497 = vmul.f32 %v4371, %v3226
    %v4498 = vmul.f32 %v4374, %v3227
    %v4499 = vmul.f32 %v4379, %v3228
    %v4500 = vmul.f32 %v4382, %v3229
    %v4501 = vmul.f32 %v4387, %v3230
    %v4502 = vmul.f32 %v4390, %v3231
    %v4503 = vmul.f32 %v4395, %v3232
    %v4504 = vmul.f32 %v4398, %v3233
    %v4505 = vmul.f32 %v4403, %v3234
    %v4506 = vmul.f32 %v4406, %v3235
    %v4507 = vmul.f32 %v4411, %v3236
    %v4508 = vmul.f32 %v4414, %v3237
    %v4509 = vmul.f32 %v4419, %v3238
    %v4510 = vmul.f32 %v4422, %v3239
    %v4511 = vmul.f32 %v4427, %v3240
    %v4512 = vmul.f32 %v4430, %v3241
    %v4513 = vmul.f32 %v4435, %v3242
    %v4514 = vmul.f32 %v4438, %v3243
    %v4515 = vmul.f32 %v4443, %v3244
    %v4516 = vmul.f32 %v4446, %v3245
    %v4517 = vmul.f32 %v4451, %v3246
    %v4518 = vmul.f32 %v4454, %v3247
    %v4519 = vmul.f32 %v4459, %v3248
    %v4520 = vmul.f32 %v4462, %v3249
    %v4521 = vmul.f32 %v4467, %v3250
    %v4522 = vmul.f32 %v4470, %v3251
    %v4523 = vmul.f32 %v4475, %v3252
    %v4524 = vmul.f32 %v4478, %v3253
    %v4525 = vmul.f32 %v4483, %v3254
    %v4526 = vmul.f32 %v4486, %v3255
    %v4527 = vmul.f32 %v4491, %v3256
    %v4528 = vmul.f32 %v4494, %v3257
    %v4529 = vadd.f32 %v4497, %v4501
    %v4530 = vadd.f32 %v4498, %v4502
    %v4531 = vadd.f32 %v4499, %v4503
    %v4532 = vadd.f32 %v4500, %v4504
    %v4533 = vadd.f32 %v4505, %v4509
    %v4534 = vadd.f32 %v4506, %v4510
    %v4535 = vadd.f32 %v4507, %v4511
    %v4536 = vadd.f32 %v4508, %v4512
    %v4537 = vadd.f32 %v4513, %v4517
    %v4538 = vadd.f32 %v4514, %v4518
    %v4539 = vadd.f32 %v4515, %v4519
    %v4540 = vadd.f32 %v4516, %v4520
    %v4541 = vadd.f32 %v4521, %v4525
    %v4542 = vadd.f32 %v4522, %v4526
    %v4543 = vadd.f32 %v4523, %v4527
    %v4544 = vadd.f32 %v4524, %v4528
    %v4545 = vadd.f32 %v4529, %v4533
    %v4546 = vadd.f32 %v4530, %v4534
    %v4547 = vadd.f32 %v4531, %v4535
    %v4548 = vadd.f32 %v4532, %v4536
    %v4549 = vadd.f32 %v4537, %v4541
    %v4550 = vadd.f32 %v4538, %v4542
    %v4551 = vadd.f32 %v4539, %v4543
    %v4552 = vadd.f32 %v4540, %v4544
    %v4553 = vadd.f32 %v4545, %v4549
    %v4554 = vadd.f32 %v4546, %v4550
    %v4555 = vadd.f32 %v4547, %v4551
    %v4556 = vadd.f32 %v4548, %v4552
    %v4557 = vld [vmem:[%s49] sm:$0xf]
    %v4558 = vld [vmem:[%s49 + $0x4] sm:$0xf]
    %v4559 = vld [vmem:[%s49 + $0x8] sm:$0xf]
    %v4560 = vld [vmem:[%s49 + $0xc] sm:$0xf]
    %v4561 = vpack.c.bf16 %v4554, %v4553
    %v4562 = vpack.c.bf16 %v4556, %v4555
    %v4567 = vunpack.c.l.b16 %v4557
    %v4568 = vunpack.c.l.b16 %v4558
    %v4569 = vunpack.c.l.b16 %v4559
    %v4570 = vunpack.c.l.b16 %v4560
    %v4571 = vpack.c.b16 %v4568, %v4567
    %v4572 = vpack.c.b16 %v4570, %v4569
    %v4576 = vsel %vm208, %v4561, 0
    %v4579 = vsel %vm208, %v4562, 0
    %4581 = vmatprep.subr.bf16.mxu0 0
    %4582 = vmatpush1.bf16.msra.mxu0 %v4571
    %4583 = vmatprep.subr.bf16.mxu0 0
    %4584 = vmatpush1.bf16.msra.mxu0 %v4572
    %4585 = vmatprep.subr.bf16.mxu0 0
    %4586 = vmatpush1.bf16.msra.mxu0 0
    %4587 = vmatprep.subr.bf16.mxu0 0
    %4588 = vmatpush1.bf16.msra.mxu0 0
    %4589 = vmatprep.subr.bf16.mxu0 0
    %4590 = vmatpush1.bf16.msra.mxu0 0
    %4591 = vmatprep.subr.bf16.mxu0 0
    %4592 = vmatpush1.bf16.msra.mxu0 0
    %4593 = vmatprep.subr.bf16.mxu0 0
    %4594 = vmatpush1.bf16.msra.mxu0 0
    %4595 = vmatprep.subr.bf16.mxu0 0
    %4596 = vmatpush1.bf16.msra.mxu0 0
    %4597 = vmatprep.subr.bf16.mxu0 0
    %4598 = vmatpush1.bf16.msra.mxu0 0
    %4599 = vmatprep.subr.bf16.mxu0 0
    %4600 = vmatpush1.bf16.msra.mxu0 0
    %4601 = vmatprep.subr.bf16.mxu0 0
    %4602 = vmatpush1.bf16.msra.mxu0 0
    %4603 = vmatprep.subr.bf16.mxu0 0
    %4604 = vmatpush1.bf16.msra.mxu0 0
    %4605 = vmatprep.subr.bf16.mxu0 0
    %4606 = vmatpush1.bf16.msra.mxu0 0
    %4607 = vmatprep.subr.bf16.mxu0 0
    %4608 = vmatpush1.bf16.msra.mxu0 0
    %4609 = vmatprep.subr.bf16.mxu0 0
    %4610 = vmatpush1.bf16.msra.mxu0 0
    %4611 = vmatprep.subr.bf16.mxu0 0
    %4612 = vmatpush1.bf16.msra.mxu0 0
    %4613 = vmatprep.mubr.bf16.mxu0 0
    %4614 = vmatmul.mubr.bf16.gmra.mrb[0].mxu0 %v4576
    %v4615 = vpop.f32.mrb[0].mxu0
    %v4616 = vadd.f32 0.0, %v4615
    %v4617 = vpop.f32.mrb[0].mxu0
    %v4618 = vpop.f32.mrb[0].mxu0
    %v4619 = vadd.f32 0.0, %v4618
    %v4620 = vpop.f32.mrb[0].mxu0
    %4621 = vmatprep.mubr.bf16.mxu0 0
    %4622 = vmatmul.mubr.bf16.gmra.mrb[0].mxu0 %v4579
    %v4623 = vpop.f32.mrb[0].mxu0
    %v4624 = vadd.f32 0.0, %v4623
    %v4625 = vpop.f32.mrb[0].mxu0
    %v4626 = vpop.f32.mrb[0].mxu0
    %v4627 = vadd.f32 0.0, %v4626
    %v4628 = vpop.f32.mrb[0].mxu0
    %4629 = vdwg.mxu0
    %v4630 = vadd.f32 %v3222, %v4616
    %v4631 = vadd.f32 %v3223, %v4619
    %v4632 = vadd.f32 %v3224, %v4624
    %v4633 = vadd.f32 %v3225, %v4627
    %v4634 = vld [vmem:[%s51] sm:$0x1]
    %v4636 = vlaneseq
    %v4637 = vshrl.u32 %v4636, 7
    %v4638 = vsub.s32 0, %v4637
    %v4639 = vrot.slane %v4634, %v4638
    %v4641 = vadd.f32 %v4630, %v4639
    %v4642 = vadd.f32 %v4631, %v4639
    %v4643 = vadd.f32 %v4632, %v4639
    %v4644 = vadd.f32 %v4633, %v4639
    %v4645 = vld [vmem:[%s53] sm:$0x1]
    %v4646 = vld [vmem:[%s55] sm:$0x1]
    %v4647 = vsel %vm208, %v4641, 0.0
    %4648 = vadd.xlane.f32.xlu0 %v4647
    %v4649 = vpop.xlane.xlu0 %4648
    %v4650 = vsel %vm208, %v4642, 0.0
    %4651 = vadd.xlane.f32.xlu0 %v4650
    %v4652 = vpop.xlane.xlu0 %4651
    %v4653 = vsel %vm208, %v4643, 0.0
    %4654 = vadd.xlane.f32.xlu0 %v4653
    %v4655 = vpop.xlane.xlu0 %4654
    %v4656 = vsel %vm208, %v4644, 0.0
    %4657 = vadd.xlane.f32.xlu0 %v4656
    %v4658 = vpop.xlane.xlu0 %4657
    %v4659 = vmul.f32 %v4649, %v3304
    %v4660 = vmul.f32 %v4652, %v3304
    %v4661 = vmul.f32 %v4655, %v3304
    %v4662 = vmul.f32 %v4658, %v3304
    %v4663 = vsub.f32 %v4641, %v4659
    %v4664 = vsub.f32 %v4642, %v4660
    %v4665 = vsub.f32 %v4643, %v4661
    %v4666 = vsub.f32 %v4644, %v4662
    %v4667 = vmul.f32 %v4663, %v4663
    %v4668 = vmul.f32 %v4664, %v4664
    %v4669 = vmul.f32 %v4665, %v4665
    %v4670 = vmul.f32 %v4666, %v4666
    %v4671 = vsel %vm208, %v4667, 0.0
    %4672 = vadd.xlane.f32.xlu0 %v4671
    %v4673 = vpop.xlane.xlu0 %4672
    %v4674 = vsel %vm208, %v4668, 0.0
    %4675 = vadd.xlane.f32.xlu0 %v4674
    %v4676 = vpop.xlane.xlu0 %4675
    %v4677 = vsel %vm208, %v4669, 0.0
    %4678 = vadd.xlane.f32.xlu0 %v4677
    %v4679 = vpop.xlane.xlu0 %4678
    %v4680 = vsel %vm208, %v4670, 0.0
    %4681 = vadd.xlane.f32.xlu0 %v4680
    %v4682 = vpop.xlane.xlu0 %4681
    %v4683 = vmul.f32 %v4673, %v3304
    %v4684 = vmul.f32 %v4676, %v3304
    %v4685 = vmul.f32 %v4679, %v3304
    %v4686 = vmul.f32 %v4682, %v3304
    %v4687 = vadd.f32 %v4683, 1e-05
    %v4688 = vadd.f32 %v4684, 1e-05
    %v4689 = vadd.f32 %v4685, 1e-05
    %v4690 = vadd.f32 %v4686, 1e-05
    %v4691 = vrsqrt.pop %v4687
    %v4692 = vrsqrt.pop %v4688
    %v4693 = vrsqrt.pop %v4689
    %v4694 = vrsqrt.pop %v4690
    %v4695 = vmul.f32 %v4663, %v4691
    %v4696 = vmul.f32 %v4664, %v4692
    %v4697 = vmul.f32 %v4665, %v4693
    %v4698 = vmul.f32 %v4666, %v4694
    %v4700 = vlaneseq
    %v4701 = vshrl.u32 %v4700, 7
    %v4702 = vsub.s32 0, %v4701
    %v4703 = vrot.slane %v4645, %v4702
    %v4705 = vmul.f32 %v4695, %v4703
    %v4706 = vmul.f32 %v4696, %v4703
    %v4707 = vmul.f32 %v4697, %v4703
    %v4708 = vmul.f32 %v4698, %v4703
    %v4710 = vlaneseq
    %v4711 = vshrl.u32 %v4710, 7
    %v4712 = vsub.s32 0, %v4711
    %v4713 = vrot.slane %v4646, %v4712
    %v4715 = vadd.f32 %v4705, %v4713
    %v4716 = vadd.f32 %v4706, %v4713
    %v4717 = vadd.f32 %v4707, %v4713
    %v4718 = vadd.f32 %v4708, %v4713
    %v4719 = vld [vmem:[%s57] sm:$0xf]
    %v4720 = vld [vmem:[%s57 + $0x4] sm:$0xf]
    %v4721 = vld [vmem:[%s57 + $0x8] sm:$0xf]
    %v4722 = vld [vmem:[%s57 + $0xc] sm:$0xf]
    %v4723 = vpack.c.bf16 %v4716, %v4715
    %v4724 = vpack.c.bf16 %v4718, %v4717
    %v4725 = vld [vmem:[%s59] sm:$0x1]
    %v4727 = vlaneseq
    %v4728 = vshrl.u32 %v4727, 7
    %v4729 = vsub.s32 0, %v4728
    %v4730 = vrot.slane %v4725, %v4729
    %v4736 = vunpack.c.l.b16 %v4719
    %v4737 = vunpack.c.l.b16 %v4720
    %v4738 = vunpack.c.l.b16 %v4721
    %v4739 = vunpack.c.l.b16 %v4722
    %v4740 = vpack.c.b16 %v4737, %v4736
    %v4741 = vpack.c.b16 %v4739, %v4738
    %v4745 = vsel %vm208, %v4723, 0
    %v4748 = vsel %vm208, %v4724, 0
    %4750 = vmatprep.subr.bf16.mxu0 0
    %4751 = vmatpush1.bf16.msra.mxu0 %v4740
    %4752 = vmatprep.subr.bf16.mxu0 0
    %4753 = vmatpush1.bf16.msra.mxu0 %v4741
    %4754 = vmatprep.subr.bf16.mxu0 0
    %4755 = vmatpush1.bf16.msra.mxu0 0
    %4756 = vmatprep.subr.bf16.mxu0 0
    %4757 = vmatpush1.bf16.msra.mxu0 0
    %4758 = vmatprep.subr.bf16.mxu0 0
    %4759 = vmatpush1.bf16.msra.mxu0 0
    %4760 = vmatprep.subr.bf16.mxu0 0
    %4761 = vmatpush1.bf16.msra.mxu0 0
    %4762 = vmatprep.subr.bf16.mxu0 0
    %4763 = vmatpush1.bf16.msra.mxu0 0
    %4764 = vmatprep.subr.bf16.mxu0 0
    %4765 = vmatpush1.bf16.msra.mxu0 0
    %4766 = vmatprep.subr.bf16.mxu0 0
    %4767 = vmatpush1.bf16.msra.mxu0 0
    %4768 = vmatprep.subr.bf16.mxu0 0
    %4769 = vmatpush1.bf16.msra.mxu0 0
    %4770 = vmatprep.subr.bf16.mxu0 0
    %4771 = vmatpush1.bf16.msra.mxu0 0
    %4772 = vmatprep.subr.bf16.mxu0 0
    %4773 = vmatpush1.bf16.msra.mxu0 0
    %4774 = vmatprep.subr.bf16.mxu0 0
    %4775 = vmatpush1.bf16.msra.mxu0 0
    %4776 = vmatprep.subr.bf16.mxu0 0
    %4777 = vmatpush1.bf16.msra.mxu0 0
    %4778 = vmatprep.subr.bf16.mxu0 0
    %4779 = vmatpush1.bf16.msra.mxu0 0
    %4780 = vmatprep.subr.bf16.mxu0 0
    %4781 = vmatpush1.bf16.msra.mxu0 0
    %4782 = vmatprep.mubr.bf16.mxu0 0
    %4783 = vmatmul.mubr.bf16.gmra.mrb[0].mxu0 %v4745
    %v4784 = vpop.f32.mrb[0].mxu0
    %v4785 = vadd.f32 %v4730, %v4784
    %v4786 = vpop.f32.mrb[0].mxu0
    %v4787 = vpop.f32.mrb[0].mxu0
    %v4788 = vadd.f32 %v4730, %v4787
    %v4789 = vpop.f32.mrb[0].mxu0
    %4790 = vmatprep.mubr.bf16.mxu0 0
    %4791 = vmatmul.mubr.bf16.gmra.mrb[0].mxu0 %v4748
    %v4792 = vpop.f32.mrb[0].mxu0
    %v4793 = vadd.f32 %v4730, %v4792
    %v4794 = vpop.f32.mrb[0].mxu0
    %v4795 = vpop.f32.mrb[0].mxu0
    %v4796 = vadd.f32 %v4730, %v4795
    %v4797 = vpop.f32.mrb[0].mxu0
    %4798 = vdwg.mxu0
    %v4799 = vmax.f32 %v4785, 0.0
    %v4800 = vmax.f32 %v4788, 0.0
    %v4801 = vmax.f32 %v4793, 0.0
    %v4802 = vmax.f32 %v4796, 0.0
    %v4803 = vld [vmem:[%s61] sm:$0xf]
    %v4804 = vld [vmem:[%s61 + $0x4] sm:$0xf]
    %v4805 = vld [vmem:[%s61 + $0x8] sm:$0xf]
    %v4806 = vld [vmem:[%s61 + $0xc] sm:$0xf]
    %v4807 = vld [vmem:[%s61 + $0x10] sm:$0xf]
    %v4808 = vld [vmem:[%s61 + $0x14] sm:$0xf]
    %v4809 = vld [vmem:[%s61 + $0x18] sm:$0xf]
    %v4810 = vld [vmem:[%s61 + $0x1c] sm:$0xf]
    %v4811 = vpack.c.bf16 %v4800, %v4799
    %v4812 = vpack.c.bf16 %v4802, %v4801
    %v4821 = vunpack.c.l.b16 %v4803
    %v4822 = vunpack.c.l.b16 %v4804
    %v4823 = vunpack.c.l.b16 %v4805
    %v4824 = vunpack.c.l.b16 %v4806
    %v4825 = vunpack.c.l.b16 %v4807
    %v4826 = vunpack.c.l.b16 %v4808
    %v4827 = vunpack.c.l.b16 %v4809
    %v4828 = vunpack.c.l.b16 %v4810
    %v4829 = vpack.c.b16 %v4822, %v4821
    %v4830 = vpack.c.b16 %v4824, %v4823
    %v4831 = vpack.c.b16 %v4826, %v4825
    %v4832 = vpack.c.b16 %v4828, %v4827
    %v4838 = vsel %vm2861, %v4811, 0
    %v4841 = vsel %vm2861, %v4812, 0
    %4843 = vmatprep.subr.bf16.mxu0 0
    %4844 = vmatpush1.bf16.msra.mxu0 %v4829
    %4845 = vmatprep.subr.bf16.mxu0 0
    %4846 = vmatpush1.bf16.msra.mxu0 %v4830
    %4847 = vmatprep.subr.bf16.mxu0 0
    %4848 = vmatpush1.bf16.msra.mxu0 %v4831
    %4849 = vmatprep.subr.bf16.mxu0 0
    %4850 = vmatpush1.bf16.msra.mxu0 %v4832
    %4851 = vmatprep.subr.bf16.mxu0 0
    %4852 = vmatpush1.bf16.msra.mxu0 0
    %4853 = vmatprep.subr.bf16.mxu0 0
    %4854 = vmatpush1.bf16.msra.mxu0 0
    %4855 = vmatprep.subr.bf16.mxu0 0
    %4856 = vmatpush1.bf16.msra.mxu0 0
    %4857 = vmatprep.subr.bf16.mxu0 0
    %4858 = vmatpush1.bf16.msra.mxu0 0
    %4859 = vmatprep.subr.bf16.mxu0 0
    %4860 = vmatpush1.bf16.msra.mxu0 0
    %4861 = vmatprep.subr.bf16.mxu0 0
    %4862 = vmatpush1.bf16.msra.mxu0 0
    %4863 = vmatprep.subr.bf16.mxu0 0
    %4864 = vmatpush1.bf16.msra.mxu0 0
    %4865 = vmatprep.subr.bf16.mxu0 0
    %4866 = vmatpush1.bf16.msra.mxu0 0
    %4867 = vmatprep.subr.bf16.mxu0 0
    %4868 = vmatpush1.bf16.msra.mxu0 0
    %4869 = vmatprep.subr.bf16.mxu0 0
    %4870 = vmatpush1.bf16.msra.mxu0 0
    %4871 = vmatprep.subr.bf16.mxu0 0
    %4872 = vmatpush1.bf16.msra.mxu0 0
    %4873 = vmatprep.subr.bf16.mxu0 0
    %4874 = vmatpush1.bf16.msra.mxu0 0
    %4875 = vmatprep.mubr.bf16.mxu0 0
    %4876 = vmatmul.mubr.bf16.gmra.mrb[0].mxu0 %v4838
    %v4877 = vpop.f32.mrb[0].mxu0
    %v4878 = vadd.f32 0.0, %v4877
    %v4879 = vpop.f32.mrb[0].mxu0
    %v4880 = vpop.f32.mrb[0].mxu0
    %v4881 = vadd.f32 0.0, %v4880
    %v4882 = vpop.f32.mrb[0].mxu0
    %4883 = vmatprep.mubr.bf16.mxu0 0
    %4884 = vmatmul.mubr.bf16.gmra.mrb[0].mxu0 %v4841
    %v4885 = vpop.f32.mrb[0].mxu0
    %v4886 = vadd.f32 0.0, %v4885
    %v4887 = vpop.f32.mrb[0].mxu0
    %v4888 = vpop.f32.mrb[0].mxu0
    %v4889 = vadd.f32 0.0, %v4888
    %v4890 = vpop.f32.mrb[0].mxu0
    %4891 = vdwg.mxu0
    %v4892 = vadd.f32 %v4641, %v4878
    %v4893 = vadd.f32 %v4642, %v4881
    %v4894 = vadd.f32 %v4643, %v4886
    %v4895 = vadd.f32 %v4644, %v4889
    %v4896 = vld [vmem:[%s63] sm:$0x1]
    %v4898 = vlaneseq
    %v4899 = vshrl.u32 %v4898, 7
    %v4900 = vsub.s32 0, %v4899
    %v4901 = vrot.slane %v4896, %v4900
    %v4903 = vadd.f32 %v4892, %v4901
    %v4904 = vadd.f32 %v4893, %v4901
    %v4905 = vadd.f32 %v4894, %v4901
    %v4906 = vadd.f32 %v4895, %v4901
    %s4907 = scalar_lea.vmem %s33, 1
    %v4908 = vld [vmem:[%s4907] sm:$0x1]
    %s4909 = scalar_lea.vmem %s35, 1
    %v4910 = vld [vmem:[%s4909] sm:$0x1]
    %v4911 = vsel %vm208, %v4903, 0.0
    %4912 = vadd.xlane.f32.xlu0 %v4911
    %v4913 = vpop.xlane.xlu0 %4912
    %v4914 = vsel %vm208, %v4904, 0.0
    %4915 = vadd.xlane.f32.xlu0 %v4914
    %v4916 = vpop.xlane.xlu0 %4915
    %v4917 = vsel %vm208, %v4905, 0.0
    %4918 = vadd.xlane.f32.xlu0 %v4917
    %v4919 = vpop.xlane.xlu0 %4918
    %v4920 = vsel %vm208, %v4906, 0.0
    %4921 = vadd.xlane.f32.xlu0 %v4920
    %v4922 = vpop.xlane.xlu0 %4921
    %v4923 = vmul.f32 %v4913, %v3304
    %v4924 = vmul.f32 %v4916, %v3304
    %v4925 = vmul.f32 %v4919, %v3304
    %v4926 = vmul.f32 %v4922, %v3304
    %v4927 = vsub.f32 %v4903, %v4923
    %v4928 = vsub.f32 %v4904, %v4924
    %v4929 = vsub.f32 %v4905, %v4925
    %v4930 = vsub.f32 %v4906, %v4926
    %v4931 = vmul.f32 %v4927, %v4927
    %v4932 = vmul.f32 %v4928, %v4928
    %v4933 = vmul.f32 %v4929, %v4929
    %v4934 = vmul.f32 %v4930, %v4930
    %v4935 = vsel %vm208, %v4931, 0.0
    %4936 = vadd.xlane.f32.xlu0 %v4935
    %v4937 = vpop.xlane.xlu0 %4936
    %v4938 = vsel %vm208, %v4932, 0.0
    %4939 = vadd.xlane.f32.xlu0 %v4938
    %v4940 = vpop.xlane.xlu0 %4939
    %v4941 = vsel %vm208, %v4933, 0.0
    %4942 = vadd.xlane.f32.xlu0 %v4941
    %v4943 = vpop.xlane.xlu0 %4942
    %v4944 = vsel %vm208, %v4934, 0.0
    %4945 = vadd.xlane.f32.xlu0 %v4944
    %v4946 = vpop.xlane.xlu0 %4945
    %v4947 = vmul.f32 %v4937, %v3304
    %v4948 = vmul.f32 %v4940, %v3304
    %v4949 = vmul.f32 %v4943, %v3304
    %v4950 = vmul.f32 %v4946, %v3304
    %v4951 = vadd.f32 %v4947, 1e-05
    %v4952 = vadd.f32 %v4948, 1e-05
    %v4953 = vadd.f32 %v4949, 1e-05
    %v4954 = vadd.f32 %v4950, 1e-05
    %v4955 = vrsqrt.pop %v4951
    %v4956 = vrsqrt.pop %v4952
    %v4957 = vrsqrt.pop %v4953
    %v4958 = vrsqrt.pop %v4954
    %v4959 = vmul.f32 %v4927, %v4955
    %v4960 = vmul.f32 %v4928, %v4956
    %v4961 = vmul.f32 %v4929, %v4957
    %v4962 = vmul.f32 %v4930, %v4958
    %v4964 = vlaneseq
    %v4965 = vshrl.u32 %v4964, 7
    %v4966 = vsub.s32 0, %v4965
    %v4967 = vrot.slane %v4908, %v4966
    %v4969 = vmul.f32 %v4959, %v4967
    %v4970 = vmul.f32 %v4960, %v4967
    %v4971 = vmul.f32 %v4961, %v4967
    %v4972 = vmul.f32 %v4962, %v4967
    %v4974 = vlaneseq
    %v4975 = vshrl.u32 %v4974, 7
    %v4976 = vsub.s32 0, %v4975
    %v4977 = vrot.slane %v4910, %v4976
    %v4979 = vadd.f32 %v4969, %v4977
    %v4980 = vadd.f32 %v4970, %v4977
    %v4981 = vadd.f32 %v4971, %v4977
    %v4982 = vadd.f32 %v4972, %v4977
    %v4983 = vpack.c.bf16 %v4980, %v4979
    %v4984 = vpack.c.bf16 %v4982, %v4981
    %s4985 = scalar_lea.vmem %s37, 16
    %v4986 = vld [vmem:[%s4985] sm:$0xf]
    %v4987 = vld [vmem:[%s4985 + $0x4] sm:$0xf]
    %v4988 = vld [vmem:[%s4985 + $0x8] sm:$0xf]
    %v4989 = vld [vmem:[%s4985 + $0xc] sm:$0xf]
    %s4990 = scalar_lea.vmem %s39, 1
    %v4991 = vld [vmem:[%s4990] sm:$0x1]
    %v4993 = vlaneseq
    %v4994 = vshrl.u32 %v4993, 7
    %v4995 = vsub.s32 0, %v4994
    %v4996 = vrot.slane %v4991, %v4995
    %v5002 = vunpack.c.l.b16 %v4986
    %v5003 = vunpack.c.l.b16 %v4987
    %v5004 = vunpack.c.l.b16 %v4988
    %v5005 = vunpack.c.l.b16 %v4989
    %v5006 = vpack.c.b16 %v5003, %v5002
    %v5007 = vpack.c.b16 %v5005, %v5004
    %v5011 = vsel %vm208, %v4983, 0
    %v5014 = vsel %vm208, %v4984, 0
    %5016 = vmatprep.subr.bf16.mxu0 0
    %5017 = vmatpush1.bf16.msra.mxu0 %v5006
    %5018 = vmatprep.subr.bf16.mxu0 0
    %5019 = vmatpush1.bf16.msra.mxu0 %v5007
    %5020 = vmatprep.subr.bf16.mxu0 0
    %5021 = vmatpush1.bf16.msra.mxu0 0
    %5022 = vmatprep.subr.bf16.mxu0 0
    %5023 = vmatpush1.bf16.msra.mxu0 0
    %5024 = vmatprep.subr.bf16.mxu0 0
    %5025 = vmatpush1.bf16.msra.mxu0 0
    %5026 = vmatprep.subr.bf16.mxu0 0
    %5027 = vmatpush1.bf16.msra.mxu0 0
    %5028 = vmatprep.subr.bf16.mxu0 0
    %5029 = vmatpush1.bf16.msra.mxu0 0
    %5030 = vmatprep.subr.bf16.mxu0 0
    %5031 = vmatpush1.bf16.msra.mxu0 0
    %5032 = vmatprep.subr.bf16.mxu0 0
    %5033 = vmatpush1.bf16.msra.mxu0 0
    %5034 = vmatprep.subr.bf16.mxu0 0
    %5035 = vmatpush1.bf16.msra.mxu0 0
    %5036 = vmatprep.subr.bf16.mxu0 0
    %5037 = vmatpush1.bf16.msra.mxu0 0
    %5038 = vmatprep.subr.bf16.mxu0 0
    %5039 = vmatpush1.bf16.msra.mxu0 0
    %5040 = vmatprep.subr.bf16.mxu0 0
    %5041 = vmatpush1.bf16.msra.mxu0 0
    %5042 = vmatprep.subr.bf16.mxu0 0
    %5043 = vmatpush1.bf16.msra.mxu0 0
    %5044 = vmatprep.subr.bf16.mxu0 0
    %5045 = vmatpush1.bf16.msra.mxu0 0
    %5046 = vmatprep.subr.bf16.mxu0 0
    %5047 = vmatpush1.bf16.msra.mxu0 0
    %5048 = vmatprep.mubr.bf16.mxu0 0
    %5049 = vmatmul.mubr.bf16.gmra.mrb[0].mxu0 %v5011
    %v5050 = vpop.f32.mrb[0].mxu0
    %v5051 = vadd.f32 %v4996, %v5050
    %v5052 = vpop.f32.mrb[0].mxu0
    %v5053 = vpop.f32.mrb[0].mxu0
    %v5054 = vadd.f32 %v4996, %v5053
    %v5055 = vpop.f32.mrb[0].mxu0
    %5056 = vmatprep.mubr.bf16.mxu0 0
    %5057 = vmatmul.mubr.bf16.gmra.mrb[0].mxu0 %v5014
    %v5058 = vpop.f32.mrb[0].mxu0
    %v5059 = vadd.f32 %v4996, %v5058
    %v5060 = vpop.f32.mrb[0].mxu0
    %v5061 = vpop.f32.mrb[0].mxu0
    %v5062 = vadd.f32 %v4996, %v5061
    %v5063 = vpop.f32.mrb[0].mxu0
    %5064 = vdwg.mxu0
    %s5065 = scalar_lea.vmem %s41, 16
    %v5066 = vld [vmem:[%s5065] sm:$0xf]
    %v5067 = vld [vmem:[%s5065 + $0x4] sm:$0xf]
    %v5068 = vld [vmem:[%s5065 + $0x8] sm:$0xf]
    %v5069 = vld [vmem:[%s5065 + $0xc] sm:$0xf]
    %s5070 = scalar_lea.vmem %s43, 1
    %v5071 = vld [vmem:[%s5070] sm:$0x1]
    %v5073 = vlaneseq
    %v5074 = vshrl.u32 %v5073, 7
    %v5075 = vsub.s32 0, %v5074
    %v5076 = vrot.slane %v5071, %v5075
    %v5082 = vunpack.c.l.b16 %v5066
    %v5083 = vunpack.c.l.b16 %v5067
    %v5084 = vunpack.c.l.b16 %v5068
    %v5085 = vunpack.c.l.b16 %v5069
    %v5086 = vpack.c.b16 %v5083, %v5082
    %v5087 = vpack.c.b16 %v5085, %v5084
    %5090 = vmatprep.subr.bf16.mxu0 0
    %5091 = vmatpush1.bf16.msra.mxu0 %v5086
    %5092 = vmatprep.subr.bf16.mxu0 0
    %5093 = vmatpush1.bf16.msra.mxu0 %v5087
    %5094 = vmatprep.subr.bf16.mxu0 0
    %5095 = vmatpush1.bf16.msra.mxu0 0
    %5096 = vmatprep.subr.bf16.mxu0 0
    %5097 = vmatpush1.bf16.msra.mxu0 0
    %5098 = vmatprep.subr.bf16.mxu0 0
    %5099 = vmatpush1.bf16.msra.mxu0 0
    %5100 = vmatprep.subr.bf16.mxu0 0
    %5101 = vmatpush1.bf16.msra.mxu0 0
    %5102 = vmatprep.subr.bf16.mxu0 0
    %5103 = vmatpush1.bf16.msra.mxu0 0
    %5104 = vmatprep.subr.bf16.mxu0 0
    %5105 = vmatpush1.bf16.msra.mxu0 0
    %5106 = vmatprep.subr.bf16.mxu0 0
    %5107 = vmatpush1.bf16.msra.mxu0 0
    %5108 = vmatprep.subr.bf16.mxu0 0
    %5109 = vmatpush1.bf16.msra.mxu0 0
    %5110 = vmatprep.subr.bf16.mxu0 0
    %5111 = vmatpush1.bf16.msra.mxu0 0
    %5112 = vmatprep.subr.bf16.mxu0 0
    %5113 = vmatpush1.bf16.msra.mxu0 0
    %5114 = vmatprep.subr.bf16.mxu0 0
    %5115 = vmatpush1.bf16.msra.mxu0 0
    %5116 = vmatprep.subr.bf16.mxu0 0
    %5117 = vmatpush1.bf16.msra.mxu0 0
    %5118 = vmatprep.subr.bf16.mxu0 0
    %5119 = vmatpush1.bf16.msra.mxu0 0
    %5120 = vmatprep.subr.bf16.mxu0 0
    %5121 = vmatpush1.bf16.msra.mxu0 0
    %5122 = vmatprep.mubr.bf16.mxu0 0
    %5123 = vmatmul.mubr.bf16.gmra.mrb[0].mxu0 %v5011
    %v5124 = vpop.f32.mrb[0].mxu0
    %v5125 = vadd.f32 %v5076, %v5124
    %v5126 = vpop.f32.mrb[0].mxu0
    %v5127 = vpop.f32.mrb[0].mxu0
    %v5128 = vadd.f32 %v5076, %v5127
    %v5129 = vpop.f32.mrb[0].mxu0
    %5130 = vmatprep.mubr.bf16.mxu0 0
    %5131 = vmatmul.mubr.bf16.gmra.mrb[0].mxu0 %v5014
    %v5132 = vpop.f32.mrb[0].mxu0
    %v5133 = vadd.f32 %v5076, %v5132
    %v5134 = vpop.f32.mrb[0].mxu0
    %v5135 = vpop.f32.mrb[0].mxu0
    %v5136 = vadd.f32 %v5076, %v5135
    %v5137 = vpop.f32.mrb[0].mxu0
    %5138 = vdwg.mxu0
    %s5139 = scalar_lea.vmem %s45, 16
    %v5140 = vld [vmem:[%s5139] sm:$0xf]
    %v5141 = vld [vmem:[%s5139 + $0x4] sm:$0xf]
    %v5142 = vld [vmem:[%s5139 + $0x8] sm:$0xf]
    %v5143 = vld [vmem:[%s5139 + $0xc] sm:$0xf]
    %s5144 = scalar_lea.vmem %s47, 1
    %v5145 = vld [vmem:[%s5144] sm:$0x1]
    %v5147 = vlaneseq
    %v5148 = vshrl.u32 %v5147, 7
    %v5149 = vsub.s32 0, %v5148
    %v5150 = vrot.slane %v5145, %v5149
    %v5156 = vunpack.c.l.b16 %v5140
    %v5157 = vunpack.c.l.b16 %v5141
    %v5158 = vunpack.c.l.b16 %v5142
    %v5159 = vunpack.c.l.b16 %v5143
    %v5160 = vpack.c.b16 %v5157, %v5156
    %v5161 = vpack.c.b16 %v5159, %v5158
    %5164 = vmatprep.subr.bf16.mxu0 0
    %5165 = vmatpush1.bf16.msra.mxu0 %v5160
    %5166 = vmatprep.subr.bf16.mxu0 0
    %5167 = vmatpush1.bf16.msra.mxu0 %v5161
    %5168 = vmatprep.subr.bf16.mxu0 0
    %5169 = vmatpush1.bf16.msra.mxu0 0
    %5170 = vmatprep.subr.bf16.mxu0 0
    %5171 = vmatpush1.bf16.msra.mxu0 0
    %5172 = vmatprep.subr.bf16.mxu0 0
    %5173 = vmatpush1.bf16.msra.mxu0 0
    %5174 = vmatprep.subr.bf16.mxu0 0
    %5175 = vmatpush1.bf16.msra.mxu0 0
    %5176 = vmatprep.subr.bf16.mxu0 0
    %5177 = vmatpush1.bf16.msra.mxu0 0
    %5178 = vmatprep.subr.bf16.mxu0 0
    %5179 = vmatpush1.bf16.msra.mxu0 0
    %5180 = vmatprep.subr.bf16.mxu0 0
    %5181 = vmatpush1.bf16.msra.mxu0 0
    %5182 = vmatprep.subr.bf16.mxu0 0
    %5183 = vmatpush1.bf16.msra.mxu0 0
    %5184 = vmatprep.subr.bf16.mxu0 0
    %5185 = vmatpush1.bf16.msra.mxu0 0
    %5186 = vmatprep.subr.bf16.mxu0 0
    %5187 = vmatpush1.bf16.msra.mxu0 0
    %5188 = vmatprep.subr.bf16.mxu0 0
    %5189 = vmatpush1.bf16.msra.mxu0 0
    %5190 = vmatprep.subr.bf16.mxu0 0
    %5191 = vmatpush1.bf16.msra.mxu0 0
    %5192 = vmatprep.subr.bf16.mxu0 0
    %5193 = vmatpush1.bf16.msra.mxu0 0
    %5194 = vmatprep.subr.bf16.mxu0 0
    %5195 = vmatpush1.bf16.msra.mxu0 0
    %5196 = vmatprep.mubr.bf16.mxu0 0
    %5197 = vmatmul.mubr.bf16.gmra.mrb[0].mxu0 %v5011
    %v5198 = vpop.f32.mrb[0].mxu0
    %v5199 = vadd.f32 %v5150, %v5198
    %v5200 = vpop.f32.mrb[0].mxu0
    %v5201 = vpop.f32.mrb[0].mxu0
    %v5202 = vadd.f32 %v5150, %v5201
    %v5203 = vpop.f32.mrb[0].mxu0
    %5204 = vmatprep.mubr.bf16.mxu0 0
    %5205 = vmatmul.mubr.bf16.gmra.mrb[0].mxu0 %v5014
    %v5206 = vpop.f32.mrb[0].mxu0
    %v5207 = vadd.f32 %v5150, %v5206
    %v5208 = vpop.f32.mrb[0].mxu0
    %v5209 = vpop.f32.mrb[0].mxu0
    %v5210 = vadd.f32 %v5150, %v5209
    %v5211 = vpop.f32.mrb[0].mxu0
    %5212 = vdwg.mxu0
    %v5213 = vmul.f32 %v5051, %v3226
    %v5214 = vmul.f32 %v5054, %v3227
    %v5215 = vmul.f32 %v5059, %v3228
    %v5216 = vmul.f32 %v5062, %v3229
    %v5217 = vmul.f32 %v5051, %v3230
    %v5218 = vmul.f32 %v5054, %v3231
    %v5219 = vmul.f32 %v5059, %v3232
    %v5220 = vmul.f32 %v5062, %v3233
    %v5221 = vmul.f32 %v5051, %v3234
    %v5222 = vmul.f32 %v5054, %v3235
    %v5223 = vmul.f32 %v5059, %v3236
    %v5224 = vmul.f32 %v5062, %v3237
    %v5225 = vmul.f32 %v5051, %v3238
    %v5226 = vmul.f32 %v5054, %v3239
    %v5227 = vmul.f32 %v5059, %v3240
    %v5228 = vmul.f32 %v5062, %v3241
    %v5229 = vmul.f32 %v5051, %v3242
    %v5230 = vmul.f32 %v5054, %v3243
    %v5231 = vmul.f32 %v5059, %v3244
    %v5232 = vmul.f32 %v5062, %v3245
    %v5233 = vmul.f32 %v5051, %v3246
    %v5234 = vmul.f32 %v5054, %v3247
    %v5235 = vmul.f32 %v5059, %v3248
    %v5236 = vmul.f32 %v5062, %v3249
    %v5237 = vmul.f32 %v5051, %v3250
    %v5238 = vmul.f32 %v5054, %v3251
    %v5239 = vmul.f32 %v5059, %v3252
    %v5240 = vmul.f32 %v5062, %v3253
    %v5241 = vmul.f32 %v5051, %v3254
    %v5242 = vmul.f32 %v5054, %v3255
    %v5243 = vmul.f32 %v5059, %v3256
    %v5244 = vmul.f32 %v5062, %v3257
    %v5245 = vpack.c.bf16 %v5214, %v5213
    %v5246 = vpack.c.bf16 %v5216, %v5215
    %v5247 = vpack.c.bf16 %v5218, %v5217
    %v5248 = vpack.c.bf16 %v5220, %v5219
    %v5249 = vpack.c.bf16 %v5222, %v5221
    %v5250 = vpack.c.bf16 %v5224, %v5223
    %v5251 = vpack.c.bf16 %v5226, %v5225
    %v5252 = vpack.c.bf16 %v5228, %v5227
    %v5253 = vpack.c.bf16 %v5230, %v5229
    %v5254 = vpack.c.bf16 %v5232, %v5231
    %v5255 = vpack.c.bf16 %v5234, %v5233
    %v5256 = vpack.c.bf16 %v5236, %v5235
    %v5257 = vpack.c.bf16 %v5238, %v5237
    %v5258 = vpack.c.bf16 %v5240, %v5239
    %v5259 = vpack.c.bf16 %v5242, %v5241
    %v5260 = vpack.c.bf16 %v5244, %v5243
    %v5261 = vpack.c.bf16 %v5128, %v5125
    %v5262 = vpack.c.bf16 %v5136, %v5133
    %v5264 = vsel %vm208, %v5245, 0
    %v5267 = vsel %vm208, %v5246, 0
    %v5270 = vsel %vm208, %v5247, 0
    %v5273 = vsel %vm208, %v5248, 0
    %v5276 = vsel %vm208, %v5249, 0
    %v5279 = vsel %vm208, %v5250, 0
    %v5282 = vsel %vm208, %v5251, 0
    %v5285 = vsel %vm208, %v5252, 0
    %v5288 = vsel %vm208, %v5253, 0
    %v5291 = vsel %vm208, %v5254, 0
    %v5294 = vsel %vm208, %v5255, 0
    %v5297 = vsel %vm208, %v5256, 0
    %v5300 = vsel %vm208, %v5257, 0
    %v5303 = vsel %vm208, %v5258, 0
    %v5306 = vsel %vm208, %v5259, 0
    %v5309 = vsel %vm208, %v5260, 0
    %v5312 = vsel %vm208, %v5261, 0
    %v5315 = vsel %vm208, %v5262, 0
    %5317 = vmatprep.subr.bf16.mxu0 0
    %5318 = vmatpush1.bf16.xpose.msra.mxu0 %v5312
    %5319 = vmatprep.subr.bf16.mxu0 0
    %5320 = vmatpush1.bf16.xpose.msra.mxu0 %v5315
    %5321 = vmatprep.subr.bf16.mxu0 0
    %5322 = vmatpush1.bf16.xpose.msra.mxu0 0
    %5323 = vmatprep.subr.bf16.mxu0 0
    %5324 = vmatpush1.bf16.xpose.msra.mxu0 0
    %5325 = vmatprep.subr.bf16.mxu0 0
    %5326 = vmatpush1.bf16.xpose.msra.mxu0 0
    %5327 = vmatprep.subr.bf16.mxu0 0
    %5328 = vmatpush1.bf16.xpose.msra.mxu0 0
    %5329 = vmatprep.subr.bf16.mxu0 0
    %5330 = vmatpush1.bf16.xpose.msra.mxu0 0
    %5331 = vmatprep.subr.bf16.mxu0 0
    %5332 = vmatpush1.bf16.xpose.msra.mxu0 0
    %5333 = vmatprep.subr.bf16.mxu0 0
    %5334 = vmatpush1.bf16.xpose.msra.mxu0 0
    %5335 = vmatprep.subr.bf16.mxu0 0
    %5336 = vmatpush1.bf16.xpose.msra.mxu0 0
    %5337 = vmatprep.subr.bf16.mxu0 0
    %5338 = vmatpush1.bf16.xpose.msra.mxu0 0
    %5339 = vmatprep.subr.bf16.mxu0 0
    %5340 = vmatpush1.bf16.xpose.msra.mxu0 0
    %5341 = vmatprep.subr.bf16.mxu0 0
    %5342 = vmatpush1.bf16.xpose.msra.mxu0 0
    %5343 = vmatprep.subr.bf16.mxu0 0
    %5344 = vmatpush1.bf16.xpose.msra.mxu0 0
    %5345 = vmatprep.subr.bf16.mxu0 0
    %5346 = vmatpush1.bf16.xpose.msra.mxu0 0
    %5347 = vmatprep.subr.bf16.mxu0 0
    %5348 = vmatpush1.bf16.xpose.msra.mxu0 0
    %5349 = vmatprep.mubr.bf16.mxu0 0
    %5350 = vmatmul.mubr.bf16.gmra.mrb[0].mxu0 %v5264
    %v5351 = vpop.f32.mrb[0].mxu0
    %v5352 = vadd.f32 0.0, %v5351
    %v5353 = vpop.f32.mrb[0].mxu0
    %v5354 = vpop.f32.mrb[0].mxu0
    %v5355 = vadd.f32 0.0, %v5354
    %v5356 = vpop.f32.mrb[0].mxu0
    %5357 = vmatprep.mubr.bf16.mxu0 0
    %5358 = vmatmul.mubr.bf16.gmra.mrb[0].mxu0 %v5267
    %v5359 = vpop.f32.mrb[0].mxu0
    %v5360 = vadd.f32 0.0, %v5359
    %v5361 = vpop.f32.mrb[0].mxu0
    %v5362 = vpop.f32.mrb[0].mxu0
    %v5363 = vadd.f32 0.0, %v5362
    %v5364 = vpop.f32.mrb[0].mxu0
    %5365 = vmatprep.mubr.bf16.mxu0 0
    %5366 = vmatmul.mubr.bf16.gmra.mrb[0].mxu0 %v5270
    %v5367 = vpop.f32.mrb[0].mxu0
    %v5368 = vadd.f32 0.0, %v5367
    %v5369 = vpop.f32.mrb[0].mxu0
    %v5370 = vpop.f32.mrb[0].mxu0
    %v5371 = vadd.f32 0.0, %v5370
    %v5372 = vpop.f32.mrb[0].mxu0
    %5373 = vmatprep.mubr.bf16.mxu0 0
    %5374 = vmatmul.mubr.bf16.gmra.mrb[0].mxu0 %v5273
    %v5375 = vpop.f32.mrb[0].mxu0
    %v5376 = vadd.f32 0.0, %v5375
    %v5377 = vpop.f32.mrb[0].mxu0
    %v5378 = vpop.f32.mrb[0].mxu0
    %v5379 = vadd.f32 0.0, %v5378
    %v5380 = vpop.f32.mrb[0].mxu0
    %5381 = vmatprep.mubr.bf16.mxu0 0
    %5382 = vmatmul.mubr.bf16.gmra.mrb[0].mxu0 %v5276
    %v5383 = vpop.f32.mrb[0].mxu0
    %v5384 = vadd.f32 0.0, %v5383
    %v5385 = vpop.f32.mrb[0].mxu0
    %v5386 = vpop.f32.mrb[0].mxu0
    %v5387 = vadd.f32 0.0, %v5386
    %v5388 = vpop.f32.mrb[0].mxu0
    %5389 = vmatprep.mubr.bf16.mxu0 0
    %5390 = vmatmul.mubr.bf16.gmra.mrb[0].mxu0 %v5279
    %v5391 = vpop.f32.mrb[0].mxu0
    %v5392 = vadd.f32 0.0, %v5391
    %v5393 = vpop.f32.mrb[0].mxu0
    %v5394 = vpop.f32.mrb[0].mxu0
    %v5395 = vadd.f32 0.0, %v5394
    %v5396 = vpop.f32.mrb[0].mxu0
    %5397 = vmatprep.mubr.bf16.mxu0 0
    %5398 = vmatmul.mubr.bf16.gmra.mrb[0].mxu0 %v5282
    %v5399 = vpop.f32.mrb[0].mxu0
    %v5400 = vadd.f32 0.0, %v5399
    %v5401 = vpop.f32.mrb[0].mxu0
    %v5402 = vpop.f32.mrb[0].mxu0
    %v5403 = vadd.f32 0.0, %v5402
    %v5404 = vpop.f32.mrb[0].mxu0
    %5405 = vmatprep.mubr.bf16.mxu0 0
    %5406 = vmatmul.mubr.bf16.gmra.mrb[0].mxu0 %v5285
    %v5407 = vpop.f32.mrb[0].mxu0
    %v5408 = vadd.f32 0.0, %v5407
    %v5409 = vpop.f32.mrb[0].mxu0
    %v5410 = vpop.f32.mrb[0].mxu0
    %v5411 = vadd.f32 0.0, %v5410
    %v5412 = vpop.f32.mrb[0].mxu0
    %5413 = vmatprep.mubr.bf16.mxu0 0
    %5414 = vmatmul.mubr.bf16.gmra.mrb[0].mxu0 %v5288
    %v5415 = vpop.f32.mrb[0].mxu0
    %v5416 = vadd.f32 0.0, %v5415
    %v5417 = vpop.f32.mrb[0].mxu0
    %v5418 = vpop.f32.mrb[0].mxu0
    %v5419 = vadd.f32 0.0, %v5418
    %v5420 = vpop.f32.mrb[0].mxu0
    %5421 = vmatprep.mubr.bf16.mxu0 0
    %5422 = vmatmul.mubr.bf16.gmra.mrb[0].mxu0 %v5291
    %v5423 = vpop.f32.mrb[0].mxu0
    %v5424 = vadd.f32 0.0, %v5423
    %v5425 = vpop.f32.mrb[0].mxu0
    %v5426 = vpop.f32.mrb[0].mxu0
    %v5427 = vadd.f32 0.0, %v5426
    %v5428 = vpop.f32.mrb[0].mxu0
    %5429 = vmatprep.mubr.bf16.mxu0 0
    %5430 = vmatmul.mubr.bf16.gmra.mrb[0].mxu0 %v5294
    %v5431 = vpop.f32.mrb[0].mxu0
    %v5432 = vadd.f32 0.0, %v5431
    %v5433 = vpop.f32.mrb[0].mxu0
    %v5434 = vpop.f32.mrb[0].mxu0
    %v5435 = vadd.f32 0.0, %v5434
    %v5436 = vpop.f32.mrb[0].mxu0
    %5437 = vmatprep.mubr.bf16.mxu0 0
    %5438 = vmatmul.mubr.bf16.gmra.mrb[0].mxu0 %v5297
    %v5439 = vpop.f32.mrb[0].mxu0
    %v5440 = vadd.f32 0.0, %v5439
    %v5441 = vpop.f32.mrb[0].mxu0
    %v5442 = vpop.f32.mrb[0].mxu0
    %v5443 = vadd.f32 0.0, %v5442
    %v5444 = vpop.f32.mrb[0].mxu0
    %5445 = vmatprep.mubr.bf16.mxu0 0
    %5446 = vmatmul.mubr.bf16.gmra.mrb[0].mxu0 %v5300
    %v5447 = vpop.f32.mrb[0].mxu0
    %v5448 = vadd.f32 0.0, %v5447
    %v5449 = vpop.f32.mrb[0].mxu0
    %v5450 = vpop.f32.mrb[0].mxu0
    %v5451 = vadd.f32 0.0, %v5450
    %v5452 = vpop.f32.mrb[0].mxu0
    %5453 = vmatprep.mubr.bf16.mxu0 0
    %5454 = vmatmul.mubr.bf16.gmra.mrb[0].mxu0 %v5303
    %v5455 = vpop.f32.mrb[0].mxu0
    %v5456 = vadd.f32 0.0, %v5455
    %v5457 = vpop.f32.mrb[0].mxu0
    %v5458 = vpop.f32.mrb[0].mxu0
    %v5459 = vadd.f32 0.0, %v5458
    %v5460 = vpop.f32.mrb[0].mxu0
    %5461 = vmatprep.mubr.bf16.mxu0 0
    %5462 = vmatmul.mubr.bf16.gmra.mrb[0].mxu0 %v5306
    %v5463 = vpop.f32.mrb[0].mxu0
    %v5464 = vadd.f32 0.0, %v5463
    %v5465 = vpop.f32.mrb[0].mxu0
    %v5466 = vpop.f32.mrb[0].mxu0
    %v5467 = vadd.f32 0.0, %v5466
    %v5468 = vpop.f32.mrb[0].mxu0
    %5469 = vmatprep.mubr.bf16.mxu0 0
    %5470 = vmatmul.mubr.bf16.gmra.mrb[0].mxu0 %v5309
    %v5471 = vpop.f32.mrb[0].mxu0
    %v5472 = vadd.f32 0.0, %v5471
    %v5473 = vpop.f32.mrb[0].mxu0
    %v5474 = vpop.f32.mrb[0].mxu0
    %v5475 = vadd.f32 0.0, %v5474
    %v5476 = vpop.f32.mrb[0].mxu0
    %5477 = vdwg.mxu0
    %v5478 = vmul.f32 %v5352, 0.5
    %v5479 = vmul.f32 %v5355, 0.5
    %v5480 = vmul.f32 %v5360, 0.5
    %v5481 = vmul.f32 %v5363, 0.5
    %v5482 = vmul.f32 %v5368, 0.5
    %v5483 = vmul.f32 %v5371, 0.5
    %v5484 = vmul.f32 %v5376, 0.5
    %v5485 = vmul.f32 %v5379, 0.5
    %v5486 = vmul.f32 %v5384, 0.5
    %v5487 = vmul.f32 %v5387, 0.5
    %v5488 = vmul.f32 %v5392, 0.5
    %v5489 = vmul.f32 %v5395, 0.5
    %v5490 = vmul.f32 %v5400, 0.5
    %v5491 = vmul.f32 %v5403, 0.5
    %v5492 = vmul.f32 %v5408, 0.5
    %v5493 = vmul.f32 %v5411, 0.5
    %v5494 = vmul.f32 %v5416, 0.5
    %v5495 = vmul.f32 %v5419, 0.5
    %v5496 = vmul.f32 %v5424, 0.5
    %v5497 = vmul.f32 %v5427, 0.5
    %v5498 = vmul.f32 %v5432, 0.5
    %v5499 = vmul.f32 %v5435, 0.5
    %v5500 = vmul.f32 %v5440, 0.5
    %v5501 = vmul.f32 %v5443, 0.5
    %v5502 = vmul.f32 %v5448, 0.5
    %v5503 = vmul.f32 %v5451, 0.5
    %v5504 = vmul.f32 %v5456, 0.5
    %v5505 = vmul.f32 %v5459, 0.5
    %v5506 = vmul.f32 %v5464, 0.5
    %v5507 = vmul.f32 %v5467, 0.5
    %v5508 = vmul.f32 %v5472, 0.5
    %v5509 = vmul.f32 %v5475, 0.5
    %v5510 = vadd.f32 %v5478, %v3258
    %v5511 = vadd.f32 %v5479, %v3259
    %v5512 = vadd.f32 %v5480, %v3260
    %v5513 = vadd.f32 %v5481, %v3261
    %v5514 = vadd.f32 %v5482, %v3262
    %v5515 = vadd.f32 %v5483, %v3263
    %v5516 = vadd.f32 %v5484, %v3264
    %v5517 = vadd.f32 %v5485, %v3265
    %v5518 = vadd.f32 %v5486, %v3266
    %v5519 = vadd.f32 %v5487, %v3267
    %v5520 = vadd.f32 %v5488, %v3268
    %v5521 = vadd.f32 %v5489, %v3269
    %v5522 = vadd.f32 %v5490, %v3270
    %v5523 = vadd.f32 %v5491, %v3271
    %v5524 = vadd.f32 %v5492, %v3272
    %v5525 = vadd.f32 %v5493, %v3273
    %v5526 = vadd.f32 %v5494, %v3274
    %v5527 = vadd.f32 %v5495, %v3275
    %v5528 = vadd.f32 %v5496, %v3276
    %v5529 = vadd.f32 %v5497, %v3277
    %v5530 = vadd.f32 %v5498, %v3278
    %v5531 = vadd.f32 %v5499, %v3279
    %v5532 = vadd.f32 %v5500, %v3280
    %v5533 = vadd.f32 %v5501, %v3281
    %v5534 = vadd.f32 %v5502, %v3282
    %v5535 = vadd.f32 %v5503, %v3283
    %v5536 = vadd.f32 %v5504, %v3284
    %v5537 = vadd.f32 %v5505, %v3285
    %v5538 = vadd.f32 %v5506, %v3286
    %v5539 = vadd.f32 %v5507, %v3287
    %v5540 = vadd.f32 %v5508, %v3288
    %v5541 = vadd.f32 %v5509, %v3289
    %v5542 = vsel %vm208, %v5510, -inf
    %5543 = vmax.xlane.f32.xlu0 %v5542
    %v5544 = vpop.xlane.xlu0 %5543
    %v5545 = vsel %vm208, %v5511, -inf
    %5546 = vmax.xlane.f32.xlu0 %v5545
    %v5547 = vpop.xlane.xlu0 %5546
    %v5548 = vsel %vm208, %v5512, -inf
    %5549 = vmax.xlane.f32.xlu0 %v5548
    %v5550 = vpop.xlane.xlu0 %5549
    %v5551 = vsel %vm208, %v5513, -inf
    %5552 = vmax.xlane.f32.xlu0 %v5551
    %v5553 = vpop.xlane.xlu0 %5552
    %v5554 = vsel %vm208, %v5514, -inf
    %5555 = vmax.xlane.f32.xlu0 %v5554
    %v5556 = vpop.xlane.xlu0 %5555
    %v5557 = vsel %vm208, %v5515, -inf
    %5558 = vmax.xlane.f32.xlu0 %v5557
    %v5559 = vpop.xlane.xlu0 %5558
    %v5560 = vsel %vm208, %v5516, -inf
    %5561 = vmax.xlane.f32.xlu0 %v5560
    %v5562 = vpop.xlane.xlu0 %5561
    %v5563 = vsel %vm208, %v5517, -inf
    %5564 = vmax.xlane.f32.xlu0 %v5563
    %v5565 = vpop.xlane.xlu0 %5564
    %v5566 = vsel %vm208, %v5518, -inf
    %5567 = vmax.xlane.f32.xlu0 %v5566
    %v5568 = vpop.xlane.xlu0 %5567
    %v5569 = vsel %vm208, %v5519, -inf
    %5570 = vmax.xlane.f32.xlu0 %v5569
    %v5571 = vpop.xlane.xlu0 %5570
    %v5572 = vsel %vm208, %v5520, -inf
    %5573 = vmax.xlane.f32.xlu0 %v5572
    %v5574 = vpop.xlane.xlu0 %5573
    %v5575 = vsel %vm208, %v5521, -inf
    %5576 = vmax.xlane.f32.xlu0 %v5575
    %v5577 = vpop.xlane.xlu0 %5576
    %v5578 = vsel %vm208, %v5522, -inf
    %5579 = vmax.xlane.f32.xlu0 %v5578
    %v5580 = vpop.xlane.xlu0 %5579
    %v5581 = vsel %vm208, %v5523, -inf
    %5582 = vmax.xlane.f32.xlu0 %v5581
    %v5583 = vpop.xlane.xlu0 %5582
    %v5584 = vsel %vm208, %v5524, -inf
    %5585 = vmax.xlane.f32.xlu0 %v5584
    %v5586 = vpop.xlane.xlu0 %5585
    %v5587 = vsel %vm208, %v5525, -inf
    %5588 = vmax.xlane.f32.xlu0 %v5587
    %v5589 = vpop.xlane.xlu0 %5588
    %v5590 = vsel %vm208, %v5526, -inf
    %5591 = vmax.xlane.f32.xlu0 %v5590
    %v5592 = vpop.xlane.xlu0 %5591
    %v5593 = vsel %vm208, %v5527, -inf
    %5594 = vmax.xlane.f32.xlu0 %v5593
    %v5595 = vpop.xlane.xlu0 %5594
    %v5596 = vsel %vm208, %v5528, -inf
    %5597 = vmax.xlane.f32.xlu0 %v5596
    %v5598 = vpop.xlane.xlu0 %5597
    %v5599 = vsel %vm208, %v5529, -inf
    %5600 = vmax.xlane.f32.xlu0 %v5599
    %v5601 = vpop.xlane.xlu0 %5600
    %v5602 = vsel %vm208, %v5530, -inf
    %5603 = vmax.xlane.f32.xlu0 %v5602
    %v5604 = vpop.xlane.xlu0 %5603
    %v5605 = vsel %vm208, %v5531, -inf
    %5606 = vmax.xlane.f32.xlu0 %v5605
    %v5607 = vpop.xlane.xlu0 %5606
    %v5608 = vsel %vm208, %v5532, -inf
    %5609 = vmax.xlane.f32.xlu0 %v5608
    %v5610 = vpop.xlane.xlu0 %5609
    %v5611 = vsel %vm208, %v5533, -inf
    %5612 = vmax.xlane.f32.xlu0 %v5611
    %v5613 = vpop.xlane.xlu0 %5612
    %v5614 = vsel %vm208, %v5534, -inf
    %5615 = vmax.xlane.f32.xlu0 %v5614
    %v5616 = vpop.xlane.xlu0 %5615
    %v5617 = vsel %vm208, %v5535, -inf
    %5618 = vmax.xlane.f32.xlu0 %v5617
    %v5619 = vpop.xlane.xlu0 %5618
    %v5620 = vsel %vm208, %v5536, -inf
    %5621 = vmax.xlane.f32.xlu0 %v5620
    %v5622 = vpop.xlane.xlu0 %5621
    %v5623 = vsel %vm208, %v5537, -inf
    %5624 = vmax.xlane.f32.xlu0 %v5623
    %v5625 = vpop.xlane.xlu0 %5624
    %v5626 = vsel %vm208, %v5538, -inf
    %5627 = vmax.xlane.f32.xlu0 %v5626
    %v5628 = vpop.xlane.xlu0 %5627
    %v5629 = vsel %vm208, %v5539, -inf
    %5630 = vmax.xlane.f32.xlu0 %v5629
    %v5631 = vpop.xlane.xlu0 %5630
    %v5632 = vsel %vm208, %v5540, -inf
    %5633 = vmax.xlane.f32.xlu0 %v5632
    %v5634 = vpop.xlane.xlu0 %5633
    %v5635 = vsel %vm208, %v5541, -inf
    %5636 = vmax.xlane.f32.xlu0 %v5635
    %v5637 = vpop.xlane.xlu0 %5636
    %v5638 = vsub.f32 %v5510, %v5544
    %v5639 = vsub.f32 %v5511, %v5547
    %v5640 = vsub.f32 %v5512, %v5550
    %v5641 = vsub.f32 %v5513, %v5553
    %v5642 = vsub.f32 %v5514, %v5556
    %v5643 = vsub.f32 %v5515, %v5559
    %v5644 = vsub.f32 %v5516, %v5562
    %v5645 = vsub.f32 %v5517, %v5565
    %v5646 = vsub.f32 %v5518, %v5568
    %v5647 = vsub.f32 %v5519, %v5571
    %v5648 = vsub.f32 %v5520, %v5574
    %v5649 = vsub.f32 %v5521, %v5577
    %v5650 = vsub.f32 %v5522, %v5580
    %v5651 = vsub.f32 %v5523, %v5583
    %v5652 = vsub.f32 %v5524, %v5586
    %v5653 = vsub.f32 %v5525, %v5589
    %v5654 = vsub.f32 %v5526, %v5592
    %v5655 = vsub.f32 %v5527, %v5595
    %v5656 = vsub.f32 %v5528, %v5598
    %v5657 = vsub.f32 %v5529, %v5601
    %v5658 = vsub.f32 %v5530, %v5604
    %v5659 = vsub.f32 %v5531, %v5607
    %v5660 = vsub.f32 %v5532, %v5610
    %v5661 = vsub.f32 %v5533, %v5613
    %v5662 = vsub.f32 %v5534, %v5616
    %v5663 = vsub.f32 %v5535, %v5619
    %v5664 = vsub.f32 %v5536, %v5622
    %v5665 = vsub.f32 %v5537, %v5625
    %v5666 = vsub.f32 %v5538, %v5628
    %v5667 = vsub.f32 %v5539, %v5631
    %v5668 = vsub.f32 %v5540, %v5634
    %v5669 = vsub.f32 %v5541, %v5637
    %v5670 = vmul.f32 %v5638, 1.442695
    %v5671 = vpow.pop %v5670
    %v5672 = vmul.f32 %v5639, 1.442695
    %v5673 = vpow.pop %v5672
    %v5674 = vmul.f32 %v5640, 1.442695
    %v5675 = vpow.pop %v5674
    %v5676 = vmul.f32 %v5641, 1.442695
    %v5677 = vpow.pop %v5676
    %v5678 = vmul.f32 %v5642, 1.442695
    %v5679 = vpow.pop %v5678
    %v5680 = vmul.f32 %v5643, 1.442695
    %v5681 = vpow.pop %v5680
    %v5682 = vmul.f32 %v5644, 1.442695
    %v5683 = vpow.pop %v5682
    %v5684 = vmul.f32 %v5645, 1.442695
    %v5685 = vpow.pop %v5684
    %v5686 = vmul.f32 %v5646, 1.442695
    %v5687 = vpow.pop %v5686
    %v5688 = vmul.f32 %v5647, 1.442695
    %v5689 = vpow.pop %v5688
    %v5690 = vmul.f32 %v5648, 1.442695
    %v5691 = vpow.pop %v5690
    %v5692 = vmul.f32 %v5649, 1.442695
    %v5693 = vpow.pop %v5692
    %v5694 = vmul.f32 %v5650, 1.442695
    %v5695 = vpow.pop %v5694
    %v5696 = vmul.f32 %v5651, 1.442695
    %v5697 = vpow.pop %v5696
    %v5698 = vmul.f32 %v5652, 1.442695
    %v5699 = vpow.pop %v5698
    %v5700 = vmul.f32 %v5653, 1.442695
    %v5701 = vpow.pop %v5700
    %v5702 = vmul.f32 %v5654, 1.442695
    %v5703 = vpow.pop %v5702
    %v5704 = vmul.f32 %v5655, 1.442695
    %v5705 = vpow.pop %v5704
    %v5706 = vmul.f32 %v5656, 1.442695
    %v5707 = vpow.pop %v5706
    %v5708 = vmul.f32 %v5657, 1.442695
    %v5709 = vpow.pop %v5708
    %v5710 = vmul.f32 %v5658, 1.442695
    %v5711 = vpow.pop %v5710
    %v5712 = vmul.f32 %v5659, 1.442695
    %v5713 = vpow.pop %v5712
    %v5714 = vmul.f32 %v5660, 1.442695
    %v5715 = vpow.pop %v5714
    %v5716 = vmul.f32 %v5661, 1.442695
    %v5717 = vpow.pop %v5716
    %v5718 = vmul.f32 %v5662, 1.442695
    %v5719 = vpow.pop %v5718
    %v5720 = vmul.f32 %v5663, 1.442695
    %v5721 = vpow.pop %v5720
    %v5722 = vmul.f32 %v5664, 1.442695
    %v5723 = vpow.pop %v5722
    %v5724 = vmul.f32 %v5665, 1.442695
    %v5725 = vpow.pop %v5724
    %v5726 = vmul.f32 %v5666, 1.442695
    %v5727 = vpow.pop %v5726
    %v5728 = vmul.f32 %v5667, 1.442695
    %v5729 = vpow.pop %v5728
    %v5730 = vmul.f32 %v5668, 1.442695
    %v5731 = vpow.pop %v5730
    %v5732 = vmul.f32 %v5669, 1.442695
    %v5733 = vpow.pop %v5732
    %v5734 = vsel %vm208, %v5671, 0.0
    %5735 = vadd.xlane.f32.xlu0 %v5734
    %v5736 = vpop.xlane.xlu0 %5735
    %v5737 = vsel %vm208, %v5673, 0.0
    %5738 = vadd.xlane.f32.xlu0 %v5737
    %v5739 = vpop.xlane.xlu0 %5738
    %v5740 = vsel %vm208, %v5675, 0.0
    %5741 = vadd.xlane.f32.xlu0 %v5740
    %v5742 = vpop.xlane.xlu0 %5741
    %v5743 = vsel %vm208, %v5677, 0.0
    %5744 = vadd.xlane.f32.xlu0 %v5743
    %v5745 = vpop.xlane.xlu0 %5744
    %v5746 = vsel %vm208, %v5679, 0.0
    %5747 = vadd.xlane.f32.xlu0 %v5746
    %v5748 = vpop.xlane.xlu0 %5747
    %v5749 = vsel %vm208, %v5681, 0.0
    %5750 = vadd.xlane.f32.xlu0 %v5749
    %v5751 = vpop.xlane.xlu0 %5750
    %v5752 = vsel %vm208, %v5683, 0.0
    %5753 = vadd.xlane.f32.xlu0 %v5752
    %v5754 = vpop.xlane.xlu0 %5753
    %v5755 = vsel %vm208, %v5685, 0.0
    %5756 = vadd.xlane.f32.xlu0 %v5755
    %v5757 = vpop.xlane.xlu0 %5756
    %v5758 = vsel %vm208, %v5687, 0.0
    %5759 = vadd.xlane.f32.xlu0 %v5758
    %v5760 = vpop.xlane.xlu0 %5759
    %v5761 = vsel %vm208, %v5689, 0.0
    %5762 = vadd.xlane.f32.xlu0 %v5761
    %v5763 = vpop.xlane.xlu0 %5762
    %v5764 = vsel %vm208, %v5691, 0.0
    %5765 = vadd.xlane.f32.xlu0 %v5764
    %v5766 = vpop.xlane.xlu0 %5765
    %v5767 = vsel %vm208, %v5693, 0.0
    %5768 = vadd.xlane.f32.xlu0 %v5767
    %v5769 = vpop.xlane.xlu0 %5768
    %v5770 = vsel %vm208, %v5695, 0.0
    %5771 = vadd.xlane.f32.xlu0 %v5770
    %v5772 = vpop.xlane.xlu0 %5771
    %v5773 = vsel %vm208, %v5697, 0.0
    %5774 = vadd.xlane.f32.xlu0 %v5773
    %v5775 = vpop.xlane.xlu0 %5774
    %v5776 = vsel %vm208, %v5699, 0.0
    %5777 = vadd.xlane.f32.xlu0 %v5776
    %v5778 = vpop.xlane.xlu0 %5777
    %v5779 = vsel %vm208, %v5701, 0.0
    %5780 = vadd.xlane.f32.xlu0 %v5779
    %v5781 = vpop.xlane.xlu0 %5780
    %v5782 = vsel %vm208, %v5703, 0.0
    %5783 = vadd.xlane.f32.xlu0 %v5782
    %v5784 = vpop.xlane.xlu0 %5783
    %v5785 = vsel %vm208, %v5705, 0.0
    %5786 = vadd.xlane.f32.xlu0 %v5785
    %v5787 = vpop.xlane.xlu0 %5786
    %v5788 = vsel %vm208, %v5707, 0.0
    %5789 = vadd.xlane.f32.xlu0 %v5788
    %v5790 = vpop.xlane.xlu0 %5789
    %v5791 = vsel %vm208, %v5709, 0.0
    %5792 = vadd.xlane.f32.xlu0 %v5791
    %v5793 = vpop.xlane.xlu0 %5792
    %v5794 = vsel %vm208, %v5711, 0.0
    %5795 = vadd.xlane.f32.xlu0 %v5794
    %v5796 = vpop.xlane.xlu0 %5795
    %v5797 = vsel %vm208, %v5713, 0.0
    %5798 = vadd.xlane.f32.xlu0 %v5797
    %v5799 = vpop.xlane.xlu0 %5798
    %v5800 = vsel %vm208, %v5715, 0.0
    %5801 = vadd.xlane.f32.xlu0 %v5800
    %v5802 = vpop.xlane.xlu0 %5801
    %v5803 = vsel %vm208, %v5717, 0.0
    %5804 = vadd.xlane.f32.xlu0 %v5803
    %v5805 = vpop.xlane.xlu0 %5804
    %v5806 = vsel %vm208, %v5719, 0.0
    %5807 = vadd.xlane.f32.xlu0 %v5806
    %v5808 = vpop.xlane.xlu0 %5807
    %v5809 = vsel %vm208, %v5721, 0.0
    %5810 = vadd.xlane.f32.xlu0 %v5809
    %v5811 = vpop.xlane.xlu0 %5810
    %v5812 = vsel %vm208, %v5723, 0.0
    %5813 = vadd.xlane.f32.xlu0 %v5812
    %v5814 = vpop.xlane.xlu0 %5813
    %v5815 = vsel %vm208, %v5725, 0.0
    %5816 = vadd.xlane.f32.xlu0 %v5815
    %v5817 = vpop.xlane.xlu0 %5816
    %v5818 = vsel %vm208, %v5727, 0.0
    %5819 = vadd.xlane.f32.xlu0 %v5818
    %v5820 = vpop.xlane.xlu0 %5819
    %v5821 = vsel %vm208, %v5729, 0.0
    %5822 = vadd.xlane.f32.xlu0 %v5821
    %v5823 = vpop.xlane.xlu0 %5822
    %v5824 = vsel %vm208, %v5731, 0.0
    %5825 = vadd.xlane.f32.xlu0 %v5824
    %v5826 = vpop.xlane.xlu0 %5825
    %v5827 = vsel %vm208, %v5733, 0.0
    %5828 = vadd.xlane.f32.xlu0 %v5827
    %v5829 = vpop.xlane.xlu0 %5828
    %v5830 = vrcp.pop %v5736
    %v5831 = vrcp.pop %v5739
    %v5832 = vrcp.pop %v5742
    %v5833 = vrcp.pop %v5745
    %v5834 = vrcp.pop %v5748
    %v5835 = vrcp.pop %v5751
    %v5836 = vrcp.pop %v5754
    %v5837 = vrcp.pop %v5757
    %v5838 = vrcp.pop %v5760
    %v5839 = vrcp.pop %v5763
    %v5840 = vrcp.pop %v5766
    %v5841 = vrcp.pop %v5769
    %v5842 = vrcp.pop %v5772
    %v5843 = vrcp.pop %v5775
    %v5844 = vrcp.pop %v5778
    %v5845 = vrcp.pop %v5781
    %v5846 = vrcp.pop %v5784
    %v5847 = vrcp.pop %v5787
    %v5848 = vrcp.pop %v5790
    %v5849 = vrcp.pop %v5793
    %v5850 = vrcp.pop %v5796
    %v5851 = vrcp.pop %v5799
    %v5852 = vrcp.pop %v5802
    %v5853 = vrcp.pop %v5805
    %v5854 = vrcp.pop %v5808
    %v5855 = vrcp.pop %v5811
    %v5856 = vrcp.pop %v5814
    %v5857 = vrcp.pop %v5817
    %v5858 = vrcp.pop %v5820
    %v5859 = vrcp.pop %v5823
    %v5860 = vrcp.pop %v5826
    %v5861 = vrcp.pop %v5829
    %v5862 = vmul.f32 %v5671, %v5830
    %v5863 = vmul.f32 %v5673, %v5831
    %v5864 = vmul.f32 %v5675, %v5832
    %v5865 = vmul.f32 %v5677, %v5833
    %v5866 = vmul.f32 %v5679, %v5834
    %v5867 = vmul.f32 %v5681, %v5835
    %v5868 = vmul.f32 %v5683, %v5836
    %v5869 = vmul.f32 %v5685, %v5837
    %v5870 = vmul.f32 %v5687, %v5838
    %v5871 = vmul.f32 %v5689, %v5839
    %v5872 = vmul.f32 %v5691, %v5840
    %v5873 = vmul.f32 %v5693, %v5841
    %v5874 = vmul.f32 %v5695, %v5842
    %v5875 = vmul.f32 %v5697, %v5843
    %v5876 = vmul.f32 %v5699, %v5844
    %v5877 = vmul.f32 %v5701, %v5845
    %v5878 = vmul.f32 %v5703, %v5846
    %v5879 = vmul.f32 %v5705, %v5847
    %v5880 = vmul.f32 %v5707, %v5848
    %v5881 = vmul.f32 %v5709, %v5849
    %v5882 = vmul.f32 %v5711, %v5850
    %v5883 = vmul.f32 %v5713, %v5851
    %v5884 = vmul.f32 %v5715, %v5852
    %v5885 = vmul.f32 %v5717, %v5853
    %v5886 = vmul.f32 %v5719, %v5854
    %v5887 = vmul.f32 %v5721, %v5855
    %v5888 = vmul.f32 %v5723, %v5856
    %v5889 = vmul.f32 %v5725, %v5857
    %v5890 = vmul.f32 %v5727, %v5858
    %v5891 = vmul.f32 %v5729, %v5859
    %v5892 = vmul.f32 %v5731, %v5860
    %v5893 = vmul.f32 %v5733, %v5861
    %v5894 = vpack.c.bf16 %v5863, %v5862
    %v5895 = vpack.c.bf16 %v5865, %v5864
    %v5896 = vpack.c.bf16 %v5867, %v5866
    %v5897 = vpack.c.bf16 %v5869, %v5868
    %v5898 = vpack.c.bf16 %v5871, %v5870
    %v5899 = vpack.c.bf16 %v5873, %v5872
    %v5900 = vpack.c.bf16 %v5875, %v5874
    %v5901 = vpack.c.bf16 %v5877, %v5876
    %v5902 = vpack.c.bf16 %v5879, %v5878
    %v5903 = vpack.c.bf16 %v5881, %v5880
    %v5904 = vpack.c.bf16 %v5883, %v5882
    %v5905 = vpack.c.bf16 %v5885, %v5884
    %v5906 = vpack.c.bf16 %v5887, %v5886
    %v5907 = vpack.c.bf16 %v5889, %v5888
    %v5908 = vpack.c.bf16 %v5891, %v5890
    %v5909 = vpack.c.bf16 %v5893, %v5892
    %v5910 = vpack.c.bf16 %v5202, %v5199
    %v5911 = vpack.c.bf16 %v5210, %v5207
    %v5913 = vsel %vm208, %v5894, 0
    %v5916 = vsel %vm208, %v5895, 0
    %v5919 = vsel %vm208, %v5896, 0
    %v5922 = vsel %vm208, %v5897, 0
    %v5925 = vsel %vm208, %v5898, 0
    %v5928 = vsel %vm208, %v5899, 0
    %v5931 = vsel %vm208, %v5900, 0
    %v5934 = vsel %vm208, %v5901, 0
    %v5937 = vsel %vm208, %v5902, 0
    %v5940 = vsel %vm208, %v5903, 0
    %v5943 = vsel %vm208, %v5904, 0
    %v5946 = vsel %vm208, %v5905, 0
    %v5949 = vsel %vm208, %v5906, 0
    %v5952 = vsel %vm208, %v5907, 0
    %v5955 = vsel %vm208, %v5908, 0
    %v5958 = vsel %vm208, %v5909, 0
    %5960 = vmatprep.subr.bf16.mxu0 0
    %5961 = vmatpush1.bf16.msra.mxu0 %v5910
    %5962 = vmatprep.subr.bf16.mxu0 0
    %5963 = vmatpush1.bf16.msra.mxu0 %v5911
    %5964 = vmatprep.subr.bf16.mxu0 0
    %5965 = vmatpush1.bf16.msra.mxu0 0
    %5966 = vmatprep.subr.bf16.mxu0 0
    %5967 = vmatpush1.bf16.msra.mxu0 0
    %5968 = vmatprep.subr.bf16.mxu0 0
    %5969 = vmatpush1.bf16.msra.mxu0 0
    %5970 = vmatprep.subr.bf16.mxu0 0
    %5971 = vmatpush1.bf16.msra.mxu0 0
    %5972 = vmatprep.subr.bf16.mxu0 0
    %5973 = vmatpush1.bf16.msra.mxu0 0
    %5974 = vmatprep.subr.bf16.mxu0 0
    %5975 = vmatpush1.bf16.msra.mxu0 0
    %5976 = vmatprep.subr.bf16.mxu0 0
    %5977 = vmatpush1.bf16.msra.mxu0 0
    %5978 = vmatprep.subr.bf16.mxu0 0
    %5979 = vmatpush1.bf16.msra.mxu0 0
    %5980 = vmatprep.subr.bf16.mxu0 0
    %5981 = vmatpush1.bf16.msra.mxu0 0
    %5982 = vmatprep.subr.bf16.mxu0 0
    %5983 = vmatpush1.bf16.msra.mxu0 0
    %5984 = vmatprep.subr.bf16.mxu0 0
    %5985 = vmatpush1.bf16.msra.mxu0 0
    %5986 = vmatprep.subr.bf16.mxu0 0
    %5987 = vmatpush1.bf16.msra.mxu0 0
    %5988 = vmatprep.subr.bf16.mxu0 0
    %5989 = vmatpush1.bf16.msra.mxu0 0
    %5990 = vmatprep.subr.bf16.mxu0 0
    %5991 = vmatpush1.bf16.msra.mxu0 0
    %5992 = vmatprep.mubr.bf16.mxu0 0
    %5993 = vmatmul.mubr.bf16.gmra.mrb[0].mxu0 %v5913
    %v5994 = vpop.f32.mrb[0].mxu0
    %v5995 = vadd.f32 0.0, %v5994
    %v5996 = vpop.f32.mrb[0].mxu0
    %v5997 = vpop.f32.mrb[0].mxu0
    %v5998 = vadd.f32 0.0, %v5997
    %v5999 = vpop.f32.mrb[0].mxu0
    %6000 = vmatprep.mubr.bf16.mxu0 0
    %6001 = vmatmul.mubr.bf16.gmra.mrb[0].mxu0 %v5916
    %v6002 = vpop.f32.mrb[0].mxu0
    %v6003 = vadd.f32 0.0, %v6002
    %v6004 = vpop.f32.mrb[0].mxu0
    %v6005 = vpop.f32.mrb[0].mxu0
    %v6006 = vadd.f32 0.0, %v6005
    %v6007 = vpop.f32.mrb[0].mxu0
    %6008 = vmatprep.mubr.bf16.mxu0 0
    %6009 = vmatmul.mubr.bf16.gmra.mrb[0].mxu0 %v5919
    %v6010 = vpop.f32.mrb[0].mxu0
    %v6011 = vadd.f32 0.0, %v6010
    %v6012 = vpop.f32.mrb[0].mxu0
    %v6013 = vpop.f32.mrb[0].mxu0
    %v6014 = vadd.f32 0.0, %v6013
    %v6015 = vpop.f32.mrb[0].mxu0
    %6016 = vmatprep.mubr.bf16.mxu0 0
    %6017 = vmatmul.mubr.bf16.gmra.mrb[0].mxu0 %v5922
    %v6018 = vpop.f32.mrb[0].mxu0
    %v6019 = vadd.f32 0.0, %v6018
    %v6020 = vpop.f32.mrb[0].mxu0
    %v6021 = vpop.f32.mrb[0].mxu0
    %v6022 = vadd.f32 0.0, %v6021
    %v6023 = vpop.f32.mrb[0].mxu0
    %6024 = vmatprep.mubr.bf16.mxu0 0
    %6025 = vmatmul.mubr.bf16.gmra.mrb[0].mxu0 %v5925
    %v6026 = vpop.f32.mrb[0].mxu0
    %v6027 = vadd.f32 0.0, %v6026
    %v6028 = vpop.f32.mrb[0].mxu0
    %v6029 = vpop.f32.mrb[0].mxu0
    %v6030 = vadd.f32 0.0, %v6029
    %v6031 = vpop.f32.mrb[0].mxu0
    %6032 = vmatprep.mubr.bf16.mxu0 0
    %6033 = vmatmul.mubr.bf16.gmra.mrb[0].mxu0 %v5928
    %v6034 = vpop.f32.mrb[0].mxu0
    %v6035 = vadd.f32 0.0, %v6034
    %v6036 = vpop.f32.mrb[0].mxu0
    %v6037 = vpop.f32.mrb[0].mxu0
    %v6038 = vadd.f32 0.0, %v6037
    %v6039 = vpop.f32.mrb[0].mxu0
    %6040 = vmatprep.mubr.bf16.mxu0 0
    %6041 = vmatmul.mubr.bf16.gmra.mrb[0].mxu0 %v5931
    %v6042 = vpop.f32.mrb[0].mxu0
    %v6043 = vadd.f32 0.0, %v6042
    %v6044 = vpop.f32.mrb[0].mxu0
    %v6045 = vpop.f32.mrb[0].mxu0
    %v6046 = vadd.f32 0.0, %v6045
    %v6047 = vpop.f32.mrb[0].mxu0
    %6048 = vmatprep.mubr.bf16.mxu0 0
    %6049 = vmatmul.mubr.bf16.gmra.mrb[0].mxu0 %v5934
    %v6050 = vpop.f32.mrb[0].mxu0
    %v6051 = vadd.f32 0.0, %v6050
    %v6052 = vpop.f32.mrb[0].mxu0
    %v6053 = vpop.f32.mrb[0].mxu0
    %v6054 = vadd.f32 0.0, %v6053
    %v6055 = vpop.f32.mrb[0].mxu0
    %6056 = vmatprep.mubr.bf16.mxu0 0
    %6057 = vmatmul.mubr.bf16.gmra.mrb[0].mxu0 %v5937
    %v6058 = vpop.f32.mrb[0].mxu0
    %v6059 = vadd.f32 0.0, %v6058
    %v6060 = vpop.f32.mrb[0].mxu0
    %v6061 = vpop.f32.mrb[0].mxu0
    %v6062 = vadd.f32 0.0, %v6061
    %v6063 = vpop.f32.mrb[0].mxu0
    %6064 = vmatprep.mubr.bf16.mxu0 0
    %6065 = vmatmul.mubr.bf16.gmra.mrb[0].mxu0 %v5940
    %v6066 = vpop.f32.mrb[0].mxu0
    %v6067 = vadd.f32 0.0, %v6066
    %v6068 = vpop.f32.mrb[0].mxu0
    %v6069 = vpop.f32.mrb[0].mxu0
    %v6070 = vadd.f32 0.0, %v6069
    %v6071 = vpop.f32.mrb[0].mxu0
    %6072 = vmatprep.mubr.bf16.mxu0 0
    %6073 = vmatmul.mubr.bf16.gmra.mrb[0].mxu0 %v5943
    %v6074 = vpop.f32.mrb[0].mxu0
    %v6075 = vadd.f32 0.0, %v6074
    %v6076 = vpop.f32.mrb[0].mxu0
    %v6077 = vpop.f32.mrb[0].mxu0
    %v6078 = vadd.f32 0.0, %v6077
    %v6079 = vpop.f32.mrb[0].mxu0
    %6080 = vmatprep.mubr.bf16.mxu0 0
    %6081 = vmatmul.mubr.bf16.gmra.mrb[0].mxu0 %v5946
    %v6082 = vpop.f32.mrb[0].mxu0
    %v6083 = vadd.f32 0.0, %v6082
    %v6084 = vpop.f32.mrb[0].mxu0
    %v6085 = vpop.f32.mrb[0].mxu0
    %v6086 = vadd.f32 0.0, %v6085
    %v6087 = vpop.f32.mrb[0].mxu0
    %6088 = vmatprep.mubr.bf16.mxu0 0
    %6089 = vmatmul.mubr.bf16.gmra.mrb[0].mxu0 %v5949
    %v6090 = vpop.f32.mrb[0].mxu0
    %v6091 = vadd.f32 0.0, %v6090
    %v6092 = vpop.f32.mrb[0].mxu0
    %v6093 = vpop.f32.mrb[0].mxu0
    %v6094 = vadd.f32 0.0, %v6093
    %v6095 = vpop.f32.mrb[0].mxu0
    %6096 = vmatprep.mubr.bf16.mxu0 0
    %6097 = vmatmul.mubr.bf16.gmra.mrb[0].mxu0 %v5952
    %v6098 = vpop.f32.mrb[0].mxu0
    %v6099 = vadd.f32 0.0, %v6098
    %v6100 = vpop.f32.mrb[0].mxu0
    %v6101 = vpop.f32.mrb[0].mxu0
    %v6102 = vadd.f32 0.0, %v6101
    %v6103 = vpop.f32.mrb[0].mxu0
    %6104 = vmatprep.mubr.bf16.mxu0 0
    %6105 = vmatmul.mubr.bf16.gmra.mrb[0].mxu0 %v5955
    %v6106 = vpop.f32.mrb[0].mxu0
    %v6107 = vadd.f32 0.0, %v6106
    %v6108 = vpop.f32.mrb[0].mxu0
    %v6109 = vpop.f32.mrb[0].mxu0
    %v6110 = vadd.f32 0.0, %v6109
    %v6111 = vpop.f32.mrb[0].mxu0
    %6112 = vmatprep.mubr.bf16.mxu0 0
    %6113 = vmatmul.mubr.bf16.gmra.mrb[0].mxu0 %v5958
    %v6114 = vpop.f32.mrb[0].mxu0
    %v6115 = vadd.f32 0.0, %v6114
    %v6116 = vpop.f32.mrb[0].mxu0
    %v6117 = vpop.f32.mrb[0].mxu0
    %v6118 = vadd.f32 0.0, %v6117
    %v6119 = vpop.f32.mrb[0].mxu0
    %6120 = vdwg.mxu0
    %v6121 = vmul.f32 %v5995, %v3226
    %v6122 = vmul.f32 %v5998, %v3227
    %v6123 = vmul.f32 %v6003, %v3228
    %v6124 = vmul.f32 %v6006, %v3229
    %v6125 = vmul.f32 %v6011, %v3230
    %v6126 = vmul.f32 %v6014, %v3231
    %v6127 = vmul.f32 %v6019, %v3232
    %v6128 = vmul.f32 %v6022, %v3233
    %v6129 = vmul.f32 %v6027, %v3234
    %v6130 = vmul.f32 %v6030, %v3235
    %v6131 = vmul.f32 %v6035, %v3236
    %v6132 = vmul.f32 %v6038, %v3237
    %v6133 = vmul.f32 %v6043, %v3238
    %v6134 = vmul.f32 %v6046, %v3239
    %v6135 = vmul.f32 %v6051, %v3240
    %v6136 = vmul.f32 %v6054, %v3241
    %v6137 = vmul.f32 %v6059, %v3242
    %v6138 = vmul.f32 %v6062, %v3243
    %v6139 = vmul.f32 %v6067, %v3244
    %v6140 = vmul.f32 %v6070, %v3245
    %v6141 = vmul.f32 %v6075, %v3246
    %v6142 = vmul.f32 %v6078, %v3247
    %v6143 = vmul.f32 %v6083, %v3248
    %v6144 = vmul.f32 %v6086, %v3249
    %v6145 = vmul.f32 %v6091, %v3250
    %v6146 = vmul.f32 %v6094, %v3251
    %v6147 = vmul.f32 %v6099, %v3252
    %v6148 = vmul.f32 %v6102, %v3253
    %v6149 = vmul.f32 %v6107, %v3254
    %v6150 = vmul.f32 %v6110, %v3255
    %v6151 = vmul.f32 %v6115, %v3256
    %v6152 = vmul.f32 %v6118, %v3257
    %v6153 = vadd.f32 %v6121, %v6125
    %v6154 = vadd.f32 %v6122, %v6126
    %v6155 = vadd.f32 %v6123, %v6127
    %v6156 = vadd.f32 %v6124, %v6128
    %v6157 = vadd.f32 %v6129, %v6133
    %v6158 = vadd.f32 %v6130, %v6134
    %v6159 = vadd.f32 %v6131, %v6135
    %v6160 = vadd.f32 %v6132, %v6136
    %v6161 = vadd.f32 %v6137, %v6141
    %v6162 = vadd.f32 %v6138, %v6142
    %v6163 = vadd.f32 %v6139, %v6143
    %v6164 = vadd.f32 %v6140, %v6144
    %v6165 = vadd.f32 %v6145, %v6149
    %v6166 = vadd.f32 %v6146, %v6150
    %v6167 = vadd.f32 %v6147, %v6151
    %v6168 = vadd.f32 %v6148, %v6152
    %v6169 = vadd.f32 %v6153, %v6157
    %v6170 = vadd.f32 %v6154, %v6158
    %v6171 = vadd.f32 %v6155, %v6159
    %v6172 = vadd.f32 %v6156, %v6160
    %v6173 = vadd.f32 %v6161, %v6165
    %v6174 = vadd.f32 %v6162, %v6166
    %v6175 = vadd.f32 %v6163, %v6167
    %v6176 = vadd.f32 %v6164, %v6168
    %v6177 = vadd.f32 %v6169, %v6173
    %v6178 = vadd.f32 %v6170, %v6174
    %v6179 = vadd.f32 %v6171, %v6175
    %v6180 = vadd.f32 %v6172, %v6176
    %s6181 = scalar_lea.vmem %s49, 16
    %v6182 = vld [vmem:[%s6181] sm:$0xf]
    %v6183 = vld [vmem:[%s6181 + $0x4] sm:$0xf]
    %v6184 = vld [vmem:[%s6181 + $0x8] sm:$0xf]
    %v6185 = vld [vmem:[%s6181 + $0xc] sm:$0xf]
    %v6186 = vpack.c.bf16 %v6178, %v6177
    %v6187 = vpack.c.bf16 %v6180, %v6179
    %v6192 = vunpack.c.l.b16 %v6182
    %v6193 = vunpack.c.l.b16 %v6183
    %v6194 = vunpack.c.l.b16 %v6184
    %v6195 = vunpack.c.l.b16 %v6185
    %v6196 = vpack.c.b16 %v6193, %v6192
    %v6197 = vpack.c.b16 %v6195, %v6194
    %v6201 = vsel %vm208, %v6186, 0
    %v6204 = vsel %vm208, %v6187, 0
    %6206 = vmatprep.subr.bf16.mxu0 0
    %6207 = vmatpush1.bf16.msra.mxu0 %v6196
    %6208 = vmatprep.subr.bf16.mxu0 0
    %6209 = vmatpush1.bf16.msra.mxu0 %v6197
    %6210 = vmatprep.subr.bf16.mxu0 0
    %6211 = vmatpush1.bf16.msra.mxu0 0
    %6212 = vmatprep.subr.bf16.mxu0 0
    %6213 = vmatpush1.bf16.msra.mxu0 0
    %6214 = vmatprep.subr.bf16.mxu0 0
    %6215 = vmatpush1.bf16.msra.mxu0 0
    %6216 = vmatprep.subr.bf16.mxu0 0
    %6217 = vmatpush1.bf16.msra.mxu0 0
    %6218 = vmatprep.subr.bf16.mxu0 0
    %6219 = vmatpush1.bf16.msra.mxu0 0
    %6220 = vmatprep.subr.bf16.mxu0 0
    %6221 = vmatpush1.bf16.msra.mxu0 0
    %6222 = vmatprep.subr.bf16.mxu0 0
    %6223 = vmatpush1.bf16.msra.mxu0 0
    %6224 = vmatprep.subr.bf16.mxu0 0
    %6225 = vmatpush1.bf16.msra.mxu0 0
    %6226 = vmatprep.subr.bf16.mxu0 0
    %6227 = vmatpush1.bf16.msra.mxu0 0
    %6228 = vmatprep.subr.bf16.mxu0 0
    %6229 = vmatpush1.bf16.msra.mxu0 0
    %6230 = vmatprep.subr.bf16.mxu0 0
    %6231 = vmatpush1.bf16.msra.mxu0 0
    %6232 = vmatprep.subr.bf16.mxu0 0
    %6233 = vmatpush1.bf16.msra.mxu0 0
    %6234 = vmatprep.subr.bf16.mxu0 0
    %6235 = vmatpush1.bf16.msra.mxu0 0
    %6236 = vmatprep.subr.bf16.mxu0 0
    %6237 = vmatpush1.bf16.msra.mxu0 0
    %6238 = vmatprep.mubr.bf16.mxu0 0
    %6239 = vmatmul.mubr.bf16.gmra.mrb[0].mxu0 %v6201
    %v6240 = vpop.f32.mrb[0].mxu0
    %v6241 = vadd.f32 0.0, %v6240
    %v6242 = vpop.f32.mrb[0].mxu0
    %v6243 = vpop.f32.mrb[0].mxu0
    %v6244 = vadd.f32 0.0, %v6243
    %v6245 = vpop.f32.mrb[0].mxu0
    %6246 = vmatprep.mubr.bf16.mxu0 0
    %6247 = vmatmul.mubr.bf16.gmra.mrb[0].mxu0 %v6204
    %v6248 = vpop.f32.mrb[0].mxu0
    %v6249 = vadd.f32 0.0, %v6248
    %v6250 = vpop.f32.mrb[0].mxu0
    %v6251 = vpop.f32.mrb[0].mxu0
    %v6252 = vadd.f32 0.0, %v6251
    %v6253 = vpop.f32.mrb[0].mxu0
    %6254 = vdwg.mxu0
    %v6255 = vadd.f32 %v4903, %v6241
    %v6256 = vadd.f32 %v4904, %v6244
    %v6257 = vadd.f32 %v4905, %v6249
    %v6258 = vadd.f32 %v4906, %v6252
    %s6259 = scalar_lea.vmem %s51, 1
    %v6260 = vld [vmem:[%s6259] sm:$0x1]
    %v6262 = vlaneseq
    %v6263 = vshrl.u32 %v6262, 7
    %v6264 = vsub.s32 0, %v6263
    %v6265 = vrot.slane %v6260, %v6264
    %v6267 = vadd.f32 %v6255, %v6265
    %v6268 = vadd.f32 %v6256, %v6265
    %v6269 = vadd.f32 %v6257, %v6265
    %v6270 = vadd.f32 %v6258, %v6265
    %s6271 = scalar_lea.vmem %s53, 1
    %v6272 = vld [vmem:[%s6271] sm:$0x1]
    %s6273 = scalar_lea.vmem %s55, 1
    %v6274 = vld [vmem:[%s6273] sm:$0x1]
    %v6275 = vsel %vm208, %v6267, 0.0
    %6276 = vadd.xlane.f32.xlu0 %v6275
    %v6277 = vpop.xlane.xlu0 %6276
    %v6278 = vsel %vm208, %v6268, 0.0
    %6279 = vadd.xlane.f32.xlu0 %v6278
    %v6280 = vpop.xlane.xlu0 %6279
    %v6281 = vsel %vm208, %v6269, 0.0
    %6282 = vadd.xlane.f32.xlu0 %v6281
    %v6283 = vpop.xlane.xlu0 %6282
    %v6284 = vsel %vm208, %v6270, 0.0
    %6285 = vadd.xlane.f32.xlu0 %v6284
    %v6286 = vpop.xlane.xlu0 %6285
    %v6287 = vmul.f32 %v6277, %v3304
    %v6288 = vmul.f32 %v6280, %v3304
    %v6289 = vmul.f32 %v6283, %v3304
    %v6290 = vmul.f32 %v6286, %v3304
    %v6291 = vsub.f32 %v6267, %v6287
    %v6292 = vsub.f32 %v6268, %v6288
    %v6293 = vsub.f32 %v6269, %v6289
    %v6294 = vsub.f32 %v6270, %v6290
    %v6295 = vmul.f32 %v6291, %v6291
    %v6296 = vmul.f32 %v6292, %v6292
    %v6297 = vmul.f32 %v6293, %v6293
    %v6298 = vmul.f32 %v6294, %v6294
    %v6299 = vsel %vm208, %v6295, 0.0
    %6300 = vadd.xlane.f32.xlu0 %v6299
    %v6301 = vpop.xlane.xlu0 %6300
    %v6302 = vsel %vm208, %v6296, 0.0
    %6303 = vadd.xlane.f32.xlu0 %v6302
    %v6304 = vpop.xlane.xlu0 %6303
    %v6305 = vsel %vm208, %v6297, 0.0
    %6306 = vadd.xlane.f32.xlu0 %v6305
    %v6307 = vpop.xlane.xlu0 %6306
    %v6308 = vsel %vm208, %v6298, 0.0
    %6309 = vadd.xlane.f32.xlu0 %v6308
    %v6310 = vpop.xlane.xlu0 %6309
    %v6311 = vmul.f32 %v6301, %v3304
    %v6312 = vmul.f32 %v6304, %v3304
    %v6313 = vmul.f32 %v6307, %v3304
    %v6314 = vmul.f32 %v6310, %v3304
    %v6315 = vadd.f32 %v6311, 1e-05
    %v6316 = vadd.f32 %v6312, 1e-05
    %v6317 = vadd.f32 %v6313, 1e-05
    %v6318 = vadd.f32 %v6314, 1e-05
    %v6319 = vrsqrt.pop %v6315
    %v6320 = vrsqrt.pop %v6316
    %v6321 = vrsqrt.pop %v6317
    %v6322 = vrsqrt.pop %v6318
    %v6323 = vmul.f32 %v6291, %v6319
    %v6324 = vmul.f32 %v6292, %v6320
    %v6325 = vmul.f32 %v6293, %v6321
    %v6326 = vmul.f32 %v6294, %v6322
    %v6328 = vlaneseq
    %v6329 = vshrl.u32 %v6328, 7
    %v6330 = vsub.s32 0, %v6329
    %v6331 = vrot.slane %v6272, %v6330
    %v6333 = vmul.f32 %v6323, %v6331
    %v6334 = vmul.f32 %v6324, %v6331
    %v6335 = vmul.f32 %v6325, %v6331
    %v6336 = vmul.f32 %v6326, %v6331
    %v6338 = vlaneseq
    %v6339 = vshrl.u32 %v6338, 7
    %v6340 = vsub.s32 0, %v6339
    %v6341 = vrot.slane %v6274, %v6340
    %v6343 = vadd.f32 %v6333, %v6341
    %v6344 = vadd.f32 %v6334, %v6341
    %v6345 = vadd.f32 %v6335, %v6341
    %v6346 = vadd.f32 %v6336, %v6341
    %s6347 = scalar_lea.vmem %s57, 16
    %v6348 = vld [vmem:[%s6347] sm:$0xf]
    %v6349 = vld [vmem:[%s6347 + $0x4] sm:$0xf]
    %v6350 = vld [vmem:[%s6347 + $0x8] sm:$0xf]
    %v6351 = vld [vmem:[%s6347 + $0xc] sm:$0xf]
    %v6352 = vpack.c.bf16 %v6344, %v6343
    %v6353 = vpack.c.bf16 %v6346, %v6345
    %s6354 = scalar_lea.vmem %s59, 1
    %v6355 = vld [vmem:[%s6354] sm:$0x1]
    %v6357 = vlaneseq
    %v6358 = vshrl.u32 %v6357, 7
    %v6359 = vsub.s32 0, %v6358
    %v6360 = vrot.slane %v6355, %v6359
    %v6366 = vunpack.c.l.b16 %v6348
    %v6367 = vunpack.c.l.b16 %v6349
    %v6368 = vunpack.c.l.b16 %v6350
    %v6369 = vunpack.c.l.b16 %v6351
    %v6370 = vpack.c.b16 %v6367, %v6366
    %v6371 = vpack.c.b16 %v6369, %v6368
    %v6375 = vsel %vm208, %v6352, 0
    %v6378 = vsel %vm208, %v6353, 0
    %6380 = vmatprep.subr.bf16.mxu0 0
    %6381 = vmatpush1.bf16.msra.mxu0 %v6370
    %6382 = vmatprep.subr.bf16.mxu0 0
    %6383 = vmatpush1.bf16.msra.mxu0 %v6371
    %6384 = vmatprep.subr.bf16.mxu0 0
    %6385 = vmatpush1.bf16.msra.mxu0 0
    %6386 = vmatprep.subr.bf16.mxu0 0
    %6387 = vmatpush1.bf16.msra.mxu0 0
    %6388 = vmatprep.subr.bf16.mxu0 0
    %6389 = vmatpush1.bf16.msra.mxu0 0
    %6390 = vmatprep.subr.bf16.mxu0 0
    %6391 = vmatpush1.bf16.msra.mxu0 0
    %6392 = vmatprep.subr.bf16.mxu0 0
    %6393 = vmatpush1.bf16.msra.mxu0 0
    %6394 = vmatprep.subr.bf16.mxu0 0
    %6395 = vmatpush1.bf16.msra.mxu0 0
    %6396 = vmatprep.subr.bf16.mxu0 0
    %6397 = vmatpush1.bf16.msra.mxu0 0
    %6398 = vmatprep.subr.bf16.mxu0 0
    %6399 = vmatpush1.bf16.msra.mxu0 0
    %6400 = vmatprep.subr.bf16.mxu0 0
    %6401 = vmatpush1.bf16.msra.mxu0 0
    %6402 = vmatprep.subr.bf16.mxu0 0
    %6403 = vmatpush1.bf16.msra.mxu0 0
    %6404 = vmatprep.subr.bf16.mxu0 0
    %6405 = vmatpush1.bf16.msra.mxu0 0
    %6406 = vmatprep.subr.bf16.mxu0 0
    %6407 = vmatpush1.bf16.msra.mxu0 0
    %6408 = vmatprep.subr.bf16.mxu0 0
    %6409 = vmatpush1.bf16.msra.mxu0 0
    %6410 = vmatprep.subr.bf16.mxu0 0
    %6411 = vmatpush1.bf16.msra.mxu0 0
    %6412 = vmatprep.mubr.bf16.mxu0 0
    %6413 = vmatmul.mubr.bf16.gmra.mrb[0].mxu0 %v6375
    %v6414 = vpop.f32.mrb[0].mxu0
    %v6415 = vadd.f32 %v6360, %v6414
    %v6416 = vpop.f32.mrb[0].mxu0
    %v6417 = vpop.f32.mrb[0].mxu0
    %v6418 = vadd.f32 %v6360, %v6417
    %v6419 = vpop.f32.mrb[0].mxu0
    %6420 = vmatprep.mubr.bf16.mxu0 0
    %6421 = vmatmul.mubr.bf16.gmra.mrb[0].mxu0 %v6378
    %v6422 = vpop.f32.mrb[0].mxu0
    %v6423 = vadd.f32 %v6360, %v6422
    %v6424 = vpop.f32.mrb[0].mxu0
    %v6425 = vpop.f32.mrb[0].mxu0
    %v6426 = vadd.f32 %v6360, %v6425
    %v6427 = vpop.f32.mrb[0].mxu0
    %6428 = vdwg.mxu0
    %v6429 = vmax.f32 %v6415, 0.0
    %v6430 = vmax.f32 %v6418, 0.0
    %v6431 = vmax.f32 %v6423, 0.0
    %v6432 = vmax.f32 %v6426, 0.0
    %s6433 = scalar_lea.vmem %s61, 32
    %v6434 = vld [vmem:[%s6433] sm:$0xf]
    %v6435 = vld [vmem:[%s6433 + $0x4] sm:$0xf]
    %v6436 = vld [vmem:[%s6433 + $0x8] sm:$0xf]
    %v6437 = vld [vmem:[%s6433 + $0xc] sm:$0xf]
    %v6438 = vld [vmem:[%s6433 + $0x10] sm:$0xf]
    %v6439 = vld [vmem:[%s6433 + $0x14] sm:$0xf]
    %v6440 = vld [vmem:[%s6433 + $0x18] sm:$0xf]
    %v6441 = vld [vmem:[%s6433 + $0x1c] sm:$0xf]
    %v6442 = vpack.c.bf16 %v6430, %v6429
    %v6443 = vpack.c.bf16 %v6432, %v6431
    %v6452 = vunpack.c.l.b16 %v6434
    %v6453 = vunpack.c.l.b16 %v6435
    %v6454 = vunpack.c.l.b16 %v6436
    %v6455 = vunpack.c.l.b16 %v6437
    %v6456 = vunpack.c.l.b16 %v6438
    %v6457 = vunpack.c.l.b16 %v6439
    %v6458 = vunpack.c.l.b16 %v6440
    %v6459 = vunpack.c.l.b16 %v6441
    %v6460 = vpack.c.b16 %v6453, %v6452
    %v6461 = vpack.c.b16 %v6455, %v6454
    %v6462 = vpack.c.b16 %v6457, %v6456
    %v6463 = vpack.c.b16 %v6459, %v6458
    %v6469 = vsel %vm2861, %v6442, 0
    %v6472 = vsel %vm2861, %v6443, 0
    %6474 = vmatprep.subr.bf16.mxu0 0
    %6475 = vmatpush1.bf16.msra.mxu0 %v6460
    %6476 = vmatprep.subr.bf16.mxu0 0
    %6477 = vmatpush1.bf16.msra.mxu0 %v6461
    %6478 = vmatprep.subr.bf16.mxu0 0
    %6479 = vmatpush1.bf16.msra.mxu0 %v6462
    %6480 = vmatprep.subr.bf16.mxu0 0
    %6481 = vmatpush1.bf16.msra.mxu0 %v6463
    %6482 = vmatprep.subr.bf16.mxu0 0
    %6483 = vmatpush1.bf16.msra.mxu0 0
    %6484 = vmatprep.subr.bf16.mxu0 0
    %6485 = vmatpush1.bf16.msra.mxu0 0
    %6486 = vmatprep.subr.bf16.mxu0 0
    %6487 = vmatpush1.bf16.msra.mxu0 0
    %6488 = vmatprep.subr.bf16.mxu0 0
    %6489 = vmatpush1.bf16.msra.mxu0 0
    %6490 = vmatprep.subr.bf16.mxu0 0
    %6491 = vmatpush1.bf16.msra.mxu0 0
    %6492 = vmatprep.subr.bf16.mxu0 0
    %6493 = vmatpush1.bf16.msra.mxu0 0
    %6494 = vmatprep.subr.bf16.mxu0 0
    %6495 = vmatpush1.bf16.msra.mxu0 0
    %6496 = vmatprep.subr.bf16.mxu0 0
    %6497 = vmatpush1.bf16.msra.mxu0 0
    %6498 = vmatprep.subr.bf16.mxu0 0
    %6499 = vmatpush1.bf16.msra.mxu0 0
    %6500 = vmatprep.subr.bf16.mxu0 0
    %6501 = vmatpush1.bf16.msra.mxu0 0
    %6502 = vmatprep.subr.bf16.mxu0 0
    %6503 = vmatpush1.bf16.msra.mxu0 0
    %6504 = vmatprep.subr.bf16.mxu0 0
    %6505 = vmatpush1.bf16.msra.mxu0 0
    %6506 = vmatprep.mubr.bf16.mxu0 0
    %6507 = vmatmul.mubr.bf16.gmra.mrb[0].mxu0 %v6469
    %v6508 = vpop.f32.mrb[0].mxu0
    %v6509 = vadd.f32 0.0, %v6508
    %v6510 = vpop.f32.mrb[0].mxu0
    %v6511 = vpop.f32.mrb[0].mxu0
    %v6512 = vadd.f32 0.0, %v6511
    %v6513 = vpop.f32.mrb[0].mxu0
    %6514 = vmatprep.mubr.bf16.mxu0 0
    %6515 = vmatmul.mubr.bf16.gmra.mrb[0].mxu0 %v6472
    %v6516 = vpop.f32.mrb[0].mxu0
    %v6517 = vadd.f32 0.0, %v6516
    %v6518 = vpop.f32.mrb[0].mxu0
    %v6519 = vpop.f32.mrb[0].mxu0
    %v6520 = vadd.f32 0.0, %v6519
    %v6521 = vpop.f32.mrb[0].mxu0
    %6522 = vdwg.mxu0
    %v6523 = vadd.f32 %v6267, %v6509
    %v6524 = vadd.f32 %v6268, %v6512
    %v6525 = vadd.f32 %v6269, %v6517
    %v6526 = vadd.f32 %v6270, %v6520
    %s6527 = scalar_lea.vmem %s63, 1
    %v6528 = vld [vmem:[%s6527] sm:$0x1]
    %v6530 = vlaneseq
    %v6531 = vshrl.u32 %v6530, 7
    %v6532 = vsub.s32 0, %v6531
    %v6533 = vrot.slane %v6528, %v6532
    %v6535 = vadd.f32 %v6523, %v6533
    %v6536 = vadd.f32 %v6524, %v6533
    %v6537 = vadd.f32 %v6525, %v6533
    %v6538 = vadd.f32 %v6526, %v6533
    %s6539 = scalar_lea.vmem %s33, 2
    %v6540 = vld [vmem:[%s6539] sm:$0x1]
    %s6541 = scalar_lea.vmem %s35, 2
    %v6542 = vld [vmem:[%s6541] sm:$0x1]
    %v6543 = vsel %vm208, %v6535, 0.0
    %6544 = vadd.xlane.f32.xlu0 %v6543
    %v6545 = vpop.xlane.xlu0 %6544
    %v6546 = vsel %vm208, %v6536, 0.0
    %6547 = vadd.xlane.f32.xlu0 %v6546
    %v6548 = vpop.xlane.xlu0 %6547
    %v6549 = vsel %vm208, %v6537, 0.0
    %6550 = vadd.xlane.f32.xlu0 %v6549
    %v6551 = vpop.xlane.xlu0 %6550
    %v6552 = vsel %vm208, %v6538, 0.0
    %6553 = vadd.xlane.f32.xlu0 %v6552
    %v6554 = vpop.xlane.xlu0 %6553
    %v6555 = vmul.f32 %v6545, %v3304
    %v6556 = vmul.f32 %v6548, %v3304
    %v6557 = vmul.f32 %v6551, %v3304
    %v6558 = vmul.f32 %v6554, %v3304
    %v6559 = vsub.f32 %v6535, %v6555
    %v6560 = vsub.f32 %v6536, %v6556
    %v6561 = vsub.f32 %v6537, %v6557
    %v6562 = vsub.f32 %v6538, %v6558
    %v6563 = vmul.f32 %v6559, %v6559
    %v6564 = vmul.f32 %v6560, %v6560
    %v6565 = vmul.f32 %v6561, %v6561
    %v6566 = vmul.f32 %v6562, %v6562
    %v6567 = vsel %vm208, %v6563, 0.0
    %6568 = vadd.xlane.f32.xlu0 %v6567
    %v6569 = vpop.xlane.xlu0 %6568
    %v6570 = vsel %vm208, %v6564, 0.0
    %6571 = vadd.xlane.f32.xlu0 %v6570
    %v6572 = vpop.xlane.xlu0 %6571
    %v6573 = vsel %vm208, %v6565, 0.0
    %6574 = vadd.xlane.f32.xlu0 %v6573
    %v6575 = vpop.xlane.xlu0 %6574
    %v6576 = vsel %vm208, %v6566, 0.0
    %6577 = vadd.xlane.f32.xlu0 %v6576
    %v6578 = vpop.xlane.xlu0 %6577
    %v6579 = vmul.f32 %v6569, %v3304
    %v6580 = vmul.f32 %v6572, %v3304
    %v6581 = vmul.f32 %v6575, %v3304
    %v6582 = vmul.f32 %v6578, %v3304
    %v6583 = vadd.f32 %v6579, 1e-05
    %v6584 = vadd.f32 %v6580, 1e-05
    %v6585 = vadd.f32 %v6581, 1e-05
    %v6586 = vadd.f32 %v6582, 1e-05
    %v6587 = vrsqrt.pop %v6583
    %v6588 = vrsqrt.pop %v6584
    %v6589 = vrsqrt.pop %v6585
    %v6590 = vrsqrt.pop %v6586
    %v6591 = vmul.f32 %v6559, %v6587
    %v6592 = vmul.f32 %v6560, %v6588
    %v6593 = vmul.f32 %v6561, %v6589
    %v6594 = vmul.f32 %v6562, %v6590
    %v6596 = vlaneseq
    %v6597 = vshrl.u32 %v6596, 7
    %v6598 = vsub.s32 0, %v6597
    %v6599 = vrot.slane %v6540, %v6598
    %v6601 = vmul.f32 %v6591, %v6599
    %v6602 = vmul.f32 %v6592, %v6599
    %v6603 = vmul.f32 %v6593, %v6599
    %v6604 = vmul.f32 %v6594, %v6599
    %v6606 = vlaneseq
    %v6607 = vshrl.u32 %v6606, 7
    %v6608 = vsub.s32 0, %v6607
    %v6609 = vrot.slane %v6542, %v6608
    %v6611 = vadd.f32 %v6601, %v6609
    %v6612 = vadd.f32 %v6602, %v6609
    %v6613 = vadd.f32 %v6603, %v6609
    %v6614 = vadd.f32 %v6604, %v6609
    %v6615 = vpack.c.bf16 %v6612, %v6611
    %v6616 = vpack.c.bf16 %v6614, %v6613
    %s6617 = scalar_lea.vmem %s37, 32
    %v6618 = vld [vmem:[%s6617] sm:$0xf]
    %v6619 = vld [vmem:[%s6617 + $0x4] sm:$0xf]
    %v6620 = vld [vmem:[%s6617 + $0x8] sm:$0xf]
    %v6621 = vld [vmem:[%s6617 + $0xc] sm:$0xf]
    %s6622 = scalar_lea.vmem %s39, 2
    %v6623 = vld [vmem:[%s6622] sm:$0x1]
    %v6625 = vlaneseq
    %v6626 = vshrl.u32 %v6625, 7
    %v6627 = vsub.s32 0, %v6626
    %v6628 = vrot.slane %v6623, %v6627
    %v6634 = vunpack.c.l.b16 %v6618
    %v6635 = vunpack.c.l.b16 %v6619
    %v6636 = vunpack.c.l.b16 %v6620
    %v6637 = vunpack.c.l.b16 %v6621
    %v6638 = vpack.c.b16 %v6635, %v6634
    %v6639 = vpack.c.b16 %v6637, %v6636
    %v6643 = vsel %vm208, %v6615, 0
    %v6646 = vsel %vm208, %v6616, 0
    %6648 = vmatprep.subr.bf16.mxu0 0
    %6649 = vmatpush1.bf16.msra.mxu0 %v6638
    %6650 = vmatprep.subr.bf16.mxu0 0
    %6651 = vmatpush1.bf16.msra.mxu0 %v6639
    %6652 = vmatprep.subr.bf16.mxu0 0
    %6653 = vmatpush1.bf16.msra.mxu0 0
    %6654 = vmatprep.subr.bf16.mxu0 0
    %6655 = vmatpush1.bf16.msra.mxu0 0
    %6656 = vmatprep.subr.bf16.mxu0 0
    %6657 = vmatpush1.bf16.msra.mxu0 0
    %6658 = vmatprep.subr.bf16.mxu0 0
    %6659 = vmatpush1.bf16.msra.mxu0 0
    %6660 = vmatprep.subr.bf16.mxu0 0
    %6661 = vmatpush1.bf16.msra.mxu0 0
    %6662 = vmatprep.subr.bf16.mxu0 0
    %6663 = vmatpush1.bf16.msra.mxu0 0
    %6664 = vmatprep.subr.bf16.mxu0 0
    %6665 = vmatpush1.bf16.msra.mxu0 0
    %6666 = vmatprep.subr.bf16.mxu0 0
    %6667 = vmatpush1.bf16.msra.mxu0 0
    %6668 = vmatprep.subr.bf16.mxu0 0
    %6669 = vmatpush1.bf16.msra.mxu0 0
    %6670 = vmatprep.subr.bf16.mxu0 0
    %6671 = vmatpush1.bf16.msra.mxu0 0
    %6672 = vmatprep.subr.bf16.mxu0 0
    %6673 = vmatpush1.bf16.msra.mxu0 0
    %6674 = vmatprep.subr.bf16.mxu0 0
    %6675 = vmatpush1.bf16.msra.mxu0 0
    %6676 = vmatprep.subr.bf16.mxu0 0
    %6677 = vmatpush1.bf16.msra.mxu0 0
    %6678 = vmatprep.subr.bf16.mxu0 0
    %6679 = vmatpush1.bf16.msra.mxu0 0
    %6680 = vmatprep.mubr.bf16.mxu0 0
    %6681 = vmatmul.mubr.bf16.gmra.mrb[0].mxu0 %v6643
    %v6682 = vpop.f32.mrb[0].mxu0
    %v6683 = vadd.f32 %v6628, %v6682
    %v6684 = vpop.f32.mrb[0].mxu0
    %v6685 = vpop.f32.mrb[0].mxu0
    %v6686 = vadd.f32 %v6628, %v6685
    %v6687 = vpop.f32.mrb[0].mxu0
    %6688 = vmatprep.mubr.bf16.mxu0 0
    %6689 = vmatmul.mubr.bf16.gmra.mrb[0].mxu0 %v6646
    %v6690 = vpop.f32.mrb[0].mxu0
    %v6691 = vadd.f32 %v6628, %v6690
    %v6692 = vpop.f32.mrb[0].mxu0
    %v6693 = vpop.f32.mrb[0].mxu0
    %v6694 = vadd.f32 %v6628, %v6693
    %v6695 = vpop.f32.mrb[0].mxu0
    %6696 = vdwg.mxu0
    %s6697 = scalar_lea.vmem %s41, 32
    %v6698 = vld [vmem:[%s6697] sm:$0xf]
    %v6699 = vld [vmem:[%s6697 + $0x4] sm:$0xf]
    %v6700 = vld [vmem:[%s6697 + $0x8] sm:$0xf]
    %v6701 = vld [vmem:[%s6697 + $0xc] sm:$0xf]
    %s6702 = scalar_lea.vmem %s43, 2
    %v6703 = vld [vmem:[%s6702] sm:$0x1]
    %v6705 = vlaneseq
    %v6706 = vshrl.u32 %v6705, 7
    %v6707 = vsub.s32 0, %v6706
    %v6708 = vrot.slane %v6703, %v6707
    %v6714 = vunpack.c.l.b16 %v6698
    %v6715 = vunpack.c.l.b16 %v6699
    %v6716 = vunpack.c.l.b16 %v6700
    %v6717 = vunpack.c.l.b16 %v6701
    %v6718 = vpack.c.b16 %v6715, %v6714
    %v6719 = vpack.c.b16 %v6717, %v6716
    %6722 = vmatprep.subr.bf16.mxu0 0
    %6723 = vmatpush1.bf16.msra.mxu0 %v6718
    %6724 = vmatprep.subr.bf16.mxu0 0
    %6725 = vmatpush1.bf16.msra.mxu0 %v6719
    %6726 = vmatprep.subr.bf16.mxu0 0
    %6727 = vmatpush1.bf16.msra.mxu0 0
    %6728 = vmatprep.subr.bf16.mxu0 0
    %6729 = vmatpush1.bf16.msra.mxu0 0
    %6730 = vmatprep.subr.bf16.mxu0 0
    %6731 = vmatpush1.bf16.msra.mxu0 0
    %6732 = vmatprep.subr.bf16.mxu0 0
    %6733 = vmatpush1.bf16.msra.mxu0 0
    %6734 = vmatprep.subr.bf16.mxu0 0
    %6735 = vmatpush1.bf16.msra.mxu0 0
    %6736 = vmatprep.subr.bf16.mxu0 0
    %6737 = vmatpush1.bf16.msra.mxu0 0
    %6738 = vmatprep.subr.bf16.mxu0 0
    %6739 = vmatpush1.bf16.msra.mxu0 0
    %6740 = vmatprep.subr.bf16.mxu0 0
    %6741 = vmatpush1.bf16.msra.mxu0 0
    %6742 = vmatprep.subr.bf16.mxu0 0
    %6743 = vmatpush1.bf16.msra.mxu0 0
    %6744 = vmatprep.subr.bf16.mxu0 0
    %6745 = vmatpush1.bf16.msra.mxu0 0
    %6746 = vmatprep.subr.bf16.mxu0 0
    %6747 = vmatpush1.bf16.msra.mxu0 0
    %6748 = vmatprep.subr.bf16.mxu0 0
    %6749 = vmatpush1.bf16.msra.mxu0 0
    %6750 = vmatprep.subr.bf16.mxu0 0
    %6751 = vmatpush1.bf16.msra.mxu0 0
    %6752 = vmatprep.subr.bf16.mxu0 0
    %6753 = vmatpush1.bf16.msra.mxu0 0
    %6754 = vmatprep.mubr.bf16.mxu0 0
    %6755 = vmatmul.mubr.bf16.gmra.mrb[0].mxu0 %v6643
    %v6756 = vpop.f32.mrb[0].mxu0
    %v6757 = vadd.f32 %v6708, %v6756
    %v6758 = vpop.f32.mrb[0].mxu0
    %v6759 = vpop.f32.mrb[0].mxu0
    %v6760 = vadd.f32 %v6708, %v6759
    %v6761 = vpop.f32.mrb[0].mxu0
    %6762 = vmatprep.mubr.bf16.mxu0 0
    %6763 = vmatmul.mubr.bf16.gmra.mrb[0].mxu0 %v6646
    %v6764 = vpop.f32.mrb[0].mxu0
    %v6765 = vadd.f32 %v6708, %v6764
    %v6766 = vpop.f32.mrb[0].mxu0
    %v6767 = vpop.f32.mrb[0].mxu0
    %v6768 = vadd.f32 %v6708, %v6767
    %v6769 = vpop.f32.mrb[0].mxu0
    %6770 = vdwg.mxu0
    %s6771 = scalar_lea.vmem %s45, 32
    %v6772 = vld [vmem:[%s6771] sm:$0xf]
    %v6773 = vld [vmem:[%s6771 + $0x4] sm:$0xf]
    %v6774 = vld [vmem:[%s6771 + $0x8] sm:$0xf]
    %v6775 = vld [vmem:[%s6771 + $0xc] sm:$0xf]
    %s6776 = scalar_lea.vmem %s47, 2
    %v6777 = vld [vmem:[%s6776] sm:$0x1]
    %v6779 = vlaneseq
    %v6780 = vshrl.u32 %v6779, 7
    %v6781 = vsub.s32 0, %v6780
    %v6782 = vrot.slane %v6777, %v6781
    %v6788 = vunpack.c.l.b16 %v6772
    %v6789 = vunpack.c.l.b16 %v6773
    %v6790 = vunpack.c.l.b16 %v6774
    %v6791 = vunpack.c.l.b16 %v6775
    %v6792 = vpack.c.b16 %v6789, %v6788
    %v6793 = vpack.c.b16 %v6791, %v6790
    %6796 = vmatprep.subr.bf16.mxu0 0
    %6797 = vmatpush1.bf16.msra.mxu0 %v6792
    %6798 = vmatprep.subr.bf16.mxu0 0
    %6799 = vmatpush1.bf16.msra.mxu0 %v6793
    %6800 = vmatprep.subr.bf16.mxu0 0
    %6801 = vmatpush1.bf16.msra.mxu0 0
    %6802 = vmatprep.subr.bf16.mxu0 0
    %6803 = vmatpush1.bf16.msra.mxu0 0
    %6804 = vmatprep.subr.bf16.mxu0 0
    %6805 = vmatpush1.bf16.msra.mxu0 0
    %6806 = vmatprep.subr.bf16.mxu0 0
    %6807 = vmatpush1.bf16.msra.mxu0 0
    %6808 = vmatprep.subr.bf16.mxu0 0
    %6809 = vmatpush1.bf16.msra.mxu0 0
    %6810 = vmatprep.subr.bf16.mxu0 0
    %6811 = vmatpush1.bf16.msra.mxu0 0
    %6812 = vmatprep.subr.bf16.mxu0 0
    %6813 = vmatpush1.bf16.msra.mxu0 0
    %6814 = vmatprep.subr.bf16.mxu0 0
    %6815 = vmatpush1.bf16.msra.mxu0 0
    %6816 = vmatprep.subr.bf16.mxu0 0
    %6817 = vmatpush1.bf16.msra.mxu0 0
    %6818 = vmatprep.subr.bf16.mxu0 0
    %6819 = vmatpush1.bf16.msra.mxu0 0
    %6820 = vmatprep.subr.bf16.mxu0 0
    %6821 = vmatpush1.bf16.msra.mxu0 0
    %6822 = vmatprep.subr.bf16.mxu0 0
    %6823 = vmatpush1.bf16.msra.mxu0 0
    %6824 = vmatprep.subr.bf16.mxu0 0
    %6825 = vmatpush1.bf16.msra.mxu0 0
    %6826 = vmatprep.subr.bf16.mxu0 0
    %6827 = vmatpush1.bf16.msra.mxu0 0
    %6828 = vmatprep.mubr.bf16.mxu0 0
    %6829 = vmatmul.mubr.bf16.gmra.mrb[0].mxu0 %v6643
    %v6830 = vpop.f32.mrb[0].mxu0
    %v6831 = vadd.f32 %v6782, %v6830
    %v6832 = vpop.f32.mrb[0].mxu0
    %v6833 = vpop.f32.mrb[0].mxu0
    %v6834 = vadd.f32 %v6782, %v6833
    %v6835 = vpop.f32.mrb[0].mxu0
    %6836 = vmatprep.mubr.bf16.mxu0 0
    %6837 = vmatmul.mubr.bf16.gmra.mrb[0].mxu0 %v6646
    %v6838 = vpop.f32.mrb[0].mxu0
    %v6839 = vadd.f32 %v6782, %v6838
    %v6840 = vpop.f32.mrb[0].mxu0
    %v6841 = vpop.f32.mrb[0].mxu0
    %v6842 = vadd.f32 %v6782, %v6841
    %v6843 = vpop.f32.mrb[0].mxu0
    %6844 = vdwg.mxu0
    %v6845 = vmul.f32 %v6683, %v3226
    %v6846 = vmul.f32 %v6686, %v3227
    %v6847 = vmul.f32 %v6691, %v3228
    %v6848 = vmul.f32 %v6694, %v3229
    %v6849 = vmul.f32 %v6683, %v3230
    %v6850 = vmul.f32 %v6686, %v3231
    %v6851 = vmul.f32 %v6691, %v3232
    %v6852 = vmul.f32 %v6694, %v3233
    %v6853 = vmul.f32 %v6683, %v3234
    %v6854 = vmul.f32 %v6686, %v3235
    %v6855 = vmul.f32 %v6691, %v3236
    %v6856 = vmul.f32 %v6694, %v3237
    %v6857 = vmul.f32 %v6683, %v3238
    %v6858 = vmul.f32 %v6686, %v3239
    %v6859 = vmul.f32 %v6691, %v3240
    %v6860 = vmul.f32 %v6694, %v3241
    %v6861 = vmul.f32 %v6683, %v3242
    %v6862 = vmul.f32 %v6686, %v3243
    %v6863 = vmul.f32 %v6691, %v3244
    %v6864 = vmul.f32 %v6694, %v3245
    %v6865 = vmul.f32 %v6683, %v3246
    %v6866 = vmul.f32 %v6686, %v3247
    %v6867 = vmul.f32 %v6691, %v3248
    %v6868 = vmul.f32 %v6694, %v3249
    %v6869 = vmul.f32 %v6683, %v3250
    %v6870 = vmul.f32 %v6686, %v3251
    %v6871 = vmul.f32 %v6691, %v3252
    %v6872 = vmul.f32 %v6694, %v3253
    %v6873 = vmul.f32 %v6683, %v3254
    %v6874 = vmul.f32 %v6686, %v3255
    %v6875 = vmul.f32 %v6691, %v3256
    %v6876 = vmul.f32 %v6694, %v3257
    %v6877 = vpack.c.bf16 %v6846, %v6845
    %v6878 = vpack.c.bf16 %v6848, %v6847
    %v6879 = vpack.c.bf16 %v6850, %v6849
    %v6880 = vpack.c.bf16 %v6852, %v6851
    %v6881 = vpack.c.bf16 %v6854, %v6853
    %v6882 = vpack.c.bf16 %v6856, %v6855
    %v6883 = vpack.c.bf16 %v6858, %v6857
    %v6884 = vpack.c.bf16 %v6860, %v6859
    %v6885 = vpack.c.bf16 %v6862, %v6861
    %v6886 = vpack.c.bf16 %v6864, %v6863
    %v6887 = vpack.c.bf16 %v6866, %v6865
    %v6888 = vpack.c.bf16 %v6868, %v6867
    %v6889 = vpack.c.bf16 %v6870, %v6869
    %v6890 = vpack.c.bf16 %v6872, %v6871
    %v6891 = vpack.c.bf16 %v6874, %v6873
    %v6892 = vpack.c.bf16 %v6876, %v6875
    %v6893 = vpack.c.bf16 %v6760, %v6757
    %v6894 = vpack.c.bf16 %v6768, %v6765
    %v6896 = vsel %vm208, %v6877, 0
    %v6899 = vsel %vm208, %v6878, 0
    %v6902 = vsel %vm208, %v6879, 0
    %v6905 = vsel %vm208, %v6880, 0
    %v6908 = vsel %vm208, %v6881, 0
    %v6911 = vsel %vm208, %v6882, 0
    %v6914 = vsel %vm208, %v6883, 0
    %v6917 = vsel %vm208, %v6884, 0
    %v6920 = vsel %vm208, %v6885, 0
    %v6923 = vsel %vm208, %v6886, 0
    %v6926 = vsel %vm208, %v6887, 0
    %v6929 = vsel %vm208, %v6888, 0
    %v6932 = vsel %vm208, %v6889, 0
    %v6935 = vsel %vm208, %v6890, 0
    %v6938 = vsel %vm208, %v6891, 0
    %v6941 = vsel %vm208, %v6892, 0
    %v6944 = vsel %vm208, %v6893, 0
    %v6947 = vsel %vm208, %v6894, 0
    %6949 = vmatprep.subr.bf16.mxu0 0
    %6950 = vmatpush1.bf16.xpose.msra.mxu0 %v6944
    %6951 = vmatprep.subr.bf16.mxu0 0
    %6952 = vmatpush1.bf16.xpose.msra.mxu0 %v6947
    %6953 = vmatprep.subr.bf16.mxu0 0
    %6954 = vmatpush1.bf16.xpose.msra.mxu0 0
    %6955 = vmatprep.subr.bf16.mxu0 0
    %6956 = vmatpush1.bf16.xpose.msra.mxu0 0
    %6957 = vmatprep.subr.bf16.mxu0 0
    %6958 = vmatpush1.bf16.xpose.msra.mxu0 0
    %6959 = vmatprep.subr.bf16.mxu0 0
    %6960 = vmatpush1.bf16.xpose.msra.mxu0 0
    %6961 = vmatprep.subr.bf16.mxu0 0
    %6962 = vmatpush1.bf16.xpose.msra.mxu0 0
    %6963 = vmatprep.subr.bf16.mxu0 0
    %6964 = vmatpush1.bf16.xpose.msra.mxu0 0
    %6965 = vmatprep.subr.bf16.mxu0 0
    %6966 = vmatpush1.bf16.xpose.msra.mxu0 0
    %6967 = vmatprep.subr.bf16.mxu0 0
    %6968 = vmatpush1.bf16.xpose.msra.mxu0 0
    %6969 = vmatprep.subr.bf16.mxu0 0
    %6970 = vmatpush1.bf16.xpose.msra.mxu0 0
    %6971 = vmatprep.subr.bf16.mxu0 0
    %6972 = vmatpush1.bf16.xpose.msra.mxu0 0
    %6973 = vmatprep.subr.bf16.mxu0 0
    %6974 = vmatpush1.bf16.xpose.msra.mxu0 0
    %6975 = vmatprep.subr.bf16.mxu0 0
    %6976 = vmatpush1.bf16.xpose.msra.mxu0 0
    %6977 = vmatprep.subr.bf16.mxu0 0
    %6978 = vmatpush1.bf16.xpose.msra.mxu0 0
    %6979 = vmatprep.subr.bf16.mxu0 0
    %6980 = vmatpush1.bf16.xpose.msra.mxu0 0
    %6981 = vmatprep.mubr.bf16.mxu0 0
    %6982 = vmatmul.mubr.bf16.gmra.mrb[0].mxu0 %v6896
    %v6983 = vpop.f32.mrb[0].mxu0
    %v6984 = vadd.f32 0.0, %v6983
    %v6985 = vpop.f32.mrb[0].mxu0
    %v6986 = vpop.f32.mrb[0].mxu0
    %v6987 = vadd.f32 0.0, %v6986
    %v6988 = vpop.f32.mrb[0].mxu0
    %6989 = vmatprep.mubr.bf16.mxu0 0
    %6990 = vmatmul.mubr.bf16.gmra.mrb[0].mxu0 %v6899
    %v6991 = vpop.f32.mrb[0].mxu0
    %v6992 = vadd.f32 0.0, %v6991
    %v6993 = vpop.f32.mrb[0].mxu0
    %v6994 = vpop.f32.mrb[0].mxu0
    %v6995 = vadd.f32 0.0, %v6994
    %v6996 = vpop.f32.mrb[0].mxu0
    %6997 = vmatprep.mubr.bf16.mxu0 0
    %6998 = vmatmul.mubr.bf16.gmra.mrb[0].mxu0 %v6902
    %v6999 = vpop.f32.mrb[0].mxu0
    %v7000 = vadd.f32 0.0, %v6999
    %v7001 = vpop.f32.mrb[0].mxu0
    %v7002 = vpop.f32.mrb[0].mxu0
    %v7003 = vadd.f32 0.0, %v7002
    %v7004 = vpop.f32.mrb[0].mxu0
    %7005 = vmatprep.mubr.bf16.mxu0 0
    %7006 = vmatmul.mubr.bf16.gmra.mrb[0].mxu0 %v6905
    %v7007 = vpop.f32.mrb[0].mxu0
    %v7008 = vadd.f32 0.0, %v7007
    %v7009 = vpop.f32.mrb[0].mxu0
    %v7010 = vpop.f32.mrb[0].mxu0
    %v7011 = vadd.f32 0.0, %v7010
    %v7012 = vpop.f32.mrb[0].mxu0
    %7013 = vmatprep.mubr.bf16.mxu0 0
    %7014 = vmatmul.mubr.bf16.gmra.mrb[0].mxu0 %v6908
    %v7015 = vpop.f32.mrb[0].mxu0
    %v7016 = vadd.f32 0.0, %v7015
    %v7017 = vpop.f32.mrb[0].mxu0
    %v7018 = vpop.f32.mrb[0].mxu0
    %v7019 = vadd.f32 0.0, %v7018
    %v7020 = vpop.f32.mrb[0].mxu0
    %7021 = vmatprep.mubr.bf16.mxu0 0
    %7022 = vmatmul.mubr.bf16.gmra.mrb[0].mxu0 %v6911
    %v7023 = vpop.f32.mrb[0].mxu0
    %v7024 = vadd.f32 0.0, %v7023
    %v7025 = vpop.f32.mrb[0].mxu0
    %v7026 = vpop.f32.mrb[0].mxu0
    %v7027 = vadd.f32 0.0, %v7026
    %v7028 = vpop.f32.mrb[0].mxu0
    %7029 = vmatprep.mubr.bf16.mxu0 0
    %7030 = vmatmul.mubr.bf16.gmra.mrb[0].mxu0 %v6914
    %v7031 = vpop.f32.mrb[0].mxu0
    %v7032 = vadd.f32 0.0, %v7031
    %v7033 = vpop.f32.mrb[0].mxu0
    %v7034 = vpop.f32.mrb[0].mxu0
    %v7035 = vadd.f32 0.0, %v7034
    %v7036 = vpop.f32.mrb[0].mxu0
    %7037 = vmatprep.mubr.bf16.mxu0 0
    %7038 = vmatmul.mubr.bf16.gmra.mrb[0].mxu0 %v6917
    %v7039 = vpop.f32.mrb[0].mxu0
    %v7040 = vadd.f32 0.0, %v7039
    %v7041 = vpop.f32.mrb[0].mxu0
    %v7042 = vpop.f32.mrb[0].mxu0
    %v7043 = vadd.f32 0.0, %v7042
    %v7044 = vpop.f32.mrb[0].mxu0
    %7045 = vmatprep.mubr.bf16.mxu0 0
    %7046 = vmatmul.mubr.bf16.gmra.mrb[0].mxu0 %v6920
    %v7047 = vpop.f32.mrb[0].mxu0
    %v7048 = vadd.f32 0.0, %v7047
    %v7049 = vpop.f32.mrb[0].mxu0
    %v7050 = vpop.f32.mrb[0].mxu0
    %v7051 = vadd.f32 0.0, %v7050
    %v7052 = vpop.f32.mrb[0].mxu0
    %7053 = vmatprep.mubr.bf16.mxu0 0
    %7054 = vmatmul.mubr.bf16.gmra.mrb[0].mxu0 %v6923
    %v7055 = vpop.f32.mrb[0].mxu0
    %v7056 = vadd.f32 0.0, %v7055
    %v7057 = vpop.f32.mrb[0].mxu0
    %v7058 = vpop.f32.mrb[0].mxu0
    %v7059 = vadd.f32 0.0, %v7058
    %v7060 = vpop.f32.mrb[0].mxu0
    %7061 = vmatprep.mubr.bf16.mxu0 0
    %7062 = vmatmul.mubr.bf16.gmra.mrb[0].mxu0 %v6926
    %v7063 = vpop.f32.mrb[0].mxu0
    %v7064 = vadd.f32 0.0, %v7063
    %v7065 = vpop.f32.mrb[0].mxu0
    %v7066 = vpop.f32.mrb[0].mxu0
    %v7067 = vadd.f32 0.0, %v7066
    %v7068 = vpop.f32.mrb[0].mxu0
    %7069 = vmatprep.mubr.bf16.mxu0 0
    %7070 = vmatmul.mubr.bf16.gmra.mrb[0].mxu0 %v6929
    %v7071 = vpop.f32.mrb[0].mxu0
    %v7072 = vadd.f32 0.0, %v7071
    %v7073 = vpop.f32.mrb[0].mxu0
    %v7074 = vpop.f32.mrb[0].mxu0
    %v7075 = vadd.f32 0.0, %v7074
    %v7076 = vpop.f32.mrb[0].mxu0
    %7077 = vmatprep.mubr.bf16.mxu0 0
    %7078 = vmatmul.mubr.bf16.gmra.mrb[0].mxu0 %v6932
    %v7079 = vpop.f32.mrb[0].mxu0
    %v7080 = vadd.f32 0.0, %v7079
    %v7081 = vpop.f32.mrb[0].mxu0
    %v7082 = vpop.f32.mrb[0].mxu0
    %v7083 = vadd.f32 0.0, %v7082
    %v7084 = vpop.f32.mrb[0].mxu0
    %7085 = vmatprep.mubr.bf16.mxu0 0
    %7086 = vmatmul.mubr.bf16.gmra.mrb[0].mxu0 %v6935
    %v7087 = vpop.f32.mrb[0].mxu0
    %v7088 = vadd.f32 0.0, %v7087
    %v7089 = vpop.f32.mrb[0].mxu0
    %v7090 = vpop.f32.mrb[0].mxu0
    %v7091 = vadd.f32 0.0, %v7090
    %v7092 = vpop.f32.mrb[0].mxu0
    %7093 = vmatprep.mubr.bf16.mxu0 0
    %7094 = vmatmul.mubr.bf16.gmra.mrb[0].mxu0 %v6938
    %v7095 = vpop.f32.mrb[0].mxu0
    %v7096 = vadd.f32 0.0, %v7095
    %v7097 = vpop.f32.mrb[0].mxu0
    %v7098 = vpop.f32.mrb[0].mxu0
    %v7099 = vadd.f32 0.0, %v7098
    %v7100 = vpop.f32.mrb[0].mxu0
    %7101 = vmatprep.mubr.bf16.mxu0 0
    %7102 = vmatmul.mubr.bf16.gmra.mrb[0].mxu0 %v6941
    %v7103 = vpop.f32.mrb[0].mxu0
    %v7104 = vadd.f32 0.0, %v7103
    %v7105 = vpop.f32.mrb[0].mxu0
    %v7106 = vpop.f32.mrb[0].mxu0
    %v7107 = vadd.f32 0.0, %v7106
    %v7108 = vpop.f32.mrb[0].mxu0
    %7109 = vdwg.mxu0
    %v7110 = vmul.f32 %v6984, 0.5
    %v7111 = vmul.f32 %v6987, 0.5
    %v7112 = vmul.f32 %v6992, 0.5
    %v7113 = vmul.f32 %v6995, 0.5
    %v7114 = vmul.f32 %v7000, 0.5
    %v7115 = vmul.f32 %v7003, 0.5
    %v7116 = vmul.f32 %v7008, 0.5
    %v7117 = vmul.f32 %v7011, 0.5
    %v7118 = vmul.f32 %v7016, 0.5
    %v7119 = vmul.f32 %v7019, 0.5
    %v7120 = vmul.f32 %v7024, 0.5
    %v7121 = vmul.f32 %v7027, 0.5
    %v7122 = vmul.f32 %v7032, 0.5
    %v7123 = vmul.f32 %v7035, 0.5
    %v7124 = vmul.f32 %v7040, 0.5
    %v7125 = vmul.f32 %v7043, 0.5
    %v7126 = vmul.f32 %v7048, 0.5
    %v7127 = vmul.f32 %v7051, 0.5
    %v7128 = vmul.f32 %v7056, 0.5
    %v7129 = vmul.f32 %v7059, 0.5
    %v7130 = vmul.f32 %v7064, 0.5
    %v7131 = vmul.f32 %v7067, 0.5
    %v7132 = vmul.f32 %v7072, 0.5
    %v7133 = vmul.f32 %v7075, 0.5
    %v7134 = vmul.f32 %v7080, 0.5
    %v7135 = vmul.f32 %v7083, 0.5
    %v7136 = vmul.f32 %v7088, 0.5
    %v7137 = vmul.f32 %v7091, 0.5
    %v7138 = vmul.f32 %v7096, 0.5
    %v7139 = vmul.f32 %v7099, 0.5
    %v7140 = vmul.f32 %v7104, 0.5
    %v7141 = vmul.f32 %v7107, 0.5
    %v7142 = vadd.f32 %v7110, %v3258
    %v7143 = vadd.f32 %v7111, %v3259
    %v7144 = vadd.f32 %v7112, %v3260
    %v7145 = vadd.f32 %v7113, %v3261
    %v7146 = vadd.f32 %v7114, %v3262
    %v7147 = vadd.f32 %v7115, %v3263
    %v7148 = vadd.f32 %v7116, %v3264
    %v7149 = vadd.f32 %v7117, %v3265
    %v7150 = vadd.f32 %v7118, %v3266
    %v7151 = vadd.f32 %v7119, %v3267
    %v7152 = vadd.f32 %v7120, %v3268
    %v7153 = vadd.f32 %v7121, %v3269
    %v7154 = vadd.f32 %v7122, %v3270
    %v7155 = vadd.f32 %v7123, %v3271
    %v7156 = vadd.f32 %v7124, %v3272
    %v7157 = vadd.f32 %v7125, %v3273
    %v7158 = vadd.f32 %v7126, %v3274
    %v7159 = vadd.f32 %v7127, %v3275
    %v7160 = vadd.f32 %v7128, %v3276
    %v7161 = vadd.f32 %v7129, %v3277
    %v7162 = vadd.f32 %v7130, %v3278
    %v7163 = vadd.f32 %v7131, %v3279
    %v7164 = vadd.f32 %v7132, %v3280
    %v7165 = vadd.f32 %v7133, %v3281
    %v7166 = vadd.f32 %v7134, %v3282
    %v7167 = vadd.f32 %v7135, %v3283
    %v7168 = vadd.f32 %v7136, %v3284
    %v7169 = vadd.f32 %v7137, %v3285
    %v7170 = vadd.f32 %v7138, %v3286
    %v7171 = vadd.f32 %v7139, %v3287
    %v7172 = vadd.f32 %v7140, %v3288
    %v7173 = vadd.f32 %v7141, %v3289
    %v7174 = vsel %vm208, %v7142, -inf
    %7175 = vmax.xlane.f32.xlu0 %v7174
    %v7176 = vpop.xlane.xlu0 %7175
    %v7177 = vsel %vm208, %v7143, -inf
    %7178 = vmax.xlane.f32.xlu0 %v7177
    %v7179 = vpop.xlane.xlu0 %7178
    %v7180 = vsel %vm208, %v7144, -inf
    %7181 = vmax.xlane.f32.xlu0 %v7180
    %v7182 = vpop.xlane.xlu0 %7181
    %v7183 = vsel %vm208, %v7145, -inf
    %7184 = vmax.xlane.f32.xlu0 %v7183
    %v7185 = vpop.xlane.xlu0 %7184
    %v7186 = vsel %vm208, %v7146, -inf
    %7187 = vmax.xlane.f32.xlu0 %v7186
    %v7188 = vpop.xlane.xlu0 %7187
    %v7189 = vsel %vm208, %v7147, -inf
    %7190 = vmax.xlane.f32.xlu0 %v7189
    %v7191 = vpop.xlane.xlu0 %7190
    %v7192 = vsel %vm208, %v7148, -inf
    %7193 = vmax.xlane.f32.xlu0 %v7192
    %v7194 = vpop.xlane.xlu0 %7193
    %v7195 = vsel %vm208, %v7149, -inf
    %7196 = vmax.xlane.f32.xlu0 %v7195
    %v7197 = vpop.xlane.xlu0 %7196
    %v7198 = vsel %vm208, %v7150, -inf
    %7199 = vmax.xlane.f32.xlu0 %v7198
    %v7200 = vpop.xlane.xlu0 %7199
    %v7201 = vsel %vm208, %v7151, -inf
    %7202 = vmax.xlane.f32.xlu0 %v7201
    %v7203 = vpop.xlane.xlu0 %7202
    %v7204 = vsel %vm208, %v7152, -inf
    %7205 = vmax.xlane.f32.xlu0 %v7204
    %v7206 = vpop.xlane.xlu0 %7205
    %v7207 = vsel %vm208, %v7153, -inf
    %7208 = vmax.xlane.f32.xlu0 %v7207
    %v7209 = vpop.xlane.xlu0 %7208
    %v7210 = vsel %vm208, %v7154, -inf
    %7211 = vmax.xlane.f32.xlu0 %v7210
    %v7212 = vpop.xlane.xlu0 %7211
    %v7213 = vsel %vm208, %v7155, -inf
    %7214 = vmax.xlane.f32.xlu0 %v7213
    %v7215 = vpop.xlane.xlu0 %7214
    %v7216 = vsel %vm208, %v7156, -inf
    %7217 = vmax.xlane.f32.xlu0 %v7216
    %v7218 = vpop.xlane.xlu0 %7217
    %v7219 = vsel %vm208, %v7157, -inf
    %7220 = vmax.xlane.f32.xlu0 %v7219
    %v7221 = vpop.xlane.xlu0 %7220
    %v7222 = vsel %vm208, %v7158, -inf
    %7223 = vmax.xlane.f32.xlu0 %v7222
    %v7224 = vpop.xlane.xlu0 %7223
    %v7225 = vsel %vm208, %v7159, -inf
    %7226 = vmax.xlane.f32.xlu0 %v7225
    %v7227 = vpop.xlane.xlu0 %7226
    %v7228 = vsel %vm208, %v7160, -inf
    %7229 = vmax.xlane.f32.xlu0 %v7228
    %v7230 = vpop.xlane.xlu0 %7229
    %v7231 = vsel %vm208, %v7161, -inf
    %7232 = vmax.xlane.f32.xlu0 %v7231
    %v7233 = vpop.xlane.xlu0 %7232
    %v7234 = vsel %vm208, %v7162, -inf
    %7235 = vmax.xlane.f32.xlu0 %v7234
    %v7236 = vpop.xlane.xlu0 %7235
    %v7237 = vsel %vm208, %v7163, -inf
    %7238 = vmax.xlane.f32.xlu0 %v7237
    %v7239 = vpop.xlane.xlu0 %7238
    %v7240 = vsel %vm208, %v7164, -inf
    %7241 = vmax.xlane.f32.xlu0 %v7240
    %v7242 = vpop.xlane.xlu0 %7241
    %v7243 = vsel %vm208, %v7165, -inf
    %7244 = vmax.xlane.f32.xlu0 %v7243
    %v7245 = vpop.xlane.xlu0 %7244
    %v7246 = vsel %vm208, %v7166, -inf
    %7247 = vmax.xlane.f32.xlu0 %v7246
    %v7248 = vpop.xlane.xlu0 %7247
    %v7249 = vsel %vm208, %v7167, -inf
    %7250 = vmax.xlane.f32.xlu0 %v7249
    %v7251 = vpop.xlane.xlu0 %7250
    %v7252 = vsel %vm208, %v7168, -inf
    %7253 = vmax.xlane.f32.xlu0 %v7252
    %v7254 = vpop.xlane.xlu0 %7253
    %v7255 = vsel %vm208, %v7169, -inf
    %7256 = vmax.xlane.f32.xlu0 %v7255
    %v7257 = vpop.xlane.xlu0 %7256
    %v7258 = vsel %vm208, %v7170, -inf
    %7259 = vmax.xlane.f32.xlu0 %v7258
    %v7260 = vpop.xlane.xlu0 %7259
    %v7261 = vsel %vm208, %v7171, -inf
    %7262 = vmax.xlane.f32.xlu0 %v7261
    %v7263 = vpop.xlane.xlu0 %7262
    %v7264 = vsel %vm208, %v7172, -inf
    %7265 = vmax.xlane.f32.xlu0 %v7264
    %v7266 = vpop.xlane.xlu0 %7265
    %v7267 = vsel %vm208, %v7173, -inf
    %7268 = vmax.xlane.f32.xlu0 %v7267
    %v7269 = vpop.xlane.xlu0 %7268
    %v7270 = vsub.f32 %v7142, %v7176
    %v7271 = vsub.f32 %v7143, %v7179
    %v7272 = vsub.f32 %v7144, %v7182
    %v7273 = vsub.f32 %v7145, %v7185
    %v7274 = vsub.f32 %v7146, %v7188
    %v7275 = vsub.f32 %v7147, %v7191
    %v7276 = vsub.f32 %v7148, %v7194
    %v7277 = vsub.f32 %v7149, %v7197
    %v7278 = vsub.f32 %v7150, %v7200
    %v7279 = vsub.f32 %v7151, %v7203
    %v7280 = vsub.f32 %v7152, %v7206
    %v7281 = vsub.f32 %v7153, %v7209
    %v7282 = vsub.f32 %v7154, %v7212
    %v7283 = vsub.f32 %v7155, %v7215
    %v7284 = vsub.f32 %v7156, %v7218
    %v7285 = vsub.f32 %v7157, %v7221
    %v7286 = vsub.f32 %v7158, %v7224
    %v7287 = vsub.f32 %v7159, %v7227
    %v7288 = vsub.f32 %v7160, %v7230
    %v7289 = vsub.f32 %v7161, %v7233
    %v7290 = vsub.f32 %v7162, %v7236
    %v7291 = vsub.f32 %v7163, %v7239
    %v7292 = vsub.f32 %v7164, %v7242
    %v7293 = vsub.f32 %v7165, %v7245
    %v7294 = vsub.f32 %v7166, %v7248
    %v7295 = vsub.f32 %v7167, %v7251
    %v7296 = vsub.f32 %v7168, %v7254
    %v7297 = vsub.f32 %v7169, %v7257
    %v7298 = vsub.f32 %v7170, %v7260
    %v7299 = vsub.f32 %v7171, %v7263
    %v7300 = vsub.f32 %v7172, %v7266
    %v7301 = vsub.f32 %v7173, %v7269
    %v7302 = vmul.f32 %v7270, 1.442695
    %v7303 = vpow.pop %v7302
    %v7304 = vmul.f32 %v7271, 1.442695
    %v7305 = vpow.pop %v7304
    %v7306 = vmul.f32 %v7272, 1.442695
    %v7307 = vpow.pop %v7306
    %v7308 = vmul.f32 %v7273, 1.442695
    %v7309 = vpow.pop %v7308
    %v7310 = vmul.f32 %v7274, 1.442695
    %v7311 = vpow.pop %v7310
    %v7312 = vmul.f32 %v7275, 1.442695
    %v7313 = vpow.pop %v7312
    %v7314 = vmul.f32 %v7276, 1.442695
    %v7315 = vpow.pop %v7314
    %v7316 = vmul.f32 %v7277, 1.442695
    %v7317 = vpow.pop %v7316
    %v7318 = vmul.f32 %v7278, 1.442695
    %v7319 = vpow.pop %v7318
    %v7320 = vmul.f32 %v7279, 1.442695
    %v7321 = vpow.pop %v7320
    %v7322 = vmul.f32 %v7280, 1.442695
    %v7323 = vpow.pop %v7322
    %v7324 = vmul.f32 %v7281, 1.442695
    %v7325 = vpow.pop %v7324
    %v7326 = vmul.f32 %v7282, 1.442695
    %v7327 = vpow.pop %v7326
    %v7328 = vmul.f32 %v7283, 1.442695
    %v7329 = vpow.pop %v7328
    %v7330 = vmul.f32 %v7284, 1.442695
    %v7331 = vpow.pop %v7330
    %v7332 = vmul.f32 %v7285, 1.442695
    %v7333 = vpow.pop %v7332
    %v7334 = vmul.f32 %v7286, 1.442695
    %v7335 = vpow.pop %v7334
    %v7336 = vmul.f32 %v7287, 1.442695
    %v7337 = vpow.pop %v7336
    %v7338 = vmul.f32 %v7288, 1.442695
    %v7339 = vpow.pop %v7338
    %v7340 = vmul.f32 %v7289, 1.442695
    %v7341 = vpow.pop %v7340
    %v7342 = vmul.f32 %v7290, 1.442695
    %v7343 = vpow.pop %v7342
    %v7344 = vmul.f32 %v7291, 1.442695
    %v7345 = vpow.pop %v7344
    %v7346 = vmul.f32 %v7292, 1.442695
    %v7347 = vpow.pop %v7346
    %v7348 = vmul.f32 %v7293, 1.442695
    %v7349 = vpow.pop %v7348
    %v7350 = vmul.f32 %v7294, 1.442695
    %v7351 = vpow.pop %v7350
    %v7352 = vmul.f32 %v7295, 1.442695
    %v7353 = vpow.pop %v7352
    %v7354 = vmul.f32 %v7296, 1.442695
    %v7355 = vpow.pop %v7354
    %v7356 = vmul.f32 %v7297, 1.442695
    %v7357 = vpow.pop %v7356
    %v7358 = vmul.f32 %v7298, 1.442695
    %v7359 = vpow.pop %v7358
    %v7360 = vmul.f32 %v7299, 1.442695
    %v7361 = vpow.pop %v7360
    %v7362 = vmul.f32 %v7300, 1.442695
    %v7363 = vpow.pop %v7362
    %v7364 = vmul.f32 %v7301, 1.442695
    %v7365 = vpow.pop %v7364
    %v7366 = vsel %vm208, %v7303, 0.0
    %7367 = vadd.xlane.f32.xlu0 %v7366
    %v7368 = vpop.xlane.xlu0 %7367
    %v7369 = vsel %vm208, %v7305, 0.0
    %7370 = vadd.xlane.f32.xlu0 %v7369
    %v7371 = vpop.xlane.xlu0 %7370
    %v7372 = vsel %vm208, %v7307, 0.0
    %7373 = vadd.xlane.f32.xlu0 %v7372
    %v7374 = vpop.xlane.xlu0 %7373
    %v7375 = vsel %vm208, %v7309, 0.0
    %7376 = vadd.xlane.f32.xlu0 %v7375
    %v7377 = vpop.xlane.xlu0 %7376
    %v7378 = vsel %vm208, %v7311, 0.0
    %7379 = vadd.xlane.f32.xlu0 %v7378
    %v7380 = vpop.xlane.xlu0 %7379
    %v7381 = vsel %vm208, %v7313, 0.0
    %7382 = vadd.xlane.f32.xlu0 %v7381
    %v7383 = vpop.xlane.xlu0 %7382
    %v7384 = vsel %vm208, %v7315, 0.0
    %7385 = vadd.xlane.f32.xlu0 %v7384
    %v7386 = vpop.xlane.xlu0 %7385
    %v7387 = vsel %vm208, %v7317, 0.0
    %7388 = vadd.xlane.f32.xlu0 %v7387
    %v7389 = vpop.xlane.xlu0 %7388
    %v7390 = vsel %vm208, %v7319, 0.0
    %7391 = vadd.xlane.f32.xlu0 %v7390
    %v7392 = vpop.xlane.xlu0 %7391
    %v7393 = vsel %vm208, %v7321, 0.0
    %7394 = vadd.xlane.f32.xlu0 %v7393
    %v7395 = vpop.xlane.xlu0 %7394
    %v7396 = vsel %vm208, %v7323, 0.0
    %7397 = vadd.xlane.f32.xlu0 %v7396
    %v7398 = vpop.xlane.xlu0 %7397
    %v7399 = vsel %vm208, %v7325, 0.0
    %7400 = vadd.xlane.f32.xlu0 %v7399
    %v7401 = vpop.xlane.xlu0 %7400
    %v7402 = vsel %vm208, %v7327, 0.0
    %7403 = vadd.xlane.f32.xlu0 %v7402
    %v7404 = vpop.xlane.xlu0 %7403
    %v7405 = vsel %vm208, %v7329, 0.0
    %7406 = vadd.xlane.f32.xlu0 %v7405
    %v7407 = vpop.xlane.xlu0 %7406
    %v7408 = vsel %vm208, %v7331, 0.0
    %7409 = vadd.xlane.f32.xlu0 %v7408
    %v7410 = vpop.xlane.xlu0 %7409
    %v7411 = vsel %vm208, %v7333, 0.0
    %7412 = vadd.xlane.f32.xlu0 %v7411
    %v7413 = vpop.xlane.xlu0 %7412
    %v7414 = vsel %vm208, %v7335, 0.0
    %7415 = vadd.xlane.f32.xlu0 %v7414
    %v7416 = vpop.xlane.xlu0 %7415
    %v7417 = vsel %vm208, %v7337, 0.0
    %7418 = vadd.xlane.f32.xlu0 %v7417
    %v7419 = vpop.xlane.xlu0 %7418
    %v7420 = vsel %vm208, %v7339, 0.0
    %7421 = vadd.xlane.f32.xlu0 %v7420
    %v7422 = vpop.xlane.xlu0 %7421
    %v7423 = vsel %vm208, %v7341, 0.0
    %7424 = vadd.xlane.f32.xlu0 %v7423
    %v7425 = vpop.xlane.xlu0 %7424
    %v7426 = vsel %vm208, %v7343, 0.0
    %7427 = vadd.xlane.f32.xlu0 %v7426
    %v7428 = vpop.xlane.xlu0 %7427
    %v7429 = vsel %vm208, %v7345, 0.0
    %7430 = vadd.xlane.f32.xlu0 %v7429
    %v7431 = vpop.xlane.xlu0 %7430
    %v7432 = vsel %vm208, %v7347, 0.0
    %7433 = vadd.xlane.f32.xlu0 %v7432
    %v7434 = vpop.xlane.xlu0 %7433
    %v7435 = vsel %vm208, %v7349, 0.0
    %7436 = vadd.xlane.f32.xlu0 %v7435
    %v7437 = vpop.xlane.xlu0 %7436
    %v7438 = vsel %vm208, %v7351, 0.0
    %7439 = vadd.xlane.f32.xlu0 %v7438
    %v7440 = vpop.xlane.xlu0 %7439
    %v7441 = vsel %vm208, %v7353, 0.0
    %7442 = vadd.xlane.f32.xlu0 %v7441
    %v7443 = vpop.xlane.xlu0 %7442
    %v7444 = vsel %vm208, %v7355, 0.0
    %7445 = vadd.xlane.f32.xlu0 %v7444
    %v7446 = vpop.xlane.xlu0 %7445
    %v7447 = vsel %vm208, %v7357, 0.0
    %7448 = vadd.xlane.f32.xlu0 %v7447
    %v7449 = vpop.xlane.xlu0 %7448
    %v7450 = vsel %vm208, %v7359, 0.0
    %7451 = vadd.xlane.f32.xlu0 %v7450
    %v7452 = vpop.xlane.xlu0 %7451
    %v7453 = vsel %vm208, %v7361, 0.0
    %7454 = vadd.xlane.f32.xlu0 %v7453
    %v7455 = vpop.xlane.xlu0 %7454
    %v7456 = vsel %vm208, %v7363, 0.0
    %7457 = vadd.xlane.f32.xlu0 %v7456
    %v7458 = vpop.xlane.xlu0 %7457
    %v7459 = vsel %vm208, %v7365, 0.0
    %7460 = vadd.xlane.f32.xlu0 %v7459
    %v7461 = vpop.xlane.xlu0 %7460
    %v7462 = vrcp.pop %v7368
    %v7463 = vrcp.pop %v7371
    %v7464 = vrcp.pop %v7374
    %v7465 = vrcp.pop %v7377
    %v7466 = vrcp.pop %v7380
    %v7467 = vrcp.pop %v7383
    %v7468 = vrcp.pop %v7386
    %v7469 = vrcp.pop %v7389
    %v7470 = vrcp.pop %v7392
    %v7471 = vrcp.pop %v7395
    %v7472 = vrcp.pop %v7398
    %v7473 = vrcp.pop %v7401
    %v7474 = vrcp.pop %v7404
    %v7475 = vrcp.pop %v7407
    %v7476 = vrcp.pop %v7410
    %v7477 = vrcp.pop %v7413
    %v7478 = vrcp.pop %v7416
    %v7479 = vrcp.pop %v7419
    %v7480 = vrcp.pop %v7422
    %v7481 = vrcp.pop %v7425
    %v7482 = vrcp.pop %v7428
    %v7483 = vrcp.pop %v7431
    %v7484 = vrcp.pop %v7434
    %v7485 = vrcp.pop %v7437
    %v7486 = vrcp.pop %v7440
    %v7487 = vrcp.pop %v7443
    %v7488 = vrcp.pop %v7446
    %v7489 = vrcp.pop %v7449
    %v7490 = vrcp.pop %v7452
    %v7491 = vrcp.pop %v7455
    %v7492 = vrcp.pop %v7458
    %v7493 = vrcp.pop %v7461
    %v7494 = vmul.f32 %v7303, %v7462
    %v7495 = vmul.f32 %v7305, %v7463
    %v7496 = vmul.f32 %v7307, %v7464
    %v7497 = vmul.f32 %v7309, %v7465
    %v7498 = vmul.f32 %v7311, %v7466
    %v7499 = vmul.f32 %v7313, %v7467
    %v7500 = vmul.f32 %v7315, %v7468
    %v7501 = vmul.f32 %v7317, %v7469
    %v7502 = vmul.f32 %v7319, %v7470
    %v7503 = vmul.f32 %v7321, %v7471
    %v7504 = vmul.f32 %v7323, %v7472
    %v7505 = vmul.f32 %v7325, %v7473
    %v7506 = vmul.f32 %v7327, %v7474
    %v7507 = vmul.f32 %v7329, %v7475
    %v7508 = vmul.f32 %v7331, %v7476
    %v7509 = vmul.f32 %v7333, %v7477
    %v7510 = vmul.f32 %v7335, %v7478
    %v7511 = vmul.f32 %v7337, %v7479
    %v7512 = vmul.f32 %v7339, %v7480
    %v7513 = vmul.f32 %v7341, %v7481
    %v7514 = vmul.f32 %v7343, %v7482
    %v7515 = vmul.f32 %v7345, %v7483
    %v7516 = vmul.f32 %v7347, %v7484
    %v7517 = vmul.f32 %v7349, %v7485
    %v7518 = vmul.f32 %v7351, %v7486
    %v7519 = vmul.f32 %v7353, %v7487
    %v7520 = vmul.f32 %v7355, %v7488
    %v7521 = vmul.f32 %v7357, %v7489
    %v7522 = vmul.f32 %v7359, %v7490
    %v7523 = vmul.f32 %v7361, %v7491
    %v7524 = vmul.f32 %v7363, %v7492
    %v7525 = vmul.f32 %v7365, %v7493
    %v7526 = vpack.c.bf16 %v7495, %v7494
    %v7527 = vpack.c.bf16 %v7497, %v7496
    %v7528 = vpack.c.bf16 %v7499, %v7498
    %v7529 = vpack.c.bf16 %v7501, %v7500
    %v7530 = vpack.c.bf16 %v7503, %v7502
    %v7531 = vpack.c.bf16 %v7505, %v7504
    %v7532 = vpack.c.bf16 %v7507, %v7506
    %v7533 = vpack.c.bf16 %v7509, %v7508
    %v7534 = vpack.c.bf16 %v7511, %v7510
    %v7535 = vpack.c.bf16 %v7513, %v7512
    %v7536 = vpack.c.bf16 %v7515, %v7514
    %v7537 = vpack.c.bf16 %v7517, %v7516
    %v7538 = vpack.c.bf16 %v7519, %v7518
    %v7539 = vpack.c.bf16 %v7521, %v7520
    %v7540 = vpack.c.bf16 %v7523, %v7522
    %v7541 = vpack.c.bf16 %v7525, %v7524
    %v7542 = vpack.c.bf16 %v6834, %v6831
    %v7543 = vpack.c.bf16 %v6842, %v6839
    %v7545 = vsel %vm208, %v7526, 0
    %v7548 = vsel %vm208, %v7527, 0
    %v7551 = vsel %vm208, %v7528, 0
    %v7554 = vsel %vm208, %v7529, 0
    %v7557 = vsel %vm208, %v7530, 0
    %v7560 = vsel %vm208, %v7531, 0
    %v7563 = vsel %vm208, %v7532, 0
    %v7566 = vsel %vm208, %v7533, 0
    %v7569 = vsel %vm208, %v7534, 0
    %v7572 = vsel %vm208, %v7535, 0
    %v7575 = vsel %vm208, %v7536, 0
    %v7578 = vsel %vm208, %v7537, 0
    %v7581 = vsel %vm208, %v7538, 0
    %v7584 = vsel %vm208, %v7539, 0
    %v7587 = vsel %vm208, %v7540, 0
    %v7590 = vsel %vm208, %v7541, 0
    %7592 = vmatprep.subr.bf16.mxu0 0
    %7593 = vmatpush1.bf16.msra.mxu0 %v7542
    %7594 = vmatprep.subr.bf16.mxu0 0
    %7595 = vmatpush1.bf16.msra.mxu0 %v7543
    %7596 = vmatprep.subr.bf16.mxu0 0
    %7597 = vmatpush1.bf16.msra.mxu0 0
    %7598 = vmatprep.subr.bf16.mxu0 0
    %7599 = vmatpush1.bf16.msra.mxu0 0
    %7600 = vmatprep.subr.bf16.mxu0 0
    %7601 = vmatpush1.bf16.msra.mxu0 0
    %7602 = vmatprep.subr.bf16.mxu0 0
    %7603 = vmatpush1.bf16.msra.mxu0 0
    %7604 = vmatprep.subr.bf16.mxu0 0
    %7605 = vmatpush1.bf16.msra.mxu0 0
    %7606 = vmatprep.subr.bf16.mxu0 0
    %7607 = vmatpush1.bf16.msra.mxu0 0
    %7608 = vmatprep.subr.bf16.mxu0 0
    %7609 = vmatpush1.bf16.msra.mxu0 0
    %7610 = vmatprep.subr.bf16.mxu0 0
    %7611 = vmatpush1.bf16.msra.mxu0 0
    %7612 = vmatprep.subr.bf16.mxu0 0
    %7613 = vmatpush1.bf16.msra.mxu0 0
    %7614 = vmatprep.subr.bf16.mxu0 0
    %7615 = vmatpush1.bf16.msra.mxu0 0
    %7616 = vmatprep.subr.bf16.mxu0 0
    %7617 = vmatpush1.bf16.msra.mxu0 0
    %7618 = vmatprep.subr.bf16.mxu0 0
    %7619 = vmatpush1.bf16.msra.mxu0 0
    %7620 = vmatprep.subr.bf16.mxu0 0
    %7621 = vmatpush1.bf16.msra.mxu0 0
    %7622 = vmatprep.subr.bf16.mxu0 0
    %7623 = vmatpush1.bf16.msra.mxu0 0
    %7624 = vmatprep.mubr.bf16.mxu0 0
    %7625 = vmatmul.mubr.bf16.gmra.mrb[0].mxu0 %v7545
    %v7626 = vpop.f32.mrb[0].mxu0
    %v7627 = vadd.f32 0.0, %v7626
    %v7628 = vpop.f32.mrb[0].mxu0
    %v7629 = vpop.f32.mrb[0].mxu0
    %v7630 = vadd.f32 0.0, %v7629
    %v7631 = vpop.f32.mrb[0].mxu0
    %7632 = vmatprep.mubr.bf16.mxu0 0
    %7633 = vmatmul.mubr.bf16.gmra.mrb[0].mxu0 %v7548
    %v7634 = vpop.f32.mrb[0].mxu0
    %v7635 = vadd.f32 0.0, %v7634
    %v7636 = vpop.f32.mrb[0].mxu0
    %v7637 = vpop.f32.mrb[0].mxu0
    %v7638 = vadd.f32 0.0, %v7637
    %v7639 = vpop.f32.mrb[0].mxu0
    %7640 = vmatprep.mubr.bf16.mxu0 0
    %7641 = vmatmul.mubr.bf16.gmra.mrb[0].mxu0 %v7551
    %v7642 = vpop.f32.mrb[0].mxu0
    %v7643 = vadd.f32 0.0, %v7642
    %v7644 = vpop.f32.mrb[0].mxu0
    %v7645 = vpop.f32.mrb[0].mxu0
    %v7646 = vadd.f32 0.0, %v7645
    %v7647 = vpop.f32.mrb[0].mxu0
    %7648 = vmatprep.mubr.bf16.mxu0 0
    %7649 = vmatmul.mubr.bf16.gmra.mrb[0].mxu0 %v7554
    %v7650 = vpop.f32.mrb[0].mxu0
    %v7651 = vadd.f32 0.0, %v7650
    %v7652 = vpop.f32.mrb[0].mxu0
    %v7653 = vpop.f32.mrb[0].mxu0
    %v7654 = vadd.f32 0.0, %v7653
    %v7655 = vpop.f32.mrb[0].mxu0
    %7656 = vmatprep.mubr.bf16.mxu0 0
    %7657 = vmatmul.mubr.bf16.gmra.mrb[0].mxu0 %v7557
    %v7658 = vpop.f32.mrb[0].mxu0
    %v7659 = vadd.f32 0.0, %v7658
    %v7660 = vpop.f32.mrb[0].mxu0
    %v7661 = vpop.f32.mrb[0].mxu0
    %v7662 = vadd.f32 0.0, %v7661
    %v7663 = vpop.f32.mrb[0].mxu0
    %7664 = vmatprep.mubr.bf16.mxu0 0
    %7665 = vmatmul.mubr.bf16.gmra.mrb[0].mxu0 %v7560
    %v7666 = vpop.f32.mrb[0].mxu0
    %v7667 = vadd.f32 0.0, %v7666
    %v7668 = vpop.f32.mrb[0].mxu0
    %v7669 = vpop.f32.mrb[0].mxu0
    %v7670 = vadd.f32 0.0, %v7669
    %v7671 = vpop.f32.mrb[0].mxu0
    %7672 = vmatprep.mubr.bf16.mxu0 0
    %7673 = vmatmul.mubr.bf16.gmra.mrb[0].mxu0 %v7563
    %v7674 = vpop.f32.mrb[0].mxu0
    %v7675 = vadd.f32 0.0, %v7674
    %v7676 = vpop.f32.mrb[0].mxu0
    %v7677 = vpop.f32.mrb[0].mxu0
    %v7678 = vadd.f32 0.0, %v7677
    %v7679 = vpop.f32.mrb[0].mxu0
    %7680 = vmatprep.mubr.bf16.mxu0 0
    %7681 = vmatmul.mubr.bf16.gmra.mrb[0].mxu0 %v7566
    %v7682 = vpop.f32.mrb[0].mxu0
    %v7683 = vadd.f32 0.0, %v7682
    %v7684 = vpop.f32.mrb[0].mxu0
    %v7685 = vpop.f32.mrb[0].mxu0
    %v7686 = vadd.f32 0.0, %v7685
    %v7687 = vpop.f32.mrb[0].mxu0
    %7688 = vmatprep.mubr.bf16.mxu0 0
    %7689 = vmatmul.mubr.bf16.gmra.mrb[0].mxu0 %v7569
    %v7690 = vpop.f32.mrb[0].mxu0
    %v7691 = vadd.f32 0.0, %v7690
    %v7692 = vpop.f32.mrb[0].mxu0
    %v7693 = vpop.f32.mrb[0].mxu0
    %v7694 = vadd.f32 0.0, %v7693
    %v7695 = vpop.f32.mrb[0].mxu0
    %7696 = vmatprep.mubr.bf16.mxu0 0
    %7697 = vmatmul.mubr.bf16.gmra.mrb[0].mxu0 %v7572
    %v7698 = vpop.f32.mrb[0].mxu0
    %v7699 = vadd.f32 0.0, %v7698
    %v7700 = vpop.f32.mrb[0].mxu0
    %v7701 = vpop.f32.mrb[0].mxu0
    %v7702 = vadd.f32 0.0, %v7701
    %v7703 = vpop.f32.mrb[0].mxu0
    %7704 = vmatprep.mubr.bf16.mxu0 0
    %7705 = vmatmul.mubr.bf16.gmra.mrb[0].mxu0 %v7575
    %v7706 = vpop.f32.mrb[0].mxu0
    %v7707 = vadd.f32 0.0, %v7706
    %v7708 = vpop.f32.mrb[0].mxu0
    %v7709 = vpop.f32.mrb[0].mxu0
    %v7710 = vadd.f32 0.0, %v7709
    %v7711 = vpop.f32.mrb[0].mxu0
    %7712 = vmatprep.mubr.bf16.mxu0 0
    %7713 = vmatmul.mubr.bf16.gmra.mrb[0].mxu0 %v7578
    %v7714 = vpop.f32.mrb[0].mxu0
    %v7715 = vadd.f32 0.0, %v7714
    %v7716 = vpop.f32.mrb[0].mxu0
    %v7717 = vpop.f32.mrb[0].mxu0
    %v7718 = vadd.f32 0.0, %v7717
    %v7719 = vpop.f32.mrb[0].mxu0
    %7720 = vmatprep.mubr.bf16.mxu0 0
    %7721 = vmatmul.mubr.bf16.gmra.mrb[0].mxu0 %v7581
    %v7722 = vpop.f32.mrb[0].mxu0
    %v7723 = vadd.f32 0.0, %v7722
    %v7724 = vpop.f32.mrb[0].mxu0
    %v7725 = vpop.f32.mrb[0].mxu0
    %v7726 = vadd.f32 0.0, %v7725
    %v7727 = vpop.f32.mrb[0].mxu0
    %7728 = vmatprep.mubr.bf16.mxu0 0
    %7729 = vmatmul.mubr.bf16.gmra.mrb[0].mxu0 %v7584
    %v7730 = vpop.f32.mrb[0].mxu0
    %v7731 = vadd.f32 0.0, %v7730
    %v7732 = vpop.f32.mrb[0].mxu0
    %v7733 = vpop.f32.mrb[0].mxu0
    %v7734 = vadd.f32 0.0, %v7733
    %v7735 = vpop.f32.mrb[0].mxu0
    %7736 = vmatprep.mubr.bf16.mxu0 0
    %7737 = vmatmul.mubr.bf16.gmra.mrb[0].mxu0 %v7587
    %v7738 = vpop.f32.mrb[0].mxu0
    %v7739 = vadd.f32 0.0, %v7738
    %v7740 = vpop.f32.mrb[0].mxu0
    %v7741 = vpop.f32.mrb[0].mxu0
    %v7742 = vadd.f32 0.0, %v7741
    %v7743 = vpop.f32.mrb[0].mxu0
    %7744 = vmatprep.mubr.bf16.mxu0 0
    %7745 = vmatmul.mubr.bf16.gmra.mrb[0].mxu0 %v7590
    %v7746 = vpop.f32.mrb[0].mxu0
    %v7747 = vadd.f32 0.0, %v7746
    %v7748 = vpop.f32.mrb[0].mxu0
    %v7749 = vpop.f32.mrb[0].mxu0
    %v7750 = vadd.f32 0.0, %v7749
    %v7751 = vpop.f32.mrb[0].mxu0
    %7752 = vdwg.mxu0
    %v7753 = vmul.f32 %v7627, %v3226
    %v7754 = vmul.f32 %v7630, %v3227
    %v7755 = vmul.f32 %v7635, %v3228
    %v7756 = vmul.f32 %v7638, %v3229
    %v7757 = vmul.f32 %v7643, %v3230
    %v7758 = vmul.f32 %v7646, %v3231
    %v7759 = vmul.f32 %v7651, %v3232
    %v7760 = vmul.f32 %v7654, %v3233
    %v7761 = vmul.f32 %v7659, %v3234
    %v7762 = vmul.f32 %v7662, %v3235
    %v7763 = vmul.f32 %v7667, %v3236
    %v7764 = vmul.f32 %v7670, %v3237
    %v7765 = vmul.f32 %v7675, %v3238
    %v7766 = vmul.f32 %v7678, %v3239
    %v7767 = vmul.f32 %v7683, %v3240
    %v7768 = vmul.f32 %v7686, %v3241
    %v7769 = vmul.f32 %v7691, %v3242
    %v7770 = vmul.f32 %v7694, %v3243
    %v7771 = vmul.f32 %v7699, %v3244
    %v7772 = vmul.f32 %v7702, %v3245
    %v7773 = vmul.f32 %v7707, %v3246
    %v7774 = vmul.f32 %v7710, %v3247
    %v7775 = vmul.f32 %v7715, %v3248
    %v7776 = vmul.f32 %v7718, %v3249
    %v7777 = vmul.f32 %v7723, %v3250
    %v7778 = vmul.f32 %v7726, %v3251
    %v7779 = vmul.f32 %v7731, %v3252
    %v7780 = vmul.f32 %v7734, %v3253
    %v7781 = vmul.f32 %v7739, %v3254
    %v7782 = vmul.f32 %v7742, %v3255
    %v7783 = vmul.f32 %v7747, %v3256
    %v7784 = vmul.f32 %v7750, %v3257
    %v7785 = vadd.f32 %v7753, %v7757
    %v7786 = vadd.f32 %v7754, %v7758
    %v7787 = vadd.f32 %v7755, %v7759
    %v7788 = vadd.f32 %v7756, %v7760
    %v7789 = vadd.f32 %v7761, %v7765
    %v7790 = vadd.f32 %v7762, %v7766
    %v7791 = vadd.f32 %v7763, %v7767
    %v7792 = vadd.f32 %v7764, %v7768
    %v7793 = vadd.f32 %v7769, %v7773
    %v7794 = vadd.f32 %v7770, %v7774
    %v7795 = vadd.f32 %v7771, %v7775
    %v7796 = vadd.f32 %v7772, %v7776
    %v7797 = vadd.f32 %v7777, %v7781
    %v7798 = vadd.f32 %v7778, %v7782
    %v7799 = vadd.f32 %v7779, %v7783
    %v7800 = vadd.f32 %v7780, %v7784
    %v7801 = vadd.f32 %v7785, %v7789
    %v7802 = vadd.f32 %v7786, %v7790
    %v7803 = vadd.f32 %v7787, %v7791
    %v7804 = vadd.f32 %v7788, %v7792
    %v7805 = vadd.f32 %v7793, %v7797
    %v7806 = vadd.f32 %v7794, %v7798
    %v7807 = vadd.f32 %v7795, %v7799
    %v7808 = vadd.f32 %v7796, %v7800
    %v7809 = vadd.f32 %v7801, %v7805
    %v7810 = vadd.f32 %v7802, %v7806
    %v7811 = vadd.f32 %v7803, %v7807
    %v7812 = vadd.f32 %v7804, %v7808
    %s7813 = scalar_lea.vmem %s49, 32
    %v7814 = vld [vmem:[%s7813] sm:$0xf]
    %v7815 = vld [vmem:[%s7813 + $0x4] sm:$0xf]
    %v7816 = vld [vmem:[%s7813 + $0x8] sm:$0xf]
    %v7817 = vld [vmem:[%s7813 + $0xc] sm:$0xf]
    %v7818 = vpack.c.bf16 %v7810, %v7809
    %v7819 = vpack.c.bf16 %v7812, %v7811
    %v7824 = vunpack.c.l.b16 %v7814
    %v7825 = vunpack.c.l.b16 %v7815
    %v7826 = vunpack.c.l.b16 %v7816
    %v7827 = vunpack.c.l.b16 %v7817
    %v7828 = vpack.c.b16 %v7825, %v7824
    %v7829 = vpack.c.b16 %v7827, %v7826
    %v7833 = vsel %vm208, %v7818, 0
    %v7836 = vsel %vm208, %v7819, 0
    %7838 = vmatprep.subr.bf16.mxu0 0
    %7839 = vmatpush1.bf16.msra.mxu0 %v7828
    %7840 = vmatprep.subr.bf16.mxu0 0
    %7841 = vmatpush1.bf16.msra.mxu0 %v7829
    %7842 = vmatprep.subr.bf16.mxu0 0
    %7843 = vmatpush1.bf16.msra.mxu0 0
    %7844 = vmatprep.subr.bf16.mxu0 0
    %7845 = vmatpush1.bf16.msra.mxu0 0
    %7846 = vmatprep.subr.bf16.mxu0 0
    %7847 = vmatpush1.bf16.msra.mxu0 0
    %7848 = vmatprep.subr.bf16.mxu0 0
    %7849 = vmatpush1.bf16.msra.mxu0 0
    %7850 = vmatprep.subr.bf16.mxu0 0
    %7851 = vmatpush1.bf16.msra.mxu0 0
    %7852 = vmatprep.subr.bf16.mxu0 0
    %7853 = vmatpush1.bf16.msra.mxu0 0
    %7854 = vmatprep.subr.bf16.mxu0 0
    %7855 = vmatpush1.bf16.msra.mxu0 0
    %7856 = vmatprep.subr.bf16.mxu0 0
    %7857 = vmatpush1.bf16.msra.mxu0 0
    %7858 = vmatprep.subr.bf16.mxu0 0
    %7859 = vmatpush1.bf16.msra.mxu0 0
    %7860 = vmatprep.subr.bf16.mxu0 0
    %7861 = vmatpush1.bf16.msra.mxu0 0
    %7862 = vmatprep.subr.bf16.mxu0 0
    %7863 = vmatpush1.bf16.msra.mxu0 0
    %7864 = vmatprep.subr.bf16.mxu0 0
    %7865 = vmatpush1.bf16.msra.mxu0 0
    %7866 = vmatprep.subr.bf16.mxu0 0
    %7867 = vmatpush1.bf16.msra.mxu0 0
    %7868 = vmatprep.subr.bf16.mxu0 0
    %7869 = vmatpush1.bf16.msra.mxu0 0
    %7870 = vmatprep.mubr.bf16.mxu0 0
    %7871 = vmatmul.mubr.bf16.gmra.mrb[0].mxu0 %v7833
    %v7872 = vpop.f32.mrb[0].mxu0
    %v7873 = vadd.f32 0.0, %v7872
    %v7874 = vpop.f32.mrb[0].mxu0
    %v7875 = vpop.f32.mrb[0].mxu0
    %v7876 = vadd.f32 0.0, %v7875
    %v7877 = vpop.f32.mrb[0].mxu0
    %7878 = vmatprep.mubr.bf16.mxu0 0
    %7879 = vmatmul.mubr.bf16.gmra.mrb[0].mxu0 %v7836
    %v7880 = vpop.f32.mrb[0].mxu0
    %v7881 = vadd.f32 0.0, %v7880
    %v7882 = vpop.f32.mrb[0].mxu0
    %v7883 = vpop.f32.mrb[0].mxu0
    %v7884 = vadd.f32 0.0, %v7883
    %v7885 = vpop.f32.mrb[0].mxu0
    %7886 = vdwg.mxu0
    %v7887 = vadd.f32 %v6535, %v7873
    %v7888 = vadd.f32 %v6536, %v7876
    %v7889 = vadd.f32 %v6537, %v7881
    %v7890 = vadd.f32 %v6538, %v7884
    %s7891 = scalar_lea.vmem %s51, 2
    %v7892 = vld [vmem:[%s7891] sm:$0x1]
    %v7894 = vlaneseq
    %v7895 = vshrl.u32 %v7894, 7
    %v7896 = vsub.s32 0, %v7895
    %v7897 = vrot.slane %v7892, %v7896
    %v7899 = vadd.f32 %v7887, %v7897
    %v7900 = vadd.f32 %v7888, %v7897
    %v7901 = vadd.f32 %v7889, %v7897
    %v7902 = vadd.f32 %v7890, %v7897
    %s7903 = scalar_lea.vmem %s53, 2
    %v7904 = vld [vmem:[%s7903] sm:$0x1]
    %s7905 = scalar_lea.vmem %s55, 2
    %v7906 = vld [vmem:[%s7905] sm:$0x1]
    %v7907 = vsel %vm208, %v7899, 0.0
    %7908 = vadd.xlane.f32.xlu0 %v7907
    %v7909 = vpop.xlane.xlu0 %7908
    %v7910 = vsel %vm208, %v7900, 0.0
    %7911 = vadd.xlane.f32.xlu0 %v7910
    %v7912 = vpop.xlane.xlu0 %7911
    %v7913 = vsel %vm208, %v7901, 0.0
    %7914 = vadd.xlane.f32.xlu0 %v7913
    %v7915 = vpop.xlane.xlu0 %7914
    %v7916 = vsel %vm208, %v7902, 0.0
    %7917 = vadd.xlane.f32.xlu0 %v7916
    %v7918 = vpop.xlane.xlu0 %7917
    %v7919 = vmul.f32 %v7909, %v3304
    %v7920 = vmul.f32 %v7912, %v3304
    %v7921 = vmul.f32 %v7915, %v3304
    %v7922 = vmul.f32 %v7918, %v3304
    %v7923 = vsub.f32 %v7899, %v7919
    %v7924 = vsub.f32 %v7900, %v7920
    %v7925 = vsub.f32 %v7901, %v7921
    %v7926 = vsub.f32 %v7902, %v7922
    %v7927 = vmul.f32 %v7923, %v7923
    %v7928 = vmul.f32 %v7924, %v7924
    %v7929 = vmul.f32 %v7925, %v7925
    %v7930 = vmul.f32 %v7926, %v7926
    %v7931 = vsel %vm208, %v7927, 0.0
    %7932 = vadd.xlane.f32.xlu0 %v7931
    %v7933 = vpop.xlane.xlu0 %7932
    %v7934 = vsel %vm208, %v7928, 0.0
    %7935 = vadd.xlane.f32.xlu0 %v7934
    %v7936 = vpop.xlane.xlu0 %7935
    %v7937 = vsel %vm208, %v7929, 0.0
    %7938 = vadd.xlane.f32.xlu0 %v7937
    %v7939 = vpop.xlane.xlu0 %7938
    %v7940 = vsel %vm208, %v7930, 0.0
    %7941 = vadd.xlane.f32.xlu0 %v7940
    %v7942 = vpop.xlane.xlu0 %7941
    %v7943 = vmul.f32 %v7933, %v3304
    %v7944 = vmul.f32 %v7936, %v3304
    %v7945 = vmul.f32 %v7939, %v3304
    %v7946 = vmul.f32 %v7942, %v3304
    %v7947 = vadd.f32 %v7943, 1e-05
    %v7948 = vadd.f32 %v7944, 1e-05
    %v7949 = vadd.f32 %v7945, 1e-05
    %v7950 = vadd.f32 %v7946, 1e-05
    %v7951 = vrsqrt.pop %v7947
    %v7952 = vrsqrt.pop %v7948
    %v7953 = vrsqrt.pop %v7949
    %v7954 = vrsqrt.pop %v7950
    %v7955 = vmul.f32 %v7923, %v7951
    %v7956 = vmul.f32 %v7924, %v7952
    %v7957 = vmul.f32 %v7925, %v7953
    %v7958 = vmul.f32 %v7926, %v7954
    %v7960 = vlaneseq
    %v7961 = vshrl.u32 %v7960, 7
    %v7962 = vsub.s32 0, %v7961
    %v7963 = vrot.slane %v7904, %v7962
    %v7965 = vmul.f32 %v7955, %v7963
    %v7966 = vmul.f32 %v7956, %v7963
    %v7967 = vmul.f32 %v7957, %v7963
    %v7968 = vmul.f32 %v7958, %v7963
    %v7970 = vlaneseq
    %v7971 = vshrl.u32 %v7970, 7
    %v7972 = vsub.s32 0, %v7971
    %v7973 = vrot.slane %v7906, %v7972
    %v7975 = vadd.f32 %v7965, %v7973
    %v7976 = vadd.f32 %v7966, %v7973
    %v7977 = vadd.f32 %v7967, %v7973
    %v7978 = vadd.f32 %v7968, %v7973
    %s7979 = scalar_lea.vmem %s57, 32
    %v7980 = vld [vmem:[%s7979] sm:$0xf]
    %v7981 = vld [vmem:[%s7979 + $0x4] sm:$0xf]
    %v7982 = vld [vmem:[%s7979 + $0x8] sm:$0xf]
    %v7983 = vld [vmem:[%s7979 + $0xc] sm:$0xf]
    %v7984 = vpack.c.bf16 %v7976, %v7975
    %v7985 = vpack.c.bf16 %v7978, %v7977
    %s7986 = scalar_lea.vmem %s59, 2
    %v7987 = vld [vmem:[%s7986] sm:$0x1]
    %v7989 = vlaneseq
    %v7990 = vshrl.u32 %v7989, 7
    %v7991 = vsub.s32 0, %v7990
    %v7992 = vrot.slane %v7987, %v7991
    %v7998 = vunpack.c.l.b16 %v7980
    %v7999 = vunpack.c.l.b16 %v7981
    %v8000 = vunpack.c.l.b16 %v7982
    %v8001 = vunpack.c.l.b16 %v7983
    %v8002 = vpack.c.b16 %v7999, %v7998
    %v8003 = vpack.c.b16 %v8001, %v8000
    %v8007 = vsel %vm208, %v7984, 0
    %v8010 = vsel %vm208, %v7985, 0
    %8012 = vmatprep.subr.bf16.mxu0 0
    %8013 = vmatpush1.bf16.msra.mxu0 %v8002
    %8014 = vmatprep.subr.bf16.mxu0 0
    %8015 = vmatpush1.bf16.msra.mxu0 %v8003
    %8016 = vmatprep.subr.bf16.mxu0 0
    %8017 = vmatpush1.bf16.msra.mxu0 0
    %8018 = vmatprep.subr.bf16.mxu0 0
    %8019 = vmatpush1.bf16.msra.mxu0 0
    %8020 = vmatprep.subr.bf16.mxu0 0
    %8021 = vmatpush1.bf16.msra.mxu0 0
    %8022 = vmatprep.subr.bf16.mxu0 0
    %8023 = vmatpush1.bf16.msra.mxu0 0
    %8024 = vmatprep.subr.bf16.mxu0 0
    %8025 = vmatpush1.bf16.msra.mxu0 0
    %8026 = vmatprep.subr.bf16.mxu0 0
    %8027 = vmatpush1.bf16.msra.mxu0 0
    %8028 = vmatprep.subr.bf16.mxu0 0
    %8029 = vmatpush1.bf16.msra.mxu0 0
    %8030 = vmatprep.subr.bf16.mxu0 0
    %8031 = vmatpush1.bf16.msra.mxu0 0
    %8032 = vmatprep.subr.bf16.mxu0 0
    %8033 = vmatpush1.bf16.msra.mxu0 0
    %8034 = vmatprep.subr.bf16.mxu0 0
    %8035 = vmatpush1.bf16.msra.mxu0 0
    %8036 = vmatprep.subr.bf16.mxu0 0
    %8037 = vmatpush1.bf16.msra.mxu0 0
    %8038 = vmatprep.subr.bf16.mxu0 0
    %8039 = vmatpush1.bf16.msra.mxu0 0
    %8040 = vmatprep.subr.bf16.mxu0 0
    %8041 = vmatpush1.bf16.msra.mxu0 0
    %8042 = vmatprep.subr.bf16.mxu0 0
    %8043 = vmatpush1.bf16.msra.mxu0 0
    %8044 = vmatprep.mubr.bf16.mxu0 0
    %8045 = vmatmul.mubr.bf16.gmra.mrb[0].mxu0 %v8007
    %v8046 = vpop.f32.mrb[0].mxu0
    %v8047 = vadd.f32 %v7992, %v8046
    %v8048 = vpop.f32.mrb[0].mxu0
    %v8049 = vpop.f32.mrb[0].mxu0
    %v8050 = vadd.f32 %v7992, %v8049
    %v8051 = vpop.f32.mrb[0].mxu0
    %8052 = vmatprep.mubr.bf16.mxu0 0
    %8053 = vmatmul.mubr.bf16.gmra.mrb[0].mxu0 %v8010
    %v8054 = vpop.f32.mrb[0].mxu0
    %v8055 = vadd.f32 %v7992, %v8054
    %v8056 = vpop.f32.mrb[0].mxu0
    %v8057 = vpop.f32.mrb[0].mxu0
    %v8058 = vadd.f32 %v7992, %v8057
    %v8059 = vpop.f32.mrb[0].mxu0
    %8060 = vdwg.mxu0
    %v8061 = vmax.f32 %v8047, 0.0
    %v8062 = vmax.f32 %v8050, 0.0
    %v8063 = vmax.f32 %v8055, 0.0
    %v8064 = vmax.f32 %v8058, 0.0
    %s8065 = scalar_lea.vmem %s61, 64
    %v8066 = vld [vmem:[%s8065] sm:$0xf]
    %v8067 = vld [vmem:[%s8065 + $0x4] sm:$0xf]
    %v8068 = vld [vmem:[%s8065 + $0x8] sm:$0xf]
    %v8069 = vld [vmem:[%s8065 + $0xc] sm:$0xf]
    %v8070 = vld [vmem:[%s8065 + $0x10] sm:$0xf]
    %v8071 = vld [vmem:[%s8065 + $0x14] sm:$0xf]
    %v8072 = vld [vmem:[%s8065 + $0x18] sm:$0xf]
    %v8073 = vld [vmem:[%s8065 + $0x1c] sm:$0xf]
    %v8074 = vpack.c.bf16 %v8062, %v8061
    %v8075 = vpack.c.bf16 %v8064, %v8063
    %v8084 = vunpack.c.l.b16 %v8066
    %v8085 = vunpack.c.l.b16 %v8067
    %v8086 = vunpack.c.l.b16 %v8068
    %v8087 = vunpack.c.l.b16 %v8069
    %v8088 = vunpack.c.l.b16 %v8070
    %v8089 = vunpack.c.l.b16 %v8071
    %v8090 = vunpack.c.l.b16 %v8072
    %v8091 = vunpack.c.l.b16 %v8073
    %v8092 = vpack.c.b16 %v8085, %v8084
    %v8093 = vpack.c.b16 %v8087, %v8086
    %v8094 = vpack.c.b16 %v8089, %v8088
    %v8095 = vpack.c.b16 %v8091, %v8090
    %v8101 = vsel %vm2861, %v8074, 0
    %v8104 = vsel %vm2861, %v8075, 0
    %8106 = vmatprep.subr.bf16.mxu0 0
    %8107 = vmatpush1.bf16.msra.mxu0 %v8092
    %8108 = vmatprep.subr.bf16.mxu0 0
    %8109 = vmatpush1.bf16.msra.mxu0 %v8093
    %8110 = vmatprep.subr.bf16.mxu0 0
    %8111 = vmatpush1.bf16.msra.mxu0 %v8094
    %8112 = vmatprep.subr.bf16.mxu0 0
    %8113 = vmatpush1.bf16.msra.mxu0 %v8095
    %8114 = vmatprep.subr.bf16.mxu0 0
    %8115 = vmatpush1.bf16.msra.mxu0 0
    %8116 = vmatprep.subr.bf16.mxu0 0
    %8117 = vmatpush1.bf16.msra.mxu0 0
    %8118 = vmatprep.subr.bf16.mxu0 0
    %8119 = vmatpush1.bf16.msra.mxu0 0
    %8120 = vmatprep.subr.bf16.mxu0 0
    %8121 = vmatpush1.bf16.msra.mxu0 0
    %8122 = vmatprep.subr.bf16.mxu0 0
    %8123 = vmatpush1.bf16.msra.mxu0 0
    %8124 = vmatprep.subr.bf16.mxu0 0
    %8125 = vmatpush1.bf16.msra.mxu0 0
    %8126 = vmatprep.subr.bf16.mxu0 0
    %8127 = vmatpush1.bf16.msra.mxu0 0
    %8128 = vmatprep.subr.bf16.mxu0 0
    %8129 = vmatpush1.bf16.msra.mxu0 0
    %8130 = vmatprep.subr.bf16.mxu0 0
    %8131 = vmatpush1.bf16.msra.mxu0 0
    %8132 = vmatprep.subr.bf16.mxu0 0
    %8133 = vmatpush1.bf16.msra.mxu0 0
    %8134 = vmatprep.subr.bf16.mxu0 0
    %8135 = vmatpush1.bf16.msra.mxu0 0
    %8136 = vmatprep.subr.bf16.mxu0 0
    %8137 = vmatpush1.bf16.msra.mxu0 0
    %8138 = vmatprep.mubr.bf16.mxu0 0
    %8139 = vmatmul.mubr.bf16.gmra.mrb[0].mxu0 %v8101
    %v8140 = vpop.f32.mrb[0].mxu0
    %v8141 = vadd.f32 0.0, %v8140
    %v8142 = vpop.f32.mrb[0].mxu0
    %v8143 = vpop.f32.mrb[0].mxu0
    %v8144 = vadd.f32 0.0, %v8143
    %v8145 = vpop.f32.mrb[0].mxu0
    %8146 = vmatprep.mubr.bf16.mxu0 0
    %8147 = vmatmul.mubr.bf16.gmra.mrb[0].mxu0 %v8104
    %v8148 = vpop.f32.mrb[0].mxu0
    %v8149 = vadd.f32 0.0, %v8148
    %v8150 = vpop.f32.mrb[0].mxu0
    %v8151 = vpop.f32.mrb[0].mxu0
    %v8152 = vadd.f32 0.0, %v8151
    %v8153 = vpop.f32.mrb[0].mxu0
    %8154 = vdwg.mxu0
    %v8155 = vadd.f32 %v7899, %v8141
    %v8156 = vadd.f32 %v7900, %v8144
    %v8157 = vadd.f32 %v7901, %v8149
    %v8158 = vadd.f32 %v7902, %v8152
    %s8159 = scalar_lea.vmem %s63, 2
    %v8160 = vld [vmem:[%s8159] sm:$0x1]
    %v8162 = vlaneseq
    %v8163 = vshrl.u32 %v8162, 7
    %v8164 = vsub.s32 0, %v8163
    %v8165 = vrot.slane %v8160, %v8164
    %v8167 = vadd.f32 %v8155, %v8165
    %v8168 = vadd.f32 %v8156, %v8165
    %v8169 = vadd.f32 %v8157, %v8165
    %v8170 = vadd.f32 %v8158, %v8165
    %s8171 = scalar_lea.vmem %s33, 3
    %v8172 = vld [vmem:[%s8171] sm:$0x1]
    %s8173 = scalar_lea.vmem %s35, 3
    %v8174 = vld [vmem:[%s8173] sm:$0x1]
    %v8175 = vsel %vm208, %v8167, 0.0
    %8176 = vadd.xlane.f32.xlu0 %v8175
    %v8177 = vpop.xlane.xlu0 %8176
    %v8178 = vsel %vm208, %v8168, 0.0
    %8179 = vadd.xlane.f32.xlu0 %v8178
    %v8180 = vpop.xlane.xlu0 %8179
    %v8181 = vsel %vm208, %v8169, 0.0
    %8182 = vadd.xlane.f32.xlu0 %v8181
    %v8183 = vpop.xlane.xlu0 %8182
    %v8184 = vsel %vm208, %v8170, 0.0
    %8185 = vadd.xlane.f32.xlu0 %v8184
    %v8186 = vpop.xlane.xlu0 %8185
    %v8187 = vmul.f32 %v8177, %v3304
    %v8188 = vmul.f32 %v8180, %v3304
    %v8189 = vmul.f32 %v8183, %v3304
    %v8190 = vmul.f32 %v8186, %v3304
    %v8191 = vsub.f32 %v8167, %v8187
    %v8192 = vsub.f32 %v8168, %v8188
    %v8193 = vsub.f32 %v8169, %v8189
    %v8194 = vsub.f32 %v8170, %v8190
    %v8195 = vmul.f32 %v8191, %v8191
    %v8196 = vmul.f32 %v8192, %v8192
    %v8197 = vmul.f32 %v8193, %v8193
    %v8198 = vmul.f32 %v8194, %v8194
    %v8199 = vsel %vm208, %v8195, 0.0
    %8200 = vadd.xlane.f32.xlu0 %v8199
    %v8201 = vpop.xlane.xlu0 %8200
    %v8202 = vsel %vm208, %v8196, 0.0
    %8203 = vadd.xlane.f32.xlu0 %v8202
    %v8204 = vpop.xlane.xlu0 %8203
    %v8205 = vsel %vm208, %v8197, 0.0
    %8206 = vadd.xlane.f32.xlu0 %v8205
    %v8207 = vpop.xlane.xlu0 %8206
    %v8208 = vsel %vm208, %v8198, 0.0
    %8209 = vadd.xlane.f32.xlu0 %v8208
    %v8210 = vpop.xlane.xlu0 %8209
    %v8211 = vmul.f32 %v8201, %v3304
    %v8212 = vmul.f32 %v8204, %v3304
    %v8213 = vmul.f32 %v8207, %v3304
    %v8214 = vmul.f32 %v8210, %v3304
    %v8215 = vadd.f32 %v8211, 1e-05
    %v8216 = vadd.f32 %v8212, 1e-05
    %v8217 = vadd.f32 %v8213, 1e-05
    %v8218 = vadd.f32 %v8214, 1e-05
    %v8219 = vrsqrt.pop %v8215
    %v8220 = vrsqrt.pop %v8216
    %v8221 = vrsqrt.pop %v8217
    %v8222 = vrsqrt.pop %v8218
    %v8223 = vmul.f32 %v8191, %v8219
    %v8224 = vmul.f32 %v8192, %v8220
    %v8225 = vmul.f32 %v8193, %v8221
    %v8226 = vmul.f32 %v8194, %v8222
    %v8228 = vlaneseq
    %v8229 = vshrl.u32 %v8228, 7
    %v8230 = vsub.s32 0, %v8229
    %v8231 = vrot.slane %v8172, %v8230
    %v8233 = vmul.f32 %v8223, %v8231
    %v8234 = vmul.f32 %v8224, %v8231
    %v8235 = vmul.f32 %v8225, %v8231
    %v8236 = vmul.f32 %v8226, %v8231
    %v8238 = vlaneseq
    %v8239 = vshrl.u32 %v8238, 7
    %v8240 = vsub.s32 0, %v8239
    %v8241 = vrot.slane %v8174, %v8240
    %v8243 = vadd.f32 %v8233, %v8241
    %v8244 = vadd.f32 %v8234, %v8241
    %v8245 = vadd.f32 %v8235, %v8241
    %v8246 = vadd.f32 %v8236, %v8241
    %v8247 = vpack.c.bf16 %v8244, %v8243
    %v8248 = vpack.c.bf16 %v8246, %v8245
    %s8249 = scalar_lea.vmem %s37, 48
    %v8250 = vld [vmem:[%s8249] sm:$0xf]
    %v8251 = vld [vmem:[%s8249 + $0x4] sm:$0xf]
    %v8252 = vld [vmem:[%s8249 + $0x8] sm:$0xf]
    %v8253 = vld [vmem:[%s8249 + $0xc] sm:$0xf]
    %s8254 = scalar_lea.vmem %s39, 3
    %v8255 = vld [vmem:[%s8254] sm:$0x1]
    %v8257 = vlaneseq
    %v8258 = vshrl.u32 %v8257, 7
    %v8259 = vsub.s32 0, %v8258
    %v8260 = vrot.slane %v8255, %v8259
    %v8266 = vunpack.c.l.b16 %v8250
    %v8267 = vunpack.c.l.b16 %v8251
    %v8268 = vunpack.c.l.b16 %v8252
    %v8269 = vunpack.c.l.b16 %v8253
    %v8270 = vpack.c.b16 %v8267, %v8266
    %v8271 = vpack.c.b16 %v8269, %v8268
    %v8275 = vsel %vm208, %v8247, 0
    %v8278 = vsel %vm208, %v8248, 0
    %8280 = vmatprep.subr.bf16.mxu0 0
    %8281 = vmatpush1.bf16.msra.mxu0 %v8270
    %8282 = vmatprep.subr.bf16.mxu0 0
    %8283 = vmatpush1.bf16.msra.mxu0 %v8271
    %8284 = vmatprep.subr.bf16.mxu0 0
    %8285 = vmatpush1.bf16.msra.mxu0 0
    %8286 = vmatprep.subr.bf16.mxu0 0
    %8287 = vmatpush1.bf16.msra.mxu0 0
    %8288 = vmatprep.subr.bf16.mxu0 0
    %8289 = vmatpush1.bf16.msra.mxu0 0
    %8290 = vmatprep.subr.bf16.mxu0 0
    %8291 = vmatpush1.bf16.msra.mxu0 0
    %8292 = vmatprep.subr.bf16.mxu0 0
    %8293 = vmatpush1.bf16.msra.mxu0 0
    %8294 = vmatprep.subr.bf16.mxu0 0
    %8295 = vmatpush1.bf16.msra.mxu0 0
    %8296 = vmatprep.subr.bf16.mxu0 0
    %8297 = vmatpush1.bf16.msra.mxu0 0
    %8298 = vmatprep.subr.bf16.mxu0 0
    %8299 = vmatpush1.bf16.msra.mxu0 0
    %8300 = vmatprep.subr.bf16.mxu0 0
    %8301 = vmatpush1.bf16.msra.mxu0 0
    %8302 = vmatprep.subr.bf16.mxu0 0
    %8303 = vmatpush1.bf16.msra.mxu0 0
    %8304 = vmatprep.subr.bf16.mxu0 0
    %8305 = vmatpush1.bf16.msra.mxu0 0
    %8306 = vmatprep.subr.bf16.mxu0 0
    %8307 = vmatpush1.bf16.msra.mxu0 0
    %8308 = vmatprep.subr.bf16.mxu0 0
    %8309 = vmatpush1.bf16.msra.mxu0 0
    %8310 = vmatprep.subr.bf16.mxu0 0
    %8311 = vmatpush1.bf16.msra.mxu0 0
    %8312 = vmatprep.mubr.bf16.mxu0 0
    %8313 = vmatmul.mubr.bf16.gmra.mrb[0].mxu0 %v8275
    %v8314 = vpop.f32.mrb[0].mxu0
    %v8315 = vadd.f32 %v8260, %v8314
    %v8316 = vpop.f32.mrb[0].mxu0
    %v8317 = vpop.f32.mrb[0].mxu0
    %v8318 = vadd.f32 %v8260, %v8317
    %v8319 = vpop.f32.mrb[0].mxu0
    %8320 = vmatprep.mubr.bf16.mxu0 0
    %8321 = vmatmul.mubr.bf16.gmra.mrb[0].mxu0 %v8278
    %v8322 = vpop.f32.mrb[0].mxu0
    %v8323 = vadd.f32 %v8260, %v8322
    %v8324 = vpop.f32.mrb[0].mxu0
    %v8325 = vpop.f32.mrb[0].mxu0
    %v8326 = vadd.f32 %v8260, %v8325
    %v8327 = vpop.f32.mrb[0].mxu0
    %8328 = vdwg.mxu0
    %s8329 = scalar_lea.vmem %s41, 48
    %v8330 = vld [vmem:[%s8329] sm:$0xf]
    %v8331 = vld [vmem:[%s8329 + $0x4] sm:$0xf]
    %v8332 = vld [vmem:[%s8329 + $0x8] sm:$0xf]
    %v8333 = vld [vmem:[%s8329 + $0xc] sm:$0xf]
    %s8334 = scalar_lea.vmem %s43, 3
    %v8335 = vld [vmem:[%s8334] sm:$0x1]
    %v8337 = vlaneseq
    %v8338 = vshrl.u32 %v8337, 7
    %v8339 = vsub.s32 0, %v8338
    %v8340 = vrot.slane %v8335, %v8339
    %v8346 = vunpack.c.l.b16 %v8330
    %v8347 = vunpack.c.l.b16 %v8331
    %v8348 = vunpack.c.l.b16 %v8332
    %v8349 = vunpack.c.l.b16 %v8333
    %v8350 = vpack.c.b16 %v8347, %v8346
    %v8351 = vpack.c.b16 %v8349, %v8348
    %8354 = vmatprep.subr.bf16.mxu0 0
    %8355 = vmatpush1.bf16.msra.mxu0 %v8350
    %8356 = vmatprep.subr.bf16.mxu0 0
    %8357 = vmatpush1.bf16.msra.mxu0 %v8351
    %8358 = vmatprep.subr.bf16.mxu0 0
    %8359 = vmatpush1.bf16.msra.mxu0 0
    %8360 = vmatprep.subr.bf16.mxu0 0
    %8361 = vmatpush1.bf16.msra.mxu0 0
    %8362 = vmatprep.subr.bf16.mxu0 0
    %8363 = vmatpush1.bf16.msra.mxu0 0
    %8364 = vmatprep.subr.bf16.mxu0 0
    %8365 = vmatpush1.bf16.msra.mxu0 0
    %8366 = vmatprep.subr.bf16.mxu0 0
    %8367 = vmatpush1.bf16.msra.mxu0 0
    %8368 = vmatprep.subr.bf16.mxu0 0
    %8369 = vmatpush1.bf16.msra.mxu0 0
    %8370 = vmatprep.subr.bf16.mxu0 0
    %8371 = vmatpush1.bf16.msra.mxu0 0
    %8372 = vmatprep.subr.bf16.mxu0 0
    %8373 = vmatpush1.bf16.msra.mxu0 0
    %8374 = vmatprep.subr.bf16.mxu0 0
    %8375 = vmatpush1.bf16.msra.mxu0 0
    %8376 = vmatprep.subr.bf16.mxu0 0
    %8377 = vmatpush1.bf16.msra.mxu0 0
    %8378 = vmatprep.subr.bf16.mxu0 0
    %8379 = vmatpush1.bf16.msra.mxu0 0
    %8380 = vmatprep.subr.bf16.mxu0 0
    %8381 = vmatpush1.bf16.msra.mxu0 0
    %8382 = vmatprep.subr.bf16.mxu0 0
    %8383 = vmatpush1.bf16.msra.mxu0 0
    %8384 = vmatprep.subr.bf16.mxu0 0
    %8385 = vmatpush1.bf16.msra.mxu0 0
    %8386 = vmatprep.mubr.bf16.mxu0 0
    %8387 = vmatmul.mubr.bf16.gmra.mrb[0].mxu0 %v8275
    %v8388 = vpop.f32.mrb[0].mxu0
    %v8389 = vadd.f32 %v8340, %v8388
    %v8390 = vpop.f32.mrb[0].mxu0
    %v8391 = vpop.f32.mrb[0].mxu0
    %v8392 = vadd.f32 %v8340, %v8391
    %v8393 = vpop.f32.mrb[0].mxu0
    %8394 = vmatprep.mubr.bf16.mxu0 0
    %8395 = vmatmul.mubr.bf16.gmra.mrb[0].mxu0 %v8278
    %v8396 = vpop.f32.mrb[0].mxu0
    %v8397 = vadd.f32 %v8340, %v8396
    %v8398 = vpop.f32.mrb[0].mxu0
    %v8399 = vpop.f32.mrb[0].mxu0
    %v8400 = vadd.f32 %v8340, %v8399
    %v8401 = vpop.f32.mrb[0].mxu0
    %8402 = vdwg.mxu0
    %s8403 = scalar_lea.vmem %s45, 48
    %v8404 = vld [vmem:[%s8403] sm:$0xf]
    %v8405 = vld [vmem:[%s8403 + $0x4] sm:$0xf]
    %v8406 = vld [vmem:[%s8403 + $0x8] sm:$0xf]
    %v8407 = vld [vmem:[%s8403 + $0xc] sm:$0xf]
    %s8408 = scalar_lea.vmem %s47, 3
    %v8409 = vld [vmem:[%s8408] sm:$0x1]
    %v8411 = vlaneseq
    %v8412 = vshrl.u32 %v8411, 7
    %v8413 = vsub.s32 0, %v8412
    %v8414 = vrot.slane %v8409, %v8413
    %v8420 = vunpack.c.l.b16 %v8404
    %v8421 = vunpack.c.l.b16 %v8405
    %v8422 = vunpack.c.l.b16 %v8406
    %v8423 = vunpack.c.l.b16 %v8407
    %v8424 = vpack.c.b16 %v8421, %v8420
    %v8425 = vpack.c.b16 %v8423, %v8422
    %8428 = vmatprep.subr.bf16.mxu0 0
    %8429 = vmatpush1.bf16.msra.mxu0 %v8424
    %8430 = vmatprep.subr.bf16.mxu0 0
    %8431 = vmatpush1.bf16.msra.mxu0 %v8425
    %8432 = vmatprep.subr.bf16.mxu0 0
    %8433 = vmatpush1.bf16.msra.mxu0 0
    %8434 = vmatprep.subr.bf16.mxu0 0
    %8435 = vmatpush1.bf16.msra.mxu0 0
    %8436 = vmatprep.subr.bf16.mxu0 0
    %8437 = vmatpush1.bf16.msra.mxu0 0
    %8438 = vmatprep.subr.bf16.mxu0 0
    %8439 = vmatpush1.bf16.msra.mxu0 0
    %8440 = vmatprep.subr.bf16.mxu0 0
    %8441 = vmatpush1.bf16.msra.mxu0 0
    %8442 = vmatprep.subr.bf16.mxu0 0
    %8443 = vmatpush1.bf16.msra.mxu0 0
    %8444 = vmatprep.subr.bf16.mxu0 0
    %8445 = vmatpush1.bf16.msra.mxu0 0
    %8446 = vmatprep.subr.bf16.mxu0 0
    %8447 = vmatpush1.bf16.msra.mxu0 0
    %8448 = vmatprep.subr.bf16.mxu0 0
    %8449 = vmatpush1.bf16.msra.mxu0 0
    %8450 = vmatprep.subr.bf16.mxu0 0
    %8451 = vmatpush1.bf16.msra.mxu0 0
    %8452 = vmatprep.subr.bf16.mxu0 0
    %8453 = vmatpush1.bf16.msra.mxu0 0
    %8454 = vmatprep.subr.bf16.mxu0 0
    %8455 = vmatpush1.bf16.msra.mxu0 0
    %8456 = vmatprep.subr.bf16.mxu0 0
    %8457 = vmatpush1.bf16.msra.mxu0 0
    %8458 = vmatprep.subr.bf16.mxu0 0
    %8459 = vmatpush1.bf16.msra.mxu0 0
    %8460 = vmatprep.mubr.bf16.mxu0 0
    %8461 = vmatmul.mubr.bf16.gmra.mrb[0].mxu0 %v8275
    %v8462 = vpop.f32.mrb[0].mxu0
    %v8463 = vadd.f32 %v8414, %v8462
    %v8464 = vpop.f32.mrb[0].mxu0
    %v8465 = vpop.f32.mrb[0].mxu0
    %v8466 = vadd.f32 %v8414, %v8465
    %v8467 = vpop.f32.mrb[0].mxu0
    %8468 = vmatprep.mubr.bf16.mxu0 0
    %8469 = vmatmul.mubr.bf16.gmra.mrb[0].mxu0 %v8278
    %v8470 = vpop.f32.mrb[0].mxu0
    %v8471 = vadd.f32 %v8414, %v8470
    %v8472 = vpop.f32.mrb[0].mxu0
    %v8473 = vpop.f32.mrb[0].mxu0
    %v8474 = vadd.f32 %v8414, %v8473
    %v8475 = vpop.f32.mrb[0].mxu0
    %8476 = vdwg.mxu0
    %v8477 = vmul.f32 %v8315, %v3226
    %v8478 = vmul.f32 %v8318, %v3227
    %v8479 = vmul.f32 %v8323, %v3228
    %v8480 = vmul.f32 %v8326, %v3229
    %v8481 = vmul.f32 %v8315, %v3230
    %v8482 = vmul.f32 %v8318, %v3231
    %v8483 = vmul.f32 %v8323, %v3232
    %v8484 = vmul.f32 %v8326, %v3233
    %v8485 = vmul.f32 %v8315, %v3234
    %v8486 = vmul.f32 %v8318, %v3235
    %v8487 = vmul.f32 %v8323, %v3236
    %v8488 = vmul.f32 %v8326, %v3237
    %v8489 = vmul.f32 %v8315, %v3238
    %v8490 = vmul.f32 %v8318, %v3239
    %v8491 = vmul.f32 %v8323, %v3240
    %v8492 = vmul.f32 %v8326, %v3241
    %v8493 = vmul.f32 %v8315, %v3242
    %v8494 = vmul.f32 %v8318, %v3243
    %v8495 = vmul.f32 %v8323, %v3244
    %v8496 = vmul.f32 %v8326, %v3245
    %v8497 = vmul.f32 %v8315, %v3246
    %v8498 = vmul.f32 %v8318, %v3247
    %v8499 = vmul.f32 %v8323, %v3248
    %v8500 = vmul.f32 %v8326, %v3249
    %v8501 = vmul.f32 %v8315, %v3250
    %v8502 = vmul.f32 %v8318, %v3251
    %v8503 = vmul.f32 %v8323, %v3252
    %v8504 = vmul.f32 %v8326, %v3253
    %v8505 = vmul.f32 %v8315, %v3254
    %v8506 = vmul.f32 %v8318, %v3255
    %v8507 = vmul.f32 %v8323, %v3256
    %v8508 = vmul.f32 %v8326, %v3257
    %v8509 = vpack.c.bf16 %v8478, %v8477
    %v8510 = vpack.c.bf16 %v8480, %v8479
    %v8511 = vpack.c.bf16 %v8482, %v8481
    %v8512 = vpack.c.bf16 %v8484, %v8483
    %v8513 = vpack.c.bf16 %v8486, %v8485
    %v8514 = vpack.c.bf16 %v8488, %v8487
    %v8515 = vpack.c.bf16 %v8490, %v8489
    %v8516 = vpack.c.bf16 %v8492, %v8491
    %v8517 = vpack.c.bf16 %v8494, %v8493
    %v8518 = vpack.c.bf16 %v8496, %v8495
    %v8519 = vpack.c.bf16 %v8498, %v8497
    %v8520 = vpack.c.bf16 %v8500, %v8499
    %v8521 = vpack.c.bf16 %v8502, %v8501
    %v8522 = vpack.c.bf16 %v8504, %v8503
    %v8523 = vpack.c.bf16 %v8506, %v8505
    %v8524 = vpack.c.bf16 %v8508, %v8507
    %v8525 = vpack.c.bf16 %v8392, %v8389
    %v8526 = vpack.c.bf16 %v8400, %v8397
    %v8528 = vsel %vm208, %v8509, 0
    %v8531 = vsel %vm208, %v8510, 0
    %v8534 = vsel %vm208, %v8511, 0
    %v8537 = vsel %vm208, %v8512, 0
    %v8540 = vsel %vm208, %v8513, 0
    %v8543 = vsel %vm208, %v8514, 0
    %v8546 = vsel %vm208, %v8515, 0
    %v8549 = vsel %vm208, %v8516, 0
    %v8552 = vsel %vm208, %v8517, 0
    %v8555 = vsel %vm208, %v8518, 0
    %v8558 = vsel %vm208, %v8519, 0
    %v8561 = vsel %vm208, %v8520, 0
    %v8564 = vsel %vm208, %v8521, 0
    %v8567 = vsel %vm208, %v8522, 0
    %v8570 = vsel %vm208, %v8523, 0
    %v8573 = vsel %vm208, %v8524, 0
    %v8576 = vsel %vm208, %v8525, 0
    %v8579 = vsel %vm208, %v8526, 0
    %8581 = vmatprep.subr.bf16.mxu0 0
    %8582 = vmatpush1.bf16.xpose.msra.mxu0 %v8576
    %8583 = vmatprep.subr.bf16.mxu0 0
    %8584 = vmatpush1.bf16.xpose.msra.mxu0 %v8579
    %8585 = vmatprep.subr.bf16.mxu0 0
    %8586 = vmatpush1.bf16.xpose.msra.mxu0 0
    %8587 = vmatprep.subr.bf16.mxu0 0
    %8588 = vmatpush1.bf16.xpose.msra.mxu0 0
    %8589 = vmatprep.subr.bf16.mxu0 0
    %8590 = vmatpush1.bf16.xpose.msra.mxu0 0
    %8591 = vmatprep.subr.bf16.mxu0 0
    %8592 = vmatpush1.bf16.xpose.msra.mxu0 0
    %8593 = vmatprep.subr.bf16.mxu0 0
    %8594 = vmatpush1.bf16.xpose.msra.mxu0 0
    %8595 = vmatprep.subr.bf16.mxu0 0
    %8596 = vmatpush1.bf16.xpose.msra.mxu0 0
    %8597 = vmatprep.subr.bf16.mxu0 0
    %8598 = vmatpush1.bf16.xpose.msra.mxu0 0
    %8599 = vmatprep.subr.bf16.mxu0 0
    %8600 = vmatpush1.bf16.xpose.msra.mxu0 0
    %8601 = vmatprep.subr.bf16.mxu0 0
    %8602 = vmatpush1.bf16.xpose.msra.mxu0 0
    %8603 = vmatprep.subr.bf16.mxu0 0
    %8604 = vmatpush1.bf16.xpose.msra.mxu0 0
    %8605 = vmatprep.subr.bf16.mxu0 0
    %8606 = vmatpush1.bf16.xpose.msra.mxu0 0
    %8607 = vmatprep.subr.bf16.mxu0 0
    %8608 = vmatpush1.bf16.xpose.msra.mxu0 0
    %8609 = vmatprep.subr.bf16.mxu0 0
    %8610 = vmatpush1.bf16.xpose.msra.mxu0 0
    %8611 = vmatprep.subr.bf16.mxu0 0
    %8612 = vmatpush1.bf16.xpose.msra.mxu0 0
    %8613 = vmatprep.mubr.bf16.mxu0 0
    %8614 = vmatmul.mubr.bf16.gmra.mrb[0].mxu0 %v8528
    %v8615 = vpop.f32.mrb[0].mxu0
    %v8616 = vadd.f32 0.0, %v8615
    %v8617 = vpop.f32.mrb[0].mxu0
    %v8618 = vpop.f32.mrb[0].mxu0
    %v8619 = vadd.f32 0.0, %v8618
    %v8620 = vpop.f32.mrb[0].mxu0
    %8621 = vmatprep.mubr.bf16.mxu0 0
    %8622 = vmatmul.mubr.bf16.gmra.mrb[0].mxu0 %v8531
    %v8623 = vpop.f32.mrb[0].mxu0
    %v8624 = vadd.f32 0.0, %v8623
    %v8625 = vpop.f32.mrb[0].mxu0
    %v8626 = vpop.f32.mrb[0].mxu0
    %v8627 = vadd.f32 0.0, %v8626
    %v8628 = vpop.f32.mrb[0].mxu0
    %8629 = vmatprep.mubr.bf16.mxu0 0
    %8630 = vmatmul.mubr.bf16.gmra.mrb[0].mxu0 %v8534
    %v8631 = vpop.f32.mrb[0].mxu0
    %v8632 = vadd.f32 0.0, %v8631
    %v8633 = vpop.f32.mrb[0].mxu0
    %v8634 = vpop.f32.mrb[0].mxu0
    %v8635 = vadd.f32 0.0, %v8634
    %v8636 = vpop.f32.mrb[0].mxu0
    %8637 = vmatprep.mubr.bf16.mxu0 0
    %8638 = vmatmul.mubr.bf16.gmra.mrb[0].mxu0 %v8537
    %v8639 = vpop.f32.mrb[0].mxu0
    %v8640 = vadd.f32 0.0, %v8639
    %v8641 = vpop.f32.mrb[0].mxu0
    %v8642 = vpop.f32.mrb[0].mxu0
    %v8643 = vadd.f32 0.0, %v8642
    %v8644 = vpop.f32.mrb[0].mxu0
    %8645 = vmatprep.mubr.bf16.mxu0 0
    %8646 = vmatmul.mubr.bf16.gmra.mrb[0].mxu0 %v8540
    %v8647 = vpop.f32.mrb[0].mxu0
    %v8648 = vadd.f32 0.0, %v8647
    %v8649 = vpop.f32.mrb[0].mxu0
    %v8650 = vpop.f32.mrb[0].mxu0
    %v8651 = vadd.f32 0.0, %v8650
    %v8652 = vpop.f32.mrb[0].mxu0
    %8653 = vmatprep.mubr.bf16.mxu0 0
    %8654 = vmatmul.mubr.bf16.gmra.mrb[0].mxu0 %v8543
    %v8655 = vpop.f32.mrb[0].mxu0
    %v8656 = vadd.f32 0.0, %v8655
    %v8657 = vpop.f32.mrb[0].mxu0
    %v8658 = vpop.f32.mrb[0].mxu0
    %v8659 = vadd.f32 0.0, %v8658
    %v8660 = vpop.f32.mrb[0].mxu0
    %8661 = vmatprep.mubr.bf16.mxu0 0
    %8662 = vmatmul.mubr.bf16.gmra.mrb[0].mxu0 %v8546
    %v8663 = vpop.f32.mrb[0].mxu0
    %v8664 = vadd.f32 0.0, %v8663
    %v8665 = vpop.f32.mrb[0].mxu0
    %v8666 = vpop.f32.mrb[0].mxu0
    %v8667 = vadd.f32 0.0, %v8666
    %v8668 = vpop.f32.mrb[0].mxu0
    %8669 = vmatprep.mubr.bf16.mxu0 0
    %8670 = vmatmul.mubr.bf16.gmra.mrb[0].mxu0 %v8549
    %v8671 = vpop.f32.mrb[0].mxu0
    %v8672 = vadd.f32 0.0, %v8671
    %v8673 = vpop.f32.mrb[0].mxu0
    %v8674 = vpop.f32.mrb[0].mxu0
    %v8675 = vadd.f32 0.0, %v8674
    %v8676 = vpop.f32.mrb[0].mxu0
    %8677 = vmatprep.mubr.bf16.mxu0 0
    %8678 = vmatmul.mubr.bf16.gmra.mrb[0].mxu0 %v8552
    %v8679 = vpop.f32.mrb[0].mxu0
    %v8680 = vadd.f32 0.0, %v8679
    %v8681 = vpop.f32.mrb[0].mxu0
    %v8682 = vpop.f32.mrb[0].mxu0
    %v8683 = vadd.f32 0.0, %v8682
    %v8684 = vpop.f32.mrb[0].mxu0
    %8685 = vmatprep.mubr.bf16.mxu0 0
    %8686 = vmatmul.mubr.bf16.gmra.mrb[0].mxu0 %v8555
    %v8687 = vpop.f32.mrb[0].mxu0
    %v8688 = vadd.f32 0.0, %v8687
    %v8689 = vpop.f32.mrb[0].mxu0
    %v8690 = vpop.f32.mrb[0].mxu0
    %v8691 = vadd.f32 0.0, %v8690
    %v8692 = vpop.f32.mrb[0].mxu0
    %8693 = vmatprep.mubr.bf16.mxu0 0
    %8694 = vmatmul.mubr.bf16.gmra.mrb[0].mxu0 %v8558
    %v8695 = vpop.f32.mrb[0].mxu0
    %v8696 = vadd.f32 0.0, %v8695
    %v8697 = vpop.f32.mrb[0].mxu0
    %v8698 = vpop.f32.mrb[0].mxu0
    %v8699 = vadd.f32 0.0, %v8698
    %v8700 = vpop.f32.mrb[0].mxu0
    %8701 = vmatprep.mubr.bf16.mxu0 0
    %8702 = vmatmul.mubr.bf16.gmra.mrb[0].mxu0 %v8561
    %v8703 = vpop.f32.mrb[0].mxu0
    %v8704 = vadd.f32 0.0, %v8703
    %v8705 = vpop.f32.mrb[0].mxu0
    %v8706 = vpop.f32.mrb[0].mxu0
    %v8707 = vadd.f32 0.0, %v8706
    %v8708 = vpop.f32.mrb[0].mxu0
    %8709 = vmatprep.mubr.bf16.mxu0 0
    %8710 = vmatmul.mubr.bf16.gmra.mrb[0].mxu0 %v8564
    %v8711 = vpop.f32.mrb[0].mxu0
    %v8712 = vadd.f32 0.0, %v8711
    %v8713 = vpop.f32.mrb[0].mxu0
    %v8714 = vpop.f32.mrb[0].mxu0
    %v8715 = vadd.f32 0.0, %v8714
    %v8716 = vpop.f32.mrb[0].mxu0
    %8717 = vmatprep.mubr.bf16.mxu0 0
    %8718 = vmatmul.mubr.bf16.gmra.mrb[0].mxu0 %v8567
    %v8719 = vpop.f32.mrb[0].mxu0
    %v8720 = vadd.f32 0.0, %v8719
    %v8721 = vpop.f32.mrb[0].mxu0
    %v8722 = vpop.f32.mrb[0].mxu0
    %v8723 = vadd.f32 0.0, %v8722
    %v8724 = vpop.f32.mrb[0].mxu0
    %8725 = vmatprep.mubr.bf16.mxu0 0
    %8726 = vmatmul.mubr.bf16.gmra.mrb[0].mxu0 %v8570
    %v8727 = vpop.f32.mrb[0].mxu0
    %v8728 = vadd.f32 0.0, %v8727
    %v8729 = vpop.f32.mrb[0].mxu0
    %v8730 = vpop.f32.mrb[0].mxu0
    %v8731 = vadd.f32 0.0, %v8730
    %v8732 = vpop.f32.mrb[0].mxu0
    %8733 = vmatprep.mubr.bf16.mxu0 0
    %8734 = vmatmul.mubr.bf16.gmra.mrb[0].mxu0 %v8573
    %v8735 = vpop.f32.mrb[0].mxu0
    %v8736 = vadd.f32 0.0, %v8735
    %v8737 = vpop.f32.mrb[0].mxu0
    %v8738 = vpop.f32.mrb[0].mxu0
    %v8739 = vadd.f32 0.0, %v8738
    %v8740 = vpop.f32.mrb[0].mxu0
    %8741 = vdwg.mxu0
    %v8742 = vmul.f32 %v8616, 0.5
    %v8743 = vmul.f32 %v8619, 0.5
    %v8744 = vmul.f32 %v8624, 0.5
    %v8745 = vmul.f32 %v8627, 0.5
    %v8746 = vmul.f32 %v8632, 0.5
    %v8747 = vmul.f32 %v8635, 0.5
    %v8748 = vmul.f32 %v8640, 0.5
    %v8749 = vmul.f32 %v8643, 0.5
    %v8750 = vmul.f32 %v8648, 0.5
    %v8751 = vmul.f32 %v8651, 0.5
    %v8752 = vmul.f32 %v8656, 0.5
    %v8753 = vmul.f32 %v8659, 0.5
    %v8754 = vmul.f32 %v8664, 0.5
    %v8755 = vmul.f32 %v8667, 0.5
    %v8756 = vmul.f32 %v8672, 0.5
    %v8757 = vmul.f32 %v8675, 0.5
    %v8758 = vmul.f32 %v8680, 0.5
    %v8759 = vmul.f32 %v8683, 0.5
    %v8760 = vmul.f32 %v8688, 0.5
    %v8761 = vmul.f32 %v8691, 0.5
    %v8762 = vmul.f32 %v8696, 0.5
    %v8763 = vmul.f32 %v8699, 0.5
    %v8764 = vmul.f32 %v8704, 0.5
    %v8765 = vmul.f32 %v8707, 0.5
    %v8766 = vmul.f32 %v8712, 0.5
    %v8767 = vmul.f32 %v8715, 0.5
    %v8768 = vmul.f32 %v8720, 0.5
    %v8769 = vmul.f32 %v8723, 0.5
    %v8770 = vmul.f32 %v8728, 0.5
    %v8771 = vmul.f32 %v8731, 0.5
    %v8772 = vmul.f32 %v8736, 0.5
    %v8773 = vmul.f32 %v8739, 0.5
    %v8774 = vadd.f32 %v8742, %v3258
    %v8775 = vadd.f32 %v8743, %v3259
    %v8776 = vadd.f32 %v8744, %v3260
    %v8777 = vadd.f32 %v8745, %v3261
    %v8778 = vadd.f32 %v8746, %v3262
    %v8779 = vadd.f32 %v8747, %v3263
    %v8780 = vadd.f32 %v8748, %v3264
    %v8781 = vadd.f32 %v8749, %v3265
    %v8782 = vadd.f32 %v8750, %v3266
    %v8783 = vadd.f32 %v8751, %v3267
    %v8784 = vadd.f32 %v8752, %v3268
    %v8785 = vadd.f32 %v8753, %v3269
    %v8786 = vadd.f32 %v8754, %v3270
    %v8787 = vadd.f32 %v8755, %v3271
    %v8788 = vadd.f32 %v8756, %v3272
    %v8789 = vadd.f32 %v8757, %v3273
    %v8790 = vadd.f32 %v8758, %v3274
    %v8791 = vadd.f32 %v8759, %v3275
    %v8792 = vadd.f32 %v8760, %v3276
    %v8793 = vadd.f32 %v8761, %v3277
    %v8794 = vadd.f32 %v8762, %v3278
    %v8795 = vadd.f32 %v8763, %v3279
    %v8796 = vadd.f32 %v8764, %v3280
    %v8797 = vadd.f32 %v8765, %v3281
    %v8798 = vadd.f32 %v8766, %v3282
    %v8799 = vadd.f32 %v8767, %v3283
    %v8800 = vadd.f32 %v8768, %v3284
    %v8801 = vadd.f32 %v8769, %v3285
    %v8802 = vadd.f32 %v8770, %v3286
    %v8803 = vadd.f32 %v8771, %v3287
    %v8804 = vadd.f32 %v8772, %v3288
    %v8805 = vadd.f32 %v8773, %v3289
    %v8806 = vsel %vm208, %v8774, -inf
    %8807 = vmax.xlane.f32.xlu0 %v8806
    %v8808 = vpop.xlane.xlu0 %8807
    %v8809 = vsel %vm208, %v8775, -inf
    %8810 = vmax.xlane.f32.xlu0 %v8809
    %v8811 = vpop.xlane.xlu0 %8810
    %v8812 = vsel %vm208, %v8776, -inf
    %8813 = vmax.xlane.f32.xlu0 %v8812
    %v8814 = vpop.xlane.xlu0 %8813
    %v8815 = vsel %vm208, %v8777, -inf
    %8816 = vmax.xlane.f32.xlu0 %v8815
    %v8817 = vpop.xlane.xlu0 %8816
    %v8818 = vsel %vm208, %v8778, -inf
    %8819 = vmax.xlane.f32.xlu0 %v8818
    %v8820 = vpop.xlane.xlu0 %8819
    %v8821 = vsel %vm208, %v8779, -inf
    %8822 = vmax.xlane.f32.xlu0 %v8821
    %v8823 = vpop.xlane.xlu0 %8822
    %v8824 = vsel %vm208, %v8780, -inf
    %8825 = vmax.xlane.f32.xlu0 %v8824
    %v8826 = vpop.xlane.xlu0 %8825
    %v8827 = vsel %vm208, %v8781, -inf
    %8828 = vmax.xlane.f32.xlu0 %v8827
    %v8829 = vpop.xlane.xlu0 %8828
    %v8830 = vsel %vm208, %v8782, -inf
    %8831 = vmax.xlane.f32.xlu0 %v8830
    %v8832 = vpop.xlane.xlu0 %8831
    %v8833 = vsel %vm208, %v8783, -inf
    %8834 = vmax.xlane.f32.xlu0 %v8833
    %v8835 = vpop.xlane.xlu0 %8834
    %v8836 = vsel %vm208, %v8784, -inf
    %8837 = vmax.xlane.f32.xlu0 %v8836
    %v8838 = vpop.xlane.xlu0 %8837
    %v8839 = vsel %vm208, %v8785, -inf
    %8840 = vmax.xlane.f32.xlu0 %v8839
    %v8841 = vpop.xlane.xlu0 %8840
    %v8842 = vsel %vm208, %v8786, -inf
    %8843 = vmax.xlane.f32.xlu0 %v8842
    %v8844 = vpop.xlane.xlu0 %8843
    %v8845 = vsel %vm208, %v8787, -inf
    %8846 = vmax.xlane.f32.xlu0 %v8845
    %v8847 = vpop.xlane.xlu0 %8846
    %v8848 = vsel %vm208, %v8788, -inf
    %8849 = vmax.xlane.f32.xlu0 %v8848
    %v8850 = vpop.xlane.xlu0 %8849
    %v8851 = vsel %vm208, %v8789, -inf
    %8852 = vmax.xlane.f32.xlu0 %v8851
    %v8853 = vpop.xlane.xlu0 %8852
    %v8854 = vsel %vm208, %v8790, -inf
    %8855 = vmax.xlane.f32.xlu0 %v8854
    %v8856 = vpop.xlane.xlu0 %8855
    %v8857 = vsel %vm208, %v8791, -inf
    %8858 = vmax.xlane.f32.xlu0 %v8857
    %v8859 = vpop.xlane.xlu0 %8858
    %v8860 = vsel %vm208, %v8792, -inf
    %8861 = vmax.xlane.f32.xlu0 %v8860
    %v8862 = vpop.xlane.xlu0 %8861
    %v8863 = vsel %vm208, %v8793, -inf
    %8864 = vmax.xlane.f32.xlu0 %v8863
    %v8865 = vpop.xlane.xlu0 %8864
    %v8866 = vsel %vm208, %v8794, -inf
    %8867 = vmax.xlane.f32.xlu0 %v8866
    %v8868 = vpop.xlane.xlu0 %8867
    %v8869 = vsel %vm208, %v8795, -inf
    %8870 = vmax.xlane.f32.xlu0 %v8869
    %v8871 = vpop.xlane.xlu0 %8870
    %v8872 = vsel %vm208, %v8796, -inf
    %8873 = vmax.xlane.f32.xlu0 %v8872
    %v8874 = vpop.xlane.xlu0 %8873
    %v8875 = vsel %vm208, %v8797, -inf
    %8876 = vmax.xlane.f32.xlu0 %v8875
    %v8877 = vpop.xlane.xlu0 %8876
    %v8878 = vsel %vm208, %v8798, -inf
    %8879 = vmax.xlane.f32.xlu0 %v8878
    %v8880 = vpop.xlane.xlu0 %8879
    %v8881 = vsel %vm208, %v8799, -inf
    %8882 = vmax.xlane.f32.xlu0 %v8881
    %v8883 = vpop.xlane.xlu0 %8882
    %v8884 = vsel %vm208, %v8800, -inf
    %8885 = vmax.xlane.f32.xlu0 %v8884
    %v8886 = vpop.xlane.xlu0 %8885
    %v8887 = vsel %vm208, %v8801, -inf
    %8888 = vmax.xlane.f32.xlu0 %v8887
    %v8889 = vpop.xlane.xlu0 %8888
    %v8890 = vsel %vm208, %v8802, -inf
    %8891 = vmax.xlane.f32.xlu0 %v8890
    %v8892 = vpop.xlane.xlu0 %8891
    %v8893 = vsel %vm208, %v8803, -inf
    %8894 = vmax.xlane.f32.xlu0 %v8893
    %v8895 = vpop.xlane.xlu0 %8894
    %v8896 = vsel %vm208, %v8804, -inf
    %8897 = vmax.xlane.f32.xlu0 %v8896
    %v8898 = vpop.xlane.xlu0 %8897
    %v8899 = vsel %vm208, %v8805, -inf
    %8900 = vmax.xlane.f32.xlu0 %v8899
    %v8901 = vpop.xlane.xlu0 %8900
    %v8902 = vsub.f32 %v8774, %v8808
    %v8903 = vsub.f32 %v8775, %v8811
    %v8904 = vsub.f32 %v8776, %v8814
    %v8905 = vsub.f32 %v8777, %v8817
    %v8906 = vsub.f32 %v8778, %v8820
    %v8907 = vsub.f32 %v8779, %v8823
    %v8908 = vsub.f32 %v8780, %v8826
    %v8909 = vsub.f32 %v8781, %v8829
    %v8910 = vsub.f32 %v8782, %v8832
    %v8911 = vsub.f32 %v8783, %v8835
    %v8912 = vsub.f32 %v8784, %v8838
    %v8913 = vsub.f32 %v8785, %v8841
    %v8914 = vsub.f32 %v8786, %v8844
    %v8915 = vsub.f32 %v8787, %v8847
    %v8916 = vsub.f32 %v8788, %v8850
    %v8917 = vsub.f32 %v8789, %v8853
    %v8918 = vsub.f32 %v8790, %v8856
    %v8919 = vsub.f32 %v8791, %v8859
    %v8920 = vsub.f32 %v8792, %v8862
    %v8921 = vsub.f32 %v8793, %v8865
    %v8922 = vsub.f32 %v8794, %v8868
    %v8923 = vsub.f32 %v8795, %v8871
    %v8924 = vsub.f32 %v8796, %v8874
    %v8925 = vsub.f32 %v8797, %v8877
    %v8926 = vsub.f32 %v8798, %v8880
    %v8927 = vsub.f32 %v8799, %v8883
    %v8928 = vsub.f32 %v8800, %v8886
    %v8929 = vsub.f32 %v8801, %v8889
    %v8930 = vsub.f32 %v8802, %v8892
    %v8931 = vsub.f32 %v8803, %v8895
    %v8932 = vsub.f32 %v8804, %v8898
    %v8933 = vsub.f32 %v8805, %v8901
    %v8934 = vmul.f32 %v8902, 1.442695
    %v8935 = vpow.pop %v8934
    %v8936 = vmul.f32 %v8903, 1.442695
    %v8937 = vpow.pop %v8936
    %v8938 = vmul.f32 %v8904, 1.442695
    %v8939 = vpow.pop %v8938
    %v8940 = vmul.f32 %v8905, 1.442695
    %v8941 = vpow.pop %v8940
    %v8942 = vmul.f32 %v8906, 1.442695
    %v8943 = vpow.pop %v8942
    %v8944 = vmul.f32 %v8907, 1.442695
    %v8945 = vpow.pop %v8944
    %v8946 = vmul.f32 %v8908, 1.442695
    %v8947 = vpow.pop %v8946
    %v8948 = vmul.f32 %v8909, 1.442695
    %v8949 = vpow.pop %v8948
    %v8950 = vmul.f32 %v8910, 1.442695
    %v8951 = vpow.pop %v8950
    %v8952 = vmul.f32 %v8911, 1.442695
    %v8953 = vpow.pop %v8952
    %v8954 = vmul.f32 %v8912, 1.442695
    %v8955 = vpow.pop %v8954
    %v8956 = vmul.f32 %v8913, 1.442695
    %v8957 = vpow.pop %v8956
    %v8958 = vmul.f32 %v8914, 1.442695
    %v8959 = vpow.pop %v8958
    %v8960 = vmul.f32 %v8915, 1.442695
    %v8961 = vpow.pop %v8960
    %v8962 = vmul.f32 %v8916, 1.442695
    %v8963 = vpow.pop %v8962
    %v8964 = vmul.f32 %v8917, 1.442695
    %v8965 = vpow.pop %v8964
    %v8966 = vmul.f32 %v8918, 1.442695
    %v8967 = vpow.pop %v8966
    %v8968 = vmul.f32 %v8919, 1.442695
    %v8969 = vpow.pop %v8968
    %v8970 = vmul.f32 %v8920, 1.442695
    %v8971 = vpow.pop %v8970
    %v8972 = vmul.f32 %v8921, 1.442695
    %v8973 = vpow.pop %v8972
    %v8974 = vmul.f32 %v8922, 1.442695
    %v8975 = vpow.pop %v8974
    %v8976 = vmul.f32 %v8923, 1.442695
    %v8977 = vpow.pop %v8976
    %v8978 = vmul.f32 %v8924, 1.442695
    %v8979 = vpow.pop %v8978
    %v8980 = vmul.f32 %v8925, 1.442695
    %v8981 = vpow.pop %v8980
    %v8982 = vmul.f32 %v8926, 1.442695
    %v8983 = vpow.pop %v8982
    %v8984 = vmul.f32 %v8927, 1.442695
    %v8985 = vpow.pop %v8984
    %v8986 = vmul.f32 %v8928, 1.442695
    %v8987 = vpow.pop %v8986
    %v8988 = vmul.f32 %v8929, 1.442695
    %v8989 = vpow.pop %v8988
    %v8990 = vmul.f32 %v8930, 1.442695
    %v8991 = vpow.pop %v8990
    %v8992 = vmul.f32 %v8931, 1.442695
    %v8993 = vpow.pop %v8992
    %v8994 = vmul.f32 %v8932, 1.442695
    %v8995 = vpow.pop %v8994
    %v8996 = vmul.f32 %v8933, 1.442695
    %v8997 = vpow.pop %v8996
    %v8998 = vsel %vm208, %v8935, 0.0
    %8999 = vadd.xlane.f32.xlu0 %v8998
    %v9000 = vpop.xlane.xlu0 %8999
    %v9001 = vsel %vm208, %v8937, 0.0
    %9002 = vadd.xlane.f32.xlu0 %v9001
    %v9003 = vpop.xlane.xlu0 %9002
    %v9004 = vsel %vm208, %v8939, 0.0
    %9005 = vadd.xlane.f32.xlu0 %v9004
    %v9006 = vpop.xlane.xlu0 %9005
    %v9007 = vsel %vm208, %v8941, 0.0
    %9008 = vadd.xlane.f32.xlu0 %v9007
    %v9009 = vpop.xlane.xlu0 %9008
    %v9010 = vsel %vm208, %v8943, 0.0
    %9011 = vadd.xlane.f32.xlu0 %v9010
    %v9012 = vpop.xlane.xlu0 %9011
    %v9013 = vsel %vm208, %v8945, 0.0
    %9014 = vadd.xlane.f32.xlu0 %v9013
    %v9015 = vpop.xlane.xlu0 %9014
    %v9016 = vsel %vm208, %v8947, 0.0
    %9017 = vadd.xlane.f32.xlu0 %v9016
    %v9018 = vpop.xlane.xlu0 %9017
    %v9019 = vsel %vm208, %v8949, 0.0
    %9020 = vadd.xlane.f32.xlu0 %v9019
    %v9021 = vpop.xlane.xlu0 %9020
    %v9022 = vsel %vm208, %v8951, 0.0
    %9023 = vadd.xlane.f32.xlu0 %v9022
    %v9024 = vpop.xlane.xlu0 %9023
    %v9025 = vsel %vm208, %v8953, 0.0
    %9026 = vadd.xlane.f32.xlu0 %v9025
    %v9027 = vpop.xlane.xlu0 %9026
    %v9028 = vsel %vm208, %v8955, 0.0
    %9029 = vadd.xlane.f32.xlu0 %v9028
    %v9030 = vpop.xlane.xlu0 %9029
    %v9031 = vsel %vm208, %v8957, 0.0
    %9032 = vadd.xlane.f32.xlu0 %v9031
    %v9033 = vpop.xlane.xlu0 %9032
    %v9034 = vsel %vm208, %v8959, 0.0
    %9035 = vadd.xlane.f32.xlu0 %v9034
    %v9036 = vpop.xlane.xlu0 %9035
    %v9037 = vsel %vm208, %v8961, 0.0
    %9038 = vadd.xlane.f32.xlu0 %v9037
    %v9039 = vpop.xlane.xlu0 %9038
    %v9040 = vsel %vm208, %v8963, 0.0
    %9041 = vadd.xlane.f32.xlu0 %v9040
    %v9042 = vpop.xlane.xlu0 %9041
    %v9043 = vsel %vm208, %v8965, 0.0
    %9044 = vadd.xlane.f32.xlu0 %v9043
    %v9045 = vpop.xlane.xlu0 %9044
    %v9046 = vsel %vm208, %v8967, 0.0
    %9047 = vadd.xlane.f32.xlu0 %v9046
    %v9048 = vpop.xlane.xlu0 %9047
    %v9049 = vsel %vm208, %v8969, 0.0
    %9050 = vadd.xlane.f32.xlu0 %v9049
    %v9051 = vpop.xlane.xlu0 %9050
    %v9052 = vsel %vm208, %v8971, 0.0
    %9053 = vadd.xlane.f32.xlu0 %v9052
    %v9054 = vpop.xlane.xlu0 %9053
    %v9055 = vsel %vm208, %v8973, 0.0
    %9056 = vadd.xlane.f32.xlu0 %v9055
    %v9057 = vpop.xlane.xlu0 %9056
    %v9058 = vsel %vm208, %v8975, 0.0
    %9059 = vadd.xlane.f32.xlu0 %v9058
    %v9060 = vpop.xlane.xlu0 %9059
    %v9061 = vsel %vm208, %v8977, 0.0
    %9062 = vadd.xlane.f32.xlu0 %v9061
    %v9063 = vpop.xlane.xlu0 %9062
    %v9064 = vsel %vm208, %v8979, 0.0
    %9065 = vadd.xlane.f32.xlu0 %v9064
    %v9066 = vpop.xlane.xlu0 %9065
    %v9067 = vsel %vm208, %v8981, 0.0
    %9068 = vadd.xlane.f32.xlu0 %v9067
    %v9069 = vpop.xlane.xlu0 %9068
    %v9070 = vsel %vm208, %v8983, 0.0
    %9071 = vadd.xlane.f32.xlu0 %v9070
    %v9072 = vpop.xlane.xlu0 %9071
    %v9073 = vsel %vm208, %v8985, 0.0
    %9074 = vadd.xlane.f32.xlu0 %v9073
    %v9075 = vpop.xlane.xlu0 %9074
    %v9076 = vsel %vm208, %v8987, 0.0
    %9077 = vadd.xlane.f32.xlu0 %v9076
    %v9078 = vpop.xlane.xlu0 %9077
    %v9079 = vsel %vm208, %v8989, 0.0
    %9080 = vadd.xlane.f32.xlu0 %v9079
    %v9081 = vpop.xlane.xlu0 %9080
    %v9082 = vsel %vm208, %v8991, 0.0
    %9083 = vadd.xlane.f32.xlu0 %v9082
    %v9084 = vpop.xlane.xlu0 %9083
    %v9085 = vsel %vm208, %v8993, 0.0
    %9086 = vadd.xlane.f32.xlu0 %v9085
    %v9087 = vpop.xlane.xlu0 %9086
    %v9088 = vsel %vm208, %v8995, 0.0
    %9089 = vadd.xlane.f32.xlu0 %v9088
    %v9090 = vpop.xlane.xlu0 %9089
    %v9091 = vsel %vm208, %v8997, 0.0
    %9092 = vadd.xlane.f32.xlu0 %v9091
    %v9093 = vpop.xlane.xlu0 %9092
    %v9094 = vrcp.pop %v9000
    %v9095 = vrcp.pop %v9003
    %v9096 = vrcp.pop %v9006
    %v9097 = vrcp.pop %v9009
    %v9098 = vrcp.pop %v9012
    %v9099 = vrcp.pop %v9015
    %v9100 = vrcp.pop %v9018
    %v9101 = vrcp.pop %v9021
    %v9102 = vrcp.pop %v9024
    %v9103 = vrcp.pop %v9027
    %v9104 = vrcp.pop %v9030
    %v9105 = vrcp.pop %v9033
    %v9106 = vrcp.pop %v9036
    %v9107 = vrcp.pop %v9039
    %v9108 = vrcp.pop %v9042
    %v9109 = vrcp.pop %v9045
    %v9110 = vrcp.pop %v9048
    %v9111 = vrcp.pop %v9051
    %v9112 = vrcp.pop %v9054
    %v9113 = vrcp.pop %v9057
    %v9114 = vrcp.pop %v9060
    %v9115 = vrcp.pop %v9063
    %v9116 = vrcp.pop %v9066
    %v9117 = vrcp.pop %v9069
    %v9118 = vrcp.pop %v9072
    %v9119 = vrcp.pop %v9075
    %v9120 = vrcp.pop %v9078
    %v9121 = vrcp.pop %v9081
    %v9122 = vrcp.pop %v9084
    %v9123 = vrcp.pop %v9087
    %v9124 = vrcp.pop %v9090
    %v9125 = vrcp.pop %v9093
    %v9126 = vmul.f32 %v8935, %v9094
    %v9127 = vmul.f32 %v8937, %v9095
    %v9128 = vmul.f32 %v8939, %v9096
    %v9129 = vmul.f32 %v8941, %v9097
    %v9130 = vmul.f32 %v8943, %v9098
    %v9131 = vmul.f32 %v8945, %v9099
    %v9132 = vmul.f32 %v8947, %v9100
    %v9133 = vmul.f32 %v8949, %v9101
    %v9134 = vmul.f32 %v8951, %v9102
    %v9135 = vmul.f32 %v8953, %v9103
    %v9136 = vmul.f32 %v8955, %v9104
    %v9137 = vmul.f32 %v8957, %v9105
    %v9138 = vmul.f32 %v8959, %v9106
    %v9139 = vmul.f32 %v8961, %v9107
    %v9140 = vmul.f32 %v8963, %v9108
    %v9141 = vmul.f32 %v8965, %v9109
    %v9142 = vmul.f32 %v8967, %v9110
    %v9143 = vmul.f32 %v8969, %v9111
    %v9144 = vmul.f32 %v8971, %v9112
    %v9145 = vmul.f32 %v8973, %v9113
    %v9146 = vmul.f32 %v8975, %v9114
    %v9147 = vmul.f32 %v8977, %v9115
    %v9148 = vmul.f32 %v8979, %v9116
    %v9149 = vmul.f32 %v8981, %v9117
    %v9150 = vmul.f32 %v8983, %v9118
    %v9151 = vmul.f32 %v8985, %v9119
    %v9152 = vmul.f32 %v8987, %v9120
    %v9153 = vmul.f32 %v8989, %v9121
    %v9154 = vmul.f32 %v8991, %v9122
    %v9155 = vmul.f32 %v8993, %v9123
    %v9156 = vmul.f32 %v8995, %v9124
    %v9157 = vmul.f32 %v8997, %v9125
    %v9158 = vpack.c.bf16 %v9127, %v9126
    %v9159 = vpack.c.bf16 %v9129, %v9128
    %v9160 = vpack.c.bf16 %v9131, %v9130
    %v9161 = vpack.c.bf16 %v9133, %v9132
    %v9162 = vpack.c.bf16 %v9135, %v9134
    %v9163 = vpack.c.bf16 %v9137, %v9136
    %v9164 = vpack.c.bf16 %v9139, %v9138
    %v9165 = vpack.c.bf16 %v9141, %v9140
    %v9166 = vpack.c.bf16 %v9143, %v9142
    %v9167 = vpack.c.bf16 %v9145, %v9144
    %v9168 = vpack.c.bf16 %v9147, %v9146
    %v9169 = vpack.c.bf16 %v9149, %v9148
    %v9170 = vpack.c.bf16 %v9151, %v9150
    %v9171 = vpack.c.bf16 %v9153, %v9152
    %v9172 = vpack.c.bf16 %v9155, %v9154
    %v9173 = vpack.c.bf16 %v9157, %v9156
    %v9174 = vpack.c.bf16 %v8466, %v8463
    %v9175 = vpack.c.bf16 %v8474, %v8471
    %v9177 = vsel %vm208, %v9158, 0
    %v9180 = vsel %vm208, %v9159, 0
    %v9183 = vsel %vm208, %v9160, 0
    %v9186 = vsel %vm208, %v9161, 0
    %v9189 = vsel %vm208, %v9162, 0
    %v9192 = vsel %vm208, %v9163, 0
    %v9195 = vsel %vm208, %v9164, 0
    %v9198 = vsel %vm208, %v9165, 0
    %v9201 = vsel %vm208, %v9166, 0
    %v9204 = vsel %vm208, %v9167, 0
    %v9207 = vsel %vm208, %v9168, 0
    %v9210 = vsel %vm208, %v9169, 0
    %v9213 = vsel %vm208, %v9170, 0
    %v9216 = vsel %vm208, %v9171, 0
    %v9219 = vsel %vm208, %v9172, 0
    %v9222 = vsel %vm208, %v9173, 0
    %9224 = vmatprep.subr.bf16.mxu0 0
    %9225 = vmatpush1.bf16.msra.mxu0 %v9174
    %9226 = vmatprep.subr.bf16.mxu0 0
    %9227 = vmatpush1.bf16.msra.mxu0 %v9175
    %9228 = vmatprep.subr.bf16.mxu0 0
    %9229 = vmatpush1.bf16.msra.mxu0 0
    %9230 = vmatprep.subr.bf16.mxu0 0
    %9231 = vmatpush1.bf16.msra.mxu0 0
    %9232 = vmatprep.subr.bf16.mxu0 0
    %9233 = vmatpush1.bf16.msra.mxu0 0
    %9234 = vmatprep.subr.bf16.mxu0 0
    %9235 = vmatpush1.bf16.msra.mxu0 0
    %9236 = vmatprep.subr.bf16.mxu0 0
    %9237 = vmatpush1.bf16.msra.mxu0 0
    %9238 = vmatprep.subr.bf16.mxu0 0
    %9239 = vmatpush1.bf16.msra.mxu0 0
    %9240 = vmatprep.subr.bf16.mxu0 0
    %9241 = vmatpush1.bf16.msra.mxu0 0
    %9242 = vmatprep.subr.bf16.mxu0 0
    %9243 = vmatpush1.bf16.msra.mxu0 0
    %9244 = vmatprep.subr.bf16.mxu0 0
    %9245 = vmatpush1.bf16.msra.mxu0 0
    %9246 = vmatprep.subr.bf16.mxu0 0
    %9247 = vmatpush1.bf16.msra.mxu0 0
    %9248 = vmatprep.subr.bf16.mxu0 0
    %9249 = vmatpush1.bf16.msra.mxu0 0
    %9250 = vmatprep.subr.bf16.mxu0 0
    %9251 = vmatpush1.bf16.msra.mxu0 0
    %9252 = vmatprep.subr.bf16.mxu0 0
    %9253 = vmatpush1.bf16.msra.mxu0 0
    %9254 = vmatprep.subr.bf16.mxu0 0
    %9255 = vmatpush1.bf16.msra.mxu0 0
    %9256 = vmatprep.mubr.bf16.mxu0 0
    %9257 = vmatmul.mubr.bf16.gmra.mrb[0].mxu0 %v9177
    %v9258 = vpop.f32.mrb[0].mxu0
    %v9259 = vadd.f32 0.0, %v9258
    %v9260 = vpop.f32.mrb[0].mxu0
    %v9261 = vpop.f32.mrb[0].mxu0
    %v9262 = vadd.f32 0.0, %v9261
    %v9263 = vpop.f32.mrb[0].mxu0
    %9264 = vmatprep.mubr.bf16.mxu0 0
    %9265 = vmatmul.mubr.bf16.gmra.mrb[0].mxu0 %v9180
    %v9266 = vpop.f32.mrb[0].mxu0
    %v9267 = vadd.f32 0.0, %v9266
    %v9268 = vpop.f32.mrb[0].mxu0
    %v9269 = vpop.f32.mrb[0].mxu0
    %v9270 = vadd.f32 0.0, %v9269
    %v9271 = vpop.f32.mrb[0].mxu0
    %9272 = vmatprep.mubr.bf16.mxu0 0
    %9273 = vmatmul.mubr.bf16.gmra.mrb[0].mxu0 %v9183
    %v9274 = vpop.f32.mrb[0].mxu0
    %v9275 = vadd.f32 0.0, %v9274
    %v9276 = vpop.f32.mrb[0].mxu0
    %v9277 = vpop.f32.mrb[0].mxu0
    %v9278 = vadd.f32 0.0, %v9277
    %v9279 = vpop.f32.mrb[0].mxu0
    %9280 = vmatprep.mubr.bf16.mxu0 0
    %9281 = vmatmul.mubr.bf16.gmra.mrb[0].mxu0 %v9186
    %v9282 = vpop.f32.mrb[0].mxu0
    %v9283 = vadd.f32 0.0, %v9282
    %v9284 = vpop.f32.mrb[0].mxu0
    %v9285 = vpop.f32.mrb[0].mxu0
    %v9286 = vadd.f32 0.0, %v9285
    %v9287 = vpop.f32.mrb[0].mxu0
    %9288 = vmatprep.mubr.bf16.mxu0 0
    %9289 = vmatmul.mubr.bf16.gmra.mrb[0].mxu0 %v9189
    %v9290 = vpop.f32.mrb[0].mxu0
    %v9291 = vadd.f32 0.0, %v9290
    %v9292 = vpop.f32.mrb[0].mxu0
    %v9293 = vpop.f32.mrb[0].mxu0
    %v9294 = vadd.f32 0.0, %v9293
    %v9295 = vpop.f32.mrb[0].mxu0
    %9296 = vmatprep.mubr.bf16.mxu0 0
    %9297 = vmatmul.mubr.bf16.gmra.mrb[0].mxu0 %v9192
    %v9298 = vpop.f32.mrb[0].mxu0
    %v9299 = vadd.f32 0.0, %v9298
    %v9300 = vpop.f32.mrb[0].mxu0
    %v9301 = vpop.f32.mrb[0].mxu0
    %v9302 = vadd.f32 0.0, %v9301
    %v9303 = vpop.f32.mrb[0].mxu0
    %9304 = vmatprep.mubr.bf16.mxu0 0
    %9305 = vmatmul.mubr.bf16.gmra.mrb[0].mxu0 %v9195
    %v9306 = vpop.f32.mrb[0].mxu0
    %v9307 = vadd.f32 0.0, %v9306
    %v9308 = vpop.f32.mrb[0].mxu0
    %v9309 = vpop.f32.mrb[0].mxu0
    %v9310 = vadd.f32 0.0, %v9309
    %v9311 = vpop.f32.mrb[0].mxu0
    %9312 = vmatprep.mubr.bf16.mxu0 0
    %9313 = vmatmul.mubr.bf16.gmra.mrb[0].mxu0 %v9198
    %v9314 = vpop.f32.mrb[0].mxu0
    %v9315 = vadd.f32 0.0, %v9314
    %v9316 = vpop.f32.mrb[0].mxu0
    %v9317 = vpop.f32.mrb[0].mxu0
    %v9318 = vadd.f32 0.0, %v9317
    %v9319 = vpop.f32.mrb[0].mxu0
    %9320 = vmatprep.mubr.bf16.mxu0 0
    %9321 = vmatmul.mubr.bf16.gmra.mrb[0].mxu0 %v9201
    %v9322 = vpop.f32.mrb[0].mxu0
    %v9323 = vadd.f32 0.0, %v9322
    %v9324 = vpop.f32.mrb[0].mxu0
    %v9325 = vpop.f32.mrb[0].mxu0
    %v9326 = vadd.f32 0.0, %v9325
    %v9327 = vpop.f32.mrb[0].mxu0
    %9328 = vmatprep.mubr.bf16.mxu0 0
    %9329 = vmatmul.mubr.bf16.gmra.mrb[0].mxu0 %v9204
    %v9330 = vpop.f32.mrb[0].mxu0
    %v9331 = vadd.f32 0.0, %v9330
    %v9332 = vpop.f32.mrb[0].mxu0
    %v9333 = vpop.f32.mrb[0].mxu0
    %v9334 = vadd.f32 0.0, %v9333
    %v9335 = vpop.f32.mrb[0].mxu0
    %9336 = vmatprep.mubr.bf16.mxu0 0
    %9337 = vmatmul.mubr.bf16.gmra.mrb[0].mxu0 %v9207
    %v9338 = vpop.f32.mrb[0].mxu0
    %v9339 = vadd.f32 0.0, %v9338
    %v9340 = vpop.f32.mrb[0].mxu0
    %v9341 = vpop.f32.mrb[0].mxu0
    %v9342 = vadd.f32 0.0, %v9341
    %v9343 = vpop.f32.mrb[0].mxu0
    %9344 = vmatprep.mubr.bf16.mxu0 0
    %9345 = vmatmul.mubr.bf16.gmra.mrb[0].mxu0 %v9210
    %v9346 = vpop.f32.mrb[0].mxu0
    %v9347 = vadd.f32 0.0, %v9346
    %v9348 = vpop.f32.mrb[0].mxu0
    %v9349 = vpop.f32.mrb[0].mxu0
    %v9350 = vadd.f32 0.0, %v9349
    %v9351 = vpop.f32.mrb[0].mxu0
    %9352 = vmatprep.mubr.bf16.mxu0 0
    %9353 = vmatmul.mubr.bf16.gmra.mrb[0].mxu0 %v9213
    %v9354 = vpop.f32.mrb[0].mxu0
    %v9355 = vadd.f32 0.0, %v9354
    %v9356 = vpop.f32.mrb[0].mxu0
    %v9357 = vpop.f32.mrb[0].mxu0
    %v9358 = vadd.f32 0.0, %v9357
    %v9359 = vpop.f32.mrb[0].mxu0
    %9360 = vmatprep.mubr.bf16.mxu0 0
    %9361 = vmatmul.mubr.bf16.gmra.mrb[0].mxu0 %v9216
    %v9362 = vpop.f32.mrb[0].mxu0
    %v9363 = vadd.f32 0.0, %v9362
    %v9364 = vpop.f32.mrb[0].mxu0
    %v9365 = vpop.f32.mrb[0].mxu0
    %v9366 = vadd.f32 0.0, %v9365
    %v9367 = vpop.f32.mrb[0].mxu0
    %9368 = vmatprep.mubr.bf16.mxu0 0
    %9369 = vmatmul.mubr.bf16.gmra.mrb[0].mxu0 %v9219
    %v9370 = vpop.f32.mrb[0].mxu0
    %v9371 = vadd.f32 0.0, %v9370
    %v9372 = vpop.f32.mrb[0].mxu0
    %v9373 = vpop.f32.mrb[0].mxu0
    %v9374 = vadd.f32 0.0, %v9373
    %v9375 = vpop.f32.mrb[0].mxu0
    %9376 = vmatprep.mubr.bf16.mxu0 0
    %9377 = vmatmul.mubr.bf16.gmra.mrb[0].mxu0 %v9222
    %v9378 = vpop.f32.mrb[0].mxu0
    %v9379 = vadd.f32 0.0, %v9378
    %v9380 = vpop.f32.mrb[0].mxu0
    %v9381 = vpop.f32.mrb[0].mxu0
    %v9382 = vadd.f32 0.0, %v9381
    %v9383 = vpop.f32.mrb[0].mxu0
    %9384 = vdwg.mxu0
    %v9385 = vmul.f32 %v9259, %v3226
    %v9386 = vmul.f32 %v9262, %v3227
    %v9387 = vmul.f32 %v9267, %v3228
    %v9388 = vmul.f32 %v9270, %v3229
    %v9389 = vmul.f32 %v9275, %v3230
    %v9390 = vmul.f32 %v9278, %v3231
    %v9391 = vmul.f32 %v9283, %v3232
    %v9392 = vmul.f32 %v9286, %v3233
    %v9393 = vmul.f32 %v9291, %v3234
    %v9394 = vmul.f32 %v9294, %v3235
    %v9395 = vmul.f32 %v9299, %v3236
    %v9396 = vmul.f32 %v9302, %v3237
    %v9397 = vmul.f32 %v9307, %v3238
    %v9398 = vmul.f32 %v9310, %v3239
    %v9399 = vmul.f32 %v9315, %v3240
    %v9400 = vmul.f32 %v9318, %v3241
    %v9401 = vmul.f32 %v9323, %v3242
    %v9402 = vmul.f32 %v9326, %v3243
    %v9403 = vmul.f32 %v9331, %v3244
    %v9404 = vmul.f32 %v9334, %v3245
    %v9405 = vmul.f32 %v9339, %v3246
    %v9406 = vmul.f32 %v9342, %v3247
    %v9407 = vmul.f32 %v9347, %v3248
    %v9408 = vmul.f32 %v9350, %v3249
    %v9409 = vmul.f32 %v9355, %v3250
    %v9410 = vmul.f32 %v9358, %v3251
    %v9411 = vmul.f32 %v9363, %v3252
    %v9412 = vmul.f32 %v9366, %v3253
    %v9413 = vmul.f32 %v9371, %v3254
    %v9414 = vmul.f32 %v9374, %v3255
    %v9415 = vmul.f32 %v9379, %v3256
    %v9416 = vmul.f32 %v9382, %v3257
    %v9417 = vadd.f32 %v9385, %v9389
    %v9418 = vadd.f32 %v9386, %v9390
    %v9419 = vadd.f32 %v9387, %v9391
    %v9420 = vadd.f32 %v9388, %v9392
    %v9421 = vadd.f32 %v9393, %v9397
    %v9422 = vadd.f32 %v9394, %v9398
    %v9423 = vadd.f32 %v9395, %v9399
    %v9424 = vadd.f32 %v9396, %v9400
    %v9425 = vadd.f32 %v9401, %v9405
    %v9426 = vadd.f32 %v9402, %v9406
    %v9427 = vadd.f32 %v9403, %v9407
    %v9428 = vadd.f32 %v9404, %v9408
    %v9429 = vadd.f32 %v9409, %v9413
    %v9430 = vadd.f32 %v9410, %v9414
    %v9431 = vadd.f32 %v9411, %v9415
    %v9432 = vadd.f32 %v9412, %v9416
    %v9433 = vadd.f32 %v9417, %v9421
    %v9434 = vadd.f32 %v9418, %v9422
    %v9435 = vadd.f32 %v9419, %v9423
    %v9436 = vadd.f32 %v9420, %v9424
    %v9437 = vadd.f32 %v9425, %v9429
    %v9438 = vadd.f32 %v9426, %v9430
    %v9439 = vadd.f32 %v9427, %v9431
    %v9440 = vadd.f32 %v9428, %v9432
    %v9441 = vadd.f32 %v9433, %v9437
    %v9442 = vadd.f32 %v9434, %v9438
    %v9443 = vadd.f32 %v9435, %v9439
    %v9444 = vadd.f32 %v9436, %v9440
    %s9445 = scalar_lea.vmem %s49, 48
    %v9446 = vld [vmem:[%s9445] sm:$0xf]
    %v9447 = vld [vmem:[%s9445 + $0x4] sm:$0xf]
    %v9448 = vld [vmem:[%s9445 + $0x8] sm:$0xf]
    %v9449 = vld [vmem:[%s9445 + $0xc] sm:$0xf]
    %v9450 = vpack.c.bf16 %v9442, %v9441
    %v9451 = vpack.c.bf16 %v9444, %v9443
    %v9456 = vunpack.c.l.b16 %v9446
    %v9457 = vunpack.c.l.b16 %v9447
    %v9458 = vunpack.c.l.b16 %v9448
    %v9459 = vunpack.c.l.b16 %v9449
    %v9460 = vpack.c.b16 %v9457, %v9456
    %v9461 = vpack.c.b16 %v9459, %v9458
    %v9465 = vsel %vm208, %v9450, 0
    %v9468 = vsel %vm208, %v9451, 0
    %9470 = vmatprep.subr.bf16.mxu0 0
    %9471 = vmatpush1.bf16.msra.mxu0 %v9460
    %9472 = vmatprep.subr.bf16.mxu0 0
    %9473 = vmatpush1.bf16.msra.mxu0 %v9461
    %9474 = vmatprep.subr.bf16.mxu0 0
    %9475 = vmatpush1.bf16.msra.mxu0 0
    %9476 = vmatprep.subr.bf16.mxu0 0
    %9477 = vmatpush1.bf16.msra.mxu0 0
    %9478 = vmatprep.subr.bf16.mxu0 0
    %9479 = vmatpush1.bf16.msra.mxu0 0
    %9480 = vmatprep.subr.bf16.mxu0 0
    %9481 = vmatpush1.bf16.msra.mxu0 0
    %9482 = vmatprep.subr.bf16.mxu0 0
    %9483 = vmatpush1.bf16.msra.mxu0 0
    %9484 = vmatprep.subr.bf16.mxu0 0
    %9485 = vmatpush1.bf16.msra.mxu0 0
    %9486 = vmatprep.subr.bf16.mxu0 0
    %9487 = vmatpush1.bf16.msra.mxu0 0
    %9488 = vmatprep.subr.bf16.mxu0 0
    %9489 = vmatpush1.bf16.msra.mxu0 0
    %9490 = vmatprep.subr.bf16.mxu0 0
    %9491 = vmatpush1.bf16.msra.mxu0 0
    %9492 = vmatprep.subr.bf16.mxu0 0
    %9493 = vmatpush1.bf16.msra.mxu0 0
    %9494 = vmatprep.subr.bf16.mxu0 0
    %9495 = vmatpush1.bf16.msra.mxu0 0
    %9496 = vmatprep.subr.bf16.mxu0 0
    %9497 = vmatpush1.bf16.msra.mxu0 0
    %9498 = vmatprep.subr.bf16.mxu0 0
    %9499 = vmatpush1.bf16.msra.mxu0 0
    %9500 = vmatprep.subr.bf16.mxu0 0
    %9501 = vmatpush1.bf16.msra.mxu0 0
    %9502 = vmatprep.mubr.bf16.mxu0 0
    %9503 = vmatmul.mubr.bf16.gmra.mrb[0].mxu0 %v9465
    %v9504 = vpop.f32.mrb[0].mxu0
    %v9505 = vadd.f32 0.0, %v9504
    %v9506 = vpop.f32.mrb[0].mxu0
    %v9507 = vpop.f32.mrb[0].mxu0
    %v9508 = vadd.f32 0.0, %v9507
    %v9509 = vpop.f32.mrb[0].mxu0
    %9510 = vmatprep.mubr.bf16.mxu0 0
    %9511 = vmatmul.mubr.bf16.gmra.mrb[0].mxu0 %v9468
    %v9512 = vpop.f32.mrb[0].mxu0
    %v9513 = vadd.f32 0.0, %v9512
    %v9514 = vpop.f32.mrb[0].mxu0
    %v9515 = vpop.f32.mrb[0].mxu0
    %v9516 = vadd.f32 0.0, %v9515
    %v9517 = vpop.f32.mrb[0].mxu0
    %9518 = vdwg.mxu0
    %v9519 = vadd.f32 %v8167, %v9505
    %v9520 = vadd.f32 %v8168, %v9508
    %v9521 = vadd.f32 %v8169, %v9513
    %v9522 = vadd.f32 %v8170, %v9516
    %s9523 = scalar_lea.vmem %s51, 3
    %v9524 = vld [vmem:[%s9523] sm:$0x1]
    %v9526 = vlaneseq
    %v9527 = vshrl.u32 %v9526, 7
    %v9528 = vsub.s32 0, %v9527
    %v9529 = vrot.slane %v9524, %v9528
    %v9531 = vadd.f32 %v9519, %v9529
    %v9532 = vadd.f32 %v9520, %v9529
    %v9533 = vadd.f32 %v9521, %v9529
    %v9534 = vadd.f32 %v9522, %v9529
    %s9535 = scalar_lea.vmem %s53, 3
    %v9536 = vld [vmem:[%s9535] sm:$0x1]
    %s9537 = scalar_lea.vmem %s55, 3
    %v9538 = vld [vmem:[%s9537] sm:$0x1]
    %v9539 = vsel %vm208, %v9531, 0.0
    %9540 = vadd.xlane.f32.xlu0 %v9539
    %v9541 = vpop.xlane.xlu0 %9540
    %v9542 = vsel %vm208, %v9532, 0.0
    %9543 = vadd.xlane.f32.xlu0 %v9542
    %v9544 = vpop.xlane.xlu0 %9543
    %v9545 = vsel %vm208, %v9533, 0.0
    %9546 = vadd.xlane.f32.xlu0 %v9545
    %v9547 = vpop.xlane.xlu0 %9546
    %v9548 = vsel %vm208, %v9534, 0.0
    %9549 = vadd.xlane.f32.xlu0 %v9548
    %v9550 = vpop.xlane.xlu0 %9549
    %v9551 = vmul.f32 %v9541, %v3304
    %v9552 = vmul.f32 %v9544, %v3304
    %v9553 = vmul.f32 %v9547, %v3304
    %v9554 = vmul.f32 %v9550, %v3304
    %v9555 = vsub.f32 %v9531, %v9551
    %v9556 = vsub.f32 %v9532, %v9552
    %v9557 = vsub.f32 %v9533, %v9553
    %v9558 = vsub.f32 %v9534, %v9554
    %v9559 = vmul.f32 %v9555, %v9555
    %v9560 = vmul.f32 %v9556, %v9556
    %v9561 = vmul.f32 %v9557, %v9557
    %v9562 = vmul.f32 %v9558, %v9558
    %v9563 = vsel %vm208, %v9559, 0.0
    %9564 = vadd.xlane.f32.xlu0 %v9563
    %v9565 = vpop.xlane.xlu0 %9564
    %v9566 = vsel %vm208, %v9560, 0.0
    %9567 = vadd.xlane.f32.xlu0 %v9566
    %v9568 = vpop.xlane.xlu0 %9567
    %v9569 = vsel %vm208, %v9561, 0.0
    %9570 = vadd.xlane.f32.xlu0 %v9569
    %v9571 = vpop.xlane.xlu0 %9570
    %v9572 = vsel %vm208, %v9562, 0.0
    %9573 = vadd.xlane.f32.xlu0 %v9572
    %v9574 = vpop.xlane.xlu0 %9573
    %v9575 = vmul.f32 %v9565, %v3304
    %v9576 = vmul.f32 %v9568, %v3304
    %v9577 = vmul.f32 %v9571, %v3304
    %v9578 = vmul.f32 %v9574, %v3304
    %v9579 = vadd.f32 %v9575, 1e-05
    %v9580 = vadd.f32 %v9576, 1e-05
    %v9581 = vadd.f32 %v9577, 1e-05
    %v9582 = vadd.f32 %v9578, 1e-05
    %v9583 = vrsqrt.pop %v9579
    %v9584 = vrsqrt.pop %v9580
    %v9585 = vrsqrt.pop %v9581
    %v9586 = vrsqrt.pop %v9582
    %v9587 = vmul.f32 %v9555, %v9583
    %v9588 = vmul.f32 %v9556, %v9584
    %v9589 = vmul.f32 %v9557, %v9585
    %v9590 = vmul.f32 %v9558, %v9586
    %v9592 = vlaneseq
    %v9593 = vshrl.u32 %v9592, 7
    %v9594 = vsub.s32 0, %v9593
    %v9595 = vrot.slane %v9536, %v9594
    %v9597 = vmul.f32 %v9587, %v9595
    %v9598 = vmul.f32 %v9588, %v9595
    %v9599 = vmul.f32 %v9589, %v9595
    %v9600 = vmul.f32 %v9590, %v9595
    %v9602 = vlaneseq
    %v9603 = vshrl.u32 %v9602, 7
    %v9604 = vsub.s32 0, %v9603
    %v9605 = vrot.slane %v9538, %v9604
    %v9607 = vadd.f32 %v9597, %v9605
    %v9608 = vadd.f32 %v9598, %v9605
    %v9609 = vadd.f32 %v9599, %v9605
    %v9610 = vadd.f32 %v9600, %v9605
    %s9611 = scalar_lea.vmem %s57, 48
    %v9612 = vld [vmem:[%s9611] sm:$0xf]
    %v9613 = vld [vmem:[%s9611 + $0x4] sm:$0xf]
    %v9614 = vld [vmem:[%s9611 + $0x8] sm:$0xf]
    %v9615 = vld [vmem:[%s9611 + $0xc] sm:$0xf]
    %v9616 = vpack.c.bf16 %v9608, %v9607
    %v9617 = vpack.c.bf16 %v9610, %v9609
    %s9618 = scalar_lea.vmem %s59, 3
    %v9619 = vld [vmem:[%s9618] sm:$0x1]
    %v9621 = vlaneseq
    %v9622 = vshrl.u32 %v9621, 7
    %v9623 = vsub.s32 0, %v9622
    %v9624 = vrot.slane %v9619, %v9623
    %v9630 = vunpack.c.l.b16 %v9612
    %v9631 = vunpack.c.l.b16 %v9613
    %v9632 = vunpack.c.l.b16 %v9614
    %v9633 = vunpack.c.l.b16 %v9615
    %v9634 = vpack.c.b16 %v9631, %v9630
    %v9635 = vpack.c.b16 %v9633, %v9632
    %v9639 = vsel %vm208, %v9616, 0
    %v9642 = vsel %vm208, %v9617, 0
    %9644 = vmatprep.subr.bf16.mxu0 0
    %9645 = vmatpush1.bf16.msra.mxu0 %v9634
    %9646 = vmatprep.subr.bf16.mxu0 0
    %9647 = vmatpush1.bf16.msra.mxu0 %v9635
    %9648 = vmatprep.subr.bf16.mxu0 0
    %9649 = vmatpush1.bf16.msra.mxu0 0
    %9650 = vmatprep.subr.bf16.mxu0 0
    %9651 = vmatpush1.bf16.msra.mxu0 0
    %9652 = vmatprep.subr.bf16.mxu0 0
    %9653 = vmatpush1.bf16.msra.mxu0 0
    %9654 = vmatprep.subr.bf16.mxu0 0
    %9655 = vmatpush1.bf16.msra.mxu0 0
    %9656 = vmatprep.subr.bf16.mxu0 0
    %9657 = vmatpush1.bf16.msra.mxu0 0
    %9658 = vmatprep.subr.bf16.mxu0 0
    %9659 = vmatpush1.bf16.msra.mxu0 0
    %9660 = vmatprep.subr.bf16.mxu0 0
    %9661 = vmatpush1.bf16.msra.mxu0 0
    %9662 = vmatprep.subr.bf16.mxu0 0
    %9663 = vmatpush1.bf16.msra.mxu0 0
    %9664 = vmatprep.subr.bf16.mxu0 0
    %9665 = vmatpush1.bf16.msra.mxu0 0
    %9666 = vmatprep.subr.bf16.mxu0 0
    %9667 = vmatpush1.bf16.msra.mxu0 0
    %9668 = vmatprep.subr.bf16.mxu0 0
    %9669 = vmatpush1.bf16.msra.mxu0 0
    %9670 = vmatprep.subr.bf16.mxu0 0
    %9671 = vmatpush1.bf16.msra.mxu0 0
    %9672 = vmatprep.subr.bf16.mxu0 0
    %9673 = vmatpush1.bf16.msra.mxu0 0
    %9674 = vmatprep.subr.bf16.mxu0 0
    %9675 = vmatpush1.bf16.msra.mxu0 0
    %9676 = vmatprep.mubr.bf16.mxu0 0
    %9677 = vmatmul.mubr.bf16.gmra.mrb[0].mxu0 %v9639
    %v9678 = vpop.f32.mrb[0].mxu0
    %v9679 = vadd.f32 %v9624, %v9678
    %v9680 = vpop.f32.mrb[0].mxu0
    %v9681 = vpop.f32.mrb[0].mxu0
    %v9682 = vadd.f32 %v9624, %v9681
    %v9683 = vpop.f32.mrb[0].mxu0
    %9684 = vmatprep.mubr.bf16.mxu0 0
    %9685 = vmatmul.mubr.bf16.gmra.mrb[0].mxu0 %v9642
    %v9686 = vpop.f32.mrb[0].mxu0
    %v9687 = vadd.f32 %v9624, %v9686
    %v9688 = vpop.f32.mrb[0].mxu0
    %v9689 = vpop.f32.mrb[0].mxu0
    %v9690 = vadd.f32 %v9624, %v9689
    %v9691 = vpop.f32.mrb[0].mxu0
    %9692 = vdwg.mxu0
    %v9693 = vmax.f32 %v9679, 0.0
    %v9694 = vmax.f32 %v9682, 0.0
    %v9695 = vmax.f32 %v9687, 0.0
    %v9696 = vmax.f32 %v9690, 0.0
    %s9697 = scalar_lea.vmem %s61, 96
    %v9698 = vld [vmem:[%s9697] sm:$0xf]
    %v9699 = vld [vmem:[%s9697 + $0x4] sm:$0xf]
    %v9700 = vld [vmem:[%s9697 + $0x8] sm:$0xf]
    %v9701 = vld [vmem:[%s9697 + $0xc] sm:$0xf]
    %v9702 = vld [vmem:[%s9697 + $0x10] sm:$0xf]
    %v9703 = vld [vmem:[%s9697 + $0x14] sm:$0xf]
    %v9704 = vld [vmem:[%s9697 + $0x18] sm:$0xf]
    %v9705 = vld [vmem:[%s9697 + $0x1c] sm:$0xf]
    %v9706 = vpack.c.bf16 %v9694, %v9693
    %v9707 = vpack.c.bf16 %v9696, %v9695
    %v9716 = vunpack.c.l.b16 %v9698
    %v9717 = vunpack.c.l.b16 %v9699
    %v9718 = vunpack.c.l.b16 %v9700
    %v9719 = vunpack.c.l.b16 %v9701
    %v9720 = vunpack.c.l.b16 %v9702
    %v9721 = vunpack.c.l.b16 %v9703
    %v9722 = vunpack.c.l.b16 %v9704
    %v9723 = vunpack.c.l.b16 %v9705
    %v9724 = vpack.c.b16 %v9717, %v9716
    %v9725 = vpack.c.b16 %v9719, %v9718
    %v9726 = vpack.c.b16 %v9721, %v9720
    %v9727 = vpack.c.b16 %v9723, %v9722
    %v9733 = vsel %vm2861, %v9706, 0
    %v9736 = vsel %vm2861, %v9707, 0
    %9738 = vmatprep.subr.bf16.mxu0 0
    %9739 = vmatpush1.bf16.msra.mxu0 %v9724
    %9740 = vmatprep.subr.bf16.mxu0 0
    %9741 = vmatpush1.bf16.msra.mxu0 %v9725
    %9742 = vmatprep.subr.bf16.mxu0 0
    %9743 = vmatpush1.bf16.msra.mxu0 %v9726
    %9744 = vmatprep.subr.bf16.mxu0 0
    %9745 = vmatpush1.bf16.msra.mxu0 %v9727
    %9746 = vmatprep.subr.bf16.mxu0 0
    %9747 = vmatpush1.bf16.msra.mxu0 0
    %9748 = vmatprep.subr.bf16.mxu0 0
    %9749 = vmatpush1.bf16.msra.mxu0 0
    %9750 = vmatprep.subr.bf16.mxu0 0
    %9751 = vmatpush1.bf16.msra.mxu0 0
    %9752 = vmatprep.subr.bf16.mxu0 0
    %9753 = vmatpush1.bf16.msra.mxu0 0
    %9754 = vmatprep.subr.bf16.mxu0 0
    %9755 = vmatpush1.bf16.msra.mxu0 0
    %9756 = vmatprep.subr.bf16.mxu0 0
    %9757 = vmatpush1.bf16.msra.mxu0 0
    %9758 = vmatprep.subr.bf16.mxu0 0
    %9759 = vmatpush1.bf16.msra.mxu0 0
    %9760 = vmatprep.subr.bf16.mxu0 0
    %9761 = vmatpush1.bf16.msra.mxu0 0
    %9762 = vmatprep.subr.bf16.mxu0 0
    %9763 = vmatpush1.bf16.msra.mxu0 0
    %9764 = vmatprep.subr.bf16.mxu0 0
    %9765 = vmatpush1.bf16.msra.mxu0 0
    %9766 = vmatprep.subr.bf16.mxu0 0
    %9767 = vmatpush1.bf16.msra.mxu0 0
    %9768 = vmatprep.subr.bf16.mxu0 0
    %9769 = vmatpush1.bf16.msra.mxu0 0
    %9770 = vmatprep.mubr.bf16.mxu0 0
    %9771 = vmatmul.mubr.bf16.gmra.mrb[0].mxu0 %v9733
    %v9772 = vpop.f32.mrb[0].mxu0
    %v9773 = vadd.f32 0.0, %v9772
    %v9774 = vpop.f32.mrb[0].mxu0
    %v9775 = vpop.f32.mrb[0].mxu0
    %v9776 = vadd.f32 0.0, %v9775
    %v9777 = vpop.f32.mrb[0].mxu0
    %9778 = vmatprep.mubr.bf16.mxu0 0
    %9779 = vmatmul.mubr.bf16.gmra.mrb[0].mxu0 %v9736
    %v9780 = vpop.f32.mrb[0].mxu0
    %v9781 = vadd.f32 0.0, %v9780
    %v9782 = vpop.f32.mrb[0].mxu0
    %v9783 = vpop.f32.mrb[0].mxu0
    %v9784 = vadd.f32 0.0, %v9783
    %v9785 = vpop.f32.mrb[0].mxu0
    %9786 = vdwg.mxu0
    %v9787 = vadd.f32 %v9531, %v9773
    %v9788 = vadd.f32 %v9532, %v9776
    %v9789 = vadd.f32 %v9533, %v9781
    %v9790 = vadd.f32 %v9534, %v9784
    %s9791 = scalar_lea.vmem %s63, 3
    %v9792 = vld [vmem:[%s9791] sm:$0x1]
    %v9794 = vlaneseq
    %v9795 = vshrl.u32 %v9794, 7
    %v9796 = vsub.s32 0, %v9795
    %v9797 = vrot.slane %v9792, %v9796
    %v9799 = vadd.f32 %v9787, %v9797
    %v9800 = vadd.f32 %v9788, %v9797
    %v9801 = vadd.f32 %v9789, %v9797
    %v9802 = vadd.f32 %v9790, %v9797
    %v9803 = vld [vmem:[%s65] sm:$0xf]
    %v9804 = vld [vmem:[%s65 + $0x4] sm:$0xf]
    %v9805 = vld [vmem:[%s65 + $0x8] sm:$0xf]
    %v9806 = vld [vmem:[%s65 + $0xc] sm:$0xf]
    %v9807 = vpack.c.bf16 %v9800, %v9799
    %v9808 = vpack.c.bf16 %v9802, %v9801
    %v9809 = vld [vmem:[%s67] sm:$0x1]
    %v9811 = vlaneseq
    %v9812 = vshrl.u32 %v9811, 7
    %v9813 = vsub.s32 0, %v9812
    %v9814 = vrot.slane %v9809, %v9813
    %v9820 = vunpack.c.l.b16 %v9803
    %v9821 = vunpack.c.l.b16 %v9804
    %v9822 = vunpack.c.l.b16 %v9805
    %v9823 = vunpack.c.l.b16 %v9806
    %v9824 = vpack.c.b16 %v9821, %v9820
    %v9825 = vpack.c.b16 %v9823, %v9822
    %v9829 = vsel %vm208, %v9807, 0
    %v9832 = vsel %vm208, %v9808, 0
    %9834 = vmatprep.subr.bf16.mxu0 0
    %9835 = vmatpush1.bf16.msra.mxu0 %v9824
    %9836 = vmatprep.subr.bf16.mxu0 0
    %9837 = vmatpush1.bf16.msra.mxu0 %v9825
    %9838 = vmatprep.subr.bf16.mxu0 0
    %9839 = vmatpush1.bf16.msra.mxu0 0
    %9840 = vmatprep.subr.bf16.mxu0 0
    %9841 = vmatpush1.bf16.msra.mxu0 0
    %9842 = vmatprep.subr.bf16.mxu0 0
    %9843 = vmatpush1.bf16.msra.mxu0 0
    %9844 = vmatprep.subr.bf16.mxu0 0
    %9845 = vmatpush1.bf16.msra.mxu0 0
    %9846 = vmatprep.subr.bf16.mxu0 0
    %9847 = vmatpush1.bf16.msra.mxu0 0
    %9848 = vmatprep.subr.bf16.mxu0 0
    %9849 = vmatpush1.bf16.msra.mxu0 0
    %9850 = vmatprep.subr.bf16.mxu0 0
    %9851 = vmatpush1.bf16.msra.mxu0 0
    %9852 = vmatprep.subr.bf16.mxu0 0
    %9853 = vmatpush1.bf16.msra.mxu0 0
    %9854 = vmatprep.subr.bf16.mxu0 0
    %9855 = vmatpush1.bf16.msra.mxu0 0
    %9856 = vmatprep.subr.bf16.mxu0 0
    %9857 = vmatpush1.bf16.msra.mxu0 0
    %9858 = vmatprep.subr.bf16.mxu0 0
    %9859 = vmatpush1.bf16.msra.mxu0 0
    %9860 = vmatprep.subr.bf16.mxu0 0
    %9861 = vmatpush1.bf16.msra.mxu0 0
    %9862 = vmatprep.subr.bf16.mxu0 0
    %9863 = vmatpush1.bf16.msra.mxu0 0
    %9864 = vmatprep.subr.bf16.mxu0 0
    %9865 = vmatpush1.bf16.msra.mxu0 0
    %9866 = vmatprep.mubr.bf16.mxu0 0
    %9867 = vmatmul.mubr.bf16.gmra.mrb[0].mxu0 %v9829
    %v9868 = vpop.f32.mrb[0].mxu0
    %v9869 = vadd.f32 %v9814, %v9868
    %v9870 = vpop.f32.mrb[0].mxu0
    %v9871 = vpop.f32.mrb[0].mxu0
    %v9872 = vadd.f32 %v9814, %v9871
    %v9873 = vpop.f32.mrb[0].mxu0
    %9874 = vmatprep.mubr.bf16.mxu0 0
    %9875 = vmatmul.mubr.bf16.gmra.mrb[0].mxu0 %v9832
    %v9876 = vpop.f32.mrb[0].mxu0
    %v9877 = vadd.f32 %v9814, %v9876
    %v9878 = vpop.f32.mrb[0].mxu0
    %v9879 = vpop.f32.mrb[0].mxu0
    %v9880 = vadd.f32 %v9814, %v9879
    %v9881 = vpop.f32.mrb[0].mxu0
    %9882 = vdwg.mxu0
    %9883 = vst [vmem:[#allocation2] sm:$0xff] %v9869
    %9884 = vst [vmem:[#allocation2 + $0x8] sm:$0xff] %v9872
    %9885 = vst [vmem:[#allocation2 + $0x10] sm:$0xff] %v9877
    %9886 = vst [vmem:[#allocation2 + $0x18] sm:$0xff] %v9880
    // Predicated region
    $region138: #{tpu_custom_call.1} parent=1 // pred_check
      _
    $region139: #{tpu_custom_call.1} parent=1 // pred_check_branch
      %9888 = sbr.rel (0) target = $region141
    $region140: #{tpu_custom_call.1} parent=1 // pred_region
      %s9890 = ssub.s32 512, 512
      %9891 = vsyncadd [#allocation3], %s9890
      %s9892 = sshll.u32 [#allocation2], 4
      %s9893 = int_to_ptr.vmem [resolvable:$true] %s9892
      %9898 = dma.vmem_to_hbm [thread:$0]  %s9893, 512, %s69, [#allocation3], 128, 128, 8
    $region141: #{tpu_custom_call.1} parent=1 // pred_fallthru
      _
    // Predicated region
    $region142: #{tpu_custom_call.1} parent=1 // pred_check
      _
    $region143: #{tpu_custom_call.1} parent=1 // pred_check_branch
      %9900 = sbr.rel (0) target = $region145
    $region144: #{tpu_custom_call.1} parent=1 // pred_region
      %9901 = dma.done [#allocation3], 512
    $region145: #{tpu_custom_call.1} parent=1 // pred_fallthru
      _
    %9902 = vsyncpa [#allocation3], 1

</llo_original>
